<compile_context>
chip_gen: v5e
topology: v5e:2x2
jax: 0.10.0
libtpu: 0.0.40
codegen_flags: <defaults>
</compile_context>

<pallas_src>
import functools

import jax
import jax.numpy as jnp
from jax.experimental import pallas as pl
from jax.experimental.pallas import tpu as pltpu

BN_EPS = 1e-5
_VMEM_LIMIT = 32 * 1024 * 1024     # explicit scoped-VMEM budget (use is <1 MiB)

# (kernel_size, stride, padding) per layer, as in the PyTorch module.
_DBG_CFG = {
    "d1": ((9, 5), (9, 1), (0, 2)),
    "d2": ((4, 8), (2, 2), (1, 3)),
    "d3": ((4, 8), (2, 2), (1, 3)),
    "d4": ((3, 9), (1, 1), (1, 4)),
}


# ----------------------------------------------------------------------------
# Pallas kernels — one fused kernel per layer, single grid step.
# ----------------------------------------------------------------------------
def dbg_fused_kernel(p_ref, w_ref, b_ref, o_ref, *, co, inv_n):
    """Fused DBG layer.

    p_ref: (nph, rows_pp, Kp) bf16  sub-pixel-phase im2col patches
    w_ref: (nph, Kp, 2*co)    bf16  per-phase fused main|gate weights
    b_ref: (1, 2*co)          f32   fused bias
    o_ref: (nph*rows_pp, co)  bf16  output rows, phase-major
    """
    nph = p_ref.shape[0]
    hgs = [jnp.dot(p_ref[p], w_ref[p], preferred_element_type=jnp.float32)
           for p in range(nph)]
    hg = hgs[0] if nph == 1 else jnp.concatenate(hgs, axis=0)
    hg = hg + b_ref[...]

    # Training-mode BatchNorm (gamma=1, beta=0), biased variance.  Two-pass
    # (centered) statistics avoid the E[x^2]-E[x]^2 cancellation issue.
    mean = jnp.sum(hg, axis=0, keepdims=True) * inv_n
    ctr = hg - mean
    var = jnp.sum(ctr * ctr, axis=0, keepdims=True) * inv_n
    xn = ctr * jax.lax.rsqrt(var + BN_EPS)

    h = xn[:, :co]
    g = xn[:, co:]
    # Exact sigmoid (no approximate reciprocal) to track torch.sigmoid.
    o_ref[...] = (h / (1.0 + jnp.exp(-g))).astype(o_ref.dtype)


def convt_sample_kernel(p_ref, w_ref, b_ref, eps_ref, o_ref):
    """d4 ConvTranspose2d GEMM fused with z = mean + exp(log_var) * eps.

    The source module literally uses exp(log_var) (not exp(0.5*log_var)).
    """
    y = jnp.dot(p_ref[0], w_ref[0], preferred_element_type=jnp.float32)
    y = y + b_ref[...]
    mean = y[:, 0:1]
    log_var = y[:, 1:2]
    o_ref[...] = mean + jnp.exp(log_var) * eps_ref[...]


# ----------------------------------------------------------------------------
# Sub-pixel (output-phase) decomposition of ConvTranspose2d.
# out[b, oh, ow, co] = sum_{ih,iw,ci,kh,kw : oh=ih*sh+kh-ph, ow=iw*sw+kw-pw}
#                      x[b,ih,iw,ci] * W[ci,co,kh,kw]
# For a given output phase (oh % sh, ow % sw) only taps with
# kh % sh == (oh+ph) % sh (resp. kw) contribute -> K shrinks by sh*sw.
# ----------------------------------------------------------------------------
def _phase_taps(K, s, p):
    """taps[r] = kernel taps contributing to outputs with out_index % s == r."""
    return [[k for k in range(K) if k % s == (r + p) % s] for r in range(s)]


def _phase_geometry(H, KH, sh, ph):
    OH = (H - 1) * sh - 2 * ph + KH
    assert KH % sh == 0 and OH % sh == 0, "phase decomposition needs K % s == 0"
    taps = _phase_taps(KH, sh, ph)
    # input index = output block index + off  (exact division by construction)
    offs = [[(r + ph - k) // sh for k in taps[r]] for r in range(sh)]
    flat = [d for row in offs for d in row]
    OHs = OH // sh
    pad_lo = max(0, -min(flat))
    pad_hi = max(0, OHs - 1 + max(flat) - (H - 1))
    return OH, OHs, offs, pad_lo, pad_hi


def conv_transpose_phase_patches(x, KH, KW, sh, sw, ph, pw):
    """x: (B, H, W, CI) NHWC -> P_all (sh*sw, B*OHs*OWs, nkh*nkw*CI), OH, OW.

    Phase p = r0*sw + c0 holds output pixels with (oh % sh, ow % sw) == (r0, c0).
    """
    B, H, W, CI = x.shape
    OH, OHs, offs_h, pt, pb = _phase_geometry(H, KH, sh, ph)
    OW, OWs, offs_w, pad_l, pad_r = _phase_geometry(W, KW, sw, pw)
    xp = jnp.pad(x, ((0, 0), (pt, pb), (pad_l, pad_r), (0, 0)))
    phases = []
    for r0 in range(sh):
        for c0 in range(sw):
            cols = []
            for dh in offs_h[r0]:
                for dw in offs_w[c0]:
                    cols.append(xp[:, dh + pt:dh + pt + OHs,
                                   dw + pad_l:dw + pad_l + OWs, :])
            pp = jnp.stack(cols, axis=3)            # (B, OHs, OWs, ntaps, CI)
            phases.append(pp.reshape(B * OHs * OWs, -1))
    return jnp.stack(phases, axis=0), OH, OW


def ct_phase_weight(w, KH, KW, sh, sw, ph, pw):
    """PyTorch ConvTranspose2d weight (CI, CO, KH, KW) -> per-phase GEMM
    weights (sh*sw, nkh*nkw*CI, CO), matching conv_transpose_phase_patches."""
    CI, CO, KH_, KW_ = w.shape
    assert (KH_, KW_) == (KH, KW)
    taps_h = _phase_taps(KH, sh, ph)
    taps_w = _phase_taps(KW, sw, pw)
    phases = []
    for r0 in range(sh):
        for c0 in range(sw):
            wp = w[:, :, taps_h[r0], :][:, :, :, taps_w[c0]]  # (CI,CO,nkh,nkw)
            wp = wp.transpose(2, 3, 0, 1).reshape(-1, CO)     # (nkh*nkw*CI,CO)
            phases.append(wp)
    return jnp.stack(phases, axis=0)


def prepare_params(raw):
    """Hoisted, once-per-model weight prep: per-phase GEMM weights, fused
    main|gate on the lane axis, bf16 MXU operands."""
    prep = {}
    for name in ("d1", "d2", "d3"):
        (KH, KW), (sh, sw), (ph, pw) = _DBG_CFG[name]
        q = raw[name]
        wm = ct_phase_weight(q["w"], KH, KW, sh, sw, ph, pw)
        wg = ct_phase_weight(q["wg"], KH, KW, sh, sw, ph, pw)
        co = wm.shape[-1]
        prep[name] = dict(
            w_cat=jnp.concatenate([wm, wg], axis=-1).astype(jnp.bfloat16),
            b_cat=jnp.concatenate([q["b"], q["bg"]])
                     .reshape(1, 2 * co).astype(jnp.float32))
    (KH, KW), (sh, sw), (ph, pw) = _DBG_CFG["d4"]
    prep["d4"] = dict(
        w=ct_phase_weight(raw["d4"]["w"], KH, KW, sh, sw, ph, pw)
             .astype(jnp.bfloat16),
        b=raw["d4"]["b"].reshape(1, 2).astype(jnp.float32))
    return prep


# ----------------------------------------------------------------------------
# Layers
# ----------------------------------------------------------------------------
def dbg_layer(x_nhwc, lp, kernel_size, stride, padding):
    B = x_nhwc.shape[0]
    (KH, KW), (sh, sw), (ph, pw) = kernel_size, stride, padding
    P_all, OH, OW = conv_transpose_phase_patches(
        x_nhwc.astype(jnp.bfloat16), KH, KW, sh, sw, ph, pw)
    nph, rows_pp, Kp = P_all.shape
    w_cat, b_cat = lp["w_cat"], lp["b_cat"]
    CO2 = w_cat.shape[-1]
    CO = CO2 // 2
    rows = nph * rows_pp                      # == B*OH*OW, no padded rows

    out = pl.pallas_call(
        functools.partial(dbg_fused_kernel, co=CO, inv_n=1.0 / rows),
        out_shape=jax.ShapeDtypeStruct((rows, CO), jnp.bfloat16),
        grid_spec=pltpu.PrefetchScalarGridSpec(
            num_scalar_prefetch=0, grid=(1,),
            in_specs=[pl.BlockSpec((nph, rows_pp, Kp), lambda i: (0, 0, 0)),
                      pl.BlockSpec((nph, Kp, CO2), lambda i: (0, 0, 0)),
                      pl.BlockSpec((1, CO2), lambda i: (0, 0))],
            out_specs=pl.BlockSpec((rows, CO), lambda i: (0, 0))),
        compiler_params=pltpu.CompilerParams(
            dimension_semantics=("arbitrary",),
            vmem_limit_bytes=_VMEM_LIMIT),
    )(P_all, w_cat, b_cat)

    # Phase-major rows -> (B, OH, OW, CO); pure host-side reshape/transpose.
    OHs, OWs = OH // sh, OW // sw
    out = out.reshape(sh, sw, B, OHs, OWs, CO)
    return out.transpose(2, 3, 0, 4, 1, 5).reshape(B, OH, OW, CO)


def convt_sample_layer(x_nhwc, lp, kernel_size, stride, padding, eps_key):
    B = x_nhwc.shape[0]
    (KH, KW), (sh, sw), (ph, pw) = kernel_size, stride, padding
    P_all, OH, OW = conv_transpose_phase_patches(
        x_nhwc.astype(jnp.bfloat16), KH, KW, sh, sw, ph, pw)
    nph, rows, Kp = P_all.shape               # stride (1,1) -> nph == 1
    eps = jax.random.normal(eps_key, (rows, 1), jnp.float32)

    out = pl.pallas_call(
        convt_sample_kernel,
        out_shape=jax.ShapeDtypeStruct((rows, 1), jnp.float32),
        grid_spec=pltpu.PrefetchScalarGridSpec(
            num_scalar_prefetch=0, grid=(1,),
            in_specs=[pl.BlockSpec((nph, rows, Kp), lambda i: (0, 0, 0)),
                      pl.BlockSpec((nph, Kp, 2), lambda i: (0, 0, 0)),
                      pl.BlockSpec((1, 2), lambda i: (0, 0)),
                      pl.BlockSpec((rows, 1), lambda i: (0, 0))],
            out_specs=pl.BlockSpec((rows, 1), lambda i: (0, 0))),
        compiler_params=pltpu.CompilerParams(
            dimension_semantics=("arbitrary",),
            vmem_limit_bytes=_VMEM_LIMIT),
    )(P_all, lp["w"], lp["b"], eps)

    return out.reshape(B, OH, OW, 1)


# ----------------------------------------------------------------------------
# UttrDecoder forward
# ----------------------------------------------------------------------------
def init_params(key):
    """Random parameters in PyTorch ConvTranspose2d layout (CI, CO, KH, KW)."""
    def conv_w(k, ci, co, kh, kw):
        return 0.1 * jax.random.normal(k, (ci, co, kh, kw), jnp.float32)

    ks = jax.random.split(key, 14)
    p = {}
    p["d1"] = dict(w=conv_w(ks[0], 8, 16, 9, 5),
                   b=0.01 * jax.random.normal(ks[1], (16,)),
                   wg=conv_w(ks[2], 8, 16, 9, 5),
                   bg=0.01 * jax.random.normal(ks[3], (16,)))
    p["d2"] = dict(w=conv_w(ks[4], 16, 16, 4, 8),
                   b=0.01 * jax.random.normal(ks[5], (16,)),
                   wg=conv_w(ks[6], 16, 16, 4, 8),
                   bg=0.01 * jax.random.normal(ks[7], (16,)))
    p["d3"] = dict(w=conv_w(ks[8], 16, 8, 4, 8),
                   b=0.01 * jax.random.normal(ks[9], (8,)),
                   wg=conv_w(ks[10], 16, 8, 4, 8),
                   bg=0.01 * jax.random.normal(ks[11], (8,)))
    p["d4"] = dict(w=conv_w(ks[12], 8, 2, 3, 9),
                   b=0.01 * jax.random.normal(ks[13], (2,)))
    return p


def uttr_decoder_forward(prep, z, c, eps_key):
    # NCHW -> NHWC once at the module boundary; everything stays NHWC inside.
    z_n = jnp.transpose(z, (0, 2, 3, 1))
    c_n = jnp.transpose(c, (0, 2, 3, 1))

    # x, _ = torch.broadcast_tensors(z, c)
    x = jnp.broadcast_to(z_n, jnp.broadcast_shapes(z_n.shape, c_n.shape))
    x = dbg_layer(x, prep["d1"], *_DBG_CFG["d1"])

    cc = jnp.concatenate((c_n, c_n), axis=-1)          # torch.cat((c, c), 1)
    x = jnp.broadcast_to(x, jnp.broadcast_shapes(x.shape, cc.shape))
    x = dbg_layer(x, prep["d2"], *_DBG_CFG["d2"])

    x = jnp.broadcast_to(x, jnp.broadcast_shapes(x.shape, cc.shape))
    x = dbg_layer(x, prep["d3"], *_DBG_CFG["d3"])

    x = jnp.broadcast_to(x, jnp.broadcast_shapes(x.shape, c_n.shape))
    # d4 ConvTranspose2d fused with z = mean + exp(log_var) * eps (as in the
    # torch source; note: exp(log_var), not exp(0.5*log_var)).
    out_nhwc = convt_sample_layer(x, prep["d4"], *_DBG_CFG["d4"], eps_key)
    return jnp.transpose(out_nhwc, (0, 3, 1, 2))       # back to NCHW (B,1,H,W)


if __name__ == "__main__":
    key = jax.random.PRNGKey(0)
    pkey, zkey, ckey, ekey = jax.random.split(key, 4)

    raw = init_params(pkey)
    prep = prepare_params(raw)                         # weight prep hoisted

    # z: latent (B, 8, 1, T/4); c: per-utterance code (B, 8, 1, 1) that
    # broadcasts against z / intermediate activations.
    z = jax.random.normal(zkey, (2, 8, 1, 4), jnp.float32)
    c = jax.random.normal(ckey, (2, 8, 1, 1), jnp.float32)

    fwd = jax.jit(functools.partial(uttr_decoder_forward, prep))
    out = fwd(z, c, ekey)
    jax.block_until_ready(out)
    assert out.shape == (2, 1, 36, 16), out.shape
    print("KERNEL_OK")
</pallas_src>

<mosaic_0001>
module attributes {stable_mosaic.version = 11 : i64} {
  func.func @dbg_fused_kernel(%arg0: i32, %arg1: memref<9x8x40xbf16, #tpu.memory_space<vmem>>, %arg2: memref<9x40x32xbf16, #tpu.memory_space<vmem>>, %arg3: memref<1x32xf32, #tpu.memory_space<vmem>>, %arg4: memref<72x16xbf16, #tpu.memory_space<vmem>>) attributes {dimension_semantics = [#tpu.dimension_semantics<arbitrary>], iteration_bounds = array<i64: 1>, scalar_prefetch = 0 : i64, scratch_operands = 0 : i64, tpu.core_type = #tpu.core_type<tc>, window_params = [{pipeline_mode = #tpu.pipeline_mode<synchronous>, transform_indices = @transform_0, window_bounds = array<i64: 9, 8, 40>}, {pipeline_mode = #tpu.pipeline_mode<synchronous>, transform_indices = @transform_1, window_bounds = array<i64: 9, 40, 32>}, {pipeline_mode = #tpu.pipeline_mode<synchronous>, transform_indices = @transform_2, window_bounds = array<i64: 1, 32>}, {pipeline_mode = #tpu.pipeline_mode<synchronous>, transform_indices = @transform_3, window_bounds = array<i64: 72, 16>}]} {
    %c0 = arith.constant 0 : index
    %c0_0 = arith.constant 0 : index
    %c0_1 = arith.constant 0 : index
    %0 = vector.load %arg1[%c0, %c0_0, %c0_1] : memref<9x8x40xbf16, #tpu.memory_space<vmem>>, vector<1x8x40xbf16>
    %1 = vector.shape_cast %0 : vector<1x8x40xbf16> to vector<8x40xbf16>
    %c0_2 = arith.constant 0 : index
    %c0_3 = arith.constant 0 : index
    %c0_4 = arith.constant 0 : index
    %2 = vector.load %arg2[%c0_2, %c0_3, %c0_4] : memref<9x40x32xbf16, #tpu.memory_space<vmem>>, vector<1x40x32xbf16>
    %3 = vector.shape_cast %2 : vector<1x40x32xbf16> to vector<40x32xbf16>
    %cst = arith.constant dense<0.000000e+00> : vector<8x32xf32>
    %4 = tpu.matmul %1, %3, %cst {dimension_numbers = #tpu.dot_dimension_numbers<[1], [0], [0], [1], [0, 0, 1, 1], [], []>} : vector<8x40xbf16>, vector<40x32xbf16>, vector<8x32xf32> -> vector<8x32xf32>
    %c1 = arith.constant 1 : index
    %c0_5 = arith.constant 0 : index
    %c0_6 = arith.constant 0 : index
    %5 = vector.load %arg1[%c1, %c0_5, %c0_6] : memref<9x8x40xbf16, #tpu.memory_space<vmem>>, vector<1x8x40xbf16>
    %6 = vector.shape_cast %5 : vector<1x8x40xbf16> to vector<8x40xbf16>
    %c1_7 = arith.constant 1 : index
    %c0_8 = arith.constant 0 : index
    %c0_9 = arith.constant 0 : index
    %7 = vector.load %arg2[%c1_7, %c0_8, %c0_9] : memref<9x40x32xbf16, #tpu.memory_space<vmem>>, vector<1x40x32xbf16>
    %8 = vector.shape_cast %7 : vector<1x40x32xbf16> to vector<40x32xbf16>
    %cst_10 = arith.constant dense<0.000000e+00> : vector<8x32xf32>
    %9 = tpu.matmul %6, %8, %cst_10 {dimension_numbers = #tpu.dot_dimension_numbers<[1], [0], [0], [1], [0, 0, 1, 1], [], []>} : vector<8x40xbf16>, vector<40x32xbf16>, vector<8x32xf32> -> vector<8x32xf32>
    %c2 = arith.constant 2 : index
    %c0_11 = arith.constant 0 : index
    %c0_12 = arith.constant 0 : index
    %10 = vector.load %arg1[%c2, %c0_11, %c0_12] : memref<9x8x40xbf16, #tpu.memory_space<vmem>>, vector<1x8x40xbf16>
    %11 = vector.shape_cast %10 : vector<1x8x40xbf16> to vector<8x40xbf16>
    %c2_13 = arith.constant 2 : index
    %c0_14 = arith.constant 0 : index
    %c0_15 = arith.constant 0 : index
    %12 = vector.load %arg2[%c2_13, %c0_14, %c0_15] : memref<9x40x32xbf16, #tpu.memory_space<vmem>>, vector<1x40x32xbf16>
    %13 = vector.shape_cast %12 : vector<1x40x32xbf16> to vector<40x32xbf16>
    %cst_16 = arith.constant dense<0.000000e+00> : vector<8x32xf32>
    %14 = tpu.matmul %11, %13, %cst_16 {dimension_numbers = #tpu.dot_dimension_numbers<[1], [0], [0], [1], [0, 0, 1, 1], [], []>} : vector<8x40xbf16>, vector<40x32xbf16>, vector<8x32xf32> -> vector<8x32xf32>
    %c3 = arith.constant 3 : index
    %c0_17 = arith.constant 0 : index
    %c0_18 = arith.constant 0 : index
    %15 = vector.load %arg1[%c3, %c0_17, %c0_18] : memref<9x8x40xbf16, #tpu.memory_space<vmem>>, vector<1x8x40xbf16>
    %16 = vector.shape_cast %15 : vector<1x8x40xbf16> to vector<8x40xbf16>
    %c3_19 = arith.constant 3 : index
    %c0_20 = arith.constant 0 : index
    %c0_21 = arith.constant 0 : index
    %17 = vector.load %arg2[%c3_19, %c0_20, %c0_21] : memref<9x40x32xbf16, #tpu.memory_space<vmem>>, vector<1x40x32xbf16>
    %18 = vector.shape_cast %17 : vector<1x40x32xbf16> to vector<40x32xbf16>
    %cst_22 = arith.constant dense<0.000000e+00> : vector<8x32xf32>
    %19 = tpu.matmul %16, %18, %cst_22 {dimension_numbers = #tpu.dot_dimension_numbers<[1], [0], [0], [1], [0, 0, 1, 1], [], []>} : vector<8x40xbf16>, vector<40x32xbf16>, vector<8x32xf32> -> vector<8x32xf32>
    %c4 = arith.constant 4 : index
    %c0_23 = arith.constant 0 : index
    %c0_24 = arith.constant 0 : index
    %20 = vector.load %arg1[%c4, %c0_23, %c0_24] : memref<9x8x40xbf16, #tpu.memory_space<vmem>>, vector<1x8x40xbf16>
    %21 = vector.shape_cast %20 : vector<1x8x40xbf16> to vector<8x40xbf16>
    %c4_25 = arith.constant 4 : index
    %c0_26 = arith.constant 0 : index
    %c0_27 = arith.constant 0 : index
    %22 = vector.load %arg2[%c4_25, %c0_26, %c0_27] : memref<9x40x32xbf16, #tpu.memory_space<vmem>>, vector<1x40x32xbf16>
    %23 = vector.shape_cast %22 : vector<1x40x32xbf16> to vector<40x32xbf16>
    %cst_28 = arith.constant dense<0.000000e+00> : vector<8x32xf32>
    %24 = tpu.matmul %21, %23, %cst_28 {dimension_numbers = #tpu.dot_dimension_numbers<[1], [0], [0], [1], [0, 0, 1, 1], [], []>} : vector<8x40xbf16>, vector<40x32xbf16>, vector<8x32xf32> -> vector<8x32xf32>
    %c5 = arith.constant 5 : index
    %c0_29 = arith.constant 0 : index
    %c0_30 = arith.constant 0 : index
    %25 = vector.load %arg1[%c5, %c0_29, %c0_30] : memref<9x8x40xbf16, #tpu.memory_space<vmem>>, vector<1x8x40xbf16>
    %26 = vector.shape_cast %25 : vector<1x8x40xbf16> to vector<8x40xbf16>
    %c5_31 = arith.constant 5 : index
    %c0_32 = arith.constant 0 : index
    %c0_33 = arith.constant 0 : index
    %27 = vector.load %arg2[%c5_31, %c0_32, %c0_33] : memref<9x40x32xbf16, #tpu.memory_space<vmem>>, vector<1x40x32xbf16>
    %28 = vector.shape_cast %27 : vector<1x40x32xbf16> to vector<40x32xbf16>
    %cst_34 = arith.constant dense<0.000000e+00> : vector<8x32xf32>
    %29 = tpu.matmul %26, %28, %cst_34 {dimension_numbers = #tpu.dot_dimension_numbers<[1], [0], [0], [1], [0, 0, 1, 1], [], []>} : vector<8x40xbf16>, vector<40x32xbf16>, vector<8x32xf32> -> vector<8x32xf32>
    %c6 = arith.constant 6 : index
    %c0_35 = arith.constant 0 : index
    %c0_36 = arith.constant 0 : index
    %30 = vector.load %arg1[%c6, %c0_35, %c0_36] : memref<9x8x40xbf16, #tpu.memory_space<vmem>>, vector<1x8x40xbf16>
    %31 = vector.shape_cast %30 : vector<1x8x40xbf16> to vector<8x40xbf16>
    %c6_37 = arith.constant 6 : index
    %c0_38 = arith.constant 0 : index
    %c0_39 = arith.constant 0 : index
    %32 = vector.load %arg2[%c6_37, %c0_38, %c0_39] : memref<9x40x32xbf16, #tpu.memory_space<vmem>>, vector<1x40x32xbf16>
    %33 = vector.shape_cast %32 : vector<1x40x32xbf16> to vector<40x32xbf16>
    %cst_40 = arith.constant dense<0.000000e+00> : vector<8x32xf32>
    %34 = tpu.matmul %31, %33, %cst_40 {dimension_numbers = #tpu.dot_dimension_numbers<[1], [0], [0], [1], [0, 0, 1, 1], [], []>} : vector<8x40xbf16>, vector<40x32xbf16>, vector<8x32xf32> -> vector<8x32xf32>
    %c7 = arith.constant 7 : index
    %c0_41 = arith.constant 0 : index
    %c0_42 = arith.constant 0 : index
    %35 = vector.load %arg1[%c7, %c0_41, %c0_42] : memref<9x8x40xbf16, #tpu.memory_space<vmem>>, vector<1x8x40xbf16>
    %36 = vector.shape_cast %35 : vector<1x8x40xbf16> to vector<8x40xbf16>
    %c7_43 = arith.constant 7 : index
    %c0_44 = arith.constant 0 : index
    %c0_45 = arith.constant 0 : index
    %37 = vector.load %arg2[%c7_43, %c0_44, %c0_45] : memref<9x40x32xbf16, #tpu.memory_space<vmem>>, vector<1x40x32xbf16>
    %38 = vector.shape_cast %37 : vector<1x40x32xbf16> to vector<40x32xbf16>
    %cst_46 = arith.constant dense<0.000000e+00> : vector<8x32xf32>
    %39 = tpu.matmul %36, %38, %cst_46 {dimension_numbers = #tpu.dot_dimension_numbers<[1], [0], [0], [1], [0, 0, 1, 1], [], []>} : vector<8x40xbf16>, vector<40x32xbf16>, vector<8x32xf32> -> vector<8x32xf32>
    %c8 = arith.constant 8 : index
    %c0_47 = arith.constant 0 : index
    %c0_48 = arith.constant 0 : index
    %40 = vector.load %arg1[%c8, %c0_47, %c0_48] : memref<9x8x40xbf16, #tpu.memory_space<vmem>>, vector<1x8x40xbf16>
    %41 = vector.shape_cast %40 : vector<1x8x40xbf16> to vector<8x40xbf16>
    %c8_49 = arith.constant 8 : index
    %c0_50 = arith.constant 0 : index
    %c0_51 = arith.constant 0 : index
    %42 = vector.load %arg2[%c8_49, %c0_50, %c0_51] : memref<9x40x32xbf16, #tpu.memory_space<vmem>>, vector<1x40x32xbf16>
    %43 = vector.shape_cast %42 : vector<1x40x32xbf16> to vector<40x32xbf16>
    %cst_52 = arith.constant dense<0.000000e+00> : vector<8x32xf32>
    %44 = tpu.matmul %41, %43, %cst_52 {dimension_numbers = #tpu.dot_dimension_numbers<[1], [0], [0], [1], [0, 0, 1, 1], [], []>} : vector<8x40xbf16>, vector<40x32xbf16>, vector<8x32xf32> -> vector<8x32xf32>
    %45 = tpu.concatenate %4, %9, %14, %19, %24, %29, %34, %39, %44 in 0 : vector<8x32xf32>, vector<8x32xf32>, vector<8x32xf32>, vector<8x32xf32>, vector<8x32xf32>, vector<8x32xf32>, vector<8x32xf32>, vector<8x32xf32>, vector<8x32xf32> -> vector<72x32xf32>
    %c0_53 = arith.constant 0 : index
    %c0_54 = arith.constant 0 : index
    %46 = vector.load %arg3[%c0_53, %c0_54] : memref<1x32xf32, #tpu.memory_space<vmem>>, vector<1x32xf32>
    %47 = vector.broadcast %46 : vector<1x32xf32> to vector<72x32xf32>
    %48 = arith.addf %45, %47 : vector<72x32xf32>
    %cst_55 = arith.constant dense<0.000000e+00> : vector<32xf32>
    %49 = vector.multi_reduction <add>, %48, %cst_55 [0] : vector<72x32xf32> to vector<32xf32>
    %50 = vector.shape_cast %49 : vector<32xf32> to vector<1x32xf32>
    %cst_56 = arith.constant 0.013888889 : f32
    %51 = vector.broadcast %cst_56 : f32 to vector<1x32xf32>
    %52 = arith.mulf %50, %51 : vector<1x32xf32>
    %53 = vector.broadcast %52 : vector<1x32xf32> to vector<72x32xf32>
    %54 = arith.subf %48, %53 : vector<72x32xf32>
    %55 = arith.mulf %54, %54 : vector<72x32xf32>
    %cst_57 = arith.constant dense<0.000000e+00> : vector<32xf32>
    %56 = vector.multi_reduction <add>, %55, %cst_57 [0] : vector<72x32xf32> to vector<32xf32>
    %57 = vector.shape_cast %56 : vector<32xf32> to vector<1x32xf32>
    %cst_58 = arith.constant 0.013888889 : f32
    %58 = vector.broadcast %cst_58 : f32 to vector<1x32xf32>
    %59 = arith.mulf %57, %58 : vector<1x32xf32>
    %cst_59 = arith.constant 9.99999974E-6 : f32
    %60 = vector.broadcast %cst_59 : f32 to vector<1x32xf32>
    %61 = arith.addf %59, %60 : vector<1x32xf32>
    %62 = math.rsqrt %61 : vector<1x32xf32>
    %63 = vector.broadcast %62 : vector<1x32xf32> to vector<72x32xf32>
    %64 = arith.mulf %54, %63 : vector<72x32xf32>
    %65 = vector.extract_strided_slice %64 {offsets = [0, 0], sizes = [72, 16], strides = [1, 1]} : vector<72x32xf32> to vector<72x16xf32>
    %66 = vector.extract_strided_slice %64 {offsets = [0, 16], sizes = [72, 16], strides = [1, 1]} : vector<72x32xf32> to vector<72x16xf32>
    %cst_60 = arith.constant 0.000000e+00 : f32
    %67 = vector.broadcast %cst_60 : f32 to vector<72x16xf32>
    %68 = arith.subf %67, %66 : vector<72x16xf32>
    %69 = math.exp %68 : vector<72x16xf32>
    %cst_61 = arith.constant 1.000000e+00 : f32
    %70 = vector.broadcast %cst_61 : f32 to vector<72x16xf32>
    %71 = arith.addf %70, %69 : vector<72x16xf32>
    %72 = arith.divf %65, %71 : vector<72x16xf32>
    %73 = arith.truncf %72 : vector<72x16xf32> to vector<72x16xbf16>
    %c0_62 = arith.constant 0 : index
    %c0_63 = arith.constant 0 : index
    %74 = vector.load %arg4[%c0_62, %c0_63] : memref<72x16xbf16, #tpu.memory_space<vmem>>, vector<72x16xbf16>
    tpu.vector_store %arg4[%c0_62, %c0_63], %73 {strides = array<i32>} : memref<72x16xbf16, #tpu.memory_space<vmem>>, vector<72x16xbf16>,
    return
  }
  func.func @transform_0(%arg0: i32) -> (i32, i32, i32) {
    %c0_i32 = arith.constant 0 : i32
    %c0_i32_0 = arith.constant 0 : i32
    %c0_i32_1 = arith.constant 0 : i32
    %c0_i32_2 = arith.constant 0 : i32
    return %c0_i32, %c0_i32_0, %c0_i32_1 : i32, i32, i32
  }
  func.func @transform_1(%arg0: i32) -> (i32, i32, i32) {
    %c0_i32 = arith.constant 0 : i32
    %c0_i32_0 = arith.constant 0 : i32
    %c0_i32_1 = arith.constant 0 : i32
    %c0_i32_2 = arith.constant 0 : i32
    return %c0_i32, %c0_i32_0, %c0_i32_1 : i32, i32, i32
  }
  func.func @transform_2(%arg0: i32) -> (i32, i32) {
    %c0_i32 = arith.constant 0 : i32
    %c0_i32_0 = arith.constant 0 : i32
    %c0_i32_1 = arith.constant 0 : i32
    return %c0_i32, %c0_i32_0 : i32, i32
  }
  func.func @transform_3(%arg0: i32) -> (i32, i32) {
    %c0_i32 = arith.constant 0 : i32
    %c0_i32_0 = arith.constant 0 : i32
    %c0_i32_1 = arith.constant 0 : i32
    return %c0_i32, %c0_i32_0 : i32, i32
  }
}

module attributes {stable_mosaic.version = 11 : i64} {
  func.func @dbg_fused_kernel(%arg0: i32, %arg1: memref<4x72x128xbf16, #tpu.memory_space<vmem>>, %arg2: memref<4x128x32xbf16, #tpu.memory_space<vmem>>, %arg3: memref<1x32xf32, #tpu.memory_space<vmem>>, %arg4: memref<288x16xbf16, #tpu.memory_space<vmem>>) attributes {dimension_semantics = [#tpu.dimension_semantics<arbitrary>], iteration_bounds = array<i64: 1>, scalar_prefetch = 0 : i64, scratch_operands = 0 : i64, tpu.core_type = #tpu.core_type<tc>, window_params = [{pipeline_mode = #tpu.pipeline_mode<synchronous>, transform_indices = @transform_0, window_bounds = array<i64: 4, 72, 128>}, {pipeline_mode = #tpu.pipeline_mode<synchronous>, transform_indices = @transform_1, window_bounds = array<i64: 4, 128, 32>}, {pipeline_mode = #tpu.pipeline_mode<synchronous>, transform_indices = @transform_2, window_bounds = array<i64: 1, 32>}, {pipeline_mode = #tpu.pipeline_mode<synchronous>, transform_indices = @transform_3, window_bounds = array<i64: 288, 16>}]} {
    %c0 = arith.constant 0 : index
    %c0_0 = arith.constant 0 : index
    %c0_1 = arith.constant 0 : index
    %0 = vector.load %arg1[%c0, %c0_0, %c0_1] : memref<4x72x128xbf16, #tpu.memory_space<vmem>>, vector<1x72x128xbf16>
    %1 = vector.shape_cast %0 : vector<1x72x128xbf16> to vector<72x128xbf16>
    %c0_2 = arith.constant 0 : index
    %c0_3 = arith.constant 0 : index
    %c0_4 = arith.constant 0 : index
    %2 = vector.load %arg2[%c0_2, %c0_3, %c0_4] : memref<4x128x32xbf16, #tpu.memory_space<vmem>>, vector<1x128x32xbf16>
    %3 = vector.shape_cast %2 : vector<1x128x32xbf16> to vector<128x32xbf16>
    %cst = arith.constant dense<0.000000e+00> : vector<72x32xf32>
    %4 = tpu.matmul %1, %3, %cst {dimension_numbers = #tpu.dot_dimension_numbers<[1], [0], [0], [1], [0, 0, 1, 1], [], []>} : vector<72x128xbf16>, vector<128x32xbf16>, vector<72x32xf32> -> vector<72x32xf32>
    %c1 = arith.constant 1 : index
    %c0_5 = arith.constant 0 : index
    %c0_6 = arith.constant 0 : index
    %5 = vector.load %arg1[%c1, %c0_5, %c0_6] : memref<4x72x128xbf16, #tpu.memory_space<vmem>>, vector<1x72x128xbf16>
    %6 = vector.shape_cast %5 : vector<1x72x128xbf16> to vector<72x128xbf16>
    %c1_7 = arith.constant 1 : index
    %c0_8 = arith.constant 0 : index
    %c0_9 = arith.constant 0 : index
    %7 = vector.load %arg2[%c1_7, %c0_8, %c0_9] : memref<4x128x32xbf16, #tpu.memory_space<vmem>>, vector<1x128x32xbf16>
    %8 = vector.shape_cast %7 : vector<1x128x32xbf16> to vector<128x32xbf16>
    %cst_10 = arith.constant dense<0.000000e+00> : vector<72x32xf32>
    %9 = tpu.matmul %6, %8, %cst_10 {dimension_numbers = #tpu.dot_dimension_numbers<[1], [0], [0], [1], [0, 0, 1, 1], [], []>} : vector<72x128xbf16>, vector<128x32xbf16>, vector<72x32xf32> -> vector<72x32xf32>
    %c2 = arith.constant 2 : index
    %c0_11 = arith.constant 0 : index
    %c0_12 = arith.constant 0 : index
    %10 = vector.load %arg1[%c2, %c0_11, %c0_12] : memref<4x72x128xbf16, #tpu.memory_space<vmem>>, vector<1x72x128xbf16>
    %11 = vector.shape_cast %10 : vector<1x72x128xbf16> to vector<72x128xbf16>
    %c2_13 = arith.constant 2 : index
    %c0_14 = arith.constant 0 : index
    %c0_15 = arith.constant 0 : index
    %12 = vector.load %arg2[%c2_13, %c0_14, %c0_15] : memref<4x128x32xbf16, #tpu.memory_space<vmem>>, vector<1x128x32xbf16>
    %13 = vector.shape_cast %12 : vector<1x128x32xbf16> to vector<128x32xbf16>
    %cst_16 = arith.constant dense<0.000000e+00> : vector<72x32xf32>
    %14 = tpu.matmul %11, %13, %cst_16 {dimension_numbers = #tpu.dot_dimension_numbers<[1], [0], [0], [1], [0, 0, 1, 1], [], []>} : vector<72x128xbf16>, vector<128x32xbf16>, vector<72x32xf32> -> vector<72x32xf32>
    %c3 = arith.constant 3 : index
    %c0_17 = arith.constant 0 : index
    %c0_18 = arith.constant 0 : index
    %15 = vector.load %arg1[%c3, %c0_17, %c0_18] : memref<4x72x128xbf16, #tpu.memory_space<vmem>>, vector<1x72x128xbf16>
    %16 = vector.shape_cast %15 : vector<1x72x128xbf16> to vector<72x128xbf16>
    %c3_19 = arith.constant 3 : index
    %c0_20 = arith.constant 0 : index
    %c0_21 = arith.constant 0 : index
    %17 = vector.load %arg2[%c3_19, %c0_20, %c0_21] : memref<4x128x32xbf16, #tpu.memory_space<vmem>>, vector<1x128x32xbf16>
    %18 = vector.shape_cast %17 : vector<1x128x32xbf16> to vector<128x32xbf16>
    %cst_22 = arith.constant dense<0.000000e+00> : vector<72x32xf32>
    %19 = tpu.matmul %16, %18, %cst_22 {dimension_numbers = #tpu.dot_dimension_numbers<[1], [0], [0], [1], [0, 0, 1, 1], [], []>} : vector<72x128xbf16>, vector<128x32xbf16>, vector<72x32xf32> -> vector<72x32xf32>
    %20 = tpu.concatenate %4, %9, %14, %19 in 0 : vector<72x32xf32>, vector<72x32xf32>, vector<72x32xf32>, vector<72x32xf32> -> vector<288x32xf32>
    %c0_23 = arith.constant 0 : index
    %c0_24 = arith.constant 0 : index
    %21 = vector.load %arg3[%c0_23, %c0_24] : memref<1x32xf32, #tpu.memory_space<vmem>>, vector<1x32xf32>
    %22 = vector.broadcast %21 : vector<1x32xf32> to vector<288x32xf32>
    %23 = arith.addf %20, %22 : vector<288x32xf32>
    %cst_25 = arith.constant dense<0.000000e+00> : vector<32xf32>
    %24 = vector.multi_reduction <add>, %23, %cst_25 [0] : vector<288x32xf32> to vector<32xf32>
    %25 = vector.shape_cast %24 : vector<32xf32> to vector<1x32xf32>
    %cst_26 = arith.constant 0.00347222225 : f32
    %26 = vector.broadcast %cst_26 : f32 to vector<1x32xf32>
    %27 = arith.mulf %25, %26 : vector<1x32xf32>
    %28 = vector.broadcast %27 : vector<1x32xf32> to vector<288x32xf32>
    %29 = arith.subf %23, %28 : vector<288x32xf32>
    %30 = arith.mulf %29, %29 : vector<288x32xf32>
    %cst_27 = arith.constant dense<0.000000e+00> : vector<32xf32>
    %31 = vector.multi_reduction <add>, %30, %cst_27 [0] : vector<288x32xf32> to vector<32xf32>
    %32 = vector.shape_cast %31 : vector<32xf32> to vector<1x32xf32>
    %cst_28 = arith.constant 0.00347222225 : f32
    %33 = vector.broadcast %cst_28 : f32 to vector<1x32xf32>
    %34 = arith.mulf %32, %33 : vector<1x32xf32>
    %cst_29 = arith.constant 9.99999974E-6 : f32
    %35 = vector.broadcast %cst_29 : f32 to vector<1x32xf32>
    %36 = arith.addf %34, %35 : vector<1x32xf32>
    %37 = math.rsqrt %36 : vector<1x32xf32>
    %38 = vector.broadcast %37 : vector<1x32xf32> to vector<288x32xf32>
    %39 = arith.mulf %29, %38 : vector<288x32xf32>
    %40 = vector.extract_strided_slice %39 {offsets = [0, 0], sizes = [288, 16], strides = [1, 1]} : vector<288x32xf32> to vector<288x16xf32>
    %41 = vector.extract_strided_slice %39 {offsets = [0, 16], sizes = [288, 16], strides = [1, 1]} : vector<288x32xf32> to vector<288x16xf32>
    %cst_30 = arith.constant 0.000000e+00 : f32
    %42 = vector.broadcast %cst_30 : f32 to vector<288x16xf32>
    %43 = arith.subf %42, %41 : vector<288x16xf32>
    %44 = math.exp %43 : vector<288x16xf32>
    %cst_31 = arith.constant 1.000000e+00 : f32
    %45 = vector.broadcast %cst_31 : f32 to vector<288x16xf32>
    %46 = arith.addf %45, %44 : vector<288x16xf32>
    %47 = arith.divf %40, %46 : vector<288x16xf32>
    %48 = arith.truncf %47 : vector<288x16xf32> to vector<288x16xbf16>
    %c0_32 = arith.constant 0 : index
    %c0_33 = arith.constant 0 : index
    %49 = vector.load %arg4[%c0_32, %c0_33] : memref<288x16xbf16, #tpu.memory_space<vmem>>, vector<288x16xbf16>
    tpu.vector_store %arg4[%c0_32, %c0_33], %48 {strides = array<i32>} : memref<288x16xbf16, #tpu.memory_space<vmem>>, vector<288x16xbf16>,
    return
  }
  func.func @transform_0(%arg0: i32) -> (i32, i32, i32) {
    %c0_i32 = arith.constant 0 : i32
    %c0_i32_0 = arith.constant 0 : i32
    %c0_i32_1 = arith.constant 0 : i32
    %c0_i32_2 = arith.constant 0 : i32
    return %c0_i32, %c0_i32_0, %c0_i32_1 : i32, i32, i32
  }
  func.func @transform_1(%arg0: i32) -> (i32, i32, i32) {
    %c0_i32 = arith.constant 0 : i32
    %c0_i32_0 = arith.constant 0 : i32
    %c0_i32_1 = arith.constant 0 : i32
    %c0_i32_2 = arith.constant 0 : i32
    return %c0_i32, %c0_i32_0, %c0_i32_1 : i32, i32, i32
  }
  func.func @transform_2(%arg0: i32) -> (i32, i32) {
    %c0_i32 = arith.constant 0 : i32
    %c0_i32_0 = arith.constant 0 : i32
    %c0_i32_1 = arith.constant 0 : i32
    return %c0_i32, %c0_i32_0 : i32, i32
  }
  func.func @transform_3(%arg0: i32) -> (i32, i32) {
    %c0_i32 = arith.constant 0 : i32
    %c0_i32_0 = arith.constant 0 : i32
    %c0_i32_1 = arith.constant 0 : i32
    return %c0_i32, %c0_i32_0 : i32, i32
  }
}

module attributes {stable_mosaic.version = 11 : i64} {
  func.func @dbg_fused_kernel(%arg0: i32, %arg1: memref<4x288x128xbf16, #tpu.memory_space<vmem>>, %arg2: memref<4x128x16xbf16, #tpu.memory_space<vmem>>, %arg3: memref<1x16xf32, #tpu.memory_space<vmem>>, %arg4: memref<1152x8xbf16, #tpu.memory_space<vmem>>) attributes {dimension_semantics = [#tpu.dimension_semantics<arbitrary>], iteration_bounds = array<i64: 1>, scalar_prefetch = 0 : i64, scratch_operands = 0 : i64, tpu.core_type = #tpu.core_type<tc>, window_params = [{pipeline_mode = #tpu.pipeline_mode<synchronous>, transform_indices = @transform_0, window_bounds = array<i64: 4, 288, 128>}, {pipeline_mode = #tpu.pipeline_mode<synchronous>, transform_indices = @transform_1, window_bounds = array<i64: 4, 128, 16>}, {pipeline_mode = #tpu.pipeline_mode<synchronous>, transform_indices = @transform_2, window_bounds = array<i64: 1, 16>}, {pipeline_mode = #tpu.pipeline_mode<synchronous>, transform_indices = @transform_3, window_bounds = array<i64: 1152, 8>}]} {
    %c0 = arith.constant 0 : index
    %c0_0 = arith.constant 0 : index
    %c0_1 = arith.constant 0 : index
    %0 = vector.load %arg1[%c0, %c0_0, %c0_1] : memref<4x288x128xbf16, #tpu.memory_space<vmem>>, vector<1x288x128xbf16>
    %1 = vector.shape_cast %0 : vector<1x288x128xbf16> to vector<288x128xbf16>
    %c0_2 = arith.constant 0 : index
    %c0_3 = arith.constant 0 : index
    %c0_4 = arith.constant 0 : index
    %2 = vector.load %arg2[%c0_2, %c0_3, %c0_4] : memref<4x128x16xbf16, #tpu.memory_space<vmem>>, vector<1x128x16xbf16>
    %3 = vector.shape_cast %2 : vector<1x128x16xbf16> to vector<128x16xbf16>
    %cst = arith.constant dense<0.000000e+00> : vector<288x16xf32>
    %4 = tpu.matmul %1, %3, %cst {dimension_numbers = #tpu.dot_dimension_numbers<[1], [0], [0], [1], [0, 0, 1, 1], [], []>} : vector<288x128xbf16>, vector<128x16xbf16>, vector<288x16xf32> -> vector<288x16xf32>
    %c1 = arith.constant 1 : index
    %c0_5 = arith.constant 0 : index
    %c0_6 = arith.constant 0 : index
    %5 = vector.load %arg1[%c1, %c0_5, %c0_6] : memref<4x288x128xbf16, #tpu.memory_space<vmem>>, vector<1x288x128xbf16>
    %6 = vector.shape_cast %5 : vector<1x288x128xbf16> to vector<288x128xbf16>
    %c1_7 = arith.constant 1 : index
    %c0_8 = arith.constant 0 : index
    %c0_9 = arith.constant 0 : index
    %7 = vector.load %arg2[%c1_7, %c0_8, %c0_9] : memref<4x128x16xbf16, #tpu.memory_space<vmem>>, vector<1x128x16xbf16>
    %8 = vector.shape_cast %7 : vector<1x128x16xbf16> to vector<128x16xbf16>
    %cst_10 = arith.constant dense<0.000000e+00> : vector<288x16xf32>
    %9 = tpu.matmul %6, %8, %cst_10 {dimension_numbers = #tpu.dot_dimension_numbers<[1], [0], [0], [1], [0, 0, 1, 1], [], []>} : vector<288x128xbf16>, vector<128x16xbf16>, vector<288x16xf32> -> vector<288x16xf32>
    %c2 = arith.constant 2 : index
    %c0_11 = arith.constant 0 : index
    %c0_12 = arith.constant 0 : index
    %10 = vector.load %arg1[%c2, %c0_11, %c0_12] : memref<4x288x128xbf16, #tpu.memory_space<vmem>>, vector<1x288x128xbf16>
    %11 = vector.shape_cast %10 : vector<1x288x128xbf16> to vector<288x128xbf16>
    %c2_13 = arith.constant 2 : index
    %c0_14 = arith.constant 0 : index
    %c0_15 = arith.constant 0 : index
    %12 = vector.load %arg2[%c2_13, %c0_14, %c0_15] : memref<4x128x16xbf16, #tpu.memory_space<vmem>>, vector<1x128x16xbf16>
    %13 = vector.shape_cast %12 : vector<1x128x16xbf16> to vector<128x16xbf16>
    %cst_16 = arith.constant dense<0.000000e+00> : vector<288x16xf32>
    %14 = tpu.matmul %11, %13, %cst_16 {dimension_numbers = #tpu.dot_dimension_numbers<[1], [0], [0], [1], [0, 0, 1, 1], [], []>} : vector<288x128xbf16>, vector<128x16xbf16>, vector<288x16xf32> -> vector<288x16xf32>
    %c3 = arith.constant 3 : index
    %c0_17 = arith.constant 0 : index
    %c0_18 = arith.constant 0 : index
    %15 = vector.load %arg1[%c3, %c0_17, %c0_18] : memref<4x288x128xbf16, #tpu.memory_space<vmem>>, vector<1x288x128xbf16>
    %16 = vector.shape_cast %15 : vector<1x288x128xbf16> to vector<288x128xbf16>
    %c3_19 = arith.constant 3 : index
    %c0_20 = arith.constant 0 : index
    %c0_21 = arith.constant 0 : index
    %17 = vector.load %arg2[%c3_19, %c0_20, %c0_21] : memref<4x128x16xbf16, #tpu.memory_space<vmem>>, vector<1x128x16xbf16>
    %18 = vector.shape_cast %17 : vector<1x128x16xbf16> to vector<128x16xbf16>
    %cst_22 = arith.constant dense<0.000000e+00> : vector<288x16xf32>
    %19 = tpu.matmul %16, %18, %cst_22 {dimension_numbers = #tpu.dot_dimension_numbers<[1], [0], [0], [1], [0, 0, 1, 1], [], []>} : vector<288x128xbf16>, vector<128x16xbf16>, vector<288x16xf32> -> vector<288x16xf32>
    %20 = tpu.concatenate %4, %9, %14, %19 in 0 : vector<288x16xf32>, vector<288x16xf32>, vector<288x16xf32>, vector<288x16xf32> -> vector<1152x16xf32>
    %c0_23 = arith.constant 0 : index
    %c0_24 = arith.constant 0 : index
    %21 = vector.load %arg3[%c0_23, %c0_24] : memref<1x16xf32, #tpu.memory_space<vmem>>, vector<1x16xf32>
    %22 = vector.broadcast %21 : vector<1x16xf32> to vector<1152x16xf32>
    %23 = arith.addf %20, %22 : vector<1152x16xf32>
    %cst_25 = arith.constant dense<0.000000e+00> : vector<16xf32>
    %24 = vector.multi_reduction <add>, %23, %cst_25 [0] : vector<1152x16xf32> to vector<16xf32>
    %25 = vector.shape_cast %24 : vector<16xf32> to vector<1x16xf32>
    %cst_26 = arith.constant 8.68055562E-4 : f32
    %26 = vector.broadcast %cst_26 : f32 to vector<1x16xf32>
    %27 = arith.mulf %25, %26 : vector<1x16xf32>
    %28 = vector.broadcast %27 : vector<1x16xf32> to vector<1152x16xf32>
    %29 = arith.subf %23, %28 : vector<1152x16xf32>
    %30 = arith.mulf %29, %29 : vector<1152x16xf32>
    %cst_27 = arith.constant dense<0.000000e+00> : vector<16xf32>
    %31 = vector.multi_reduction <add>, %30, %cst_27 [0] : vector<1152x16xf32> to vector<16xf32>
    %32 = vector.shape_cast %31 : vector<16xf32> to vector<1x16xf32>
    %cst_28 = arith.constant 8.68055562E-4 : f32
    %33 = vector.broadcast %cst_28 : f32 to vector<1x16xf32>
    %34 = arith.mulf %32, %33 : vector<1x16xf32>
    %cst_29 = arith.constant 9.99999974E-6 : f32
    %35 = vector.broadcast %cst_29 : f32 to vector<1x16xf32>
    %36 = arith.addf %34, %35 : vector<1x16xf32>
    %37 = math.rsqrt %36 : vector<1x16xf32>
    %38 = vector.broadcast %37 : vector<1x16xf32> to vector<1152x16xf32>
    %39 = arith.mulf %29, %38 : vector<1152x16xf32>
    %40 = vector.extract_strided_slice %39 {offsets = [0, 0], sizes = [1152, 8], strides = [1, 1]} : vector<1152x16xf32> to vector<1152x8xf32>
    %41 = vector.extract_strided_slice %39 {offsets = [0, 8], sizes = [1152, 8], strides = [1, 1]} : vector<1152x16xf32> to vector<1152x8xf32>
    %cst_30 = arith.constant 0.000000e+00 : f32
    %42 = vector.broadcast %cst_30 : f32 to vector<1152x8xf32>
    %43 = arith.subf %42, %41 : vector<1152x8xf32>
    %44 = math.exp %43 : vector<1152x8xf32>
    %cst_31 = arith.constant 1.000000e+00 : f32
    %45 = vector.broadcast %cst_31 : f32 to vector<1152x8xf32>
    %46 = arith.addf %45, %44 : vector<1152x8xf32>
    %47 = arith.divf %40, %46 : vector<1152x8xf32>
    %48 = arith.truncf %47 : vector<1152x8xf32> to vector<1152x8xbf16>
    %c0_32 = arith.constant 0 : index
    %c0_33 = arith.constant 0 : index
    %49 = vector.load %arg4[%c0_32, %c0_33] : memref<1152x8xbf16, #tpu.memory_space<vmem>>, vector<1152x8xbf16>
    tpu.vector_store %arg4[%c0_32, %c0_33], %48 {strides = array<i32>} : memref<1152x8xbf16, #tpu.memory_space<vmem>>, vector<1152x8xbf16>,
    return
  }
  func.func @transform_0(%arg0: i32) -> (i32, i32, i32) {
    %c0_i32 = arith.constant 0 : i32
    %c0_i32_0 = arith.constant 0 : i32
    %c0_i32_1 = arith.constant 0 : i32
    %c0_i32_2 = arith.constant 0 : i32
    return %c0_i32, %c0_i32_0, %c0_i32_1 : i32, i32, i32
  }
  func.func @transform_1(%arg0: i32) -> (i32, i32, i32) {
    %c0_i32 = arith.constant 0 : i32
    %c0_i32_0 = arith.constant 0 : i32
    %c0_i32_1 = arith.constant 0 : i32
    %c0_i32_2 = arith.constant 0 : i32
    return %c0_i32, %c0_i32_0, %c0_i32_1 : i32, i32, i32
  }
  func.func @transform_2(%arg0: i32) -> (i32, i32) {
    %c0_i32 = arith.constant 0 : i32
    %c0_i32_0 = arith.constant 0 : i32
    %c0_i32_1 = arith.constant 0 : i32
    return %c0_i32, %c0_i32_0 : i32, i32
  }
  func.func @transform_3(%arg0: i32) -> (i32, i32) {
    %c0_i32 = arith.constant 0 : i32
    %c0_i32_0 = arith.constant 0 : i32
    %c0_i32_1 = arith.constant 0 : i32
    return %c0_i32, %c0_i32_0 : i32, i32
  }
}

module attributes {stable_mosaic.version = 11 : i64} {
  func.func @convt_sample_kernel(%arg0: i32, %arg1: memref<1x1152x216xbf16, #tpu.memory_space<vmem>>, %arg2: memref<1x216x2xbf16, #tpu.memory_space<vmem>>, %arg3: memref<1x2xf32, #tpu.memory_space<vmem>>, %arg4: memref<1152x1xf32, #tpu.memory_space<vmem>>, %arg5: memref<1152x1xf32, #tpu.memory_space<vmem>>) attributes {dimension_semantics = [#tpu.dimension_semantics<arbitrary>], iteration_bounds = array<i64: 1>, scalar_prefetch = 0 : i64, scratch_operands = 0 : i64, tpu.core_type = #tpu.core_type<tc>, window_params = [{pipeline_mode = #tpu.pipeline_mode<synchronous>, transform_indices = @transform_0, window_bounds = array<i64: 1, 1152, 216>}, {pipeline_mode = #tpu.pipeline_mode<synchronous>, transform_indices = @transform_1, window_bounds = array<i64: 1, 216, 2>}, {pipeline_mode = #tpu.pipeline_mode<synchronous>, transform_indices = @transform_2, window_bounds = array<i64: 1, 2>}, {pipeline_mode = #tpu.pipeline_mode<synchronous>, transform_indices = @transform_3, window_bounds = array<i64: 1152, 1>}, {pipeline_mode = #tpu.pipeline_mode<synchronous>, transform_indices = @transform_4, window_bounds = array<i64: 1152, 1>}]} {
    %c0 = arith.constant 0 : index
    %c0_0 = arith.constant 0 : index
    %c0_1 = arith.constant 0 : index
    %0 = vector.load %arg1[%c0, %c0_0, %c0_1] : memref<1x1152x216xbf16, #tpu.memory_space<vmem>>, vector<1x1152x216xbf16>
    %1 = vector.shape_cast %0 : vector<1x1152x216xbf16> to vector<1152x216xbf16>
    %c0_2 = arith.constant 0 : index
    %c0_3 = arith.constant 0 : index
    %c0_4 = arith.constant 0 : index
    %2 = vector.load %arg2[%c0_2, %c0_3, %c0_4] : memref<1x216x2xbf16, #tpu.memory_space<vmem>>, vector<1x216x2xbf16>
    %3 = vector.shape_cast %2 : vector<1x216x2xbf16> to vector<216x2xbf16>
    %cst = arith.constant dense<0.000000e+00> : vector<1152x2xf32>
    %4 = tpu.matmul %1, %3, %cst {dimension_numbers = #tpu.dot_dimension_numbers<[1], [0], [0], [1], [0, 0, 1, 1], [], []>} : vector<1152x216xbf16>, vector<216x2xbf16>, vector<1152x2xf32> -> vector<1152x2xf32>
    %c0_5 = arith.constant 0 : index
    %c0_6 = arith.constant 0 : index
    %5 = vector.load %arg3[%c0_5, %c0_6] : memref<1x2xf32, #tpu.memory_space<vmem>>, vector<1x2xf32>
    %6 = vector.broadcast %5 : vector<1x2xf32> to vector<1152x2xf32>
    %7 = arith.addf %4, %6 : vector<1152x2xf32>
    %8 = vector.extract_strided_slice %7 {offsets = [0, 0], sizes = [1152, 1], strides = [1, 1]} : vector<1152x2xf32> to vector<1152x1xf32>
    %9 = vector.extract_strided_slice %7 {offsets = [0, 1], sizes = [1152, 1], strides = [1, 1]} : vector<1152x2xf32> to vector<1152x1xf32>
    %10 = math.exp %9 : vector<1152x1xf32>
    %c0_7 = arith.constant 0 : index
    %c0_8 = arith.constant 0 : index
    %11 = vector.load %arg4[%c0_7, %c0_8] : memref<1152x1xf32, #tpu.memory_space<vmem>>, vector<1152x1xf32>
    %12 = arith.mulf %10, %11 : vector<1152x1xf32>
    %13 = arith.addf %8, %12 : vector<1152x1xf32>
    %c0_9 = arith.constant 0 : index
    %c0_10 = arith.constant 0 : index
    %14 = vector.load %arg5[%c0_9, %c0_10] : memref<1152x1xf32, #tpu.memory_space<vmem>>, vector<1152x1xf32>
    tpu.vector_store %arg5[%c0_9, %c0_10], %13 {strides = array<i32>} : memref<1152x1xf32, #tpu.memory_space<vmem>>, vector<1152x1xf32>,
    return
  }
  func.func @transform_0(%arg0: i32) -> (i32, i32, i32) {
    %c0_i32 = arith.constant 0 : i32
    %c0_i32_0 = arith.constant 0 : i32
    %c0_i32_1 = arith.constant 0 : i32
    %c0_i32_2 = arith.constant 0 : i32
    return %c0_i32, %c0_i32_0, %c0_i32_1 : i32, i32, i32
  }
  func.func @transform_1(%arg0: i32) -> (i32, i32, i32) {
    %c0_i32 = arith.constant 0 : i32
    %c0_i32_0 = arith.constant 0 : i32
    %c0_i32_1 = arith.constant 0 : i32
    %c0_i32_2 = arith.constant 0 : i32
    return %c0_i32, %c0_i32_0, %c0_i32_1 : i32, i32, i32
  }
  func.func @transform_2(%arg0: i32) -> (i32, i32) {
    %c0_i32 = arith.constant 0 : i32
    %c0_i32_0 = arith.constant 0 : i32
    %c0_i32_1 = arith.constant 0 : i32
    return %c0_i32, %c0_i32_0 : i32, i32
  }
  func.func @transform_3(%arg0: i32) -> (i32, i32) {
    %c0_i32 = arith.constant 0 : i32
    %c0_i32_0 = arith.constant 0 : i32
    %c0_i32_1 = arith.constant 0 : i32
    return %c0_i32, %c0_i32_0 : i32, i32
  }
  func.func @transform_4(%arg0: i32) -> (i32, i32) {
    %c0_i32 = arith.constant 0 : i32
    %c0_i32_0 = arith.constant 0 : i32
    %c0_i32_1 = arith.constant 0 : i32
    return %c0_i32, %c0_i32_0 : i32, i32
  }
}

</mosaic_0001>

<llo_original>
// kernel: uttr_decoder_forward.4
$region0: #{uttr_decoder_forward.4}
  #allocation0 [shape = 'u32[]', space=smem, size = 0x4, offset = 0x4, fixed_abs, tag = 'smem constant byte address 0x4 - core index']
  #allocation1 [shape = 'u32[72,128]{1,0:T(1,128)}', space=vmem, size = 0x9000, scoped, tag = 'internal scratch']
  %s0 = inlined_call_operand.vmem [shape: bf16[9,8,40], index: 0, kind: input, shape index: {}]
  %s1 = inlined_call_operand.hbm [shape: bf16[9,40,32], index: 1, kind: input, shape index: {}]
  %s2 = inlined_call_operand.hbm [shape: f32[1,32], index: 2, kind: input, shape index: {}]
  %s3 = inlined_call_operand.vmem [shape: bf16[72,16], index: 3, kind: output, shape index: {}]
  %s4 = sld [smem:[#allocation0]]
  $region30: #{uttr_decoder_forward.4} parent=0
    _
  %s6 = ssub.s32 1, %s4
  %s7 = scalar_select 0, %s6, %s4
  $region1: #{uttr_decoder_forward.4} parent=0
    #allocation2 [shape = 'u8[92160]{0}', space=vmem, size = 0x16800, scoped, tag = 'input window, operand 1, single buffered']
    #allocation3 [shape = 's32[1]{0}', space=sflag, size = 0x4, scoped, tag = 'scoped memory for uttr_decoder_forward.4']
    #allocation4 [shape = 'u8[512]{0}', space=vmem, size = 0x400, scoped, tag = 'input window, operand 2, single buffered']
    #allocation5 [shape = 's32[1]{0}', space=sflag, size = 0x4, scoped, tag = 'scoped memory for uttr_decoder_forward.4']
    %8 = vsyncpa [#allocation3], 0
    %9 = vsyncpa [#allocation5], 0
    // Predicated region
    $region2: #{uttr_decoder_forward.4} parent=1 // pred_check
      _
    $region3: #{uttr_decoder_forward.4} parent=1 // pred_check_branch
      %11 = sbr.rel (0) target = $region5
    $region4: #{uttr_decoder_forward.4} parent=1 // pred_region
      _
    $region5: #{uttr_decoder_forward.4} parent=1 // pred_fallthru
      _
    // Predicated region
    $region6: #{uttr_decoder_forward.4} parent=1 // pred_check
      _
    $region7: #{uttr_decoder_forward.4} parent=1 // pred_check_branch
      %13 = sbr.rel (0) target = $region9
    $region8: #{uttr_decoder_forward.4} parent=1 // pred_region
      %15 = vsyncadd [#allocation3], 0
      %s16 = sshll.u32 %s1, 4
      %s17 = int_to_ptr.hbm [resolvable:$true] %s16
      %s18 = sshll.u32 [#allocation2], 4
      %s19 = int_to_ptr.vmem [resolvable:$true] %s18
      %24 = dma.hbm_to_vmem [thread:$0]  %s17, 2880, %s19, [#allocation3], 64, 64, 4
    $region9: #{uttr_decoder_forward.4} parent=1 // pred_fallthru
      _
    // Predicated region
    $region10: #{uttr_decoder_forward.4} parent=1 // pred_check
      _
    $region11: #{uttr_decoder_forward.4} parent=1 // pred_check_branch
      %26 = sbr.rel (0) target = $region13
    $region12: #{uttr_decoder_forward.4} parent=1 // pred_region
      %28 = vsyncadd [#allocation5], 0
      %s30 = sshll.u32 %s2, 4
      %s31 = int_to_ptr.hbm [resolvable:$true] %s30
      %s32 = sshll.u32 [#allocation4], 4
      %s33 = int_to_ptr.vmem [resolvable:$true] %s32
      %35 = dma.hbm_to_vmem [thread:$0]  %s31, 16, %s33, [#allocation5]
    $region13: #{uttr_decoder_forward.4} parent=1 // pred_fallthru
      _
    // Predicated region
    $region14: #{uttr_decoder_forward.4} parent=1 // pred_check
      _
    $region15: #{uttr_decoder_forward.4} parent=1 // pred_check_branch
      %37 = sbr.rel (0) target = $region17
    $region16: #{uttr_decoder_forward.4} parent=1 // pred_region
      %39 = dma.done [#allocation3], 2880
    $region17: #{uttr_decoder_forward.4} parent=1 // pred_fallthru
      _
    // Predicated region
    $region18: #{uttr_decoder_forward.4} parent=1 // pred_check
      _
    $region19: #{uttr_decoder_forward.4} parent=1 // pred_check_branch
      %41 = sbr.rel (0) target = $region21
    $region20: #{uttr_decoder_forward.4} parent=1 // pred_region
      %43 = dma.done [#allocation5], 16
    $region21: #{uttr_decoder_forward.4} parent=1 // pred_fallthru
      _
    %v45 = vld [vmem:[%s0] sm:$0xf]
    %v46 = vld [vmem:[#allocation2] sm:$0xf]
    %v47 = vld [vmem:[#allocation2 + $0x4] sm:$0xf]
    %v48 = vld [vmem:[#allocation2 + $0x8] sm:$0xf]
    %v49 = vld [vmem:[#allocation2 + $0xc] sm:$0xf]
    %v50 = vld [vmem:[#allocation2 + $0x10] sm:$0xf]
    %v56 = vunpack.c.l.b16 %v46
    %v57 = vunpack.c.l.b16 %v47
    %v58 = vunpack.c.l.b16 %v48
    %v59 = vunpack.c.l.b16 %v49
    %v60 = vunpack.c.l.b16 %v50
    %v61 = vpack.c.b16 %v57, %v56
    %v62 = vpack.c.b16 %v59, %v58
    %v63 = vpack.c.b16 %v60, %v60
    %vm66 = vcmask 326656
    %v68 = vsel %vm66, %v45, 0
    %vm70 = vcmask 1043456
    %v72 = vsel %vm70, %v63, 0
    %74 = vmatpush.bf16.msra.mxu0 0
    %75 = vmatpush.bf16.msra.mxu0 0
    %76 = vmatpush.bf16.msra.mxu0 0
    %77 = vmatpush.bf16.msra.mxu0 0
    %78 = vmatpush.bf16.msra.mxu0 0
    %79 = vmatpush.bf16.msra.mxu0 %v72
    %80 = vmatpush.bf16.msra.mxu0 %v62
    %81 = vmatpush.bf16.msra.mxu0 %v61
    %82 = vmatmul.bf16.gmra.mxu0 %v68
    %v83 = vpop.f32.mrf.mxu0
    %v84 = vadd.f32 0.0, %v83
    %v85 = vpop.f32.mrf.mxu0
    %86 = vdwg.mxu0
    %s87 = scalar_lea.vmem %s0, 4
    %v88 = vld [vmem:[%s87] sm:$0xf]
    %s89 = scalar_lea.vmem [#allocation2], 20
    %v90 = vld [vmem:[%s89] sm:$0xf]
    %v91 = vld [vmem:[%s89 + $0x4] sm:$0xf]
    %v92 = vld [vmem:[%s89 + $0x8] sm:$0xf]
    %v93 = vld [vmem:[%s89 + $0xc] sm:$0xf]
    %v94 = vld [vmem:[%s89 + $0x10] sm:$0xf]
    %v100 = vunpack.c.l.b16 %v90
    %v101 = vunpack.c.l.b16 %v91
    %v102 = vunpack.c.l.b16 %v92
    %v103 = vunpack.c.l.b16 %v93
    %v104 = vunpack.c.l.b16 %v94
    %v105 = vpack.c.b16 %v101, %v100
    %v106 = vpack.c.b16 %v103, %v102
    %v107 = vpack.c.b16 %v104, %v104
    %v111 = vsel %vm66, %v88, 0
    %v114 = vsel %vm70, %v107, 0
    %116 = vmatpush.bf16.msra.mxu0 0
    %117 = vmatpush.bf16.msra.mxu0 0
    %118 = vmatpush.bf16.msra.mxu0 0
    %119 = vmatpush.bf16.msra.mxu0 0
    %120 = vmatpush.bf16.msra.mxu0 0
    %121 = vmatpush.bf16.msra.mxu0 %v114
    %122 = vmatpush.bf16.msra.mxu0 %v106
    %123 = vmatpush.bf16.msra.mxu0 %v105
    %124 = vmatmul.bf16.gmra.mxu0 %v111
    %v125 = vpop.f32.mrf.mxu0
    %v126 = vadd.f32 0.0, %v125
    %v127 = vpop.f32.mrf.mxu0
    %128 = vdwg.mxu0
    %s129 = scalar_lea.vmem %s0, 8
    %v130 = vld [vmem:[%s129] sm:$0xf]
    %s131 = scalar_lea.vmem [#allocation2], 40
    %v132 = vld [vmem:[%s131] sm:$0xf]
    %v133 = vld [vmem:[%s131 + $0x4] sm:$0xf]
    %v134 = vld [vmem:[%s131 + $0x8] sm:$0xf]
    %v135 = vld [vmem:[%s131 + $0xc] sm:$0xf]
    %v136 = vld [vmem:[%s131 + $0x10] sm:$0xf]
    %v142 = vunpack.c.l.b16 %v132
    %v143 = vunpack.c.l.b16 %v133
    %v144 = vunpack.c.l.b16 %v134
    %v145 = vunpack.c.l.b16 %v135
    %v146 = vunpack.c.l.b16 %v136
    %v147 = vpack.c.b16 %v143, %v142
    %v148 = vpack.c.b16 %v145, %v144
    %v149 = vpack.c.b16 %v146, %v146
    %v153 = vsel %vm66, %v130, 0
    %v156 = vsel %vm70, %v149, 0
    %158 = vmatpush.bf16.msra.mxu0 0
    %159 = vmatpush.bf16.msra.mxu0 0
    %160 = vmatpush.bf16.msra.mxu0 0
    %161 = vmatpush.bf16.msra.mxu0 0
    %162 = vmatpush.bf16.msra.mxu0 0
    %163 = vmatpush.bf16.msra.mxu0 %v156
    %164 = vmatpush.bf16.msra.mxu0 %v148
    %165 = vmatpush.bf16.msra.mxu0 %v147
    %166 = vmatmul.bf16.gmra.mxu0 %v153
    %v167 = vpop.f32.mrf.mxu0
    %v168 = vadd.f32 0.0, %v167
    %v169 = vpop.f32.mrf.mxu0
    %170 = vdwg.mxu0
    %s171 = scalar_lea.vmem %s0, 12
    %v172 = vld [vmem:[%s171] sm:$0xf]
    %s173 = scalar_lea.vmem [#allocation2], 60
    %v174 = vld [vmem:[%s173] sm:$0xf]
    %v175 = vld [vmem:[%s173 + $0x4] sm:$0xf]
    %v176 = vld [vmem:[%s173 + $0x8] sm:$0xf]
    %v177 = vld [vmem:[%s173 + $0xc] sm:$0xf]
    %v178 = vld [vmem:[%s173 + $0x10] sm:$0xf]
    %v184 = vunpack.c.l.b16 %v174
    %v185 = vunpack.c.l.b16 %v175
    %v186 = vunpack.c.l.b16 %v176
    %v187 = vunpack.c.l.b16 %v177
    %v188 = vunpack.c.l.b16 %v178
    %v189 = vpack.c.b16 %v185, %v184
    %v190 = vpack.c.b16 %v187, %v186
    %v191 = vpack.c.b16 %v188, %v188
    %v195 = vsel %vm66, %v172, 0
    %v198 = vsel %vm70, %v191, 0
    %200 = vmatpush.bf16.msra.mxu0 0
    %201 = vmatpush.bf16.msra.mxu0 0
    %202 = vmatpush.bf16.msra.mxu0 0
    %203 = vmatpush.bf16.msra.mxu0 0
    %204 = vmatpush.bf16.msra.mxu0 0
    %205 = vmatpush.bf16.msra.mxu0 %v198
    %206 = vmatpush.bf16.msra.mxu0 %v190
    %207 = vmatpush.bf16.msra.mxu0 %v189
    %208 = vmatmul.bf16.gmra.mxu0 %v195
    %v209 = vpop.f32.mrf.mxu0
    %v210 = vadd.f32 0.0, %v209
    %v211 = vpop.f32.mrf.mxu0
    %212 = vdwg.mxu0
    %s213 = scalar_lea.vmem %s0, 16
    %v214 = vld [vmem:[%s213] sm:$0xf]
    %s215 = scalar_lea.vmem [#allocation2], 80
    %v216 = vld [vmem:[%s215] sm:$0xf]
    %v217 = vld [vmem:[%s215 + $0x4] sm:$0xf]
    %v218 = vld [vmem:[%s215 + $0x8] sm:$0xf]
    %v219 = vld [vmem:[%s215 + $0xc] sm:$0xf]
    %v220 = vld [vmem:[%s215 + $0x10] sm:$0xf]
    %v226 = vunpack.c.l.b16 %v216
    %v227 = vunpack.c.l.b16 %v217
    %v228 = vunpack.c.l.b16 %v218
    %v229 = vunpack.c.l.b16 %v219
    %v230 = vunpack.c.l.b16 %v220
    %v231 = vpack.c.b16 %v227, %v226
    %v232 = vpack.c.b16 %v229, %v228
    %v233 = vpack.c.b16 %v230, %v230
    %v237 = vsel %vm66, %v214, 0
    %v240 = vsel %vm70, %v233, 0
    %242 = vmatpush.bf16.msra.mxu0 0
    %243 = vmatpush.bf16.msra.mxu0 0
    %244 = vmatpush.bf16.msra.mxu0 0
    %245 = vmatpush.bf16.msra.mxu0 0
    %246 = vmatpush.bf16.msra.mxu0 0
    %247 = vmatpush.bf16.msra.mxu0 %v240
    %248 = vmatpush.bf16.msra.mxu0 %v232
    %249 = vmatpush.bf16.msra.mxu0 %v231
    %250 = vmatmul.bf16.gmra.mxu0 %v237
    %v251 = vpop.f32.mrf.mxu0
    %v252 = vadd.f32 0.0, %v251
    %v253 = vpop.f32.mrf.mxu0
    %254 = vdwg.mxu0
    %s255 = scalar_lea.vmem %s0, 20
    %v256 = vld [vmem:[%s255] sm:$0xf]
    %s257 = scalar_lea.vmem [#allocation2], 100
    %v258 = vld [vmem:[%s257] sm:$0xf]
    %v259 = vld [vmem:[%s257 + $0x4] sm:$0xf]
    %v260 = vld [vmem:[%s257 + $0x8] sm:$0xf]
    %v261 = vld [vmem:[%s257 + $0xc] sm:$0xf]
    %v262 = vld [vmem:[%s257 + $0x10] sm:$0xf]
    %v268 = vunpack.c.l.b16 %v258
    %v269 = vunpack.c.l.b16 %v259
    %v270 = vunpack.c.l.b16 %v260
    %v271 = vunpack.c.l.b16 %v261
    %v272 = vunpack.c.l.b16 %v262
    %v273 = vpack.c.b16 %v269, %v268
    %v274 = vpack.c.b16 %v271, %v270
    %v275 = vpack.c.b16 %v272, %v272
    %v279 = vsel %vm66, %v256, 0
    %v282 = vsel %vm70, %v275, 0
    %284 = vmatpush.bf16.msra.mxu0 0
    %285 = vmatpush.bf16.msra.mxu0 0
    %286 = vmatpush.bf16.msra.mxu0 0
    %287 = vmatpush.bf16.msra.mxu0 0
    %288 = vmatpush.bf16.msra.mxu0 0
    %289 = vmatpush.bf16.msra.mxu0 %v282
    %290 = vmatpush.bf16.msra.mxu0 %v274
    %291 = vmatpush.bf16.msra.mxu0 %v273
    %292 = vmatmul.bf16.gmra.mxu0 %v279
    %v293 = vpop.f32.mrf.mxu0
    %v294 = vadd.f32 0.0, %v293
    %v295 = vpop.f32.mrf.mxu0
    %296 = vdwg.mxu0
    %s297 = scalar_lea.vmem %s0, 24
    %v298 = vld [vmem:[%s297] sm:$0xf]
    %s299 = scalar_lea.vmem [#allocation2], 120
    %v300 = vld [vmem:[%s299] sm:$0xf]
    %v301 = vld [vmem:[%s299 + $0x4] sm:$0xf]
    %v302 = vld [vmem:[%s299 + $0x8] sm:$0xf]
    %v303 = vld [vmem:[%s299 + $0xc] sm:$0xf]
    %v304 = vld [vmem:[%s299 + $0x10] sm:$0xf]
    %v310 = vunpack.c.l.b16 %v300
    %v311 = vunpack.c.l.b16 %v301
    %v312 = vunpack.c.l.b16 %v302
    %v313 = vunpack.c.l.b16 %v303
    %v314 = vunpack.c.l.b16 %v304
    %v315 = vpack.c.b16 %v311, %v310
    %v316 = vpack.c.b16 %v313, %v312
    %v317 = vpack.c.b16 %v314, %v314
    %v321 = vsel %vm66, %v298, 0
    %v324 = vsel %vm70, %v317, 0
    %326 = vmatpush.bf16.msra.mxu0 0
    %327 = vmatpush.bf16.msra.mxu0 0
    %328 = vmatpush.bf16.msra.mxu0 0
    %329 = vmatpush.bf16.msra.mxu0 0
    %330 = vmatpush.bf16.msra.mxu0 0
    %331 = vmatpush.bf16.msra.mxu0 %v324
    %332 = vmatpush.bf16.msra.mxu0 %v316
    %333 = vmatpush.bf16.msra.mxu0 %v315
    %334 = vmatmul.bf16.gmra.mxu0 %v321
    %v335 = vpop.f32.mrf.mxu0
    %v336 = vadd.f32 0.0, %v335
    %v337 = vpop.f32.mrf.mxu0
    %338 = vdwg.mxu0
    %s339 = scalar_lea.vmem %s0, 28
    %v340 = vld [vmem:[%s339] sm:$0xf]
    %s341 = scalar_lea.vmem [#allocation2], 140
    %v342 = vld [vmem:[%s341] sm:$0xf]
    %v343 = vld [vmem:[%s341 + $0x4] sm:$0xf]
    %v344 = vld [vmem:[%s341 + $0x8] sm:$0xf]
    %v345 = vld [vmem:[%s341 + $0xc] sm:$0xf]
    %v346 = vld [vmem:[%s341 + $0x10] sm:$0xf]
    %v352 = vunpack.c.l.b16 %v342
    %v353 = vunpack.c.l.b16 %v343
    %v354 = vunpack.c.l.b16 %v344
    %v355 = vunpack.c.l.b16 %v345
    %v356 = vunpack.c.l.b16 %v346
    %v357 = vpack.c.b16 %v353, %v352
    %v358 = vpack.c.b16 %v355, %v354
    %v359 = vpack.c.b16 %v356, %v356
    %v363 = vsel %vm66, %v340, 0
    %v366 = vsel %vm70, %v359, 0
    %368 = vmatpush.bf16.msra.mxu0 0
    %369 = vmatpush.bf16.msra.mxu0 0
    %370 = vmatpush.bf16.msra.mxu0 0
    %371 = vmatpush.bf16.msra.mxu0 0
    %372 = vmatpush.bf16.msra.mxu0 0
    %373 = vmatpush.bf16.msra.mxu0 %v366
    %374 = vmatpush.bf16.msra.mxu0 %v358
    %375 = vmatpush.bf16.msra.mxu0 %v357
    %376 = vmatmul.bf16.gmra.mxu0 %v363
    %v377 = vpop.f32.mrf.mxu0
    %v378 = vadd.f32 0.0, %v377
    %v379 = vpop.f32.mrf.mxu0
    %380 = vdwg.mxu0
    %s381 = scalar_lea.vmem %s0, 32
    %v382 = vld [vmem:[%s381] sm:$0xf]
    %s383 = scalar_lea.vmem [#allocation2], 160
    %v384 = vld [vmem:[%s383] sm:$0xf]
    %v385 = vld [vmem:[%s383 + $0x4] sm:$0xf]
    %v386 = vld [vmem:[%s383 + $0x8] sm:$0xf]
    %v387 = vld [vmem:[%s383 + $0xc] sm:$0xf]
    %v388 = vld [vmem:[%s383 + $0x10] sm:$0xf]
    %v394 = vunpack.c.l.b16 %v384
    %v395 = vunpack.c.l.b16 %v385
    %v396 = vunpack.c.l.b16 %v386
    %v397 = vunpack.c.l.b16 %v387
    %v398 = vunpack.c.l.b16 %v388
    %v399 = vpack.c.b16 %v395, %v394
    %v400 = vpack.c.b16 %v397, %v396
    %v401 = vpack.c.b16 %v398, %v398
    %v405 = vsel %vm66, %v382, 0
    %v408 = vsel %vm70, %v401, 0
    %410 = vmatpush.bf16.msra.mxu0 0
    %411 = vmatpush.bf16.msra.mxu0 0
    %412 = vmatpush.bf16.msra.mxu0 0
    %413 = vmatpush.bf16.msra.mxu0 0
    %414 = vmatpush.bf16.msra.mxu0 0
    %415 = vmatpush.bf16.msra.mxu0 %v408
    %416 = vmatpush.bf16.msra.mxu0 %v400
    %417 = vmatpush.bf16.msra.mxu0 %v399
    %418 = vmatmul.bf16.gmra.mxu0 %v405
    %v419 = vpop.f32.mrf.mxu0
    %v420 = vadd.f32 0.0, %v419
    %v421 = vpop.f32.mrf.mxu0
    %422 = vdwg.mxu0
    %v423 = vld [vmem:[#allocation4] sm:$0x1]
    %v425 = vperm.slane %v423, 0
    %v427 = vadd.f32 %v84, %v425
    %v428 = vadd.f32 %v126, %v425
    %v429 = vadd.f32 %v168, %v425
    %v430 = vadd.f32 %v210, %v425
    %v431 = vadd.f32 %v252, %v425
    %v432 = vadd.f32 %v294, %v425
    %v433 = vadd.f32 %v336, %v425
    %v434 = vadd.f32 %v378, %v425
    %v435 = vadd.f32 %v420, %v425
    %vm436 = vcmask 261120
    %v437 = vsel %vm436, %v427, 0.0
    %v438 = vsel %vm436, %v428, 0.0
    %v439 = vadd.f32 %v437, %v438
    %v440 = vsel %vm436, %v429, 0.0
    %v441 = vadd.f32 %v439, %v440
    %v442 = vsel %vm436, %v430, 0.0
    %v443 = vadd.f32 %v441, %v442
    %v444 = vsel %vm436, %v431, 0.0
    %v445 = vadd.f32 %v443, %v444
    %v446 = vsel %vm436, %v432, 0.0
    %v447 = vadd.f32 %v445, %v446
    %v448 = vsel %vm436, %v433, 0.0
    %v449 = vadd.f32 %v447, %v448
    %v450 = vsel %vm436, %v434, 0.0
    %v451 = vadd.f32 %v449, %v450
    %v452 = vsel %vm436, %v435, 0.0
    %v453 = vadd.f32 %v451, %v452
    %v454 = vrot.slane %v453, 4
    %v455 = vadd.f32 %v453, %v454
    %v456 = vrot.slane %v455, 2
    %v457 = vadd.f32 %v455, %v456
    %v458 = vrot.slane %v457, 1
    %v459 = vadd.f32 %v457, %v458
    %v460 = vmul.f32 %v459, 0.013888889
    %v461 = vsub.f32 %v427, %v460
    %v462 = vsub.f32 %v428, %v460
    %v463 = vsub.f32 %v429, %v460
    %v464 = vsub.f32 %v430, %v460
    %v465 = vsub.f32 %v431, %v460
    %v466 = vsub.f32 %v432, %v460
    %v467 = vsub.f32 %v433, %v460
    %v468 = vsub.f32 %v434, %v460
    %v469 = vsub.f32 %v435, %v460
    %v470 = vmul.f32 %v461, %v461
    %v471 = vmul.f32 %v462, %v462
    %v472 = vmul.f32 %v463, %v463
    %v473 = vmul.f32 %v464, %v464
    %v474 = vmul.f32 %v465, %v465
    %v475 = vmul.f32 %v466, %v466
    %v476 = vmul.f32 %v467, %v467
    %v477 = vmul.f32 %v468, %v468
    %v478 = vmul.f32 %v469, %v469
    %v479 = vsel %vm436, %v470, 0.0
    %v480 = vsel %vm436, %v471, 0.0
    %v481 = vadd.f32 %v479, %v480
    %v482 = vsel %vm436, %v472, 0.0
    %v483 = vadd.f32 %v481, %v482
    %v484 = vsel %vm436, %v473, 0.0
    %v485 = vadd.f32 %v483, %v484
    %v486 = vsel %vm436, %v474, 0.0
    %v487 = vadd.f32 %v485, %v486
    %v488 = vsel %vm436, %v475, 0.0
    %v489 = vadd.f32 %v487, %v488
    %v490 = vsel %vm436, %v476, 0.0
    %v491 = vadd.f32 %v489, %v490
    %v492 = vsel %vm436, %v477, 0.0
    %v493 = vadd.f32 %v491, %v492
    %v494 = vsel %vm436, %v478, 0.0
    %v495 = vadd.f32 %v493, %v494
    %v496 = vrot.slane %v495, 4
    %v497 = vadd.f32 %v495, %v496
    %v498 = vrot.slane %v497, 2
    %v499 = vadd.f32 %v497, %v498
    %v500 = vrot.slane %v499, 1
    %v501 = vadd.f32 %v499, %v500
    %v502 = vmul.f32 %v501, 0.013888889
    %v503 = vadd.f32 %v502, 1e-05
    %v504 = vrsqrt.pop %v503
    %v505 = vmul.f32 %v504, %v503
    %v506 = vmul.f32 %v505, %v504
    %v507 = vmul.f32 0.5, %v506
    %v508 = vsub.f32 1.5, %v507
    %v509 = vmul.f32 %v504, %v508
    %vm510 = vweird.f32 %v503
    %vm511 = vweird.f32 %v504
    %vm512 = vmor %vm510, %vm511
    %v513 = vsel %vm512, %v504, %v509
    %v514 = vmul.f32 %v461, %v513
    %v515 = vmul.f32 %v462, %v513
    %v516 = vmul.f32 %v463, %v513
    %v517 = vmul.f32 %v464, %v513
    %v518 = vmul.f32 %v465, %v513
    %v519 = vmul.f32 %v466, %v513
    %v520 = vmul.f32 %v467, %v513
    %v521 = vmul.f32 %v468, %v513
    %v522 = vmul.f32 %v469, %v513
    %v523 = vsub.f32 0.0, %v514
    %v524 = vsub.f32 0.0, %v515
    %v525 = vsub.f32 0.0, %v516
    %v526 = vsub.f32 0.0, %v517
    %v527 = vsub.f32 0.0, %v518
    %v528 = vsub.f32 0.0, %v519
    %v529 = vsub.f32 0.0, %v520
    %v530 = vsub.f32 0.0, %v521
    %v531 = vsub.f32 0.0, %v522
    %v532 = vmul.f32 %v523, 1.442695
    %v533 = vpow.pop %v532
    %v534 = vmul.f32 %v524, 1.442695
    %v535 = vpow.pop %v534
    %v536 = vmul.f32 %v525, 1.442695
    %v537 = vpow.pop %v536
    %v538 = vmul.f32 %v526, 1.442695
    %v539 = vpow.pop %v538
    %v540 = vmul.f32 %v527, 1.442695
    %v541 = vpow.pop %v540
    %v542 = vmul.f32 %v528, 1.442695
    %v543 = vpow.pop %v542
    %v544 = vmul.f32 %v529, 1.442695
    %v545 = vpow.pop %v544
    %v546 = vmul.f32 %v530, 1.442695
    %v547 = vpow.pop %v546
    %v548 = vmul.f32 %v531, 1.442695
    %v549 = vpow.pop %v548
    %v550 = vadd.f32 %v533, 1.0
    %v551 = vadd.f32 %v535, 1.0
    %v552 = vadd.f32 %v537, 1.0
    %v553 = vadd.f32 %v539, 1.0
    %v554 = vadd.f32 %v541, 1.0
    %v555 = vadd.f32 %v543, 1.0
    %v556 = vadd.f32 %v545, 1.0
    %v557 = vadd.f32 %v547, 1.0
    %v558 = vadd.f32 %v549, 1.0
    %568 = vrot.lane.b32.xlu0 %v550, 112
    %v569 = vpop.permute.xlu0 %568
    %570 = vrot.lane.b32.xlu0 %v551, 112
    %v571 = vpop.permute.xlu0 %570
    %572 = vrot.lane.b32.xlu0 %v552, 112
    %v573 = vpop.permute.xlu0 %572
    %574 = vrot.lane.b32.xlu0 %v553, 112
    %v575 = vpop.permute.xlu0 %574
    %576 = vrot.lane.b32.xlu0 %v554, 112
    %v577 = vpop.permute.xlu0 %576
    %578 = vrot.lane.b32.xlu0 %v555, 112
    %v579 = vpop.permute.xlu0 %578
    %580 = vrot.lane.b32.xlu0 %v556, 112
    %v581 = vpop.permute.xlu0 %580
    %582 = vrot.lane.b32.xlu0 %v557, 112
    %v583 = vpop.permute.xlu0 %582
    %584 = vrot.lane.b32.xlu0 %v558, 112
    %v585 = vpop.permute.xlu0 %584
    %v595 = vrcp.pop %v569
    %v596 = vmul.f32 %v569, %v595
    %v597 = vsub.f32 1.0, %v596
    %v598 = vmul.f32 %v595, %v597
    %v599 = vadd.f32 %v595, %v598
    %vm600 = vweird.f32 %v569
    %vm601 = vweird.f32 %v595
    %vm602 = vmor %vm600, %vm601
    %v603 = vsel %vm602, %v595, %v599
    %v604 = vand.u32 2147483647, %v569
    %vm605 = vcmp.eq.f32.partialorder %v604, 8.507059e+37
    %v606 = vand.u32 %v569, 2147483648
    %v607 = vor.u32 1.1754944e-38, %v606
    %v608 = vsel %vm605, %v607, %v603
    %v609 = vmul.f32 %v514, %v608
    %v610 = vrcp.pop %v571
    %v611 = vmul.f32 %v571, %v610
    %v612 = vsub.f32 1.0, %v611
    %v613 = vmul.f32 %v610, %v612
    %v614 = vadd.f32 %v610, %v613
    %vm615 = vweird.f32 %v571
    %vm616 = vweird.f32 %v610
    %vm617 = vmor %vm615, %vm616
    %v618 = vsel %vm617, %v610, %v614
    %v619 = vand.u32 2147483647, %v571
    %vm620 = vcmp.eq.f32.partialorder %v619, 8.507059e+37
    %v621 = vand.u32 %v571, 2147483648
    %v622 = vor.u32 1.1754944e-38, %v621
    %v623 = vsel %vm620, %v622, %v618
    %v624 = vmul.f32 %v515, %v623
    %v625 = vrcp.pop %v573
    %v626 = vmul.f32 %v573, %v625
    %v627 = vsub.f32 1.0, %v626
    %v628 = vmul.f32 %v625, %v627
    %v629 = vadd.f32 %v625, %v628
    %vm630 = vweird.f32 %v573
    %vm631 = vweird.f32 %v625
    %vm632 = vmor %vm630, %vm631
    %v633 = vsel %vm632, %v625, %v629
    %v634 = vand.u32 2147483647, %v573
    %vm635 = vcmp.eq.f32.partialorder %v634, 8.507059e+37
    %v636 = vand.u32 %v573, 2147483648
    %v637 = vor.u32 1.1754944e-38, %v636
    %v638 = vsel %vm635, %v637, %v633
    %v639 = vmul.f32 %v516, %v638
    %v640 = vrcp.pop %v575
    %v641 = vmul.f32 %v575, %v640
    %v642 = vsub.f32 1.0, %v641
    %v643 = vmul.f32 %v640, %v642
    %v644 = vadd.f32 %v640, %v643
    %vm645 = vweird.f32 %v575
    %vm646 = vweird.f32 %v640
    %vm647 = vmor %vm645, %vm646
    %v648 = vsel %vm647, %v640, %v644
    %v649 = vand.u32 2147483647, %v575
    %vm650 = vcmp.eq.f32.partialorder %v649, 8.507059e+37
    %v651 = vand.u32 %v575, 2147483648
    %v652 = vor.u32 1.1754944e-38, %v651
    %v653 = vsel %vm650, %v652, %v648
    %v654 = vmul.f32 %v517, %v653
    %v655 = vrcp.pop %v577
    %v656 = vmul.f32 %v577, %v655
    %v657 = vsub.f32 1.0, %v656
    %v658 = vmul.f32 %v655, %v657
    %v659 = vadd.f32 %v655, %v658
    %vm660 = vweird.f32 %v577
    %vm661 = vweird.f32 %v655
    %vm662 = vmor %vm660, %vm661
    %v663 = vsel %vm662, %v655, %v659
    %v664 = vand.u32 2147483647, %v577
    %vm665 = vcmp.eq.f32.partialorder %v664, 8.507059e+37
    %v666 = vand.u32 %v577, 2147483648
    %v667 = vor.u32 1.1754944e-38, %v666
    %v668 = vsel %vm665, %v667, %v663
    %v669 = vmul.f32 %v518, %v668
    %v670 = vrcp.pop %v579
    %v671 = vmul.f32 %v579, %v670
    %v672 = vsub.f32 1.0, %v671
    %v673 = vmul.f32 %v670, %v672
    %v674 = vadd.f32 %v670, %v673
    %vm675 = vweird.f32 %v579
    %vm676 = vweird.f32 %v670
    %vm677 = vmor %vm675, %vm676
    %v678 = vsel %vm677, %v670, %v674
    %v679 = vand.u32 2147483647, %v579
    %vm680 = vcmp.eq.f32.partialorder %v679, 8.507059e+37
    %v681 = vand.u32 %v579, 2147483648
    %v682 = vor.u32 1.1754944e-38, %v681
    %v683 = vsel %vm680, %v682, %v678
    %v684 = vmul.f32 %v519, %v683
    %v685 = vrcp.pop %v581
    %v686 = vmul.f32 %v581, %v685
    %v687 = vsub.f32 1.0, %v686
    %v688 = vmul.f32 %v685, %v687
    %v689 = vadd.f32 %v685, %v688
    %vm690 = vweird.f32 %v581
    %vm691 = vweird.f32 %v685
    %vm692 = vmor %vm690, %vm691
    %v693 = vsel %vm692, %v685, %v689
    %v694 = vand.u32 2147483647, %v581
    %vm695 = vcmp.eq.f32.partialorder %v694, 8.507059e+37
    %v696 = vand.u32 %v581, 2147483648
    %v697 = vor.u32 1.1754944e-38, %v696
    %v698 = vsel %vm695, %v697, %v693
    %v699 = vmul.f32 %v520, %v698
    %v700 = vrcp.pop %v583
    %v701 = vmul.f32 %v583, %v700
    %v702 = vsub.f32 1.0, %v701
    %v703 = vmul.f32 %v700, %v702
    %v704 = vadd.f32 %v700, %v703
    %vm705 = vweird.f32 %v583
    %vm706 = vweird.f32 %v700
    %vm707 = vmor %vm705, %vm706
    %v708 = vsel %vm707, %v700, %v704
    %v709 = vand.u32 2147483647, %v583
    %vm710 = vcmp.eq.f32.partialorder %v709, 8.507059e+37
    %v711 = vand.u32 %v583, 2147483648
    %v712 = vor.u32 1.1754944e-38, %v711
    %v713 = vsel %vm710, %v712, %v708
    %v714 = vmul.f32 %v521, %v713
    %v715 = vrcp.pop %v585
    %v716 = vmul.f32 %v585, %v715
    %v717 = vsub.f32 1.0, %v716
    %v718 = vmul.f32 %v715, %v717
    %v719 = vadd.f32 %v715, %v718
    %vm720 = vweird.f32 %v585
    %vm721 = vweird.f32 %v715
    %vm722 = vmor %vm720, %vm721
    %v723 = vsel %vm722, %v715, %v719
    %v724 = vand.u32 2147483647, %v585
    %vm725 = vcmp.eq.f32.partialorder %v724, 8.507059e+37
    %v726 = vand.u32 %v585, 2147483648
    %v727 = vor.u32 1.1754944e-38, %v726
    %v728 = vsel %vm725, %v727, %v723
    %v729 = vmul.f32 %v522, %v728
    %v730 = vpack.c.bf16 %v609, %v609
    %v731 = vpack.c.bf16 %v624, %v624
    %v732 = vpack.c.bf16 %v639, %v639
    %v733 = vpack.c.bf16 %v654, %v654
    %v734 = vpack.c.bf16 %v669, %v669
    %v735 = vpack.c.bf16 %v684, %v684
    %v736 = vpack.c.bf16 %v699, %v699
    %v737 = vpack.c.bf16 %v714, %v714
    %v738 = vpack.c.bf16 %v729, %v729
    %vm739 = vcmask 125952
    %740 = vst.msk [vmem:[%s3] sm:$0xf] %vm739, %v730
    %741 = vst.msk [vmem:[%s3 + $0x4] sm:$0xf] %vm739, %v731
    %742 = vst.msk [vmem:[%s3 + $0x8] sm:$0xf] %vm739, %v732
    %743 = vst.msk [vmem:[%s3 + $0xc] sm:$0xf] %vm739, %v733
    %744 = vst.msk [vmem:[%s3 + $0x10] sm:$0xf] %vm739, %v734
    %745 = vst.msk [vmem:[%s3 + $0x14] sm:$0xf] %vm739, %v735
    %746 = vst.msk [vmem:[%s3 + $0x18] sm:$0xf] %vm739, %v736
    %747 = vst.msk [vmem:[%s3 + $0x1c] sm:$0xf] %vm739, %v737
    %748 = vst.msk [vmem:[%s3 + $0x20] sm:$0xf] %vm739, %v738
    // Predicated region
    $region22: #{uttr_decoder_forward.4} parent=1 // pred_check
      _
    $region23: #{uttr_decoder_forward.4} parent=1 // pred_check_branch
      %750 = sbr.rel (0) target = $region25
    $region24: #{uttr_decoder_forward.4} parent=1 // pred_region
      _
    $region25: #{uttr_decoder_forward.4} parent=1 // pred_fallthru
      _
    // Predicated region
    $region26: #{uttr_decoder_forward.4} parent=1 // pred_check
      _
    $region27: #{uttr_decoder_forward.4} parent=1 // pred_check_branch
      %752 = sbr.rel (0) target = $region29
    $region28: #{uttr_decoder_forward.4} parent=1 // pred_region
      _
    $region29: #{uttr_decoder_forward.4} parent=1 // pred_fallthru
      _
    %753 = vsyncpa [#allocation3], 1
    %754 = vsyncpa [#allocation5], 1

// kernel: uttr_decoder_forward.5
$region0: #{uttr_decoder_forward.5}
  #allocation0 [shape = 'u32[]', space=smem, size = 0x4, offset = 0x4, fixed_abs, tag = 'smem constant byte address 0x4 - core index']
  #allocation1 [shape = 'u32[72,128]{1,0:T(1,128)}', space=vmem, size = 0x9000, scoped, tag = 'internal scratch']
  %s0 = inlined_call_operand.vmem [shape: bf16[4,72,128], index: 0, kind: input, shape index: {}]
  %s1 = inlined_call_operand.hbm [shape: bf16[4,128,32], index: 1, kind: input, shape index: {}]
  %s2 = inlined_call_operand.hbm [shape: f32[1,32], index: 2, kind: input, shape index: {}]
  %s3 = inlined_call_operand.vmem [shape: bf16[288,16], index: 3, kind: output, shape index: {}]
  %s4 = sld [smem:[#allocation0]]
  $region30: #{uttr_decoder_forward.5} parent=0
    _
  %s6 = ssub.s32 1, %s4
  %s7 = scalar_select 0, %s6, %s4
  $region1: #{uttr_decoder_forward.5} parent=0
    #allocation2 [shape = 'u8[131072]{0}', space=vmem, size = 0x20000, scoped, tag = 'input window, operand 1, single buffered']
    #allocation3 [shape = 's32[1]{0}', space=sflag, size = 0x4, scoped, tag = 'scoped memory for uttr_decoder_forward.5']
    #allocation4 [shape = 'u8[512]{0}', space=vmem, size = 0x400, scoped, tag = 'input window, operand 2, single buffered']
    #allocation5 [shape = 's32[1]{0}', space=sflag, size = 0x4, scoped, tag = 'scoped memory for uttr_decoder_forward.5']
    %8 = vsyncpa [#allocation3], 0
    %9 = vsyncpa [#allocation5], 0
    // Predicated region
    $region2: #{uttr_decoder_forward.5} parent=1 // pred_check
      _
    $region3: #{uttr_decoder_forward.5} parent=1 // pred_check_branch
      %11 = sbr.rel (0) target = $region5
    $region4: #{uttr_decoder_forward.5} parent=1 // pred_region
      _
    $region5: #{uttr_decoder_forward.5} parent=1 // pred_fallthru
      _
    // Predicated region
    $region6: #{uttr_decoder_forward.5} parent=1 // pred_check
      _
    $region7: #{uttr_decoder_forward.5} parent=1 // pred_check_branch
      %13 = sbr.rel (0) target = $region9
    $region8: #{uttr_decoder_forward.5} parent=1 // pred_region
      %15 = vsyncadd [#allocation3], 0
      %s16 = sshll.u32 %s1, 4
      %s17 = int_to_ptr.hbm [resolvable:$true] %s16
      %s18 = sshll.u32 [#allocation2], 4
      %s19 = int_to_ptr.vmem [resolvable:$true] %s18
      %24 = dma.hbm_to_vmem [thread:$0]  %s17, 4096, %s19, [#allocation3], 64, 64, 4
    $region9: #{uttr_decoder_forward.5} parent=1 // pred_fallthru
      _
    // Predicated region
    $region10: #{uttr_decoder_forward.5} parent=1 // pred_check
      _
    $region11: #{uttr_decoder_forward.5} parent=1 // pred_check_branch
      %26 = sbr.rel (0) target = $region13
    $region12: #{uttr_decoder_forward.5} parent=1 // pred_region
      %28 = vsyncadd [#allocation5], 0
      %s30 = sshll.u32 %s2, 4
      %s31 = int_to_ptr.hbm [resolvable:$true] %s30
      %s32 = sshll.u32 [#allocation4], 4
      %s33 = int_to_ptr.vmem [resolvable:$true] %s32
      %35 = dma.hbm_to_vmem [thread:$0]  %s31, 16, %s33, [#allocation5]
    $region13: #{uttr_decoder_forward.5} parent=1 // pred_fallthru
      _
    // Predicated region
    $region14: #{uttr_decoder_forward.5} parent=1 // pred_check
      _
    $region15: #{uttr_decoder_forward.5} parent=1 // pred_check_branch
      %37 = sbr.rel (0) target = $region17
    $region16: #{uttr_decoder_forward.5} parent=1 // pred_region
      %39 = dma.done [#allocation3], 4096
    $region17: #{uttr_decoder_forward.5} parent=1 // pred_fallthru
      _
    // Predicated region
    $region18: #{uttr_decoder_forward.5} parent=1 // pred_check
      _
    $region19: #{uttr_decoder_forward.5} parent=1 // pred_check_branch
      %41 = sbr.rel (0) target = $region21
    $region20: #{uttr_decoder_forward.5} parent=1 // pred_region
      %43 = dma.done [#allocation5], 16
    $region21: #{uttr_decoder_forward.5} parent=1 // pred_fallthru
      _
    %v44 = vld [vmem:[%s0] sm:$0xf]
    %v45 = vld [vmem:[%s0 + $0x4] sm:$0xf]
    %v46 = vld [vmem:[%s0 + $0x8] sm:$0xf]
    %v47 = vld [vmem:[%s0 + $0xc] sm:$0xf]
    %v48 = vld [vmem:[%s0 + $0x10] sm:$0xf]
    %v49 = vld [vmem:[%s0 + $0x14] sm:$0xf]
    %v50 = vld [vmem:[%s0 + $0x18] sm:$0xf]
    %v51 = vld [vmem:[%s0 + $0x1c] sm:$0xf]
    %v52 = vld [vmem:[%s0 + $0x20] sm:$0xf]
    %v53 = vld [vmem:[#allocation2] sm:$0xf]
    %v54 = vld [vmem:[#allocation2 + $0x4] sm:$0xf]
    %v55 = vld [vmem:[#allocation2 + $0x8] sm:$0xf]
    %v56 = vld [vmem:[#allocation2 + $0xc] sm:$0xf]
    %v57 = vld [vmem:[#allocation2 + $0x10] sm:$0xf]
    %v58 = vld [vmem:[#allocation2 + $0x14] sm:$0xf]
    %v59 = vld [vmem:[#allocation2 + $0x18] sm:$0xf]
    %v60 = vld [vmem:[#allocation2 + $0x1c] sm:$0xf]
    %v61 = vld [vmem:[#allocation2 + $0x20] sm:$0xf]
    %v62 = vld [vmem:[#allocation2 + $0x24] sm:$0xf]
    %v63 = vld [vmem:[#allocation2 + $0x28] sm:$0xf]
    %v64 = vld [vmem:[#allocation2 + $0x2c] sm:$0xf]
    %v65 = vld [vmem:[#allocation2 + $0x30] sm:$0xf]
    %v66 = vld [vmem:[#allocation2 + $0x34] sm:$0xf]
    %v67 = vld [vmem:[#allocation2 + $0x38] sm:$0xf]
    %v68 = vld [vmem:[#allocation2 + $0x3c] sm:$0xf]
    %v78 = vunpack.c.l.b16 %v44
    %v79 = vunpack.c.l.b16 %v45
    %v80 = vunpack.c.l.b16 %v46
    %v81 = vunpack.c.l.b16 %v47
    %v82 = vunpack.c.l.b16 %v48
    %v83 = vunpack.c.l.b16 %v49
    %v84 = vunpack.c.l.b16 %v50
    %v85 = vunpack.c.l.b16 %v51
    %v86 = vunpack.c.l.b16 %v52
    %v87 = vpack.c.b16 %v79, %v78
    %v88 = vpack.c.b16 %v81, %v80
    %v89 = vpack.c.b16 %v83, %v82
    %v90 = vpack.c.b16 %v85, %v84
    %v91 = vpack.c.b16 %v86, %v86
    %v113 = vunpack.c.l.b16 %v53
    %v114 = vunpack.c.l.b16 %v54
    %v115 = vunpack.c.l.b16 %v55
    %v116 = vunpack.c.l.b16 %v56
    %v117 = vunpack.c.l.b16 %v57
    %v118 = vunpack.c.l.b16 %v58
    %v119 = vunpack.c.l.b16 %v59
    %v120 = vunpack.c.l.b16 %v60
    %v121 = vunpack.c.l.b16 %v61
    %v122 = vunpack.c.l.b16 %v62
    %v123 = vunpack.c.l.b16 %v63
    %v124 = vunpack.c.l.b16 %v64
    %v125 = vunpack.c.l.b16 %v65
    %v126 = vunpack.c.l.b16 %v66
    %v127 = vunpack.c.l.b16 %v67
    %v128 = vunpack.c.l.b16 %v68
    %v129 = vpack.c.b16 %v114, %v113
    %v130 = vpack.c.b16 %v116, %v115
    %v131 = vpack.c.b16 %v118, %v117
    %v132 = vpack.c.b16 %v120, %v119
    %v133 = vpack.c.b16 %v122, %v121
    %v134 = vpack.c.b16 %v124, %v123
    %v135 = vpack.c.b16 %v126, %v125
    %v136 = vpack.c.b16 %v128, %v127
    %145 = vmatpush.bf16.msra.mxu0 %v136
    %146 = vmatpush.bf16.msra.mxu0 %v135
    %147 = vmatpush.bf16.msra.mxu0 %v134
    %148 = vmatpush.bf16.msra.mxu0 %v133
    %149 = vmatpush.bf16.msra.mxu0 %v132
    %150 = vmatpush.bf16.msra.mxu0 %v131
    %151 = vmatpush.bf16.msra.mxu0 %v130
    %152 = vmatpush.bf16.msra.mxu0 %v129
    %153 = vmatmul.bf16.gmra.mxu0 %v87
    %v154 = vpop.f32.mrf.mxu0
    %v155 = vadd.f32 0.0, %v154
    %v156 = vpop.f32.mrf.mxu0
    %v157 = vadd.f32 0.0, %v156
    %158 = vmatmul.bf16.gmra.mxu0 %v88
    %v159 = vpop.f32.mrf.mxu0
    %v160 = vadd.f32 0.0, %v159
    %v161 = vpop.f32.mrf.mxu0
    %v162 = vadd.f32 0.0, %v161
    %163 = vmatmul.bf16.gmra.mxu0 %v89
    %v164 = vpop.f32.mrf.mxu0
    %v165 = vadd.f32 0.0, %v164
    %v166 = vpop.f32.mrf.mxu0
    %v167 = vadd.f32 0.0, %v166
    %168 = vmatmul.bf16.gmra.mxu0 %v90
    %v169 = vpop.f32.mrf.mxu0
    %v170 = vadd.f32 0.0, %v169
    %v171 = vpop.f32.mrf.mxu0
    %v172 = vadd.f32 0.0, %v171
    %173 = vmatmul.bf16.gmra.mxu0 %v91
    %v174 = vpop.f32.mrf.mxu0
    %v175 = vadd.f32 0.0, %v174
    %v176 = vpop.f32.mrf.mxu0
    %177 = vdwg.mxu0
    %s178 = scalar_lea.vmem %s0, 36
    %v179 = vld [vmem:[%s178] sm:$0xf]
    %v180 = vld [vmem:[%s178 + $0x4] sm:$0xf]
    %v181 = vld [vmem:[%s178 + $0x8] sm:$0xf]
    %v182 = vld [vmem:[%s178 + $0xc] sm:$0xf]
    %v183 = vld [vmem:[%s178 + $0x10] sm:$0xf]
    %v184 = vld [vmem:[%s178 + $0x14] sm:$0xf]
    %v185 = vld [vmem:[%s178 + $0x18] sm:$0xf]
    %v186 = vld [vmem:[%s178 + $0x1c] sm:$0xf]
    %v187 = vld [vmem:[%s178 + $0x20] sm:$0xf]
    %s188 = scalar_lea.vmem [#allocation2], 64
    %v189 = vld [vmem:[%s188] sm:$0xf]
    %v190 = vld [vmem:[%s188 + $0x4] sm:$0xf]
    %v191 = vld [vmem:[%s188 + $0x8] sm:$0xf]
    %v192 = vld [vmem:[%s188 + $0xc] sm:$0xf]
    %v193 = vld [vmem:[%s188 + $0x10] sm:$0xf]
    %v194 = vld [vmem:[%s188 + $0x14] sm:$0xf]
    %v195 = vld [vmem:[%s188 + $0x18] sm:$0xf]
    %v196 = vld [vmem:[%s188 + $0x1c] sm:$0xf]
    %v197 = vld [vmem:[%s188 + $0x20] sm:$0xf]
    %v198 = vld [vmem:[%s188 + $0x24] sm:$0xf]
    %v199 = vld [vmem:[%s188 + $0x28] sm:$0xf]
    %v200 = vld [vmem:[%s188 + $0x2c] sm:$0xf]
    %v201 = vld [vmem:[%s188 + $0x30] sm:$0xf]
    %v202 = vld [vmem:[%s188 + $0x34] sm:$0xf]
    %v203 = vld [vmem:[%s188 + $0x38] sm:$0xf]
    %v204 = vld [vmem:[%s188 + $0x3c] sm:$0xf]
    %v214 = vunpack.c.l.b16 %v179
    %v215 = vunpack.c.l.b16 %v180
    %v216 = vunpack.c.l.b16 %v181
    %v217 = vunpack.c.l.b16 %v182
    %v218 = vunpack.c.l.b16 %v183
    %v219 = vunpack.c.l.b16 %v184
    %v220 = vunpack.c.l.b16 %v185
    %v221 = vunpack.c.l.b16 %v186
    %v222 = vunpack.c.l.b16 %v187
    %v223 = vpack.c.b16 %v215, %v214
    %v224 = vpack.c.b16 %v217, %v216
    %v225 = vpack.c.b16 %v219, %v218
    %v226 = vpack.c.b16 %v221, %v220
    %v227 = vpack.c.b16 %v222, %v222
    %v249 = vunpack.c.l.b16 %v189
    %v250 = vunpack.c.l.b16 %v190
    %v251 = vunpack.c.l.b16 %v191
    %v252 = vunpack.c.l.b16 %v192
    %v253 = vunpack.c.l.b16 %v193
    %v254 = vunpack.c.l.b16 %v194
    %v255 = vunpack.c.l.b16 %v195
    %v256 = vunpack.c.l.b16 %v196
    %v257 = vunpack.c.l.b16 %v197
    %v258 = vunpack.c.l.b16 %v198
    %v259 = vunpack.c.l.b16 %v199
    %v260 = vunpack.c.l.b16 %v200
    %v261 = vunpack.c.l.b16 %v201
    %v262 = vunpack.c.l.b16 %v202
    %v263 = vunpack.c.l.b16 %v203
    %v264 = vunpack.c.l.b16 %v204
    %v265 = vpack.c.b16 %v250, %v249
    %v266 = vpack.c.b16 %v252, %v251
    %v267 = vpack.c.b16 %v254, %v253
    %v268 = vpack.c.b16 %v256, %v255
    %v269 = vpack.c.b16 %v258, %v257
    %v270 = vpack.c.b16 %v260, %v259
    %v271 = vpack.c.b16 %v262, %v261
    %v272 = vpack.c.b16 %v264, %v263
    %281 = vmatpush.bf16.msra.mxu0 %v272
    %282 = vmatpush.bf16.msra.mxu0 %v271
    %283 = vmatpush.bf16.msra.mxu0 %v270
    %284 = vmatpush.bf16.msra.mxu0 %v269
    %285 = vmatpush.bf16.msra.mxu0 %v268
    %286 = vmatpush.bf16.msra.mxu0 %v267
    %287 = vmatpush.bf16.msra.mxu0 %v266
    %288 = vmatpush.bf16.msra.mxu0 %v265
    %289 = vmatmul.bf16.gmra.mxu0 %v223
    %v290 = vpop.f32.mrf.mxu0
    %v291 = vadd.f32 0.0, %v290
    %v292 = vpop.f32.mrf.mxu0
    %v293 = vadd.f32 0.0, %v292
    %294 = vmatmul.bf16.gmra.mxu0 %v224
    %v295 = vpop.f32.mrf.mxu0
    %v296 = vadd.f32 0.0, %v295
    %v297 = vpop.f32.mrf.mxu0
    %v298 = vadd.f32 0.0, %v297
    %299 = vmatmul.bf16.gmra.mxu0 %v225
    %v300 = vpop.f32.mrf.mxu0
    %v301 = vadd.f32 0.0, %v300
    %v302 = vpop.f32.mrf.mxu0
    %v303 = vadd.f32 0.0, %v302
    %304 = vmatmul.bf16.gmra.mxu0 %v226
    %v305 = vpop.f32.mrf.mxu0
    %v306 = vadd.f32 0.0, %v305
    %v307 = vpop.f32.mrf.mxu0
    %v308 = vadd.f32 0.0, %v307
    %309 = vmatmul.bf16.gmra.mxu0 %v227
    %v310 = vpop.f32.mrf.mxu0
    %v311 = vadd.f32 0.0, %v310
    %v312 = vpop.f32.mrf.mxu0
    %313 = vdwg.mxu0
    %s314 = scalar_lea.vmem %s0, 72
    %v315 = vld [vmem:[%s314] sm:$0xf]
    %v316 = vld [vmem:[%s314 + $0x4] sm:$0xf]
    %v317 = vld [vmem:[%s314 + $0x8] sm:$0xf]
    %v318 = vld [vmem:[%s314 + $0xc] sm:$0xf]
    %v319 = vld [vmem:[%s314 + $0x10] sm:$0xf]
    %v320 = vld [vmem:[%s314 + $0x14] sm:$0xf]
    %v321 = vld [vmem:[%s314 + $0x18] sm:$0xf]
    %v322 = vld [vmem:[%s314 + $0x1c] sm:$0xf]
    %v323 = vld [vmem:[%s314 + $0x20] sm:$0xf]
    %s324 = scalar_lea.vmem [#allocation2], 128
    %v325 = vld [vmem:[%s324] sm:$0xf]
    %v326 = vld [vmem:[%s324 + $0x4] sm:$0xf]
    %v327 = vld [vmem:[%s324 + $0x8] sm:$0xf]
    %v328 = vld [vmem:[%s324 + $0xc] sm:$0xf]
    %v329 = vld [vmem:[%s324 + $0x10] sm:$0xf]
    %v330 = vld [vmem:[%s324 + $0x14] sm:$0xf]
    %v331 = vld [vmem:[%s324 + $0x18] sm:$0xf]
    %v332 = vld [vmem:[%s324 + $0x1c] sm:$0xf]
    %v333 = vld [vmem:[%s324 + $0x20] sm:$0xf]
    %v334 = vld [vmem:[%s324 + $0x24] sm:$0xf]
    %v335 = vld [vmem:[%s324 + $0x28] sm:$0xf]
    %v336 = vld [vmem:[%s324 + $0x2c] sm:$0xf]
    %v337 = vld [vmem:[%s324 + $0x30] sm:$0xf]
    %v338 = vld [vmem:[%s324 + $0x34] sm:$0xf]
    %v339 = vld [vmem:[%s324 + $0x38] sm:$0xf]
    %v340 = vld [vmem:[%s324 + $0x3c] sm:$0xf]
    %v350 = vunpack.c.l.b16 %v315
    %v351 = vunpack.c.l.b16 %v316
    %v352 = vunpack.c.l.b16 %v317
    %v353 = vunpack.c.l.b16 %v318
    %v354 = vunpack.c.l.b16 %v319
    %v355 = vunpack.c.l.b16 %v320
    %v356 = vunpack.c.l.b16 %v321
    %v357 = vunpack.c.l.b16 %v322
    %v358 = vunpack.c.l.b16 %v323
    %v359 = vpack.c.b16 %v351, %v350
    %v360 = vpack.c.b16 %v353, %v352
    %v361 = vpack.c.b16 %v355, %v354
    %v362 = vpack.c.b16 %v357, %v356
    %v363 = vpack.c.b16 %v358, %v358
    %v385 = vunpack.c.l.b16 %v325
    %v386 = vunpack.c.l.b16 %v326
    %v387 = vunpack.c.l.b16 %v327
    %v388 = vunpack.c.l.b16 %v328
    %v389 = vunpack.c.l.b16 %v329
    %v390 = vunpack.c.l.b16 %v330
    %v391 = vunpack.c.l.b16 %v331
    %v392 = vunpack.c.l.b16 %v332
    %v393 = vunpack.c.l.b16 %v333
    %v394 = vunpack.c.l.b16 %v334
    %v395 = vunpack.c.l.b16 %v335
    %v396 = vunpack.c.l.b16 %v336
    %v397 = vunpack.c.l.b16 %v337
    %v398 = vunpack.c.l.b16 %v338
    %v399 = vunpack.c.l.b16 %v339
    %v400 = vunpack.c.l.b16 %v340
    %v401 = vpack.c.b16 %v386, %v385
    %v402 = vpack.c.b16 %v388, %v387
    %v403 = vpack.c.b16 %v390, %v389
    %v404 = vpack.c.b16 %v392, %v391
    %v405 = vpack.c.b16 %v394, %v393
    %v406 = vpack.c.b16 %v396, %v395
    %v407 = vpack.c.b16 %v398, %v397
    %v408 = vpack.c.b16 %v400, %v399
    %417 = vmatpush.bf16.msra.mxu0 %v408
    %418 = vmatpush.bf16.msra.mxu0 %v407
    %419 = vmatpush.bf16.msra.mxu0 %v406
    %420 = vmatpush.bf16.msra.mxu0 %v405
    %421 = vmatpush.bf16.msra.mxu0 %v404
    %422 = vmatpush.bf16.msra.mxu0 %v403
    %423 = vmatpush.bf16.msra.mxu0 %v402
    %424 = vmatpush.bf16.msra.mxu0 %v401
    %425 = vmatmul.bf16.gmra.mxu0 %v359
    %v426 = vpop.f32.mrf.mxu0
    %v427 = vadd.f32 0.0, %v426
    %v428 = vpop.f32.mrf.mxu0
    %v429 = vadd.f32 0.0, %v428
    %430 = vmatmul.bf16.gmra.mxu0 %v360
    %v431 = vpop.f32.mrf.mxu0
    %v432 = vadd.f32 0.0, %v431
    %v433 = vpop.f32.mrf.mxu0
    %v434 = vadd.f32 0.0, %v433
    %435 = vmatmul.bf16.gmra.mxu0 %v361
    %v436 = vpop.f32.mrf.mxu0
    %v437 = vadd.f32 0.0, %v436
    %v438 = vpop.f32.mrf.mxu0
    %v439 = vadd.f32 0.0, %v438
    %440 = vmatmul.bf16.gmra.mxu0 %v362
    %v441 = vpop.f32.mrf.mxu0
    %v442 = vadd.f32 0.0, %v441
    %v443 = vpop.f32.mrf.mxu0
    %v444 = vadd.f32 0.0, %v443
    %445 = vmatmul.bf16.gmra.mxu0 %v363
    %v446 = vpop.f32.mrf.mxu0
    %v447 = vadd.f32 0.0, %v446
    %v448 = vpop.f32.mrf.mxu0
    %449 = vdwg.mxu0
    %s450 = scalar_lea.vmem %s0, 108
    %v451 = vld [vmem:[%s450] sm:$0xf]
    %v452 = vld [vmem:[%s450 + $0x4] sm:$0xf]
    %v453 = vld [vmem:[%s450 + $0x8] sm:$0xf]
    %v454 = vld [vmem:[%s450 + $0xc] sm:$0xf]
    %v455 = vld [vmem:[%s450 + $0x10] sm:$0xf]
    %v456 = vld [vmem:[%s450 + $0x14] sm:$0xf]
    %v457 = vld [vmem:[%s450 + $0x18] sm:$0xf]
    %v458 = vld [vmem:[%s450 + $0x1c] sm:$0xf]
    %v459 = vld [vmem:[%s450 + $0x20] sm:$0xf]
    %s460 = scalar_lea.vmem [#allocation2], 192
    %v461 = vld [vmem:[%s460] sm:$0xf]
    %v462 = vld [vmem:[%s460 + $0x4] sm:$0xf]
    %v463 = vld [vmem:[%s460 + $0x8] sm:$0xf]
    %v464 = vld [vmem:[%s460 + $0xc] sm:$0xf]
    %v465 = vld [vmem:[%s460 + $0x10] sm:$0xf]
    %v466 = vld [vmem:[%s460 + $0x14] sm:$0xf]
    %v467 = vld [vmem:[%s460 + $0x18] sm:$0xf]
    %v468 = vld [vmem:[%s460 + $0x1c] sm:$0xf]
    %v469 = vld [vmem:[%s460 + $0x20] sm:$0xf]
    %v470 = vld [vmem:[%s460 + $0x24] sm:$0xf]
    %v471 = vld [vmem:[%s460 + $0x28] sm:$0xf]
    %v472 = vld [vmem:[%s460 + $0x2c] sm:$0xf]
    %v473 = vld [vmem:[%s460 + $0x30] sm:$0xf]
    %v474 = vld [vmem:[%s460 + $0x34] sm:$0xf]
    %v475 = vld [vmem:[%s460 + $0x38] sm:$0xf]
    %v476 = vld [vmem:[%s460 + $0x3c] sm:$0xf]
    %v486 = vunpack.c.l.b16 %v451
    %v487 = vunpack.c.l.b16 %v452
    %v488 = vunpack.c.l.b16 %v453
    %v489 = vunpack.c.l.b16 %v454
    %v490 = vunpack.c.l.b16 %v455
    %v491 = vunpack.c.l.b16 %v456
    %v492 = vunpack.c.l.b16 %v457
    %v493 = vunpack.c.l.b16 %v458
    %v494 = vunpack.c.l.b16 %v459
    %v495 = vpack.c.b16 %v487, %v486
    %v496 = vpack.c.b16 %v489, %v488
    %v497 = vpack.c.b16 %v491, %v490
    %v498 = vpack.c.b16 %v493, %v492
    %v499 = vpack.c.b16 %v494, %v494
    %v521 = vunpack.c.l.b16 %v461
    %v522 = vunpack.c.l.b16 %v462
    %v523 = vunpack.c.l.b16 %v463
    %v524 = vunpack.c.l.b16 %v464
    %v525 = vunpack.c.l.b16 %v465
    %v526 = vunpack.c.l.b16 %v466
    %v527 = vunpack.c.l.b16 %v467
    %v528 = vunpack.c.l.b16 %v468
    %v529 = vunpack.c.l.b16 %v469
    %v530 = vunpack.c.l.b16 %v470
    %v531 = vunpack.c.l.b16 %v471
    %v532 = vunpack.c.l.b16 %v472
    %v533 = vunpack.c.l.b16 %v473
    %v534 = vunpack.c.l.b16 %v474
    %v535 = vunpack.c.l.b16 %v475
    %v536 = vunpack.c.l.b16 %v476
    %v537 = vpack.c.b16 %v522, %v521
    %v538 = vpack.c.b16 %v524, %v523
    %v539 = vpack.c.b16 %v526, %v525
    %v540 = vpack.c.b16 %v528, %v527
    %v541 = vpack.c.b16 %v530, %v529
    %v542 = vpack.c.b16 %v532, %v531
    %v543 = vpack.c.b16 %v534, %v533
    %v544 = vpack.c.b16 %v536, %v535
    %553 = vmatpush.bf16.msra.mxu0 %v544
    %554 = vmatpush.bf16.msra.mxu0 %v543
    %555 = vmatpush.bf16.msra.mxu0 %v542
    %556 = vmatpush.bf16.msra.mxu0 %v541
    %557 = vmatpush.bf16.msra.mxu0 %v540
    %558 = vmatpush.bf16.msra.mxu0 %v539
    %559 = vmatpush.bf16.msra.mxu0 %v538
    %560 = vmatpush.bf16.msra.mxu0 %v537
    %561 = vmatmul.bf16.gmra.mxu0 %v495
    %v562 = vpop.f32.mrf.mxu0
    %v563 = vadd.f32 0.0, %v562
    %v564 = vpop.f32.mrf.mxu0
    %v565 = vadd.f32 0.0, %v564
    %566 = vmatmul.bf16.gmra.mxu0 %v496
    %v567 = vpop.f32.mrf.mxu0
    %v568 = vadd.f32 0.0, %v567
    %v569 = vpop.f32.mrf.mxu0
    %v570 = vadd.f32 0.0, %v569
    %571 = vmatmul.bf16.gmra.mxu0 %v497
    %v572 = vpop.f32.mrf.mxu0
    %v573 = vadd.f32 0.0, %v572
    %v574 = vpop.f32.mrf.mxu0
    %v575 = vadd.f32 0.0, %v574
    %576 = vmatmul.bf16.gmra.mxu0 %v498
    %v577 = vpop.f32.mrf.mxu0
    %v578 = vadd.f32 0.0, %v577
    %v579 = vpop.f32.mrf.mxu0
    %v580 = vadd.f32 0.0, %v579
    %581 = vmatmul.bf16.gmra.mxu0 %v499
    %v582 = vpop.f32.mrf.mxu0
    %v583 = vadd.f32 0.0, %v582
    %v584 = vpop.f32.mrf.mxu0
    %585 = vdwg.mxu0
    %v586 = vld [vmem:[#allocation4] sm:$0x1]
    %v588 = vperm.slane %v586, 0
    %v590 = vadd.f32 %v155, %v588
    %v591 = vadd.f32 %v157, %v588
    %v592 = vadd.f32 %v160, %v588
    %v593 = vadd.f32 %v162, %v588
    %v594 = vadd.f32 %v165, %v588
    %v595 = vadd.f32 %v167, %v588
    %v596 = vadd.f32 %v170, %v588
    %v597 = vadd.f32 %v172, %v588
    %v598 = vadd.f32 %v175, %v588
    %v599 = vadd.f32 %v291, %v588
    %v600 = vadd.f32 %v293, %v588
    %v601 = vadd.f32 %v296, %v588
    %v602 = vadd.f32 %v298, %v588
    %v603 = vadd.f32 %v301, %v588
    %v604 = vadd.f32 %v303, %v588
    %v605 = vadd.f32 %v306, %v588
    %v606 = vadd.f32 %v308, %v588
    %v607 = vadd.f32 %v311, %v588
    %v608 = vadd.f32 %v427, %v588
    %v609 = vadd.f32 %v429, %v588
    %v610 = vadd.f32 %v432, %v588
    %v611 = vadd.f32 %v434, %v588
    %v612 = vadd.f32 %v437, %v588
    %v613 = vadd.f32 %v439, %v588
    %v614 = vadd.f32 %v442, %v588
    %v615 = vadd.f32 %v444, %v588
    %v616 = vadd.f32 %v447, %v588
    %v617 = vadd.f32 %v563, %v588
    %v618 = vadd.f32 %v565, %v588
    %v619 = vadd.f32 %v568, %v588
    %v620 = vadd.f32 %v570, %v588
    %v621 = vadd.f32 %v573, %v588
    %v622 = vadd.f32 %v575, %v588
    %v623 = vadd.f32 %v578, %v588
    %v624 = vadd.f32 %v580, %v588
    %v625 = vadd.f32 %v583, %v588
    %vm626 = vcmask 261120
    %v627 = vsel %vm626, %v590, 0.0
    %v628 = vsel %vm626, %v591, 0.0
    %v629 = vadd.f32 %v627, %v628
    %v630 = vsel %vm626, %v592, 0.0
    %v631 = vadd.f32 %v629, %v630
    %v632 = vsel %vm626, %v593, 0.0
    %v633 = vadd.f32 %v631, %v632
    %v634 = vsel %vm626, %v594, 0.0
    %v635 = vadd.f32 %v633, %v634
    %v636 = vsel %vm626, %v595, 0.0
    %v637 = vadd.f32 %v635, %v636
    %v638 = vsel %vm626, %v596, 0.0
    %v639 = vadd.f32 %v637, %v638
    %v640 = vsel %vm626, %v597, 0.0
    %v641 = vadd.f32 %v639, %v640
    %v642 = vsel %vm626, %v598, 0.0
    %v643 = vadd.f32 %v641, %v642
    %v644 = vsel %vm626, %v599, 0.0
    %v645 = vadd.f32 %v643, %v644
    %v646 = vsel %vm626, %v600, 0.0
    %v647 = vadd.f32 %v645, %v646
    %v648 = vsel %vm626, %v601, 0.0
    %v649 = vadd.f32 %v647, %v648
    %v650 = vsel %vm626, %v602, 0.0
    %v651 = vadd.f32 %v649, %v650
    %v652 = vsel %vm626, %v603, 0.0
    %v653 = vadd.f32 %v651, %v652
    %v654 = vsel %vm626, %v604, 0.0
    %v655 = vadd.f32 %v653, %v654
    %v656 = vsel %vm626, %v605, 0.0
    %v657 = vadd.f32 %v655, %v656
    %v658 = vsel %vm626, %v606, 0.0
    %v659 = vadd.f32 %v657, %v658
    %v660 = vsel %vm626, %v607, 0.0
    %v661 = vadd.f32 %v659, %v660
    %v662 = vsel %vm626, %v608, 0.0
    %v663 = vadd.f32 %v661, %v662
    %v664 = vsel %vm626, %v609, 0.0
    %v665 = vadd.f32 %v663, %v664
    %v666 = vsel %vm626, %v610, 0.0
    %v667 = vadd.f32 %v665, %v666
    %v668 = vsel %vm626, %v611, 0.0
    %v669 = vadd.f32 %v667, %v668
    %v670 = vsel %vm626, %v612, 0.0
    %v671 = vadd.f32 %v669, %v670
    %v672 = vsel %vm626, %v613, 0.0
    %v673 = vadd.f32 %v671, %v672
    %v674 = vsel %vm626, %v614, 0.0
    %v675 = vadd.f32 %v673, %v674
    %v676 = vsel %vm626, %v615, 0.0
    %v677 = vadd.f32 %v675, %v676
    %v678 = vsel %vm626, %v616, 0.0
    %v679 = vadd.f32 %v677, %v678
    %v680 = vsel %vm626, %v617, 0.0
    %v681 = vadd.f32 %v679, %v680
    %v682 = vsel %vm626, %v618, 0.0
    %v683 = vadd.f32 %v681, %v682
    %v684 = vsel %vm626, %v619, 0.0
    %v685 = vadd.f32 %v683, %v684
    %v686 = vsel %vm626, %v620, 0.0
    %v687 = vadd.f32 %v685, %v686
    %v688 = vsel %vm626, %v621, 0.0
    %v689 = vadd.f32 %v687, %v688
    %v690 = vsel %vm626, %v622, 0.0
    %v691 = vadd.f32 %v689, %v690
    %v692 = vsel %vm626, %v623, 0.0
    %v693 = vadd.f32 %v691, %v692
    %v694 = vsel %vm626, %v624, 0.0
    %v695 = vadd.f32 %v693, %v694
    %v696 = vsel %vm626, %v625, 0.0
    %v697 = vadd.f32 %v695, %v696
    %v698 = vrot.slane %v697, 4
    %v699 = vadd.f32 %v697, %v698
    %v700 = vrot.slane %v699, 2
    %v701 = vadd.f32 %v699, %v700
    %v702 = vrot.slane %v701, 1
    %v703 = vadd.f32 %v701, %v702
    %v704 = vmul.f32 %v703, 0.0034722222
    %v705 = vsub.f32 %v590, %v704
    %v706 = vsub.f32 %v591, %v704
    %v707 = vsub.f32 %v592, %v704
    %v708 = vsub.f32 %v593, %v704
    %v709 = vsub.f32 %v594, %v704
    %v710 = vsub.f32 %v595, %v704
    %v711 = vsub.f32 %v596, %v704
    %v712 = vsub.f32 %v597, %v704
    %v713 = vsub.f32 %v598, %v704
    %v714 = vsub.f32 %v599, %v704
    %v715 = vsub.f32 %v600, %v704
    %v716 = vsub.f32 %v601, %v704
    %v717 = vsub.f32 %v602, %v704
    %v718 = vsub.f32 %v603, %v704
    %v719 = vsub.f32 %v604, %v704
    %v720 = vsub.f32 %v605, %v704
    %v721 = vsub.f32 %v606, %v704
    %v722 = vsub.f32 %v607, %v704
    %v723 = vsub.f32 %v608, %v704
    %v724 = vsub.f32 %v609, %v704
    %v725 = vsub.f32 %v610, %v704
    %v726 = vsub.f32 %v611, %v704
    %v727 = vsub.f32 %v612, %v704
    %v728 = vsub.f32 %v613, %v704
    %v729 = vsub.f32 %v614, %v704
    %v730 = vsub.f32 %v615, %v704
    %v731 = vsub.f32 %v616, %v704
    %v732 = vsub.f32 %v617, %v704
    %v733 = vsub.f32 %v618, %v704
    %v734 = vsub.f32 %v619, %v704
    %v735 = vsub.f32 %v620, %v704
    %v736 = vsub.f32 %v621, %v704
    %v737 = vsub.f32 %v622, %v704
    %v738 = vsub.f32 %v623, %v704
    %v739 = vsub.f32 %v624, %v704
    %v740 = vsub.f32 %v625, %v704
    %v741 = vmul.f32 %v705, %v705
    %v742 = vmul.f32 %v706, %v706
    %v743 = vmul.f32 %v707, %v707
    %v744 = vmul.f32 %v708, %v708
    %v745 = vmul.f32 %v709, %v709
    %v746 = vmul.f32 %v710, %v710
    %v747 = vmul.f32 %v711, %v711
    %v748 = vmul.f32 %v712, %v712
    %v749 = vmul.f32 %v713, %v713
    %v750 = vmul.f32 %v714, %v714
    %v751 = vmul.f32 %v715, %v715
    %v752 = vmul.f32 %v716, %v716
    %v753 = vmul.f32 %v717, %v717
    %v754 = vmul.f32 %v718, %v718
    %v755 = vmul.f32 %v719, %v719
    %v756 = vmul.f32 %v720, %v720
    %v757 = vmul.f32 %v721, %v721
    %v758 = vmul.f32 %v722, %v722
    %v759 = vmul.f32 %v723, %v723
    %v760 = vmul.f32 %v724, %v724
    %v761 = vmul.f32 %v725, %v725
    %v762 = vmul.f32 %v726, %v726
    %v763 = vmul.f32 %v727, %v727
    %v764 = vmul.f32 %v728, %v728
    %v765 = vmul.f32 %v729, %v729
    %v766 = vmul.f32 %v730, %v730
    %v767 = vmul.f32 %v731, %v731
    %v768 = vmul.f32 %v732, %v732
    %v769 = vmul.f32 %v733, %v733
    %v770 = vmul.f32 %v734, %v734
    %v771 = vmul.f32 %v735, %v735
    %v772 = vmul.f32 %v736, %v736
    %v773 = vmul.f32 %v737, %v737
    %v774 = vmul.f32 %v738, %v738
    %v775 = vmul.f32 %v739, %v739
    %v776 = vmul.f32 %v740, %v740
    %v777 = vsel %vm626, %v741, 0.0
    %v778 = vsel %vm626, %v742, 0.0
    %v779 = vadd.f32 %v777, %v778
    %v780 = vsel %vm626, %v743, 0.0
    %v781 = vadd.f32 %v779, %v780
    %v782 = vsel %vm626, %v744, 0.0
    %v783 = vadd.f32 %v781, %v782
    %v784 = vsel %vm626, %v745, 0.0
    %v785 = vadd.f32 %v783, %v784
    %v786 = vsel %vm626, %v746, 0.0
    %v787 = vadd.f32 %v785, %v786
    %v788 = vsel %vm626, %v747, 0.0
    %v789 = vadd.f32 %v787, %v788
    %v790 = vsel %vm626, %v748, 0.0
    %v791 = vadd.f32 %v789, %v790
    %v792 = vsel %vm626, %v749, 0.0
    %v793 = vadd.f32 %v791, %v792
    %v794 = vsel %vm626, %v750, 0.0
    %v795 = vadd.f32 %v793, %v794
    %v796 = vsel %vm626, %v751, 0.0
    %v797 = vadd.f32 %v795, %v796
    %v798 = vsel %vm626, %v752, 0.0
    %v799 = vadd.f32 %v797, %v798
    %v800 = vsel %vm626, %v753, 0.0
    %v801 = vadd.f32 %v799, %v800
    %v802 = vsel %vm626, %v754, 0.0
    %v803 = vadd.f32 %v801, %v802
    %v804 = vsel %vm626, %v755, 0.0
    %v805 = vadd.f32 %v803, %v804
    %v806 = vsel %vm626, %v756, 0.0
    %v807 = vadd.f32 %v805, %v806
    %v808 = vsel %vm626, %v757, 0.0
    %v809 = vadd.f32 %v807, %v808
    %v810 = vsel %vm626, %v758, 0.0
    %v811 = vadd.f32 %v809, %v810
    %v812 = vsel %vm626, %v759, 0.0
    %v813 = vadd.f32 %v811, %v812
    %v814 = vsel %vm626, %v760, 0.0
    %v815 = vadd.f32 %v813, %v814
    %v816 = vsel %vm626, %v761, 0.0
    %v817 = vadd.f32 %v815, %v816
    %v818 = vsel %vm626, %v762, 0.0
    %v819 = vadd.f32 %v817, %v818
    %v820 = vsel %vm626, %v763, 0.0
    %v821 = vadd.f32 %v819, %v820
    %v822 = vsel %vm626, %v764, 0.0
    %v823 = vadd.f32 %v821, %v822
    %v824 = vsel %vm626, %v765, 0.0
    %v825 = vadd.f32 %v823, %v824
    %v826 = vsel %vm626, %v766, 0.0
    %v827 = vadd.f32 %v825, %v826
    %v828 = vsel %vm626, %v767, 0.0
    %v829 = vadd.f32 %v827, %v828
    %v830 = vsel %vm626, %v768, 0.0
    %v831 = vadd.f32 %v829, %v830
    %v832 = vsel %vm626, %v769, 0.0
    %v833 = vadd.f32 %v831, %v832
    %v834 = vsel %vm626, %v770, 0.0
    %v835 = vadd.f32 %v833, %v834
    %v836 = vsel %vm626, %v771, 0.0
    %v837 = vadd.f32 %v835, %v836
    %v838 = vsel %vm626, %v772, 0.0
    %v839 = vadd.f32 %v837, %v838
    %v840 = vsel %vm626, %v773, 0.0
    %v841 = vadd.f32 %v839, %v840
    %v842 = vsel %vm626, %v774, 0.0
    %v843 = vadd.f32 %v841, %v842
    %v844 = vsel %vm626, %v775, 0.0
    %v845 = vadd.f32 %v843, %v844
    %v846 = vsel %vm626, %v776, 0.0
    %v847 = vadd.f32 %v845, %v846
    %v848 = vrot.slane %v847, 4
    %v849 = vadd.f32 %v847, %v848
    %v850 = vrot.slane %v849, 2
    %v851 = vadd.f32 %v849, %v850
    %v852 = vrot.slane %v851, 1
    %v853 = vadd.f32 %v851, %v852
    %v854 = vmul.f32 %v853, 0.0034722222
    %v855 = vadd.f32 %v854, 1e-05
    %v856 = vrsqrt.pop %v855
    %v857 = vmul.f32 %v856, %v855
    %v858 = vmul.f32 %v857, %v856
    %v859 = vmul.f32 0.5, %v858
    %v860 = vsub.f32 1.5, %v859
    %v861 = vmul.f32 %v856, %v860
    %vm862 = vweird.f32 %v855
    %vm863 = vweird.f32 %v856
    %vm864 = vmor %vm862, %vm863
    %v865 = vsel %vm864, %v856, %v861
    %v866 = vmul.f32 %v705, %v865
    %v867 = vmul.f32 %v706, %v865
    %v868 = vmul.f32 %v707, %v865
    %v869 = vmul.f32 %v708, %v865
    %v870 = vmul.f32 %v709, %v865
    %v871 = vmul.f32 %v710, %v865
    %v872 = vmul.f32 %v711, %v865
    %v873 = vmul.f32 %v712, %v865
    %v874 = vmul.f32 %v713, %v865
    %v875 = vmul.f32 %v714, %v865
    %v876 = vmul.f32 %v715, %v865
    %v877 = vmul.f32 %v716, %v865
    %v878 = vmul.f32 %v717, %v865
    %v879 = vmul.f32 %v718, %v865
    %v880 = vmul.f32 %v719, %v865
    %v881 = vmul.f32 %v720, %v865
    %v882 = vmul.f32 %v721, %v865
    %v883 = vmul.f32 %v722, %v865
    %v884 = vmul.f32 %v723, %v865
    %v885 = vmul.f32 %v724, %v865
    %v886 = vmul.f32 %v725, %v865
    %v887 = vmul.f32 %v726, %v865
    %v888 = vmul.f32 %v727, %v865
    %v889 = vmul.f32 %v728, %v865
    %v890 = vmul.f32 %v729, %v865
    %v891 = vmul.f32 %v730, %v865
    %v892 = vmul.f32 %v731, %v865
    %v893 = vmul.f32 %v732, %v865
    %v894 = vmul.f32 %v733, %v865
    %v895 = vmul.f32 %v734, %v865
    %v896 = vmul.f32 %v735, %v865
    %v897 = vmul.f32 %v736, %v865
    %v898 = vmul.f32 %v737, %v865
    %v899 = vmul.f32 %v738, %v865
    %v900 = vmul.f32 %v739, %v865
    %v901 = vmul.f32 %v740, %v865
    %v902 = vsub.f32 0.0, %v866
    %v903 = vsub.f32 0.0, %v867
    %v904 = vsub.f32 0.0, %v868
    %v905 = vsub.f32 0.0, %v869
    %v906 = vsub.f32 0.0, %v870
    %v907 = vsub.f32 0.0, %v871
    %v908 = vsub.f32 0.0, %v872
    %v909 = vsub.f32 0.0, %v873
    %v910 = vsub.f32 0.0, %v874
    %v911 = vsub.f32 0.0, %v875
    %v912 = vsub.f32 0.0, %v876
    %v913 = vsub.f32 0.0, %v877
    %v914 = vsub.f32 0.0, %v878
    %v915 = vsub.f32 0.0, %v879
    %v916 = vsub.f32 0.0, %v880
    %v917 = vsub.f32 0.0, %v881
    %v918 = vsub.f32 0.0, %v882
    %v919 = vsub.f32 0.0, %v883
    %v920 = vsub.f32 0.0, %v884
    %v921 = vsub.f32 0.0, %v885
    %v922 = vsub.f32 0.0, %v886
    %v923 = vsub.f32 0.0, %v887
    %v924 = vsub.f32 0.0, %v888
    %v925 = vsub.f32 0.0, %v889
    %v926 = vsub.f32 0.0, %v890
    %v927 = vsub.f32 0.0, %v891
    %v928 = vsub.f32 0.0, %v892
    %v929 = vsub.f32 0.0, %v893
    %v930 = vsub.f32 0.0, %v894
    %v931 = vsub.f32 0.0, %v895
    %v932 = vsub.f32 0.0, %v896
    %v933 = vsub.f32 0.0, %v897
    %v934 = vsub.f32 0.0, %v898
    %v935 = vsub.f32 0.0, %v899
    %v936 = vsub.f32 0.0, %v900
    %v937 = vsub.f32 0.0, %v901
    %v938 = vmul.f32 %v902, 1.442695
    %v939 = vpow.pop %v938
    %v940 = vmul.f32 %v903, 1.442695
    %v941 = vpow.pop %v940
    %v942 = vmul.f32 %v904, 1.442695
    %v943 = vpow.pop %v942
    %v944 = vmul.f32 %v905, 1.442695
    %v945 = vpow.pop %v944
    %v946 = vmul.f32 %v906, 1.442695
    %v947 = vpow.pop %v946
    %v948 = vmul.f32 %v907, 1.442695
    %v949 = vpow.pop %v948
    %v950 = vmul.f32 %v908, 1.442695
    %v951 = vpow.pop %v950
    %v952 = vmul.f32 %v909, 1.442695
    %v953 = vpow.pop %v952
    %v954 = vmul.f32 %v910, 1.442695
    %v955 = vpow.pop %v954
    %v956 = vmul.f32 %v911, 1.442695
    %v957 = vpow.pop %v956
    %v958 = vmul.f32 %v912, 1.442695
    %v959 = vpow.pop %v958
    %v960 = vmul.f32 %v913, 1.442695
    %v961 = vpow.pop %v960
    %v962 = vmul.f32 %v914, 1.442695
    %v963 = vpow.pop %v962
    %v964 = vmul.f32 %v915, 1.442695
    %v965 = vpow.pop %v964
    %v966 = vmul.f32 %v916, 1.442695
    %v967 = vpow.pop %v966
    %v968 = vmul.f32 %v917, 1.442695
    %v969 = vpow.pop %v968
    %v970 = vmul.f32 %v918, 1.442695
    %v971 = vpow.pop %v970
    %v972 = vmul.f32 %v919, 1.442695
    %v973 = vpow.pop %v972
    %v974 = vmul.f32 %v920, 1.442695
    %v975 = vpow.pop %v974
    %v976 = vmul.f32 %v921, 1.442695
    %v977 = vpow.pop %v976
    %v978 = vmul.f32 %v922, 1.442695
    %v979 = vpow.pop %v978
    %v980 = vmul.f32 %v923, 1.442695
    %v981 = vpow.pop %v980
    %v982 = vmul.f32 %v924, 1.442695
    %v983 = vpow.pop %v982
    %v984 = vmul.f32 %v925, 1.442695
    %v985 = vpow.pop %v984
    %v986 = vmul.f32 %v926, 1.442695
    %v987 = vpow.pop %v986
    %v988 = vmul.f32 %v927, 1.442695
    %v989 = vpow.pop %v988
    %v990 = vmul.f32 %v928, 1.442695
    %v991 = vpow.pop %v990
    %v992 = vmul.f32 %v929, 1.442695
    %v993 = vpow.pop %v992
    %v994 = vmul.f32 %v930, 1.442695
    %v995 = vpow.pop %v994
    %v996 = vmul.f32 %v931, 1.442695
    %v997 = vpow.pop %v996
    %v998 = vmul.f32 %v932, 1.442695
    %v999 = vpow.pop %v998
    %v1000 = vmul.f32 %v933, 1.442695
    %v1001 = vpow.pop %v1000
    %v1002 = vmul.f32 %v934, 1.442695
    %v1003 = vpow.pop %v1002
    %v1004 = vmul.f32 %v935, 1.442695
    %v1005 = vpow.pop %v1004
    %v1006 = vmul.f32 %v936, 1.442695
    %v1007 = vpow.pop %v1006
    %v1008 = vmul.f32 %v937, 1.442695
    %v1009 = vpow.pop %v1008
    %v1010 = vadd.f32 %v939, 1.0
    %v1011 = vadd.f32 %v941, 1.0
    %v1012 = vadd.f32 %v943, 1.0
    %v1013 = vadd.f32 %v945, 1.0
    %v1014 = vadd.f32 %v947, 1.0
    %v1015 = vadd.f32 %v949, 1.0
    %v1016 = vadd.f32 %v951, 1.0
    %v1017 = vadd.f32 %v953, 1.0
    %v1018 = vadd.f32 %v955, 1.0
    %v1019 = vadd.f32 %v957, 1.0
    %v1020 = vadd.f32 %v959, 1.0
    %v1021 = vadd.f32 %v961, 1.0
    %v1022 = vadd.f32 %v963, 1.0
    %v1023 = vadd.f32 %v965, 1.0
    %v1024 = vadd.f32 %v967, 1.0
    %v1025 = vadd.f32 %v969, 1.0
    %v1026 = vadd.f32 %v971, 1.0
    %v1027 = vadd.f32 %v973, 1.0
    %v1028 = vadd.f32 %v975, 1.0
    %v1029 = vadd.f32 %v977, 1.0
    %v1030 = vadd.f32 %v979, 1.0
    %v1031 = vadd.f32 %v981, 1.0
    %v1032 = vadd.f32 %v983, 1.0
    %v1033 = vadd.f32 %v985, 1.0
    %v1034 = vadd.f32 %v987, 1.0
    %v1035 = vadd.f32 %v989, 1.0
    %v1036 = vadd.f32 %v991, 1.0
    %v1037 = vadd.f32 %v993, 1.0
    %v1038 = vadd.f32 %v995, 1.0
    %v1039 = vadd.f32 %v997, 1.0
    %v1040 = vadd.f32 %v999, 1.0
    %v1041 = vadd.f32 %v1001, 1.0
    %v1042 = vadd.f32 %v1003, 1.0
    %v1043 = vadd.f32 %v1005, 1.0
    %v1044 = vadd.f32 %v1007, 1.0
    %v1045 = vadd.f32 %v1009, 1.0
    %1082 = vrot.lane.b32.xlu0 %v1010, 112
    %v1083 = vpop.permute.xlu0 %1082
    %1084 = vrot.lane.b32.xlu0 %v1011, 112
    %v1085 = vpop.permute.xlu0 %1084
    %1086 = vrot.lane.b32.xlu0 %v1012, 112
    %v1087 = vpop.permute.xlu0 %1086
    %1088 = vrot.lane.b32.xlu0 %v1013, 112
    %v1089 = vpop.permute.xlu0 %1088
    %1090 = vrot.lane.b32.xlu0 %v1014, 112
    %v1091 = vpop.permute.xlu0 %1090
    %1092 = vrot.lane.b32.xlu0 %v1015, 112
    %v1093 = vpop.permute.xlu0 %1092
    %1094 = vrot.lane.b32.xlu0 %v1016, 112
    %v1095 = vpop.permute.xlu0 %1094
    %1096 = vrot.lane.b32.xlu0 %v1017, 112
    %v1097 = vpop.permute.xlu0 %1096
    %1098 = vrot.lane.b32.xlu0 %v1018, 112
    %v1099 = vpop.permute.xlu0 %1098
    %1100 = vrot.lane.b32.xlu0 %v1019, 112
    %v1101 = vpop.permute.xlu0 %1100
    %1102 = vrot.lane.b32.xlu0 %v1020, 112
    %v1103 = vpop.permute.xlu0 %1102
    %1104 = vrot.lane.b32.xlu0 %v1021, 112
    %v1105 = vpop.permute.xlu0 %1104
    %1106 = vrot.lane.b32.xlu0 %v1022, 112
    %v1107 = vpop.permute.xlu0 %1106
    %1108 = vrot.lane.b32.xlu0 %v1023, 112
    %v1109 = vpop.permute.xlu0 %1108
    %1110 = vrot.lane.b32.xlu0 %v1024, 112
    %v1111 = vpop.permute.xlu0 %1110
    %1112 = vrot.lane.b32.xlu0 %v1025, 112
    %v1113 = vpop.permute.xlu0 %1112
    %1114 = vrot.lane.b32.xlu0 %v1026, 112
    %v1115 = vpop.permute.xlu0 %1114
    %1116 = vrot.lane.b32.xlu0 %v1027, 112
    %v1117 = vpop.permute.xlu0 %1116
    %1118 = vrot.lane.b32.xlu0 %v1028, 112
    %v1119 = vpop.permute.xlu0 %1118
    %1120 = vrot.lane.b32.xlu0 %v1029, 112
    %v1121 = vpop.permute.xlu0 %1120
    %1122 = vrot.lane.b32.xlu0 %v1030, 112
    %v1123 = vpop.permute.xlu0 %1122
    %1124 = vrot.lane.b32.xlu0 %v1031, 112
    %v1125 = vpop.permute.xlu0 %1124
    %1126 = vrot.lane.b32.xlu0 %v1032, 112
    %v1127 = vpop.permute.xlu0 %1126
    %1128 = vrot.lane.b32.xlu0 %v1033, 112
    %v1129 = vpop.permute.xlu0 %1128
    %1130 = vrot.lane.b32.xlu0 %v1034, 112
    %v1131 = vpop.permute.xlu0 %1130
    %1132 = vrot.lane.b32.xlu0 %v1035, 112
    %v1133 = vpop.permute.xlu0 %1132
    %1134 = vrot.lane.b32.xlu0 %v1036, 112
    %v1135 = vpop.permute.xlu0 %1134
    %1136 = vrot.lane.b32.xlu0 %v1037, 112
    %v1137 = vpop.permute.xlu0 %1136
    %1138 = vrot.lane.b32.xlu0 %v1038, 112
    %v1139 = vpop.permute.xlu0 %1138
    %1140 = vrot.lane.b32.xlu0 %v1039, 112
    %v1141 = vpop.permute.xlu0 %1140
    %1142 = vrot.lane.b32.xlu0 %v1040, 112
    %v1143 = vpop.permute.xlu0 %1142
    %1144 = vrot.lane.b32.xlu0 %v1041, 112
    %v1145 = vpop.permute.xlu0 %1144
    %1146 = vrot.lane.b32.xlu0 %v1042, 112
    %v1147 = vpop.permute.xlu0 %1146
    %1148 = vrot.lane.b32.xlu0 %v1043, 112
    %v1149 = vpop.permute.xlu0 %1148
    %1150 = vrot.lane.b32.xlu0 %v1044, 112
    %v1151 = vpop.permute.xlu0 %1150
    %1152 = vrot.lane.b32.xlu0 %v1045, 112
    %v1153 = vpop.permute.xlu0 %1152
    %v1190 = vrcp.pop %v1083
    %v1191 = vmul.f32 %v1083, %v1190
    %v1192 = vsub.f32 1.0, %v1191
    %v1193 = vmul.f32 %v1190, %v1192
    %v1194 = vadd.f32 %v1190, %v1193
    %vm1195 = vweird.f32 %v1083
    %vm1196 = vweird.f32 %v1190
    %vm1197 = vmor %vm1195, %vm1196
    %v1198 = vsel %vm1197, %v1190, %v1194
    %v1199 = vand.u32 2147483647, %v1083
    %vm1200 = vcmp.eq.f32.partialorder %v1199, 8.507059e+37
    %v1201 = vand.u32 %v1083, 2147483648
    %v1202 = vor.u32 1.1754944e-38, %v1201
    %v1203 = vsel %vm1200, %v1202, %v1198
    %v1204 = vmul.f32 %v866, %v1203
    %v1205 = vrcp.pop %v1085
    %v1206 = vmul.f32 %v1085, %v1205
    %v1207 = vsub.f32 1.0, %v1206
    %v1208 = vmul.f32 %v1205, %v1207
    %v1209 = vadd.f32 %v1205, %v1208
    %vm1210 = vweird.f32 %v1085
    %vm1211 = vweird.f32 %v1205
    %vm1212 = vmor %vm1210, %vm1211
    %v1213 = vsel %vm1212, %v1205, %v1209
    %v1214 = vand.u32 2147483647, %v1085
    %vm1215 = vcmp.eq.f32.partialorder %v1214, 8.507059e+37
    %v1216 = vand.u32 %v1085, 2147483648
    %v1217 = vor.u32 1.1754944e-38, %v1216
    %v1218 = vsel %vm1215, %v1217, %v1213
    %v1219 = vmul.f32 %v867, %v1218
    %v1220 = vrcp.pop %v1087
    %v1221 = vmul.f32 %v1087, %v1220
    %v1222 = vsub.f32 1.0, %v1221
    %v1223 = vmul.f32 %v1220, %v1222
    %v1224 = vadd.f32 %v1220, %v1223
    %vm1225 = vweird.f32 %v1087
    %vm1226 = vweird.f32 %v1220
    %vm1227 = vmor %vm1225, %vm1226
    %v1228 = vsel %vm1227, %v1220, %v1224
    %v1229 = vand.u32 2147483647, %v1087
    %vm1230 = vcmp.eq.f32.partialorder %v1229, 8.507059e+37
    %v1231 = vand.u32 %v1087, 2147483648
    %v1232 = vor.u32 1.1754944e-38, %v1231
    %v1233 = vsel %vm1230, %v1232, %v1228
    %v1234 = vmul.f32 %v868, %v1233
    %v1235 = vrcp.pop %v1089
    %v1236 = vmul.f32 %v1089, %v1235
    %v1237 = vsub.f32 1.0, %v1236
    %v1238 = vmul.f32 %v1235, %v1237
    %v1239 = vadd.f32 %v1235, %v1238
    %vm1240 = vweird.f32 %v1089
    %vm1241 = vweird.f32 %v1235
    %vm1242 = vmor %vm1240, %vm1241
    %v1243 = vsel %vm1242, %v1235, %v1239
    %v1244 = vand.u32 2147483647, %v1089
    %vm1245 = vcmp.eq.f32.partialorder %v1244, 8.507059e+37
    %v1246 = vand.u32 %v1089, 2147483648
    %v1247 = vor.u32 1.1754944e-38, %v1246
    %v1248 = vsel %vm1245, %v1247, %v1243
    %v1249 = vmul.f32 %v869, %v1248
    %v1250 = vrcp.pop %v1091
    %v1251 = vmul.f32 %v1091, %v1250
    %v1252 = vsub.f32 1.0, %v1251
    %v1253 = vmul.f32 %v1250, %v1252
    %v1254 = vadd.f32 %v1250, %v1253
    %vm1255 = vweird.f32 %v1091
    %vm1256 = vweird.f32 %v1250
    %vm1257 = vmor %vm1255, %vm1256
    %v1258 = vsel %vm1257, %v1250, %v1254
    %v1259 = vand.u32 2147483647, %v1091
    %vm1260 = vcmp.eq.f32.partialorder %v1259, 8.507059e+37
    %v1261 = vand.u32 %v1091, 2147483648
    %v1262 = vor.u32 1.1754944e-38, %v1261
    %v1263 = vsel %vm1260, %v1262, %v1258
    %v1264 = vmul.f32 %v870, %v1263
    %v1265 = vrcp.pop %v1093
    %v1266 = vmul.f32 %v1093, %v1265
    %v1267 = vsub.f32 1.0, %v1266
    %v1268 = vmul.f32 %v1265, %v1267
    %v1269 = vadd.f32 %v1265, %v1268
    %vm1270 = vweird.f32 %v1093
    %vm1271 = vweird.f32 %v1265
    %vm1272 = vmor %vm1270, %vm1271
    %v1273 = vsel %vm1272, %v1265, %v1269
    %v1274 = vand.u32 2147483647, %v1093
    %vm1275 = vcmp.eq.f32.partialorder %v1274, 8.507059e+37
    %v1276 = vand.u32 %v1093, 2147483648
    %v1277 = vor.u32 1.1754944e-38, %v1276
    %v1278 = vsel %vm1275, %v1277, %v1273
    %v1279 = vmul.f32 %v871, %v1278
    %v1280 = vrcp.pop %v1095
    %v1281 = vmul.f32 %v1095, %v1280
    %v1282 = vsub.f32 1.0, %v1281
    %v1283 = vmul.f32 %v1280, %v1282
    %v1284 = vadd.f32 %v1280, %v1283
    %vm1285 = vweird.f32 %v1095
    %vm1286 = vweird.f32 %v1280
    %vm1287 = vmor %vm1285, %vm1286
    %v1288 = vsel %vm1287, %v1280, %v1284
    %v1289 = vand.u32 2147483647, %v1095
    %vm1290 = vcmp.eq.f32.partialorder %v1289, 8.507059e+37
    %v1291 = vand.u32 %v1095, 2147483648
    %v1292 = vor.u32 1.1754944e-38, %v1291
    %v1293 = vsel %vm1290, %v1292, %v1288
    %v1294 = vmul.f32 %v872, %v1293
    %v1295 = vrcp.pop %v1097
    %v1296 = vmul.f32 %v1097, %v1295
    %v1297 = vsub.f32 1.0, %v1296
    %v1298 = vmul.f32 %v1295, %v1297
    %v1299 = vadd.f32 %v1295, %v1298
    %vm1300 = vweird.f32 %v1097
    %vm1301 = vweird.f32 %v1295
    %vm1302 = vmor %vm1300, %vm1301
    %v1303 = vsel %vm1302, %v1295, %v1299
    %v1304 = vand.u32 2147483647, %v1097
    %vm1305 = vcmp.eq.f32.partialorder %v1304, 8.507059e+37
    %v1306 = vand.u32 %v1097, 2147483648
    %v1307 = vor.u32 1.1754944e-38, %v1306
    %v1308 = vsel %vm1305, %v1307, %v1303
    %v1309 = vmul.f32 %v873, %v1308
    %v1310 = vrcp.pop %v1099
    %v1311 = vmul.f32 %v1099, %v1310
    %v1312 = vsub.f32 1.0, %v1311
    %v1313 = vmul.f32 %v1310, %v1312
    %v1314 = vadd.f32 %v1310, %v1313
    %vm1315 = vweird.f32 %v1099
    %vm1316 = vweird.f32 %v1310
    %vm1317 = vmor %vm1315, %vm1316
    %v1318 = vsel %vm1317, %v1310, %v1314
    %v1319 = vand.u32 2147483647, %v1099
    %vm1320 = vcmp.eq.f32.partialorder %v1319, 8.507059e+37
    %v1321 = vand.u32 %v1099, 2147483648
    %v1322 = vor.u32 1.1754944e-38, %v1321
    %v1323 = vsel %vm1320, %v1322, %v1318
    %v1324 = vmul.f32 %v874, %v1323
    %v1325 = vrcp.pop %v1101
    %v1326 = vmul.f32 %v1101, %v1325
    %v1327 = vsub.f32 1.0, %v1326
    %v1328 = vmul.f32 %v1325, %v1327
    %v1329 = vadd.f32 %v1325, %v1328
    %vm1330 = vweird.f32 %v1101
    %vm1331 = vweird.f32 %v1325
    %vm1332 = vmor %vm1330, %vm1331
    %v1333 = vsel %vm1332, %v1325, %v1329
    %v1334 = vand.u32 2147483647, %v1101
    %vm1335 = vcmp.eq.f32.partialorder %v1334, 8.507059e+37
    %v1336 = vand.u32 %v1101, 2147483648
    %v1337 = vor.u32 1.1754944e-38, %v1336
    %v1338 = vsel %vm1335, %v1337, %v1333
    %v1339 = vmul.f32 %v875, %v1338
    %v1340 = vrcp.pop %v1103
    %v1341 = vmul.f32 %v1103, %v1340
    %v1342 = vsub.f32 1.0, %v1341
    %v1343 = vmul.f32 %v1340, %v1342
    %v1344 = vadd.f32 %v1340, %v1343
    %vm1345 = vweird.f32 %v1103
    %vm1346 = vweird.f32 %v1340
    %vm1347 = vmor %vm1345, %vm1346
    %v1348 = vsel %vm1347, %v1340, %v1344
    %v1349 = vand.u32 2147483647, %v1103
    %vm1350 = vcmp.eq.f32.partialorder %v1349, 8.507059e+37
    %v1351 = vand.u32 %v1103, 2147483648
    %v1352 = vor.u32 1.1754944e-38, %v1351
    %v1353 = vsel %vm1350, %v1352, %v1348
    %v1354 = vmul.f32 %v876, %v1353
    %v1355 = vrcp.pop %v1105
    %v1356 = vmul.f32 %v1105, %v1355
    %v1357 = vsub.f32 1.0, %v1356
    %v1358 = vmul.f32 %v1355, %v1357
    %v1359 = vadd.f32 %v1355, %v1358
    %vm1360 = vweird.f32 %v1105
    %vm1361 = vweird.f32 %v1355
    %vm1362 = vmor %vm1360, %vm1361
    %v1363 = vsel %vm1362, %v1355, %v1359
    %v1364 = vand.u32 2147483647, %v1105
    %vm1365 = vcmp.eq.f32.partialorder %v1364, 8.507059e+37
    %v1366 = vand.u32 %v1105, 2147483648
    %v1367 = vor.u32 1.1754944e-38, %v1366
    %v1368 = vsel %vm1365, %v1367, %v1363
    %v1369 = vmul.f32 %v877, %v1368
    %v1370 = vrcp.pop %v1107
    %v1371 = vmul.f32 %v1107, %v1370
    %v1372 = vsub.f32 1.0, %v1371
    %v1373 = vmul.f32 %v1370, %v1372
    %v1374 = vadd.f32 %v1370, %v1373
    %vm1375 = vweird.f32 %v1107
    %vm1376 = vweird.f32 %v1370
    %vm1377 = vmor %vm1375, %vm1376
    %v1378 = vsel %vm1377, %v1370, %v1374
    %v1379 = vand.u32 2147483647, %v1107
    %vm1380 = vcmp.eq.f32.partialorder %v1379, 8.507059e+37
    %v1381 = vand.u32 %v1107, 2147483648
    %v1382 = vor.u32 1.1754944e-38, %v1381
    %v1383 = vsel %vm1380, %v1382, %v1378
    %v1384 = vmul.f32 %v878, %v1383
    %v1385 = vrcp.pop %v1109
    %v1386 = vmul.f32 %v1109, %v1385
    %v1387 = vsub.f32 1.0, %v1386
    %v1388 = vmul.f32 %v1385, %v1387
    %v1389 = vadd.f32 %v1385, %v1388
    %vm1390 = vweird.f32 %v1109
    %vm1391 = vweird.f32 %v1385
    %vm1392 = vmor %vm1390, %vm1391
    %v1393 = vsel %vm1392, %v1385, %v1389
    %v1394 = vand.u32 2147483647, %v1109
    %vm1395 = vcmp.eq.f32.partialorder %v1394, 8.507059e+37
    %v1396 = vand.u32 %v1109, 2147483648
    %v1397 = vor.u32 1.1754944e-38, %v1396
    %v1398 = vsel %vm1395, %v1397, %v1393
    %v1399 = vmul.f32 %v879, %v1398
    %v1400 = vrcp.pop %v1111
    %v1401 = vmul.f32 %v1111, %v1400
    %v1402 = vsub.f32 1.0, %v1401
    %v1403 = vmul.f32 %v1400, %v1402
    %v1404 = vadd.f32 %v1400, %v1403
    %vm1405 = vweird.f32 %v1111
    %vm1406 = vweird.f32 %v1400
    %vm1407 = vmor %vm1405, %vm1406
    %v1408 = vsel %vm1407, %v1400, %v1404
    %v1409 = vand.u32 2147483647, %v1111
    %vm1410 = vcmp.eq.f32.partialorder %v1409, 8.507059e+37
    %v1411 = vand.u32 %v1111, 2147483648
    %v1412 = vor.u32 1.1754944e-38, %v1411
    %v1413 = vsel %vm1410, %v1412, %v1408
    %v1414 = vmul.f32 %v880, %v1413
    %v1415 = vrcp.pop %v1113
    %v1416 = vmul.f32 %v1113, %v1415
    %v1417 = vsub.f32 1.0, %v1416
    %v1418 = vmul.f32 %v1415, %v1417
    %v1419 = vadd.f32 %v1415, %v1418
    %vm1420 = vweird.f32 %v1113
    %vm1421 = vweird.f32 %v1415
    %vm1422 = vmor %vm1420, %vm1421
    %v1423 = vsel %vm1422, %v1415, %v1419
    %v1424 = vand.u32 2147483647, %v1113
    %vm1425 = vcmp.eq.f32.partialorder %v1424, 8.507059e+37
    %v1426 = vand.u32 %v1113, 2147483648
    %v1427 = vor.u32 1.1754944e-38, %v1426
    %v1428 = vsel %vm1425, %v1427, %v1423
    %v1429 = vmul.f32 %v881, %v1428
    %v1430 = vrcp.pop %v1115
    %v1431 = vmul.f32 %v1115, %v1430
    %v1432 = vsub.f32 1.0, %v1431
    %v1433 = vmul.f32 %v1430, %v1432
    %v1434 = vadd.f32 %v1430, %v1433
    %vm1435 = vweird.f32 %v1115
    %vm1436 = vweird.f32 %v1430
    %vm1437 = vmor %vm1435, %vm1436
    %v1438 = vsel %vm1437, %v1430, %v1434
    %v1439 = vand.u32 2147483647, %v1115
    %vm1440 = vcmp.eq.f32.partialorder %v1439, 8.507059e+37
    %v1441 = vand.u32 %v1115, 2147483648
    %v1442 = vor.u32 1.1754944e-38, %v1441
    %v1443 = vsel %vm1440, %v1442, %v1438
    %v1444 = vmul.f32 %v882, %v1443
    %v1445 = vrcp.pop %v1117
    %v1446 = vmul.f32 %v1117, %v1445
    %v1447 = vsub.f32 1.0, %v1446
    %v1448 = vmul.f32 %v1445, %v1447
    %v1449 = vadd.f32 %v1445, %v1448
    %vm1450 = vweird.f32 %v1117
    %vm1451 = vweird.f32 %v1445
    %vm1452 = vmor %vm1450, %vm1451
    %v1453 = vsel %vm1452, %v1445, %v1449
    %v1454 = vand.u32 2147483647, %v1117
    %vm1455 = vcmp.eq.f32.partialorder %v1454, 8.507059e+37
    %v1456 = vand.u32 %v1117, 2147483648
    %v1457 = vor.u32 1.1754944e-38, %v1456
    %v1458 = vsel %vm1455, %v1457, %v1453
    %v1459 = vmul.f32 %v883, %v1458
    %v1460 = vrcp.pop %v1119
    %v1461 = vmul.f32 %v1119, %v1460
    %v1462 = vsub.f32 1.0, %v1461
    %v1463 = vmul.f32 %v1460, %v1462
    %v1464 = vadd.f32 %v1460, %v1463
    %vm1465 = vweird.f32 %v1119
    %vm1466 = vweird.f32 %v1460
    %vm1467 = vmor %vm1465, %vm1466
    %v1468 = vsel %vm1467, %v1460, %v1464
    %v1469 = vand.u32 2147483647, %v1119
    %vm1470 = vcmp.eq.f32.partialorder %v1469, 8.507059e+37
    %v1471 = vand.u32 %v1119, 2147483648
    %v1472 = vor.u32 1.1754944e-38, %v1471
    %v1473 = vsel %vm1470, %v1472, %v1468
    %v1474 = vmul.f32 %v884, %v1473
    %v1475 = vrcp.pop %v1121
    %v1476 = vmul.f32 %v1121, %v1475
    %v1477 = vsub.f32 1.0, %v1476
    %v1478 = vmul.f32 %v1475, %v1477
    %v1479 = vadd.f32 %v1475, %v1478
    %vm1480 = vweird.f32 %v1121
    %vm1481 = vweird.f32 %v1475
    %vm1482 = vmor %vm1480, %vm1481
    %v1483 = vsel %vm1482, %v1475, %v1479
    %v1484 = vand.u32 2147483647, %v1121
    %vm1485 = vcmp.eq.f32.partialorder %v1484, 8.507059e+37
    %v1486 = vand.u32 %v1121, 2147483648
    %v1487 = vor.u32 1.1754944e-38, %v1486
    %v1488 = vsel %vm1485, %v1487, %v1483
    %v1489 = vmul.f32 %v885, %v1488
    %v1490 = vrcp.pop %v1123
    %v1491 = vmul.f32 %v1123, %v1490
    %v1492 = vsub.f32 1.0, %v1491
    %v1493 = vmul.f32 %v1490, %v1492
    %v1494 = vadd.f32 %v1490, %v1493
    %vm1495 = vweird.f32 %v1123
    %vm1496 = vweird.f32 %v1490
    %vm1497 = vmor %vm1495, %vm1496
    %v1498 = vsel %vm1497, %v1490, %v1494
    %v1499 = vand.u32 2147483647, %v1123
    %vm1500 = vcmp.eq.f32.partialorder %v1499, 8.507059e+37
    %v1501 = vand.u32 %v1123, 2147483648
    %v1502 = vor.u32 1.1754944e-38, %v1501
    %v1503 = vsel %vm1500, %v1502, %v1498
    %v1504 = vmul.f32 %v886, %v1503
    %v1505 = vrcp.pop %v1125
    %v1506 = vmul.f32 %v1125, %v1505
    %v1507 = vsub.f32 1.0, %v1506
    %v1508 = vmul.f32 %v1505, %v1507
    %v1509 = vadd.f32 %v1505, %v1508
    %vm1510 = vweird.f32 %v1125
    %vm1511 = vweird.f32 %v1505
    %vm1512 = vmor %vm1510, %vm1511
    %v1513 = vsel %vm1512, %v1505, %v1509
    %v1514 = vand.u32 2147483647, %v1125
    %vm1515 = vcmp.eq.f32.partialorder %v1514, 8.507059e+37
    %v1516 = vand.u32 %v1125, 2147483648
    %v1517 = vor.u32 1.1754944e-38, %v1516
    %v1518 = vsel %vm1515, %v1517, %v1513
    %v1519 = vmul.f32 %v887, %v1518
    %v1520 = vrcp.pop %v1127
    %v1521 = vmul.f32 %v1127, %v1520
    %v1522 = vsub.f32 1.0, %v1521
    %v1523 = vmul.f32 %v1520, %v1522
    %v1524 = vadd.f32 %v1520, %v1523
    %vm1525 = vweird.f32 %v1127
    %vm1526 = vweird.f32 %v1520
    %vm1527 = vmor %vm1525, %vm1526
    %v1528 = vsel %vm1527, %v1520, %v1524
    %v1529 = vand.u32 2147483647, %v1127
    %vm1530 = vcmp.eq.f32.partialorder %v1529, 8.507059e+37
    %v1531 = vand.u32 %v1127, 2147483648
    %v1532 = vor.u32 1.1754944e-38, %v1531
    %v1533 = vsel %vm1530, %v1532, %v1528
    %v1534 = vmul.f32 %v888, %v1533
    %v1535 = vrcp.pop %v1129
    %v1536 = vmul.f32 %v1129, %v1535
    %v1537 = vsub.f32 1.0, %v1536
    %v1538 = vmul.f32 %v1535, %v1537
    %v1539 = vadd.f32 %v1535, %v1538
    %vm1540 = vweird.f32 %v1129
    %vm1541 = vweird.f32 %v1535
    %vm1542 = vmor %vm1540, %vm1541
    %v1543 = vsel %vm1542, %v1535, %v1539
    %v1544 = vand.u32 2147483647, %v1129
    %vm1545 = vcmp.eq.f32.partialorder %v1544, 8.507059e+37
    %v1546 = vand.u32 %v1129, 2147483648
    %v1547 = vor.u32 1.1754944e-38, %v1546
    %v1548 = vsel %vm1545, %v1547, %v1543
    %v1549 = vmul.f32 %v889, %v1548
    %v1550 = vrcp.pop %v1131
    %v1551 = vmul.f32 %v1131, %v1550
    %v1552 = vsub.f32 1.0, %v1551
    %v1553 = vmul.f32 %v1550, %v1552
    %v1554 = vadd.f32 %v1550, %v1553
    %vm1555 = vweird.f32 %v1131
    %vm1556 = vweird.f32 %v1550
    %vm1557 = vmor %vm1555, %vm1556
    %v1558 = vsel %vm1557, %v1550, %v1554
    %v1559 = vand.u32 2147483647, %v1131
    %vm1560 = vcmp.eq.f32.partialorder %v1559, 8.507059e+37
    %v1561 = vand.u32 %v1131, 2147483648
    %v1562 = vor.u32 1.1754944e-38, %v1561
    %v1563 = vsel %vm1560, %v1562, %v1558
    %v1564 = vmul.f32 %v890, %v1563
    %v1565 = vrcp.pop %v1133
    %v1566 = vmul.f32 %v1133, %v1565
    %v1567 = vsub.f32 1.0, %v1566
    %v1568 = vmul.f32 %v1565, %v1567
    %v1569 = vadd.f32 %v1565, %v1568
    %vm1570 = vweird.f32 %v1133
    %vm1571 = vweird.f32 %v1565
    %vm1572 = vmor %vm1570, %vm1571
    %v1573 = vsel %vm1572, %v1565, %v1569
    %v1574 = vand.u32 2147483647, %v1133
    %vm1575 = vcmp.eq.f32.partialorder %v1574, 8.507059e+37
    %v1576 = vand.u32 %v1133, 2147483648
    %v1577 = vor.u32 1.1754944e-38, %v1576
    %v1578 = vsel %vm1575, %v1577, %v1573
    %v1579 = vmul.f32 %v891, %v1578
    %v1580 = vrcp.pop %v1135
    %v1581 = vmul.f32 %v1135, %v1580
    %v1582 = vsub.f32 1.0, %v1581
    %v1583 = vmul.f32 %v1580, %v1582
    %v1584 = vadd.f32 %v1580, %v1583
    %vm1585 = vweird.f32 %v1135
    %vm1586 = vweird.f32 %v1580
    %vm1587 = vmor %vm1585, %vm1586
    %v1588 = vsel %vm1587, %v1580, %v1584
    %v1589 = vand.u32 2147483647, %v1135
    %vm1590 = vcmp.eq.f32.partialorder %v1589, 8.507059e+37
    %v1591 = vand.u32 %v1135, 2147483648
    %v1592 = vor.u32 1.1754944e-38, %v1591
    %v1593 = vsel %vm1590, %v1592, %v1588
    %v1594 = vmul.f32 %v892, %v1593
    %v1595 = vrcp.pop %v1137
    %v1596 = vmul.f32 %v1137, %v1595
    %v1597 = vsub.f32 1.0, %v1596
    %v1598 = vmul.f32 %v1595, %v1597
    %v1599 = vadd.f32 %v1595, %v1598
    %vm1600 = vweird.f32 %v1137
    %vm1601 = vweird.f32 %v1595
    %vm1602 = vmor %vm1600, %vm1601
    %v1603 = vsel %vm1602, %v1595, %v1599
    %v1604 = vand.u32 2147483647, %v1137
    %vm1605 = vcmp.eq.f32.partialorder %v1604, 8.507059e+37
    %v1606 = vand.u32 %v1137, 2147483648
    %v1607 = vor.u32 1.1754944e-38, %v1606
    %v1608 = vsel %vm1605, %v1607, %v1603
    %v1609 = vmul.f32 %v893, %v1608
    %v1610 = vrcp.pop %v1139
    %v1611 = vmul.f32 %v1139, %v1610
    %v1612 = vsub.f32 1.0, %v1611
    %v1613 = vmul.f32 %v1610, %v1612
    %v1614 = vadd.f32 %v1610, %v1613
    %vm1615 = vweird.f32 %v1139
    %vm1616 = vweird.f32 %v1610
    %vm1617 = vmor %vm1615, %vm1616
    %v1618 = vsel %vm1617, %v1610, %v1614
    %v1619 = vand.u32 2147483647, %v1139
    %vm1620 = vcmp.eq.f32.partialorder %v1619, 8.507059e+37
    %v1621 = vand.u32 %v1139, 2147483648
    %v1622 = vor.u32 1.1754944e-38, %v1621
    %v1623 = vsel %vm1620, %v1622, %v1618
    %v1624 = vmul.f32 %v894, %v1623
    %v1625 = vrcp.pop %v1141
    %v1626 = vmul.f32 %v1141, %v1625
    %v1627 = vsub.f32 1.0, %v1626
    %v1628 = vmul.f32 %v1625, %v1627
    %v1629 = vadd.f32 %v1625, %v1628
    %vm1630 = vweird.f32 %v1141
    %vm1631 = vweird.f32 %v1625
    %vm1632 = vmor %vm1630, %vm1631
    %v1633 = vsel %vm1632, %v1625, %v1629
    %v1634 = vand.u32 2147483647, %v1141
    %vm1635 = vcmp.eq.f32.partialorder %v1634, 8.507059e+37
    %v1636 = vand.u32 %v1141, 2147483648
    %v1637 = vor.u32 1.1754944e-38, %v1636
    %v1638 = vsel %vm1635, %v1637, %v1633
    %v1639 = vmul.f32 %v895, %v1638
    %v1640 = vrcp.pop %v1143
    %v1641 = vmul.f32 %v1143, %v1640
    %v1642 = vsub.f32 1.0, %v1641
    %v1643 = vmul.f32 %v1640, %v1642
    %v1644 = vadd.f32 %v1640, %v1643
    %vm1645 = vweird.f32 %v1143
    %vm1646 = vweird.f32 %v1640
    %vm1647 = vmor %vm1645, %vm1646
    %v1648 = vsel %vm1647, %v1640, %v1644
    %v1649 = vand.u32 2147483647, %v1143
    %vm1650 = vcmp.eq.f32.partialorder %v1649, 8.507059e+37
    %v1651 = vand.u32 %v1143, 2147483648
    %v1652 = vor.u32 1.1754944e-38, %v1651
    %v1653 = vsel %vm1650, %v1652, %v1648
    %v1654 = vmul.f32 %v896, %v1653
    %v1655 = vrcp.pop %v1145
    %v1656 = vmul.f32 %v1145, %v1655
    %v1657 = vsub.f32 1.0, %v1656
    %v1658 = vmul.f32 %v1655, %v1657
    %v1659 = vadd.f32 %v1655, %v1658
    %vm1660 = vweird.f32 %v1145
    %vm1661 = vweird.f32 %v1655
    %vm1662 = vmor %vm1660, %vm1661
    %v1663 = vsel %vm1662, %v1655, %v1659
    %v1664 = vand.u32 2147483647, %v1145
    %vm1665 = vcmp.eq.f32.partialorder %v1664, 8.507059e+37
    %v1666 = vand.u32 %v1145, 2147483648
    %v1667 = vor.u32 1.1754944e-38, %v1666
    %v1668 = vsel %vm1665, %v1667, %v1663
    %v1669 = vmul.f32 %v897, %v1668
    %v1670 = vrcp.pop %v1147
    %v1671 = vmul.f32 %v1147, %v1670
    %v1672 = vsub.f32 1.0, %v1671
    %v1673 = vmul.f32 %v1670, %v1672
    %v1674 = vadd.f32 %v1670, %v1673
    %vm1675 = vweird.f32 %v1147
    %vm1676 = vweird.f32 %v1670
    %vm1677 = vmor %vm1675, %vm1676
    %v1678 = vsel %vm1677, %v1670, %v1674
    %v1679 = vand.u32 2147483647, %v1147
    %vm1680 = vcmp.eq.f32.partialorder %v1679, 8.507059e+37
    %v1681 = vand.u32 %v1147, 2147483648
    %v1682 = vor.u32 1.1754944e-38, %v1681
    %v1683 = vsel %vm1680, %v1682, %v1678
    %v1684 = vmul.f32 %v898, %v1683
    %v1685 = vrcp.pop %v1149
    %v1686 = vmul.f32 %v1149, %v1685
    %v1687 = vsub.f32 1.0, %v1686
    %v1688 = vmul.f32 %v1685, %v1687
    %v1689 = vadd.f32 %v1685, %v1688
    %vm1690 = vweird.f32 %v1149
    %vm1691 = vweird.f32 %v1685
    %vm1692 = vmor %vm1690, %vm1691
    %v1693 = vsel %vm1692, %v1685, %v1689
    %v1694 = vand.u32 2147483647, %v1149
    %vm1695 = vcmp.eq.f32.partialorder %v1694, 8.507059e+37
    %v1696 = vand.u32 %v1149, 2147483648
    %v1697 = vor.u32 1.1754944e-38, %v1696
    %v1698 = vsel %vm1695, %v1697, %v1693
    %v1699 = vmul.f32 %v899, %v1698
    %v1700 = vrcp.pop %v1151
    %v1701 = vmul.f32 %v1151, %v1700
    %v1702 = vsub.f32 1.0, %v1701
    %v1703 = vmul.f32 %v1700, %v1702
    %v1704 = vadd.f32 %v1700, %v1703
    %vm1705 = vweird.f32 %v1151
    %vm1706 = vweird.f32 %v1700
    %vm1707 = vmor %vm1705, %vm1706
    %v1708 = vsel %vm1707, %v1700, %v1704
    %v1709 = vand.u32 2147483647, %v1151
    %vm1710 = vcmp.eq.f32.partialorder %v1709, 8.507059e+37
    %v1711 = vand.u32 %v1151, 2147483648
    %v1712 = vor.u32 1.1754944e-38, %v1711
    %v1713 = vsel %vm1710, %v1712, %v1708
    %v1714 = vmul.f32 %v900, %v1713
    %v1715 = vrcp.pop %v1153
    %v1716 = vmul.f32 %v1153, %v1715
    %v1717 = vsub.f32 1.0, %v1716
    %v1718 = vmul.f32 %v1715, %v1717
    %v1719 = vadd.f32 %v1715, %v1718
    %vm1720 = vweird.f32 %v1153
    %vm1721 = vweird.f32 %v1715
    %vm1722 = vmor %vm1720, %vm1721
    %v1723 = vsel %vm1722, %v1715, %v1719
    %v1724 = vand.u32 2147483647, %v1153
    %vm1725 = vcmp.eq.f32.partialorder %v1724, 8.507059e+37
    %v1726 = vand.u32 %v1153, 2147483648
    %v1727 = vor.u32 1.1754944e-38, %v1726
    %v1728 = vsel %vm1725, %v1727, %v1723
    %v1729 = vmul.f32 %v901, %v1728
    %v1730 = vpack.c.bf16 %v1204, %v1204
    %v1731 = vpack.c.bf16 %v1219, %v1219
    %v1732 = vpack.c.bf16 %v1234, %v1234
    %v1733 = vpack.c.bf16 %v1249, %v1249
    %v1734 = vpack.c.bf16 %v1264, %v1264
    %v1735 = vpack.c.bf16 %v1279, %v1279
    %v1736 = vpack.c.bf16 %v1294, %v1294
    %v1737 = vpack.c.bf16 %v1309, %v1309
    %v1738 = vpack.c.bf16 %v1324, %v1324
    %v1739 = vpack.c.bf16 %v1339, %v1339
    %v1740 = vpack.c.bf16 %v1354, %v1354
    %v1741 = vpack.c.bf16 %v1369, %v1369
    %v1742 = vpack.c.bf16 %v1384, %v1384
    %v1743 = vpack.c.bf16 %v1399, %v1399
    %v1744 = vpack.c.bf16 %v1414, %v1414
    %v1745 = vpack.c.bf16 %v1429, %v1429
    %v1746 = vpack.c.bf16 %v1444, %v1444
    %v1747 = vpack.c.bf16 %v1459, %v1459
    %v1748 = vpack.c.bf16 %v1474, %v1474
    %v1749 = vpack.c.bf16 %v1489, %v1489
    %v1750 = vpack.c.bf16 %v1504, %v1504
    %v1751 = vpack.c.bf16 %v1519, %v1519
    %v1752 = vpack.c.bf16 %v1534, %v1534
    %v1753 = vpack.c.bf16 %v1549, %v1549
    %v1754 = vpack.c.bf16 %v1564, %v1564
    %v1755 = vpack.c.bf16 %v1579, %v1579
    %v1756 = vpack.c.bf16 %v1594, %v1594
    %v1757 = vpack.c.bf16 %v1609, %v1609
    %v1758 = vpack.c.bf16 %v1624, %v1624
    %v1759 = vpack.c.bf16 %v1639, %v1639
    %v1760 = vpack.c.bf16 %v1654, %v1654
    %v1761 = vpack.c.bf16 %v1669, %v1669
    %v1762 = vpack.c.bf16 %v1684, %v1684
    %v1763 = vpack.c.bf16 %v1699, %v1699
    %v1764 = vpack.c.bf16 %v1714, %v1714
    %v1765 = vpack.c.bf16 %v1729, %v1729
    %vm1766 = vcmask 125952
    %1767 = vst.msk [vmem:[%s3] sm:$0xf] %vm1766, %v1730
    %1768 = vst.msk [vmem:[%s3 + $0x4] sm:$0xf] %vm1766, %v1731
    %1769 = vst.msk [vmem:[%s3 + $0x8] sm:$0xf] %vm1766, %v1732
    %1770 = vst.msk [vmem:[%s3 + $0xc] sm:$0xf] %vm1766, %v1733
    %1771 = vst.msk [vmem:[%s3 + $0x10] sm:$0xf] %vm1766, %v1734
    %1772 = vst.msk [vmem:[%s3 + $0x14] sm:$0xf] %vm1766, %v1735
    %1773 = vst.msk [vmem:[%s3 + $0x18] sm:$0xf] %vm1766, %v1736
    %1774 = vst.msk [vmem:[%s3 + $0x1c] sm:$0xf] %vm1766, %v1737
    %1775 = vst.msk [vmem:[%s3 + $0x20] sm:$0xf] %vm1766, %v1738
    %1776 = vst.msk [vmem:[%s3 + $0x24] sm:$0xf] %vm1766, %v1739
    %1777 = vst.msk [vmem:[%s3 + $0x28] sm:$0xf] %vm1766, %v1740
    %1778 = vst.msk [vmem:[%s3 + $0x2c] sm:$0xf] %vm1766, %v1741
    %1779 = vst.msk [vmem:[%s3 + $0x30] sm:$0xf] %vm1766, %v1742
    %1780 = vst.msk [vmem:[%s3 + $0x34] sm:$0xf] %vm1766, %v1743
    %1781 = vst.msk [vmem:[%s3 + $0x38] sm:$0xf] %vm1766, %v1744
    %1782 = vst.msk [vmem:[%s3 + $0x3c] sm:$0xf] %vm1766, %v1745
    %1783 = vst.msk [vmem:[%s3 + $0x40] sm:$0xf] %vm1766, %v1746
    %1784 = vst.msk [vmem:[%s3 + $0x44] sm:$0xf] %vm1766, %v1747
    %1785 = vst.msk [vmem:[%s3 + $0x48] sm:$0xf] %vm1766, %v1748
    %1786 = vst.msk [vmem:[%s3 + $0x4c] sm:$0xf] %vm1766, %v1749
    %1787 = vst.msk [vmem:[%s3 + $0x50] sm:$0xf] %vm1766, %v1750
    %1788 = vst.msk [vmem:[%s3 + $0x54] sm:$0xf] %vm1766, %v1751
    %1789 = vst.msk [vmem:[%s3 + $0x58] sm:$0xf] %vm1766, %v1752
    %1790 = vst.msk [vmem:[%s3 + $0x5c] sm:$0xf] %vm1766, %v1753
    %1791 = vst.msk [vmem:[%s3 + $0x60] sm:$0xf] %vm1766, %v1754
    %1792 = vst.msk [vmem:[%s3 + $0x64] sm:$0xf] %vm1766, %v1755
    %1793 = vst.msk [vmem:[%s3 + $0x68] sm:$0xf] %vm1766, %v1756
    %1794 = vst.msk [vmem:[%s3 + $0x6c] sm:$0xf] %vm1766, %v1757
    %1795 = vst.msk [vmem:[%s3 + $0x70] sm:$0xf] %vm1766, %v1758
    %1796 = vst.msk [vmem:[%s3 + $0x74] sm:$0xf] %vm1766, %v1759
    %1797 = vst.msk [vmem:[%s3 + $0x78] sm:$0xf] %vm1766, %v1760
    %1798 = vst.msk [vmem:[%s3 + $0x7c] sm:$0xf] %vm1766, %v1761
    %1799 = vst.msk [vmem:[%s3 + $0x80] sm:$0xf] %vm1766, %v1762
    %1800 = vst.msk [vmem:[%s3 + $0x84] sm:$0xf] %vm1766, %v1763
    %1801 = vst.msk [vmem:[%s3 + $0x88] sm:$0xf] %vm1766, %v1764
    %1802 = vst.msk [vmem:[%s3 + $0x8c] sm:$0xf] %vm1766, %v1765
    // Predicated region
    $region22: #{uttr_decoder_forward.5} parent=1 // pred_check
      _
    $region23: #{uttr_decoder_forward.5} parent=1 // pred_check_branch
      %1804 = sbr.rel (0) target = $region25
    $region24: #{uttr_decoder_forward.5} parent=1 // pred_region
      _
    $region25: #{uttr_decoder_forward.5} parent=1 // pred_fallthru
      _
    // Predicated region
    $region26: #{uttr_decoder_forward.5} parent=1 // pred_check
      _
    $region27: #{uttr_decoder_forward.5} parent=1 // pred_check_branch
      %1806 = sbr.rel (0) target = $region29
    $region28: #{uttr_decoder_forward.5} parent=1 // pred_region
      _
    $region29: #{uttr_decoder_forward.5} parent=1 // pred_fallthru
      _
    %1807 = vsyncpa [#allocation3], 1
    %1808 = vsyncpa [#allocation5], 1

// kernel: uttr_decoder_forward.6
$region0: #{uttr_decoder_forward.6}
  #allocation0 [shape = 'u32[]', space=smem, size = 0x4, offset = 0x4, fixed_abs, tag = 'smem constant byte address 0x4 - core index']
  #allocation1 [shape = 'u32[72,128]{1,0:T(1,128)}', space=vmem, size = 0x9000, scoped, tag = 'internal scratch']
  %s0 = inlined_call_operand.vmem [shape: bf16[4,288,128], index: 0, kind: input, shape index: {}]
  %s1 = inlined_call_operand.vmem [shape: bf16[4,128,16], index: 1, kind: input, shape index: {}]
  %s2 = inlined_call_operand.vmem [shape: f32[1,16], index: 2, kind: input, shape index: {}]
  %s3 = inlined_call_operand.vmem [shape: bf16[1152,8], index: 3, kind: output, shape index: {}]
  %s4 = sld [smem:[#allocation0]]
  $region22: #{uttr_decoder_forward.6} parent=0
    _
  %s6 = ssub.s32 1, %s4
  %s7 = scalar_select 0, %s6, %s4
  // Predicated region
  $region2: #{uttr_decoder_forward.6} parent=0 // pred_check
    _
  $region3: #{uttr_decoder_forward.6} parent=0 // pred_check_branch
    %9 = sbr.rel (0) target = $region5
  $region4: #{uttr_decoder_forward.6} parent=0 // pred_region
    _
  $region5: #{uttr_decoder_forward.6} parent=0 // pred_fallthru
    _
  // Predicated region
  $region6: #{uttr_decoder_forward.6} parent=0 // pred_check
    _
  $region7: #{uttr_decoder_forward.6} parent=0 // pred_check_branch
    %11 = sbr.rel (0) target = $region9
  $region8: #{uttr_decoder_forward.6} parent=0 // pred_region
    _
  $region9: #{uttr_decoder_forward.6} parent=0 // pred_fallthru
    _
  // Predicated region
  $region10: #{uttr_decoder_forward.6} parent=0 // pred_check
    _
  $region11: #{uttr_decoder_forward.6} parent=0 // pred_check_branch
    %13 = sbr.rel (0) target = $region13
  $region12: #{uttr_decoder_forward.6} parent=0 // pred_region
    _
  $region13: #{uttr_decoder_forward.6} parent=0 // pred_fallthru
    _
  %v14 = vld [vmem:[%s0] sm:$0xf]
  %v15 = vld [vmem:[%s0 + $0x4] sm:$0xf]
  %v16 = vld [vmem:[%s0 + $0x8] sm:$0xf]
  %v17 = vld [vmem:[%s0 + $0xc] sm:$0xf]
  %v18 = vld [vmem:[%s0 + $0x10] sm:$0xf]
  %v19 = vld [vmem:[%s0 + $0x14] sm:$0xf]
  %v20 = vld [vmem:[%s0 + $0x18] sm:$0xf]
  %v21 = vld [vmem:[%s0 + $0x1c] sm:$0xf]
  %v22 = vld [vmem:[%s0 + $0x20] sm:$0xf]
  %v23 = vld [vmem:[%s0 + $0x24] sm:$0xf]
  %v24 = vld [vmem:[%s0 + $0x28] sm:$0xf]
  %v25 = vld [vmem:[%s0 + $0x2c] sm:$0xf]
  %v26 = vld [vmem:[%s0 + $0x30] sm:$0xf]
  %v27 = vld [vmem:[%s0 + $0x34] sm:$0xf]
  %v28 = vld [vmem:[%s0 + $0x38] sm:$0xf]
  %v29 = vld [vmem:[%s0 + $0x3c] sm:$0xf]
  %v30 = vld [vmem:[%s0 + $0x40] sm:$0xf]
  %v31 = vld [vmem:[%s0 + $0x44] sm:$0xf]
  %v32 = vld [vmem:[%s0 + $0x48] sm:$0xf]
  %v33 = vld [vmem:[%s0 + $0x4c] sm:$0xf]
  %v34 = vld [vmem:[%s0 + $0x50] sm:$0xf]
  %v35 = vld [vmem:[%s0 + $0x54] sm:$0xf]
  %v36 = vld [vmem:[%s0 + $0x58] sm:$0xf]
  %v37 = vld [vmem:[%s0 + $0x5c] sm:$0xf]
  %v38 = vld [vmem:[%s0 + $0x60] sm:$0xf]
  %v39 = vld [vmem:[%s0 + $0x64] sm:$0xf]
  %v40 = vld [vmem:[%s0 + $0x68] sm:$0xf]
  %v41 = vld [vmem:[%s0 + $0x6c] sm:$0xf]
  %v42 = vld [vmem:[%s0 + $0x70] sm:$0xf]
  %v43 = vld [vmem:[%s0 + $0x74] sm:$0xf]
  %v44 = vld [vmem:[%s0 + $0x78] sm:$0xf]
  %v45 = vld [vmem:[%s0 + $0x7c] sm:$0xf]
  %v46 = vld [vmem:[%s0 + $0x80] sm:$0xf]
  %v47 = vld [vmem:[%s0 + $0x84] sm:$0xf]
  %v48 = vld [vmem:[%s0 + $0x88] sm:$0xf]
  %v49 = vld [vmem:[%s0 + $0x8c] sm:$0xf]
  %v50 = vld [vmem:[%s1] sm:$0xf]
  %v51 = vld [vmem:[%s1 + $0x4] sm:$0xf]
  %v52 = vld [vmem:[%s1 + $0x8] sm:$0xf]
  %v53 = vld [vmem:[%s1 + $0xc] sm:$0xf]
  %v54 = vld [vmem:[%s1 + $0x10] sm:$0xf]
  %v55 = vld [vmem:[%s1 + $0x14] sm:$0xf]
  %v56 = vld [vmem:[%s1 + $0x18] sm:$0xf]
  %v57 = vld [vmem:[%s1 + $0x1c] sm:$0xf]
  %v58 = vld [vmem:[%s1 + $0x20] sm:$0xf]
  %v59 = vld [vmem:[%s1 + $0x24] sm:$0xf]
  %v60 = vld [vmem:[%s1 + $0x28] sm:$0xf]
  %v61 = vld [vmem:[%s1 + $0x2c] sm:$0xf]
  %v62 = vld [vmem:[%s1 + $0x30] sm:$0xf]
  %v63 = vld [vmem:[%s1 + $0x34] sm:$0xf]
  %v64 = vld [vmem:[%s1 + $0x38] sm:$0xf]
  %v65 = vld [vmem:[%s1 + $0x3c] sm:$0xf]
  %v102 = vunpack.c.l.b16 %v14
  %v103 = vunpack.c.l.b16 %v15
  %v104 = vunpack.c.l.b16 %v16
  %v105 = vunpack.c.l.b16 %v17
  %v106 = vunpack.c.l.b16 %v18
  %v107 = vunpack.c.l.b16 %v19
  %v108 = vunpack.c.l.b16 %v20
  %v109 = vunpack.c.l.b16 %v21
  %v110 = vunpack.c.l.b16 %v22
  %v111 = vunpack.c.l.b16 %v23
  %v112 = vunpack.c.l.b16 %v24
  %v113 = vunpack.c.l.b16 %v25
  %v114 = vunpack.c.l.b16 %v26
  %v115 = vunpack.c.l.b16 %v27
  %v116 = vunpack.c.l.b16 %v28
  %v117 = vunpack.c.l.b16 %v29
  %v118 = vunpack.c.l.b16 %v30
  %v119 = vunpack.c.l.b16 %v31
  %v120 = vunpack.c.l.b16 %v32
  %v121 = vunpack.c.l.b16 %v33
  %v122 = vunpack.c.l.b16 %v34
  %v123 = vunpack.c.l.b16 %v35
  %v124 = vunpack.c.l.b16 %v36
  %v125 = vunpack.c.l.b16 %v37
  %v126 = vunpack.c.l.b16 %v38
  %v127 = vunpack.c.l.b16 %v39
  %v128 = vunpack.c.l.b16 %v40
  %v129 = vunpack.c.l.b16 %v41
  %v130 = vunpack.c.l.b16 %v42
  %v131 = vunpack.c.l.b16 %v43
  %v132 = vunpack.c.l.b16 %v44
  %v133 = vunpack.c.l.b16 %v45
  %v134 = vunpack.c.l.b16 %v46
  %v135 = vunpack.c.l.b16 %v47
  %v136 = vunpack.c.l.b16 %v48
  %v137 = vunpack.c.l.b16 %v49
  %v138 = vpack.c.b16 %v103, %v102
  %v139 = vpack.c.b16 %v105, %v104
  %v140 = vpack.c.b16 %v107, %v106
  %v141 = vpack.c.b16 %v109, %v108
  %v142 = vpack.c.b16 %v111, %v110
  %v143 = vpack.c.b16 %v113, %v112
  %v144 = vpack.c.b16 %v115, %v114
  %v145 = vpack.c.b16 %v117, %v116
  %v146 = vpack.c.b16 %v119, %v118
  %v147 = vpack.c.b16 %v121, %v120
  %v148 = vpack.c.b16 %v123, %v122
  %v149 = vpack.c.b16 %v125, %v124
  %v150 = vpack.c.b16 %v127, %v126
  %v151 = vpack.c.b16 %v129, %v128
  %v152 = vpack.c.b16 %v131, %v130
  %v153 = vpack.c.b16 %v133, %v132
  %v154 = vpack.c.b16 %v135, %v134
  %v155 = vpack.c.b16 %v137, %v136
  %v190 = vunpack.c.l.b16 %v50
  %v191 = vunpack.c.l.b16 %v51
  %v192 = vunpack.c.l.b16 %v52
  %v193 = vunpack.c.l.b16 %v53
  %v194 = vunpack.c.l.b16 %v54
  %v195 = vunpack.c.l.b16 %v55
  %v196 = vunpack.c.l.b16 %v56
  %v197 = vunpack.c.l.b16 %v57
  %v198 = vunpack.c.l.b16 %v58
  %v199 = vunpack.c.l.b16 %v59
  %v200 = vunpack.c.l.b16 %v60
  %v201 = vunpack.c.l.b16 %v61
  %v202 = vunpack.c.l.b16 %v62
  %v203 = vunpack.c.l.b16 %v63
  %v204 = vunpack.c.l.b16 %v64
  %v205 = vunpack.c.l.b16 %v65
  %v206 = vpack.c.b16 %v191, %v190
  %v207 = vpack.c.b16 %v193, %v192
  %v208 = vpack.c.b16 %v195, %v194
  %v209 = vpack.c.b16 %v197, %v196
  %v210 = vpack.c.b16 %v199, %v198
  %v211 = vpack.c.b16 %v201, %v200
  %v212 = vpack.c.b16 %v203, %v202
  %v213 = vpack.c.b16 %v205, %v204
  %222 = vmatpush.bf16.msra.mxu0 %v213
  %223 = vmatpush.bf16.msra.mxu0 %v212
  %224 = vmatpush.bf16.msra.mxu0 %v211
  %225 = vmatpush.bf16.msra.mxu0 %v210
  %226 = vmatpush.bf16.msra.mxu0 %v209
  %227 = vmatpush.bf16.msra.mxu0 %v208
  %228 = vmatpush.bf16.msra.mxu0 %v207
  %229 = vmatpush.bf16.msra.mxu0 %v206
  %230 = vmatmul.bf16.gmra.mxu0 %v138
  %v231 = vpop.f32.mrf.mxu0
  %v232 = vadd.f32 0.0, %v231
  %v233 = vpop.f32.mrf.mxu0
  %v234 = vadd.f32 0.0, %v233
  %235 = vmatmul.bf16.gmra.mxu0 %v139
  %v236 = vpop.f32.mrf.mxu0
  %v237 = vadd.f32 0.0, %v236
  %v238 = vpop.f32.mrf.mxu0
  %v239 = vadd.f32 0.0, %v238
  %240 = vmatmul.bf16.gmra.mxu0 %v140
  %v241 = vpop.f32.mrf.mxu0
  %v242 = vadd.f32 0.0, %v241
  %v243 = vpop.f32.mrf.mxu0
  %v244 = vadd.f32 0.0, %v243
  %245 = vmatmul.bf16.gmra.mxu0 %v141
  %v246 = vpop.f32.mrf.mxu0
  %v247 = vadd.f32 0.0, %v246
  %v248 = vpop.f32.mrf.mxu0
  %v249 = vadd.f32 0.0, %v248
  %250 = vmatmul.bf16.gmra.mxu0 %v142
  %v251 = vpop.f32.mrf.mxu0
  %v252 = vadd.f32 0.0, %v251
  %v253 = vpop.f32.mrf.mxu0
  %v254 = vadd.f32 0.0, %v253
  %255 = vmatmul.bf16.gmra.mxu0 %v143
  %v256 = vpop.f32.mrf.mxu0
  %v257 = vadd.f32 0.0, %v256
  %v258 = vpop.f32.mrf.mxu0
  %v259 = vadd.f32 0.0, %v258
  %260 = vmatmul.bf16.gmra.mxu0 %v144
  %v261 = vpop.f32.mrf.mxu0
  %v262 = vadd.f32 0.0, %v261
  %v263 = vpop.f32.mrf.mxu0
  %v264 = vadd.f32 0.0, %v263
  %265 = vmatmul.bf16.gmra.mxu0 %v145
  %v266 = vpop.f32.mrf.mxu0
  %v267 = vadd.f32 0.0, %v266
  %v268 = vpop.f32.mrf.mxu0
  %v269 = vadd.f32 0.0, %v268
  %270 = vmatmul.bf16.gmra.mxu0 %v146
  %v271 = vpop.f32.mrf.mxu0
  %v272 = vadd.f32 0.0, %v271
  %v273 = vpop.f32.mrf.mxu0
  %v274 = vadd.f32 0.0, %v273
  %275 = vmatmul.bf16.gmra.mxu0 %v147
  %v276 = vpop.f32.mrf.mxu0
  %v277 = vadd.f32 0.0, %v276
  %v278 = vpop.f32.mrf.mxu0
  %v279 = vadd.f32 0.0, %v278
  %280 = vmatmul.bf16.gmra.mxu0 %v148
  %v281 = vpop.f32.mrf.mxu0
  %v282 = vadd.f32 0.0, %v281
  %v283 = vpop.f32.mrf.mxu0
  %v284 = vadd.f32 0.0, %v283
  %285 = vmatmul.bf16.gmra.mxu0 %v149
  %v286 = vpop.f32.mrf.mxu0
  %v287 = vadd.f32 0.0, %v286
  %v288 = vpop.f32.mrf.mxu0
  %v289 = vadd.f32 0.0, %v288
  %290 = vmatmul.bf16.gmra.mxu0 %v150
  %v291 = vpop.f32.mrf.mxu0
  %v292 = vadd.f32 0.0, %v291
  %v293 = vpop.f32.mrf.mxu0
  %v294 = vadd.f32 0.0, %v293
  %295 = vmatmul.bf16.gmra.mxu0 %v151
  %v296 = vpop.f32.mrf.mxu0
  %v297 = vadd.f32 0.0, %v296
  %v298 = vpop.f32.mrf.mxu0
  %v299 = vadd.f32 0.0, %v298
  %300 = vmatmul.bf16.gmra.mxu0 %v152
  %v301 = vpop.f32.mrf.mxu0
  %v302 = vadd.f32 0.0, %v301
  %v303 = vpop.f32.mrf.mxu0
  %v304 = vadd.f32 0.0, %v303
  %305 = vmatmul.bf16.gmra.mxu0 %v153
  %v306 = vpop.f32.mrf.mxu0
  %v307 = vadd.f32 0.0, %v306
  %v308 = vpop.f32.mrf.mxu0
  %v309 = vadd.f32 0.0, %v308
  %310 = vmatmul.bf16.gmra.mxu0 %v154
  %v311 = vpop.f32.mrf.mxu0
  %v312 = vadd.f32 0.0, %v311
  %v313 = vpop.f32.mrf.mxu0
  %v314 = vadd.f32 0.0, %v313
  %315 = vmatmul.bf16.gmra.mxu0 %v155
  %v316 = vpop.f32.mrf.mxu0
  %v317 = vadd.f32 0.0, %v316
  %v318 = vpop.f32.mrf.mxu0
  %v319 = vadd.f32 0.0, %v318
  %320 = vdwg.mxu0
  %s321 = scalar_lea.vmem %s0, 144
  %v322 = vld [vmem:[%s321] sm:$0xf]
  %v323 = vld [vmem:[%s321 + $0x4] sm:$0xf]
  %v324 = vld [vmem:[%s321 + $0x8] sm:$0xf]
  %v325 = vld [vmem:[%s321 + $0xc] sm:$0xf]
  %v326 = vld [vmem:[%s321 + $0x10] sm:$0xf]
  %v327 = vld [vmem:[%s321 + $0x14] sm:$0xf]
  %v328 = vld [vmem:[%s321 + $0x18] sm:$0xf]
  %v329 = vld [vmem:[%s321 + $0x1c] sm:$0xf]
  %v330 = vld [vmem:[%s321 + $0x20] sm:$0xf]
  %v331 = vld [vmem:[%s321 + $0x24] sm:$0xf]
  %v332 = vld [vmem:[%s321 + $0x28] sm:$0xf]
  %v333 = vld [vmem:[%s321 + $0x2c] sm:$0xf]
  %v334 = vld [vmem:[%s321 + $0x30] sm:$0xf]
  %v335 = vld [vmem:[%s321 + $0x34] sm:$0xf]
  %v336 = vld [vmem:[%s321 + $0x38] sm:$0xf]
  %v337 = vld [vmem:[%s321 + $0x3c] sm:$0xf]
  %v338 = vld [vmem:[%s321 + $0x40] sm:$0xf]
  %v339 = vld [vmem:[%s321 + $0x44] sm:$0xf]
  %v340 = vld [vmem:[%s321 + $0x48] sm:$0xf]
  %v341 = vld [vmem:[%s321 + $0x4c] sm:$0xf]
  %v342 = vld [vmem:[%s321 + $0x50] sm:$0xf]
  %v343 = vld [vmem:[%s321 + $0x54] sm:$0xf]
  %v344 = vld [vmem:[%s321 + $0x58] sm:$0xf]
  %v345 = vld [vmem:[%s321 + $0x5c] sm:$0xf]
  %v346 = vld [vmem:[%s321 + $0x60] sm:$0xf]
  %v347 = vld [vmem:[%s321 + $0x64] sm:$0xf]
  %v348 = vld [vmem:[%s321 + $0x68] sm:$0xf]
  %v349 = vld [vmem:[%s321 + $0x6c] sm:$0xf]
  %v350 = vld [vmem:[%s321 + $0x70] sm:$0xf]
  %v351 = vld [vmem:[%s321 + $0x74] sm:$0xf]
  %v352 = vld [vmem:[%s321 + $0x78] sm:$0xf]
  %v353 = vld [vmem:[%s321 + $0x7c] sm:$0xf]
  %v354 = vld [vmem:[%s321 + $0x80] sm:$0xf]
  %v355 = vld [vmem:[%s321 + $0x84] sm:$0xf]
  %v356 = vld [vmem:[%s321 + $0x88] sm:$0xf]
  %v357 = vld [vmem:[%s321 + $0x8c] sm:$0xf]
  %s358 = scalar_lea.vmem %s1, 64
  %v359 = vld [vmem:[%s358] sm:$0xf]
  %v360 = vld [vmem:[%s358 + $0x4] sm:$0xf]
  %v361 = vld [vmem:[%s358 + $0x8] sm:$0xf]
  %v362 = vld [vmem:[%s358 + $0xc] sm:$0xf]
  %v363 = vld [vmem:[%s358 + $0x10] sm:$0xf]
  %v364 = vld [vmem:[%s358 + $0x14] sm:$0xf]
  %v365 = vld [vmem:[%s358 + $0x18] sm:$0xf]
  %v366 = vld [vmem:[%s358 + $0x1c] sm:$0xf]
  %v367 = vld [vmem:[%s358 + $0x20] sm:$0xf]
  %v368 = vld [vmem:[%s358 + $0x24] sm:$0xf]
  %v369 = vld [vmem:[%s358 + $0x28] sm:$0xf]
  %v370 = vld [vmem:[%s358 + $0x2c] sm:$0xf]
  %v371 = vld [vmem:[%s358 + $0x30] sm:$0xf]
  %v372 = vld [vmem:[%s358 + $0x34] sm:$0xf]
  %v373 = vld [vmem:[%s358 + $0x38] sm:$0xf]
  %v374 = vld [vmem:[%s358 + $0x3c] sm:$0xf]
  %v411 = vunpack.c.l.b16 %v322
  %v412 = vunpack.c.l.b16 %v323
  %v413 = vunpack.c.l.b16 %v324
  %v414 = vunpack.c.l.b16 %v325
  %v415 = vunpack.c.l.b16 %v326
  %v416 = vunpack.c.l.b16 %v327
  %v417 = vunpack.c.l.b16 %v328
  %v418 = vunpack.c.l.b16 %v329
  %v419 = vunpack.c.l.b16 %v330
  %v420 = vunpack.c.l.b16 %v331
  %v421 = vunpack.c.l.b16 %v332
  %v422 = vunpack.c.l.b16 %v333
  %v423 = vunpack.c.l.b16 %v334
  %v424 = vunpack.c.l.b16 %v335
  %v425 = vunpack.c.l.b16 %v336
  %v426 = vunpack.c.l.b16 %v337
  %v427 = vunpack.c.l.b16 %v338
  %v428 = vunpack.c.l.b16 %v339
  %v429 = vunpack.c.l.b16 %v340
  %v430 = vunpack.c.l.b16 %v341
  %v431 = vunpack.c.l.b16 %v342
  %v432 = vunpack.c.l.b16 %v343
  %v433 = vunpack.c.l.b16 %v344
  %v434 = vunpack.c.l.b16 %v345
  %v435 = vunpack.c.l.b16 %v346
  %v436 = vunpack.c.l.b16 %v347
  %v437 = vunpack.c.l.b16 %v348
  %v438 = vunpack.c.l.b16 %v349
  %v439 = vunpack.c.l.b16 %v350
  %v440 = vunpack.c.l.b16 %v351
  %v441 = vunpack.c.l.b16 %v352
  %v442 = vunpack.c.l.b16 %v353
  %v443 = vunpack.c.l.b16 %v354
  %v444 = vunpack.c.l.b16 %v355
  %v445 = vunpack.c.l.b16 %v356
  %v446 = vunpack.c.l.b16 %v357
  %v447 = vpack.c.b16 %v412, %v411
  %v448 = vpack.c.b16 %v414, %v413
  %v449 = vpack.c.b16 %v416, %v415
  %v450 = vpack.c.b16 %v418, %v417
  %v451 = vpack.c.b16 %v420, %v419
  %v452 = vpack.c.b16 %v422, %v421
  %v453 = vpack.c.b16 %v424, %v423
  %v454 = vpack.c.b16 %v426, %v425
  %v455 = vpack.c.b16 %v428, %v427
  %v456 = vpack.c.b16 %v430, %v429
  %v457 = vpack.c.b16 %v432, %v431
  %v458 = vpack.c.b16 %v434, %v433
  %v459 = vpack.c.b16 %v436, %v435
  %v460 = vpack.c.b16 %v438, %v437
  %v461 = vpack.c.b16 %v440, %v439
  %v462 = vpack.c.b16 %v442, %v441
  %v463 = vpack.c.b16 %v444, %v443
  %v464 = vpack.c.b16 %v446, %v445
  %v499 = vunpack.c.l.b16 %v359
  %v500 = vunpack.c.l.b16 %v360
  %v501 = vunpack.c.l.b16 %v361
  %v502 = vunpack.c.l.b16 %v362
  %v503 = vunpack.c.l.b16 %v363
  %v504 = vunpack.c.l.b16 %v364
  %v505 = vunpack.c.l.b16 %v365
  %v506 = vunpack.c.l.b16 %v366
  %v507 = vunpack.c.l.b16 %v367
  %v508 = vunpack.c.l.b16 %v368
  %v509 = vunpack.c.l.b16 %v369
  %v510 = vunpack.c.l.b16 %v370
  %v511 = vunpack.c.l.b16 %v371
  %v512 = vunpack.c.l.b16 %v372
  %v513 = vunpack.c.l.b16 %v373
  %v514 = vunpack.c.l.b16 %v374
  %v515 = vpack.c.b16 %v500, %v499
  %v516 = vpack.c.b16 %v502, %v501
  %v517 = vpack.c.b16 %v504, %v503
  %v518 = vpack.c.b16 %v506, %v505
  %v519 = vpack.c.b16 %v508, %v507
  %v520 = vpack.c.b16 %v510, %v509
  %v521 = vpack.c.b16 %v512, %v511
  %v522 = vpack.c.b16 %v514, %v513
  %531 = vmatpush.bf16.msra.mxu0 %v522
  %532 = vmatpush.bf16.msra.mxu0 %v521
  %533 = vmatpush.bf16.msra.mxu0 %v520
  %534 = vmatpush.bf16.msra.mxu0 %v519
  %535 = vmatpush.bf16.msra.mxu0 %v518
  %536 = vmatpush.bf16.msra.mxu0 %v517
  %537 = vmatpush.bf16.msra.mxu0 %v516
  %538 = vmatpush.bf16.msra.mxu0 %v515
  %539 = vmatmul.bf16.gmra.mxu0 %v447
  %v540 = vpop.f32.mrf.mxu0
  %v541 = vadd.f32 0.0, %v540
  %v542 = vpop.f32.mrf.mxu0
  %v543 = vadd.f32 0.0, %v542
  %544 = vmatmul.bf16.gmra.mxu0 %v448
  %v545 = vpop.f32.mrf.mxu0
  %v546 = vadd.f32 0.0, %v545
  %v547 = vpop.f32.mrf.mxu0
  %v548 = vadd.f32 0.0, %v547
  %549 = vmatmul.bf16.gmra.mxu0 %v449
  %v550 = vpop.f32.mrf.mxu0
  %v551 = vadd.f32 0.0, %v550
  %v552 = vpop.f32.mrf.mxu0
  %v553 = vadd.f32 0.0, %v552
  %554 = vmatmul.bf16.gmra.mxu0 %v450
  %v555 = vpop.f32.mrf.mxu0
  %v556 = vadd.f32 0.0, %v555
  %v557 = vpop.f32.mrf.mxu0
  %v558 = vadd.f32 0.0, %v557
  %559 = vmatmul.bf16.gmra.mxu0 %v451
  %v560 = vpop.f32.mrf.mxu0
  %v561 = vadd.f32 0.0, %v560
  %v562 = vpop.f32.mrf.mxu0
  %v563 = vadd.f32 0.0, %v562
  %564 = vmatmul.bf16.gmra.mxu0 %v452
  %v565 = vpop.f32.mrf.mxu0
  %v566 = vadd.f32 0.0, %v565
  %v567 = vpop.f32.mrf.mxu0
  %v568 = vadd.f32 0.0, %v567
  %569 = vmatmul.bf16.gmra.mxu0 %v453
  %v570 = vpop.f32.mrf.mxu0
  %v571 = vadd.f32 0.0, %v570
  %v572 = vpop.f32.mrf.mxu0
  %v573 = vadd.f32 0.0, %v572
  %574 = vmatmul.bf16.gmra.mxu0 %v454
  %v575 = vpop.f32.mrf.mxu0
  %v576 = vadd.f32 0.0, %v575
  %v577 = vpop.f32.mrf.mxu0
  %v578 = vadd.f32 0.0, %v577
  %579 = vmatmul.bf16.gmra.mxu0 %v455
  %v580 = vpop.f32.mrf.mxu0
  %v581 = vadd.f32 0.0, %v580
  %v582 = vpop.f32.mrf.mxu0
  %v583 = vadd.f32 0.0, %v582
  %584 = vmatmul.bf16.gmra.mxu0 %v456
  %v585 = vpop.f32.mrf.mxu0
  %v586 = vadd.f32 0.0, %v585
  %v587 = vpop.f32.mrf.mxu0
  %v588 = vadd.f32 0.0, %v587
  %589 = vmatmul.bf16.gmra.mxu0 %v457
  %v590 = vpop.f32.mrf.mxu0
  %v591 = vadd.f32 0.0, %v590
  %v592 = vpop.f32.mrf.mxu0
  %v593 = vadd.f32 0.0, %v592
  %594 = vmatmul.bf16.gmra.mxu0 %v458
  %v595 = vpop.f32.mrf.mxu0
  %v596 = vadd.f32 0.0, %v595
  %v597 = vpop.f32.mrf.mxu0
  %v598 = vadd.f32 0.0, %v597
  %599 = vmatmul.bf16.gmra.mxu0 %v459
  %v600 = vpop.f32.mrf.mxu0
  %v601 = vadd.f32 0.0, %v600
  %v602 = vpop.f32.mrf.mxu0
  %v603 = vadd.f32 0.0, %v602
  %604 = vmatmul.bf16.gmra.mxu0 %v460
  %v605 = vpop.f32.mrf.mxu0
  %v606 = vadd.f32 0.0, %v605
  %v607 = vpop.f32.mrf.mxu0
  %v608 = vadd.f32 0.0, %v607
  %609 = vmatmul.bf16.gmra.mxu0 %v461
  %v610 = vpop.f32.mrf.mxu0
  %v611 = vadd.f32 0.0, %v610
  %v612 = vpop.f32.mrf.mxu0
  %v613 = vadd.f32 0.0, %v612
  %614 = vmatmul.bf16.gmra.mxu0 %v462
  %v615 = vpop.f32.mrf.mxu0
  %v616 = vadd.f32 0.0, %v615
  %v617 = vpop.f32.mrf.mxu0
  %v618 = vadd.f32 0.0, %v617
  %619 = vmatmul.bf16.gmra.mxu0 %v463
  %v620 = vpop.f32.mrf.mxu0
  %v621 = vadd.f32 0.0, %v620
  %v622 = vpop.f32.mrf.mxu0
  %v623 = vadd.f32 0.0, %v622
  %624 = vmatmul.bf16.gmra.mxu0 %v464
  %v625 = vpop.f32.mrf.mxu0
  %v626 = vadd.f32 0.0, %v625
  %v627 = vpop.f32.mrf.mxu0
  %v628 = vadd.f32 0.0, %v627
  %629 = vdwg.mxu0
  %s630 = scalar_lea.vmem %s0, 288
  %v631 = vld [vmem:[%s630] sm:$0xf]
  %v632 = vld [vmem:[%s630 + $0x4] sm:$0xf]
  %v633 = vld [vmem:[%s630 + $0x8] sm:$0xf]
  %v634 = vld [vmem:[%s630 + $0xc] sm:$0xf]
  %v635 = vld [vmem:[%s630 + $0x10] sm:$0xf]
  %v636 = vld [vmem:[%s630 + $0x14] sm:$0xf]
  %v637 = vld [vmem:[%s630 + $0x18] sm:$0xf]
  %v638 = vld [vmem:[%s630 + $0x1c] sm:$0xf]
  %v639 = vld [vmem:[%s630 + $0x20] sm:$0xf]
  %v640 = vld [vmem:[%s630 + $0x24] sm:$0xf]
  %v641 = vld [vmem:[%s630 + $0x28] sm:$0xf]
  %v642 = vld [vmem:[%s630 + $0x2c] sm:$0xf]
  %v643 = vld [vmem:[%s630 + $0x30] sm:$0xf]
  %v644 = vld [vmem:[%s630 + $0x34] sm:$0xf]
  %v645 = vld [vmem:[%s630 + $0x38] sm:$0xf]
  %v646 = vld [vmem:[%s630 + $0x3c] sm:$0xf]
  %v647 = vld [vmem:[%s630 + $0x40] sm:$0xf]
  %v648 = vld [vmem:[%s630 + $0x44] sm:$0xf]
  %v649 = vld [vmem:[%s630 + $0x48] sm:$0xf]
  %v650 = vld [vmem:[%s630 + $0x4c] sm:$0xf]
  %v651 = vld [vmem:[%s630 + $0x50] sm:$0xf]
  %v652 = vld [vmem:[%s630 + $0x54] sm:$0xf]
  %v653 = vld [vmem:[%s630 + $0x58] sm:$0xf]
  %v654 = vld [vmem:[%s630 + $0x5c] sm:$0xf]
  %v655 = vld [vmem:[%s630 + $0x60] sm:$0xf]
  %v656 = vld [vmem:[%s630 + $0x64] sm:$0xf]
  %v657 = vld [vmem:[%s630 + $0x68] sm:$0xf]
  %v658 = vld [vmem:[%s630 + $0x6c] sm:$0xf]
  %v659 = vld [vmem:[%s630 + $0x70] sm:$0xf]
  %v660 = vld [vmem:[%s630 + $0x74] sm:$0xf]
  %v661 = vld [vmem:[%s630 + $0x78] sm:$0xf]
  %v662 = vld [vmem:[%s630 + $0x7c] sm:$0xf]
  %v663 = vld [vmem:[%s630 + $0x80] sm:$0xf]
  %v664 = vld [vmem:[%s630 + $0x84] sm:$0xf]
  %v665 = vld [vmem:[%s630 + $0x88] sm:$0xf]
  %v666 = vld [vmem:[%s630 + $0x8c] sm:$0xf]
  %s667 = scalar_lea.vmem %s1, 128
  %v668 = vld [vmem:[%s667] sm:$0xf]
  %v669 = vld [vmem:[%s667 + $0x4] sm:$0xf]
  %v670 = vld [vmem:[%s667 + $0x8] sm:$0xf]
  %v671 = vld [vmem:[%s667 + $0xc] sm:$0xf]
  %v672 = vld [vmem:[%s667 + $0x10] sm:$0xf]
  %v673 = vld [vmem:[%s667 + $0x14] sm:$0xf]
  %v674 = vld [vmem:[%s667 + $0x18] sm:$0xf]
  %v675 = vld [vmem:[%s667 + $0x1c] sm:$0xf]
  %v676 = vld [vmem:[%s667 + $0x20] sm:$0xf]
  %v677 = vld [vmem:[%s667 + $0x24] sm:$0xf]
  %v678 = vld [vmem:[%s667 + $0x28] sm:$0xf]
  %v679 = vld [vmem:[%s667 + $0x2c] sm:$0xf]
  %v680 = vld [vmem:[%s667 + $0x30] sm:$0xf]
  %v681 = vld [vmem:[%s667 + $0x34] sm:$0xf]
  %v682 = vld [vmem:[%s667 + $0x38] sm:$0xf]
  %v683 = vld [vmem:[%s667 + $0x3c] sm:$0xf]
  %v720 = vunpack.c.l.b16 %v631
  %v721 = vunpack.c.l.b16 %v632
  %v722 = vunpack.c.l.b16 %v633
  %v723 = vunpack.c.l.b16 %v634
  %v724 = vunpack.c.l.b16 %v635
  %v725 = vunpack.c.l.b16 %v636
  %v726 = vunpack.c.l.b16 %v637
  %v727 = vunpack.c.l.b16 %v638
  %v728 = vunpack.c.l.b16 %v639
  %v729 = vunpack.c.l.b16 %v640
  %v730 = vunpack.c.l.b16 %v641
  %v731 = vunpack.c.l.b16 %v642
  %v732 = vunpack.c.l.b16 %v643
  %v733 = vunpack.c.l.b16 %v644
  %v734 = vunpack.c.l.b16 %v645
  %v735 = vunpack.c.l.b16 %v646
  %v736 = vunpack.c.l.b16 %v647
  %v737 = vunpack.c.l.b16 %v648
  %v738 = vunpack.c.l.b16 %v649
  %v739 = vunpack.c.l.b16 %v650
  %v740 = vunpack.c.l.b16 %v651
  %v741 = vunpack.c.l.b16 %v652
  %v742 = vunpack.c.l.b16 %v653
  %v743 = vunpack.c.l.b16 %v654
  %v744 = vunpack.c.l.b16 %v655
  %v745 = vunpack.c.l.b16 %v656
  %v746 = vunpack.c.l.b16 %v657
  %v747 = vunpack.c.l.b16 %v658
  %v748 = vunpack.c.l.b16 %v659
  %v749 = vunpack.c.l.b16 %v660
  %v750 = vunpack.c.l.b16 %v661
  %v751 = vunpack.c.l.b16 %v662
  %v752 = vunpack.c.l.b16 %v663
  %v753 = vunpack.c.l.b16 %v664
  %v754 = vunpack.c.l.b16 %v665
  %v755 = vunpack.c.l.b16 %v666
  %v756 = vpack.c.b16 %v721, %v720
  %v757 = vpack.c.b16 %v723, %v722
  %v758 = vpack.c.b16 %v725, %v724
  %v759 = vpack.c.b16 %v727, %v726
  %v760 = vpack.c.b16 %v729, %v728
  %v761 = vpack.c.b16 %v731, %v730
  %v762 = vpack.c.b16 %v733, %v732
  %v763 = vpack.c.b16 %v735, %v734
  %v764 = vpack.c.b16 %v737, %v736
  %v765 = vpack.c.b16 %v739, %v738
  %v766 = vpack.c.b16 %v741, %v740
  %v767 = vpack.c.b16 %v743, %v742
  %v768 = vpack.c.b16 %v745, %v744
  %v769 = vpack.c.b16 %v747, %v746
  %v770 = vpack.c.b16 %v749, %v748
  %v771 = vpack.c.b16 %v751, %v750
  %v772 = vpack.c.b16 %v753, %v752
  %v773 = vpack.c.b16 %v755, %v754
  %v808 = vunpack.c.l.b16 %v668
  %v809 = vunpack.c.l.b16 %v669
  %v810 = vunpack.c.l.b16 %v670
  %v811 = vunpack.c.l.b16 %v671
  %v812 = vunpack.c.l.b16 %v672
  %v813 = vunpack.c.l.b16 %v673
  %v814 = vunpack.c.l.b16 %v674
  %v815 = vunpack.c.l.b16 %v675
  %v816 = vunpack.c.l.b16 %v676
  %v817 = vunpack.c.l.b16 %v677
  %v818 = vunpack.c.l.b16 %v678
  %v819 = vunpack.c.l.b16 %v679
  %v820 = vunpack.c.l.b16 %v680
  %v821 = vunpack.c.l.b16 %v681
  %v822 = vunpack.c.l.b16 %v682
  %v823 = vunpack.c.l.b16 %v683
  %v824 = vpack.c.b16 %v809, %v808
  %v825 = vpack.c.b16 %v811, %v810
  %v826 = vpack.c.b16 %v813, %v812
  %v827 = vpack.c.b16 %v815, %v814
  %v828 = vpack.c.b16 %v817, %v816
  %v829 = vpack.c.b16 %v819, %v818
  %v830 = vpack.c.b16 %v821, %v820
  %v831 = vpack.c.b16 %v823, %v822
  %840 = vmatpush.bf16.msra.mxu0 %v831
  %841 = vmatpush.bf16.msra.mxu0 %v830
  %842 = vmatpush.bf16.msra.mxu0 %v829
  %843 = vmatpush.bf16.msra.mxu0 %v828
  %844 = vmatpush.bf16.msra.mxu0 %v827
  %845 = vmatpush.bf16.msra.mxu0 %v826
  %846 = vmatpush.bf16.msra.mxu0 %v825
  %847 = vmatpush.bf16.msra.mxu0 %v824
  %848 = vmatmul.bf16.gmra.mxu0 %v756
  %v849 = vpop.f32.mrf.mxu0
  %v850 = vadd.f32 0.0, %v849
  %v851 = vpop.f32.mrf.mxu0
  %v852 = vadd.f32 0.0, %v851
  %853 = vmatmul.bf16.gmra.mxu0 %v757
  %v854 = vpop.f32.mrf.mxu0
  %v855 = vadd.f32 0.0, %v854
  %v856 = vpop.f32.mrf.mxu0
  %v857 = vadd.f32 0.0, %v856
  %858 = vmatmul.bf16.gmra.mxu0 %v758
  %v859 = vpop.f32.mrf.mxu0
  %v860 = vadd.f32 0.0, %v859
  %v861 = vpop.f32.mrf.mxu0
  %v862 = vadd.f32 0.0, %v861
  %863 = vmatmul.bf16.gmra.mxu0 %v759
  %v864 = vpop.f32.mrf.mxu0
  %v865 = vadd.f32 0.0, %v864
  %v866 = vpop.f32.mrf.mxu0
  %v867 = vadd.f32 0.0, %v866
  %868 = vmatmul.bf16.gmra.mxu0 %v760
  %v869 = vpop.f32.mrf.mxu0
  %v870 = vadd.f32 0.0, %v869
  %v871 = vpop.f32.mrf.mxu0
  %v872 = vadd.f32 0.0, %v871
  %873 = vmatmul.bf16.gmra.mxu0 %v761
  %v874 = vpop.f32.mrf.mxu0
  %v875 = vadd.f32 0.0, %v874
  %v876 = vpop.f32.mrf.mxu0
  %v877 = vadd.f32 0.0, %v876
  %878 = vmatmul.bf16.gmra.mxu0 %v762
  %v879 = vpop.f32.mrf.mxu0
  %v880 = vadd.f32 0.0, %v879
  %v881 = vpop.f32.mrf.mxu0
  %v882 = vadd.f32 0.0, %v881
  %883 = vmatmul.bf16.gmra.mxu0 %v763
  %v884 = vpop.f32.mrf.mxu0
  %v885 = vadd.f32 0.0, %v884
  %v886 = vpop.f32.mrf.mxu0
  %v887 = vadd.f32 0.0, %v886
  %888 = vmatmul.bf16.gmra.mxu0 %v764
  %v889 = vpop.f32.mrf.mxu0
  %v890 = vadd.f32 0.0, %v889
  %v891 = vpop.f32.mrf.mxu0
  %v892 = vadd.f32 0.0, %v891
  %893 = vmatmul.bf16.gmra.mxu0 %v765
  %v894 = vpop.f32.mrf.mxu0
  %v895 = vadd.f32 0.0, %v894
  %v896 = vpop.f32.mrf.mxu0
  %v897 = vadd.f32 0.0, %v896
  %898 = vmatmul.bf16.gmra.mxu0 %v766
  %v899 = vpop.f32.mrf.mxu0
  %v900 = vadd.f32 0.0, %v899
  %v901 = vpop.f32.mrf.mxu0
  %v902 = vadd.f32 0.0, %v901
  %903 = vmatmul.bf16.gmra.mxu0 %v767
  %v904 = vpop.f32.mrf.mxu0
  %v905 = vadd.f32 0.0, %v904
  %v906 = vpop.f32.mrf.mxu0
  %v907 = vadd.f32 0.0, %v906
  %908 = vmatmul.bf16.gmra.mxu0 %v768
  %v909 = vpop.f32.mrf.mxu0
  %v910 = vadd.f32 0.0, %v909
  %v911 = vpop.f32.mrf.mxu0
  %v912 = vadd.f32 0.0, %v911
  %913 = vmatmul.bf16.gmra.mxu0 %v769
  %v914 = vpop.f32.mrf.mxu0
  %v915 = vadd.f32 0.0, %v914
  %v916 = vpop.f32.mrf.mxu0
  %v917 = vadd.f32 0.0, %v916
  %918 = vmatmul.bf16.gmra.mxu0 %v770
  %v919 = vpop.f32.mrf.mxu0
  %v920 = vadd.f32 0.0, %v919
  %v921 = vpop.f32.mrf.mxu0
  %v922 = vadd.f32 0.0, %v921
  %923 = vmatmul.bf16.gmra.mxu0 %v771
  %v924 = vpop.f32.mrf.mxu0
  %v925 = vadd.f32 0.0, %v924
  %v926 = vpop.f32.mrf.mxu0
  %v927 = vadd.f32 0.0, %v926
  %928 = vmatmul.bf16.gmra.mxu0 %v772
  %v929 = vpop.f32.mrf.mxu0
  %v930 = vadd.f32 0.0, %v929
  %v931 = vpop.f32.mrf.mxu0
  %v932 = vadd.f32 0.0, %v931
  %933 = vmatmul.bf16.gmra.mxu0 %v773
  %v934 = vpop.f32.mrf.mxu0
  %v935 = vadd.f32 0.0, %v934
  %v936 = vpop.f32.mrf.mxu0
  %v937 = vadd.f32 0.0, %v936
  %938 = vdwg.mxu0
  %s939 = scalar_lea.vmem %s0, 432
  %v940 = vld [vmem:[%s939] sm:$0xf]
  %v941 = vld [vmem:[%s939 + $0x4] sm:$0xf]
  %v942 = vld [vmem:[%s939 + $0x8] sm:$0xf]
  %v943 = vld [vmem:[%s939 + $0xc] sm:$0xf]
  %v944 = vld [vmem:[%s939 + $0x10] sm:$0xf]
  %v945 = vld [vmem:[%s939 + $0x14] sm:$0xf]
  %v946 = vld [vmem:[%s939 + $0x18] sm:$0xf]
  %v947 = vld [vmem:[%s939 + $0x1c] sm:$0xf]
  %v948 = vld [vmem:[%s939 + $0x20] sm:$0xf]
  %v949 = vld [vmem:[%s939 + $0x24] sm:$0xf]
  %v950 = vld [vmem:[%s939 + $0x28] sm:$0xf]
  %v951 = vld [vmem:[%s939 + $0x2c] sm:$0xf]
  %v952 = vld [vmem:[%s939 + $0x30] sm:$0xf]
  %v953 = vld [vmem:[%s939 + $0x34] sm:$0xf]
  %v954 = vld [vmem:[%s939 + $0x38] sm:$0xf]
  %v955 = vld [vmem:[%s939 + $0x3c] sm:$0xf]
  %v956 = vld [vmem:[%s939 + $0x40] sm:$0xf]
  %v957 = vld [vmem:[%s939 + $0x44] sm:$0xf]
  %v958 = vld [vmem:[%s939 + $0x48] sm:$0xf]
  %v959 = vld [vmem:[%s939 + $0x4c] sm:$0xf]
  %v960 = vld [vmem:[%s939 + $0x50] sm:$0xf]
  %v961 = vld [vmem:[%s939 + $0x54] sm:$0xf]
  %v962 = vld [vmem:[%s939 + $0x58] sm:$0xf]
  %v963 = vld [vmem:[%s939 + $0x5c] sm:$0xf]
  %v964 = vld [vmem:[%s939 + $0x60] sm:$0xf]
  %v965 = vld [vmem:[%s939 + $0x64] sm:$0xf]
  %v966 = vld [vmem:[%s939 + $0x68] sm:$0xf]
  %v967 = vld [vmem:[%s939 + $0x6c] sm:$0xf]
  %v968 = vld [vmem:[%s939 + $0x70] sm:$0xf]
  %v969 = vld [vmem:[%s939 + $0x74] sm:$0xf]
  %v970 = vld [vmem:[%s939 + $0x78] sm:$0xf]
  %v971 = vld [vmem:[%s939 + $0x7c] sm:$0xf]
  %v972 = vld [vmem:[%s939 + $0x80] sm:$0xf]
  %v973 = vld [vmem:[%s939 + $0x84] sm:$0xf]
  %v974 = vld [vmem:[%s939 + $0x88] sm:$0xf]
  %v975 = vld [vmem:[%s939 + $0x8c] sm:$0xf]
  %s976 = scalar_lea.vmem %s1, 192
  %v977 = vld [vmem:[%s976] sm:$0xf]
  %v978 = vld [vmem:[%s976 + $0x4] sm:$0xf]
  %v979 = vld [vmem:[%s976 + $0x8] sm:$0xf]
  %v980 = vld [vmem:[%s976 + $0xc] sm:$0xf]
  %v981 = vld [vmem:[%s976 + $0x10] sm:$0xf]
  %v982 = vld [vmem:[%s976 + $0x14] sm:$0xf]
  %v983 = vld [vmem:[%s976 + $0x18] sm:$0xf]
  %v984 = vld [vmem:[%s976 + $0x1c] sm:$0xf]
  %v985 = vld [vmem:[%s976 + $0x20] sm:$0xf]
  %v986 = vld [vmem:[%s976 + $0x24] sm:$0xf]
  %v987 = vld [vmem:[%s976 + $0x28] sm:$0xf]
  %v988 = vld [vmem:[%s976 + $0x2c] sm:$0xf]
  %v989 = vld [vmem:[%s976 + $0x30] sm:$0xf]
  %v990 = vld [vmem:[%s976 + $0x34] sm:$0xf]
  %v991 = vld [vmem:[%s976 + $0x38] sm:$0xf]
  %v992 = vld [vmem:[%s976 + $0x3c] sm:$0xf]
  %v1029 = vunpack.c.l.b16 %v940
  %v1030 = vunpack.c.l.b16 %v941
  %v1031 = vunpack.c.l.b16 %v942
  %v1032 = vunpack.c.l.b16 %v943
  %v1033 = vunpack.c.l.b16 %v944
  %v1034 = vunpack.c.l.b16 %v945
  %v1035 = vunpack.c.l.b16 %v946
  %v1036 = vunpack.c.l.b16 %v947
  %v1037 = vunpack.c.l.b16 %v948
  %v1038 = vunpack.c.l.b16 %v949
  %v1039 = vunpack.c.l.b16 %v950
  %v1040 = vunpack.c.l.b16 %v951
  %v1041 = vunpack.c.l.b16 %v952
  %v1042 = vunpack.c.l.b16 %v953
  %v1043 = vunpack.c.l.b16 %v954
  %v1044 = vunpack.c.l.b16 %v955
  %v1045 = vunpack.c.l.b16 %v956
  %v1046 = vunpack.c.l.b16 %v957
  %v1047 = vunpack.c.l.b16 %v958
  %v1048 = vunpack.c.l.b16 %v959
  %v1049 = vunpack.c.l.b16 %v960
  %v1050 = vunpack.c.l.b16 %v961
  %v1051 = vunpack.c.l.b16 %v962
  %v1052 = vunpack.c.l.b16 %v963
  %v1053 = vunpack.c.l.b16 %v964
  %v1054 = vunpack.c.l.b16 %v965
  %v1055 = vunpack.c.l.b16 %v966
  %v1056 = vunpack.c.l.b16 %v967
  %v1057 = vunpack.c.l.b16 %v968
  %v1058 = vunpack.c.l.b16 %v969
  %v1059 = vunpack.c.l.b16 %v970
  %v1060 = vunpack.c.l.b16 %v971
  %v1061 = vunpack.c.l.b16 %v972
  %v1062 = vunpack.c.l.b16 %v973
  %v1063 = vunpack.c.l.b16 %v974
  %v1064 = vunpack.c.l.b16 %v975
  %v1065 = vpack.c.b16 %v1030, %v1029
  %v1066 = vpack.c.b16 %v1032, %v1031
  %v1067 = vpack.c.b16 %v1034, %v1033
  %v1068 = vpack.c.b16 %v1036, %v1035
  %v1069 = vpack.c.b16 %v1038, %v1037
  %v1070 = vpack.c.b16 %v1040, %v1039
  %v1071 = vpack.c.b16 %v1042, %v1041
  %v1072 = vpack.c.b16 %v1044, %v1043
  %v1073 = vpack.c.b16 %v1046, %v1045
  %v1074 = vpack.c.b16 %v1048, %v1047
  %v1075 = vpack.c.b16 %v1050, %v1049
  %v1076 = vpack.c.b16 %v1052, %v1051
  %v1077 = vpack.c.b16 %v1054, %v1053
  %v1078 = vpack.c.b16 %v1056, %v1055
  %v1079 = vpack.c.b16 %v1058, %v1057
  %v1080 = vpack.c.b16 %v1060, %v1059
  %v1081 = vpack.c.b16 %v1062, %v1061
  %v1082 = vpack.c.b16 %v1064, %v1063
  %v1117 = vunpack.c.l.b16 %v977
  %v1118 = vunpack.c.l.b16 %v978
  %v1119 = vunpack.c.l.b16 %v979
  %v1120 = vunpack.c.l.b16 %v980
  %v1121 = vunpack.c.l.b16 %v981
  %v1122 = vunpack.c.l.b16 %v982
  %v1123 = vunpack.c.l.b16 %v983
  %v1124 = vunpack.c.l.b16 %v984
  %v1125 = vunpack.c.l.b16 %v985
  %v1126 = vunpack.c.l.b16 %v986
  %v1127 = vunpack.c.l.b16 %v987
  %v1128 = vunpack.c.l.b16 %v988
  %v1129 = vunpack.c.l.b16 %v989
  %v1130 = vunpack.c.l.b16 %v990
  %v1131 = vunpack.c.l.b16 %v991
  %v1132 = vunpack.c.l.b16 %v992
  %v1133 = vpack.c.b16 %v1118, %v1117
  %v1134 = vpack.c.b16 %v1120, %v1119
  %v1135 = vpack.c.b16 %v1122, %v1121
  %v1136 = vpack.c.b16 %v1124, %v1123
  %v1137 = vpack.c.b16 %v1126, %v1125
  %v1138 = vpack.c.b16 %v1128, %v1127
  %v1139 = vpack.c.b16 %v1130, %v1129
  %v1140 = vpack.c.b16 %v1132, %v1131
  %1149 = vmatpush.bf16.msra.mxu0 %v1140
  %1150 = vmatpush.bf16.msra.mxu0 %v1139
  %1151 = vmatpush.bf16.msra.mxu0 %v1138
  %1152 = vmatpush.bf16.msra.mxu0 %v1137
  %1153 = vmatpush.bf16.msra.mxu0 %v1136
  %1154 = vmatpush.bf16.msra.mxu0 %v1135
  %1155 = vmatpush.bf16.msra.mxu0 %v1134
  %1156 = vmatpush.bf16.msra.mxu0 %v1133
  %1157 = vmatmul.bf16.gmra.mxu0 %v1065
  %v1158 = vpop.f32.mrf.mxu0
  %v1159 = vadd.f32 0.0, %v1158
  %v1160 = vpop.f32.mrf.mxu0
  %v1161 = vadd.f32 0.0, %v1160
  %1162 = vmatmul.bf16.gmra.mxu0 %v1066
  %v1163 = vpop.f32.mrf.mxu0
  %v1164 = vadd.f32 0.0, %v1163
  %v1165 = vpop.f32.mrf.mxu0
  %v1166 = vadd.f32 0.0, %v1165
  %1167 = vmatmul.bf16.gmra.mxu0 %v1067
  %v1168 = vpop.f32.mrf.mxu0
  %v1169 = vadd.f32 0.0, %v1168
  %v1170 = vpop.f32.mrf.mxu0
  %v1171 = vadd.f32 0.0, %v1170
  %1172 = vmatmul.bf16.gmra.mxu0 %v1068
  %v1173 = vpop.f32.mrf.mxu0
  %v1174 = vadd.f32 0.0, %v1173
  %v1175 = vpop.f32.mrf.mxu0
  %v1176 = vadd.f32 0.0, %v1175
  %1177 = vmatmul.bf16.gmra.mxu0 %v1069
  %v1178 = vpop.f32.mrf.mxu0
  %v1179 = vadd.f32 0.0, %v1178
  %v1180 = vpop.f32.mrf.mxu0
  %v1181 = vadd.f32 0.0, %v1180
  %1182 = vmatmul.bf16.gmra.mxu0 %v1070
  %v1183 = vpop.f32.mrf.mxu0
  %v1184 = vadd.f32 0.0, %v1183
  %v1185 = vpop.f32.mrf.mxu0
  %v1186 = vadd.f32 0.0, %v1185
  %1187 = vmatmul.bf16.gmra.mxu0 %v1071
  %v1188 = vpop.f32.mrf.mxu0
  %v1189 = vadd.f32 0.0, %v1188
  %v1190 = vpop.f32.mrf.mxu0
  %v1191 = vadd.f32 0.0, %v1190
  %1192 = vmatmul.bf16.gmra.mxu0 %v1072
  %v1193 = vpop.f32.mrf.mxu0
  %v1194 = vadd.f32 0.0, %v1193
  %v1195 = vpop.f32.mrf.mxu0
  %v1196 = vadd.f32 0.0, %v1195
  %1197 = vmatmul.bf16.gmra.mxu0 %v1073
  %v1198 = vpop.f32.mrf.mxu0
  %v1199 = vadd.f32 0.0, %v1198
  %v1200 = vpop.f32.mrf.mxu0
  %v1201 = vadd.f32 0.0, %v1200
  %1202 = vmatmul.bf16.gmra.mxu0 %v1074
  %v1203 = vpop.f32.mrf.mxu0
  %v1204 = vadd.f32 0.0, %v1203
  %v1205 = vpop.f32.mrf.mxu0
  %v1206 = vadd.f32 0.0, %v1205
  %1207 = vmatmul.bf16.gmra.mxu0 %v1075
  %v1208 = vpop.f32.mrf.mxu0
  %v1209 = vadd.f32 0.0, %v1208
  %v1210 = vpop.f32.mrf.mxu0
  %v1211 = vadd.f32 0.0, %v1210
  %1212 = vmatmul.bf16.gmra.mxu0 %v1076
  %v1213 = vpop.f32.mrf.mxu0
  %v1214 = vadd.f32 0.0, %v1213
  %v1215 = vpop.f32.mrf.mxu0
  %v1216 = vadd.f32 0.0, %v1215
  %1217 = vmatmul.bf16.gmra.mxu0 %v1077
  %v1218 = vpop.f32.mrf.mxu0
  %v1219 = vadd.f32 0.0, %v1218
  %v1220 = vpop.f32.mrf.mxu0
  %v1221 = vadd.f32 0.0, %v1220
  %1222 = vmatmul.bf16.gmra.mxu0 %v1078
  %v1223 = vpop.f32.mrf.mxu0
  %v1224 = vadd.f32 0.0, %v1223
  %v1225 = vpop.f32.mrf.mxu0
  %v1226 = vadd.f32 0.0, %v1225
  %1227 = vmatmul.bf16.gmra.mxu0 %v1079
  %v1228 = vpop.f32.mrf.mxu0
  %v1229 = vadd.f32 0.0, %v1228
  %v1230 = vpop.f32.mrf.mxu0
  %v1231 = vadd.f32 0.0, %v1230
  %1232 = vmatmul.bf16.gmra.mxu0 %v1080
  %v1233 = vpop.f32.mrf.mxu0
  %v1234 = vadd.f32 0.0, %v1233
  %v1235 = vpop.f32.mrf.mxu0
  %v1236 = vadd.f32 0.0, %v1235
  %1237 = vmatmul.bf16.gmra.mxu0 %v1081
  %v1238 = vpop.f32.mrf.mxu0
  %v1239 = vadd.f32 0.0, %v1238
  %v1240 = vpop.f32.mrf.mxu0
  %v1241 = vadd.f32 0.0, %v1240
  %1242 = vmatmul.bf16.gmra.mxu0 %v1082
  %v1243 = vpop.f32.mrf.mxu0
  %v1244 = vadd.f32 0.0, %v1243
  %v1245 = vpop.f32.mrf.mxu0
  %v1246 = vadd.f32 0.0, %v1245
  %1247 = vdwg.mxu0
  %v1248 = vld [vmem:[%s2] sm:$0x1]
  %v1250 = vperm.slane %v1248, 0
  %v1252 = vadd.f32 %v232, %v1250
  %v1253 = vadd.f32 %v234, %v1250
  %v1254 = vadd.f32 %v237, %v1250
  %v1255 = vadd.f32 %v239, %v1250
  %v1256 = vadd.f32 %v242, %v1250
  %v1257 = vadd.f32 %v244, %v1250
  %v1258 = vadd.f32 %v247, %v1250
  %v1259 = vadd.f32 %v249, %v1250
  %v1260 = vadd.f32 %v252, %v1250
  %v1261 = vadd.f32 %v254, %v1250
  %v1262 = vadd.f32 %v257, %v1250
  %v1263 = vadd.f32 %v259, %v1250
  %v1264 = vadd.f32 %v262, %v1250
  %v1265 = vadd.f32 %v264, %v1250
  %v1266 = vadd.f32 %v267, %v1250
  %v1267 = vadd.f32 %v269, %v1250
  %v1268 = vadd.f32 %v272, %v1250
  %v1269 = vadd.f32 %v274, %v1250
  %v1270 = vadd.f32 %v277, %v1250
  %v1271 = vadd.f32 %v279, %v1250
  %v1272 = vadd.f32 %v282, %v1250
  %v1273 = vadd.f32 %v284, %v1250
  %v1274 = vadd.f32 %v287, %v1250
  %v1275 = vadd.f32 %v289, %v1250
  %v1276 = vadd.f32 %v292, %v1250
  %v1277 = vadd.f32 %v294, %v1250
  %v1278 = vadd.f32 %v297, %v1250
  %v1279 = vadd.f32 %v299, %v1250
  %v1280 = vadd.f32 %v302, %v1250
  %v1281 = vadd.f32 %v304, %v1250
  %v1282 = vadd.f32 %v307, %v1250
  %v1283 = vadd.f32 %v309, %v1250
  %v1284 = vadd.f32 %v312, %v1250
  %v1285 = vadd.f32 %v314, %v1250
  %v1286 = vadd.f32 %v317, %v1250
  %v1287 = vadd.f32 %v319, %v1250
  %v1288 = vadd.f32 %v541, %v1250
  %v1289 = vadd.f32 %v543, %v1250
  %v1290 = vadd.f32 %v546, %v1250
  %v1291 = vadd.f32 %v548, %v1250
  %v1292 = vadd.f32 %v551, %v1250
  %v1293 = vadd.f32 %v553, %v1250
  %v1294 = vadd.f32 %v556, %v1250
  %v1295 = vadd.f32 %v558, %v1250
  %v1296 = vadd.f32 %v561, %v1250
  %v1297 = vadd.f32 %v563, %v1250
  %v1298 = vadd.f32 %v566, %v1250
  %v1299 = vadd.f32 %v568, %v1250
  %v1300 = vadd.f32 %v571, %v1250
  %v1301 = vadd.f32 %v573, %v1250
  %v1302 = vadd.f32 %v576, %v1250
  %v1303 = vadd.f32 %v578, %v1250
  %v1304 = vadd.f32 %v581, %v1250
  %v1305 = vadd.f32 %v583, %v1250
  %v1306 = vadd.f32 %v586, %v1250
  %v1307 = vadd.f32 %v588, %v1250
  %v1308 = vadd.f32 %v591, %v1250
  %v1309 = vadd.f32 %v593, %v1250
  %v1310 = vadd.f32 %v596, %v1250
  %v1311 = vadd.f32 %v598, %v1250
  %v1312 = vadd.f32 %v601, %v1250
  %v1313 = vadd.f32 %v603, %v1250
  %v1314 = vadd.f32 %v606, %v1250
  %v1315 = vadd.f32 %v608, %v1250
  %v1316 = vadd.f32 %v611, %v1250
  %v1317 = vadd.f32 %v613, %v1250
  %v1318 = vadd.f32 %v616, %v1250
  %v1319 = vadd.f32 %v618, %v1250
  %v1320 = vadd.f32 %v621, %v1250
  %v1321 = vadd.f32 %v623, %v1250
  %v1322 = vadd.f32 %v626, %v1250
  %v1323 = vadd.f32 %v628, %v1250
  %v1324 = vadd.f32 %v850, %v1250
  %v1325 = vadd.f32 %v852, %v1250
  %v1326 = vadd.f32 %v855, %v1250
  %v1327 = vadd.f32 %v857, %v1250
  %v1328 = vadd.f32 %v860, %v1250
  %v1329 = vadd.f32 %v862, %v1250
  %v1330 = vadd.f32 %v865, %v1250
  %v1331 = vadd.f32 %v867, %v1250
  %v1332 = vadd.f32 %v870, %v1250
  %v1333 = vadd.f32 %v872, %v1250
  %v1334 = vadd.f32 %v875, %v1250
  %v1335 = vadd.f32 %v877, %v1250
  %v1336 = vadd.f32 %v880, %v1250
  %v1337 = vadd.f32 %v882, %v1250
  %v1338 = vadd.f32 %v885, %v1250
  %v1339 = vadd.f32 %v887, %v1250
  %v1340 = vadd.f32 %v890, %v1250
  %v1341 = vadd.f32 %v892, %v1250
  %v1342 = vadd.f32 %v895, %v1250
  %v1343 = vadd.f32 %v897, %v1250
  %v1344 = vadd.f32 %v900, %v1250
  %v1345 = vadd.f32 %v902, %v1250
  %v1346 = vadd.f32 %v905, %v1250
  %v1347 = vadd.f32 %v907, %v1250
  %v1348 = vadd.f32 %v910, %v1250
  %v1349 = vadd.f32 %v912, %v1250
  %v1350 = vadd.f32 %v915, %v1250
  %v1351 = vadd.f32 %v917, %v1250
  %v1352 = vadd.f32 %v920, %v1250
  %v1353 = vadd.f32 %v922, %v1250
  %v1354 = vadd.f32 %v925, %v1250
  %v1355 = vadd.f32 %v927, %v1250
  %v1356 = vadd.f32 %v930, %v1250
  %v1357 = vadd.f32 %v932, %v1250
  %v1358 = vadd.f32 %v935, %v1250
  %v1359 = vadd.f32 %v937, %v1250
  %v1360 = vadd.f32 %v1159, %v1250
  %v1361 = vadd.f32 %v1161, %v1250
  %v1362 = vadd.f32 %v1164, %v1250
  %v1363 = vadd.f32 %v1166, %v1250
  %v1364 = vadd.f32 %v1169, %v1250
  %v1365 = vadd.f32 %v1171, %v1250
  %v1366 = vadd.f32 %v1174, %v1250
  %v1367 = vadd.f32 %v1176, %v1250
  %v1368 = vadd.f32 %v1179, %v1250
  %v1369 = vadd.f32 %v1181, %v1250
  %v1370 = vadd.f32 %v1184, %v1250
  %v1371 = vadd.f32 %v1186, %v1250
  %v1372 = vadd.f32 %v1189, %v1250
  %v1373 = vadd.f32 %v1191, %v1250
  %v1374 = vadd.f32 %v1194, %v1250
  %v1375 = vadd.f32 %v1196, %v1250
  %v1376 = vadd.f32 %v1199, %v1250
  %v1377 = vadd.f32 %v1201, %v1250
  %v1378 = vadd.f32 %v1204, %v1250
  %v1379 = vadd.f32 %v1206, %v1250
  %v1380 = vadd.f32 %v1209, %v1250
  %v1381 = vadd.f32 %v1211, %v1250
  %v1382 = vadd.f32 %v1214, %v1250
  %v1383 = vadd.f32 %v1216, %v1250
  %v1384 = vadd.f32 %v1219, %v1250
  %v1385 = vadd.f32 %v1221, %v1250
  %v1386 = vadd.f32 %v1224, %v1250
  %v1387 = vadd.f32 %v1226, %v1250
  %v1388 = vadd.f32 %v1229, %v1250
  %v1389 = vadd.f32 %v1231, %v1250
  %v1390 = vadd.f32 %v1234, %v1250
  %v1391 = vadd.f32 %v1236, %v1250
  %v1392 = vadd.f32 %v1239, %v1250
  %v1393 = vadd.f32 %v1241, %v1250
  %v1394 = vadd.f32 %v1244, %v1250
  %v1395 = vadd.f32 %v1246, %v1250
  %vm1396 = vcmask 130048
  %v1397 = vsel %vm1396, %v1252, 0.0
  %v1398 = vsel %vm1396, %v1253, 0.0
  %v1399 = vadd.f32 %v1397, %v1398
  %v1400 = vsel %vm1396, %v1254, 0.0
  %v1401 = vadd.f32 %v1399, %v1400
  %v1402 = vsel %vm1396, %v1255, 0.0
  %v1403 = vadd.f32 %v1401, %v1402
  %v1404 = vsel %vm1396, %v1256, 0.0
  %v1405 = vadd.f32 %v1403, %v1404
  %v1406 = vsel %vm1396, %v1257, 0.0
  %v1407 = vadd.f32 %v1405, %v1406
  %v1408 = vsel %vm1396, %v1258, 0.0
  %v1409 = vadd.f32 %v1407, %v1408
  %v1410 = vsel %vm1396, %v1259, 0.0
  %v1411 = vadd.f32 %v1409, %v1410
  %v1412 = vsel %vm1396, %v1260, 0.0
  %v1413 = vadd.f32 %v1411, %v1412
  %v1414 = vsel %vm1396, %v1261, 0.0
  %v1415 = vadd.f32 %v1413, %v1414
  %v1416 = vsel %vm1396, %v1262, 0.0
  %v1417 = vadd.f32 %v1415, %v1416
  %v1418 = vsel %vm1396, %v1263, 0.0
  %v1419 = vadd.f32 %v1417, %v1418
  %v1420 = vsel %vm1396, %v1264, 0.0
  %v1421 = vadd.f32 %v1419, %v1420
  %v1422 = vsel %vm1396, %v1265, 0.0
  %v1423 = vadd.f32 %v1421, %v1422
  %v1424 = vsel %vm1396, %v1266, 0.0
  %v1425 = vadd.f32 %v1423, %v1424
  %v1426 = vsel %vm1396, %v1267, 0.0
  %v1427 = vadd.f32 %v1425, %v1426
  %v1428 = vsel %vm1396, %v1268, 0.0
  %v1429 = vadd.f32 %v1427, %v1428
  %v1430 = vsel %vm1396, %v1269, 0.0
  %v1431 = vadd.f32 %v1429, %v1430
  %v1432 = vsel %vm1396, %v1270, 0.0
  %v1433 = vadd.f32 %v1431, %v1432
  %v1434 = vsel %vm1396, %v1271, 0.0
  %v1435 = vadd.f32 %v1433, %v1434
  %v1436 = vsel %vm1396, %v1272, 0.0
  %v1437 = vadd.f32 %v1435, %v1436
  %v1438 = vsel %vm1396, %v1273, 0.0
  %v1439 = vadd.f32 %v1437, %v1438
  %v1440 = vsel %vm1396, %v1274, 0.0
  %v1441 = vadd.f32 %v1439, %v1440
  %v1442 = vsel %vm1396, %v1275, 0.0
  %v1443 = vadd.f32 %v1441, %v1442
  %v1444 = vsel %vm1396, %v1276, 0.0
  %v1445 = vadd.f32 %v1443, %v1444
  %v1446 = vsel %vm1396, %v1277, 0.0
  %v1447 = vadd.f32 %v1445, %v1446
  %v1448 = vsel %vm1396, %v1278, 0.0
  %v1449 = vadd.f32 %v1447, %v1448
  %v1450 = vsel %vm1396, %v1279, 0.0
  %v1451 = vadd.f32 %v1449, %v1450
  %v1452 = vsel %vm1396, %v1280, 0.0
  %v1453 = vadd.f32 %v1451, %v1452
  %v1454 = vsel %vm1396, %v1281, 0.0
  %v1455 = vadd.f32 %v1453, %v1454
  %v1456 = vsel %vm1396, %v1282, 0.0
  %v1457 = vadd.f32 %v1455, %v1456
  %v1458 = vsel %vm1396, %v1283, 0.0
  %v1459 = vadd.f32 %v1457, %v1458
  %v1460 = vsel %vm1396, %v1284, 0.0
  %v1461 = vadd.f32 %v1459, %v1460
  %v1462 = vsel %vm1396, %v1285, 0.0
  %v1463 = vadd.f32 %v1461, %v1462
  %v1464 = vsel %vm1396, %v1286, 0.0
  %v1465 = vadd.f32 %v1463, %v1464
  %v1466 = vsel %vm1396, %v1287, 0.0
  %v1467 = vadd.f32 %v1465, %v1466
  %v1468 = vsel %vm1396, %v1288, 0.0
  %v1469 = vadd.f32 %v1467, %v1468
  %v1470 = vsel %vm1396, %v1289, 0.0
  %v1471 = vadd.f32 %v1469, %v1470
  %v1472 = vsel %vm1396, %v1290, 0.0
  %v1473 = vadd.f32 %v1471, %v1472
  %v1474 = vsel %vm1396, %v1291, 0.0
  %v1475 = vadd.f32 %v1473, %v1474
  %v1476 = vsel %vm1396, %v1292, 0.0
  %v1477 = vadd.f32 %v1475, %v1476
  %v1478 = vsel %vm1396, %v1293, 0.0
  %v1479 = vadd.f32 %v1477, %v1478
  %v1480 = vsel %vm1396, %v1294, 0.0
  %v1481 = vadd.f32 %v1479, %v1480
  %v1482 = vsel %vm1396, %v1295, 0.0
  %v1483 = vadd.f32 %v1481, %v1482
  %v1484 = vsel %vm1396, %v1296, 0.0
  %v1485 = vadd.f32 %v1483, %v1484
  %v1486 = vsel %vm1396, %v1297, 0.0
  %v1487 = vadd.f32 %v1485, %v1486
  %v1488 = vsel %vm1396, %v1298, 0.0
  %v1489 = vadd.f32 %v1487, %v1488
  %v1490 = vsel %vm1396, %v1299, 0.0
  %v1491 = vadd.f32 %v1489, %v1490
  %v1492 = vsel %vm1396, %v1300, 0.0
  %v1493 = vadd.f32 %v1491, %v1492
  %v1494 = vsel %vm1396, %v1301, 0.0
  %v1495 = vadd.f32 %v1493, %v1494
  %v1496 = vsel %vm1396, %v1302, 0.0
  %v1497 = vadd.f32 %v1495, %v1496
  %v1498 = vsel %vm1396, %v1303, 0.0
  %v1499 = vadd.f32 %v1497, %v1498
  %v1500 = vsel %vm1396, %v1304, 0.0
  %v1501 = vadd.f32 %v1499, %v1500
  %v1502 = vsel %vm1396, %v1305, 0.0
  %v1503 = vadd.f32 %v1501, %v1502
  %v1504 = vsel %vm1396, %v1306, 0.0
  %v1505 = vadd.f32 %v1503, %v1504
  %v1506 = vsel %vm1396, %v1307, 0.0
  %v1507 = vadd.f32 %v1505, %v1506
  %v1508 = vsel %vm1396, %v1308, 0.0
  %v1509 = vadd.f32 %v1507, %v1508
  %v1510 = vsel %vm1396, %v1309, 0.0
  %v1511 = vadd.f32 %v1509, %v1510
  %v1512 = vsel %vm1396, %v1310, 0.0
  %v1513 = vadd.f32 %v1511, %v1512
  %v1514 = vsel %vm1396, %v1311, 0.0
  %v1515 = vadd.f32 %v1513, %v1514
  %v1516 = vsel %vm1396, %v1312, 0.0
  %v1517 = vadd.f32 %v1515, %v1516
  %v1518 = vsel %vm1396, %v1313, 0.0
  %v1519 = vadd.f32 %v1517, %v1518
  %v1520 = vsel %vm1396, %v1314, 0.0
  %v1521 = vadd.f32 %v1519, %v1520
  %v1522 = vsel %vm1396, %v1315, 0.0
  %v1523 = vadd.f32 %v1521, %v1522
  %v1524 = vsel %vm1396, %v1316, 0.0
  %v1525 = vadd.f32 %v1523, %v1524
  %v1526 = vsel %vm1396, %v1317, 0.0
  %v1527 = vadd.f32 %v1525, %v1526
  %v1528 = vsel %vm1396, %v1318, 0.0
  %v1529 = vadd.f32 %v1527, %v1528
  %v1530 = vsel %vm1396, %v1319, 0.0
  %v1531 = vadd.f32 %v1529, %v1530
  %v1532 = vsel %vm1396, %v1320, 0.0
  %v1533 = vadd.f32 %v1531, %v1532
  %v1534 = vsel %vm1396, %v1321, 0.0
  %v1535 = vadd.f32 %v1533, %v1534
  %v1536 = vsel %vm1396, %v1322, 0.0
  %v1537 = vadd.f32 %v1535, %v1536
  %v1538 = vsel %vm1396, %v1323, 0.0
  %v1539 = vadd.f32 %v1537, %v1538
  %v1540 = vsel %vm1396, %v1324, 0.0
  %v1541 = vadd.f32 %v1539, %v1540
  %v1542 = vsel %vm1396, %v1325, 0.0
  %v1543 = vadd.f32 %v1541, %v1542
  %v1544 = vsel %vm1396, %v1326, 0.0
  %v1545 = vadd.f32 %v1543, %v1544
  %v1546 = vsel %vm1396, %v1327, 0.0
  %v1547 = vadd.f32 %v1545, %v1546
  %v1548 = vsel %vm1396, %v1328, 0.0
  %v1549 = vadd.f32 %v1547, %v1548
  %v1550 = vsel %vm1396, %v1329, 0.0
  %v1551 = vadd.f32 %v1549, %v1550
  %v1552 = vsel %vm1396, %v1330, 0.0
  %v1553 = vadd.f32 %v1551, %v1552
  %v1554 = vsel %vm1396, %v1331, 0.0
  %v1555 = vadd.f32 %v1553, %v1554
  %v1556 = vsel %vm1396, %v1332, 0.0
  %v1557 = vadd.f32 %v1555, %v1556
  %v1558 = vsel %vm1396, %v1333, 0.0
  %v1559 = vadd.f32 %v1557, %v1558
  %v1560 = vsel %vm1396, %v1334, 0.0
  %v1561 = vadd.f32 %v1559, %v1560
  %v1562 = vsel %vm1396, %v1335, 0.0
  %v1563 = vadd.f32 %v1561, %v1562
  %v1564 = vsel %vm1396, %v1336, 0.0
  %v1565 = vadd.f32 %v1563, %v1564
  %v1566 = vsel %vm1396, %v1337, 0.0
  %v1567 = vadd.f32 %v1565, %v1566
  %v1568 = vsel %vm1396, %v1338, 0.0
  %v1569 = vadd.f32 %v1567, %v1568
  %v1570 = vsel %vm1396, %v1339, 0.0
  %v1571 = vadd.f32 %v1569, %v1570
  %v1572 = vsel %vm1396, %v1340, 0.0
  %v1573 = vadd.f32 %v1571, %v1572
  %v1574 = vsel %vm1396, %v1341, 0.0
  %v1575 = vadd.f32 %v1573, %v1574
  %v1576 = vsel %vm1396, %v1342, 0.0
  %v1577 = vadd.f32 %v1575, %v1576
  %v1578 = vsel %vm1396, %v1343, 0.0
  %v1579 = vadd.f32 %v1577, %v1578
  %v1580 = vsel %vm1396, %v1344, 0.0
  %v1581 = vadd.f32 %v1579, %v1580
  %v1582 = vsel %vm1396, %v1345, 0.0
  %v1583 = vadd.f32 %v1581, %v1582
  %v1584 = vsel %vm1396, %v1346, 0.0
  %v1585 = vadd.f32 %v1583, %v1584
  %v1586 = vsel %vm1396, %v1347, 0.0
  %v1587 = vadd.f32 %v1585, %v1586
  %v1588 = vsel %vm1396, %v1348, 0.0
  %v1589 = vadd.f32 %v1587, %v1588
  %v1590 = vsel %vm1396, %v1349, 0.0
  %v1591 = vadd.f32 %v1589, %v1590
  %v1592 = vsel %vm1396, %v1350, 0.0
  %v1593 = vadd.f32 %v1591, %v1592
  %v1594 = vsel %vm1396, %v1351, 0.0
  %v1595 = vadd.f32 %v1593, %v1594
  %v1596 = vsel %vm1396, %v1352, 0.0
  %v1597 = vadd.f32 %v1595, %v1596
  %v1598 = vsel %vm1396, %v1353, 0.0
  %v1599 = vadd.f32 %v1597, %v1598
  %v1600 = vsel %vm1396, %v1354, 0.0
  %v1601 = vadd.f32 %v1599, %v1600
  %v1602 = vsel %vm1396, %v1355, 0.0
  %v1603 = vadd.f32 %v1601, %v1602
  %v1604 = vsel %vm1396, %v1356, 0.0
  %v1605 = vadd.f32 %v1603, %v1604
  %v1606 = vsel %vm1396, %v1357, 0.0
  %v1607 = vadd.f32 %v1605, %v1606
  %v1608 = vsel %vm1396, %v1358, 0.0
  %v1609 = vadd.f32 %v1607, %v1608
  %v1610 = vsel %vm1396, %v1359, 0.0
  %v1611 = vadd.f32 %v1609, %v1610
  %v1612 = vsel %vm1396, %v1360, 0.0
  %v1613 = vadd.f32 %v1611, %v1612
  %v1614 = vsel %vm1396, %v1361, 0.0
  %v1615 = vadd.f32 %v1613, %v1614
  %v1616 = vsel %vm1396, %v1362, 0.0
  %v1617 = vadd.f32 %v1615, %v1616
  %v1618 = vsel %vm1396, %v1363, 0.0
  %v1619 = vadd.f32 %v1617, %v1618
  %v1620 = vsel %vm1396, %v1364, 0.0
  %v1621 = vadd.f32 %v1619, %v1620
  %v1622 = vsel %vm1396, %v1365, 0.0
  %v1623 = vadd.f32 %v1621, %v1622
  %v1624 = vsel %vm1396, %v1366, 0.0
  %v1625 = vadd.f32 %v1623, %v1624
  %v1626 = vsel %vm1396, %v1367, 0.0
  %v1627 = vadd.f32 %v1625, %v1626
  %v1628 = vsel %vm1396, %v1368, 0.0
  %v1629 = vadd.f32 %v1627, %v1628
  %v1630 = vsel %vm1396, %v1369, 0.0
  %v1631 = vadd.f32 %v1629, %v1630
  %v1632 = vsel %vm1396, %v1370, 0.0
  %v1633 = vadd.f32 %v1631, %v1632
  %v1634 = vsel %vm1396, %v1371, 0.0
  %v1635 = vadd.f32 %v1633, %v1634
  %v1636 = vsel %vm1396, %v1372, 0.0
  %v1637 = vadd.f32 %v1635, %v1636
  %v1638 = vsel %vm1396, %v1373, 0.0
  %v1639 = vadd.f32 %v1637, %v1638
  %v1640 = vsel %vm1396, %v1374, 0.0
  %v1641 = vadd.f32 %v1639, %v1640
  %v1642 = vsel %vm1396, %v1375, 0.0
  %v1643 = vadd.f32 %v1641, %v1642
  %v1644 = vsel %vm1396, %v1376, 0.0
  %v1645 = vadd.f32 %v1643, %v1644
  %v1646 = vsel %vm1396, %v1377, 0.0
  %v1647 = vadd.f32 %v1645, %v1646
  %v1648 = vsel %vm1396, %v1378, 0.0
  %v1649 = vadd.f32 %v1647, %v1648
  %v1650 = vsel %vm1396, %v1379, 0.0
  %v1651 = vadd.f32 %v1649, %v1650
  %v1652 = vsel %vm1396, %v1380, 0.0
  %v1653 = vadd.f32 %v1651, %v1652
  %v1654 = vsel %vm1396, %v1381, 0.0
  %v1655 = vadd.f32 %v1653, %v1654
  %v1656 = vsel %vm1396, %v1382, 0.0
  %v1657 = vadd.f32 %v1655, %v1656
  %v1658 = vsel %vm1396, %v1383, 0.0
  %v1659 = vadd.f32 %v1657, %v1658
  %v1660 = vsel %vm1396, %v1384, 0.0
  %v1661 = vadd.f32 %v1659, %v1660
  %v1662 = vsel %vm1396, %v1385, 0.0
  %v1663 = vadd.f32 %v1661, %v1662
  %v1664 = vsel %vm1396, %v1386, 0.0
  %v1665 = vadd.f32 %v1663, %v1664
  %v1666 = vsel %vm1396, %v1387, 0.0
  %v1667 = vadd.f32 %v1665, %v1666
  %v1668 = vsel %vm1396, %v1388, 0.0
  %v1669 = vadd.f32 %v1667, %v1668
  %v1670 = vsel %vm1396, %v1389, 0.0
  %v1671 = vadd.f32 %v1669, %v1670
  %v1672 = vsel %vm1396, %v1390, 0.0
  %v1673 = vadd.f32 %v1671, %v1672
  %v1674 = vsel %vm1396, %v1391, 0.0
  %v1675 = vadd.f32 %v1673, %v1674
  %v1676 = vsel %vm1396, %v1392, 0.0
  %v1677 = vadd.f32 %v1675, %v1676
  %v1678 = vsel %vm1396, %v1393, 0.0
  %v1679 = vadd.f32 %v1677, %v1678
  %v1680 = vsel %vm1396, %v1394, 0.0
  %v1681 = vadd.f32 %v1679, %v1680
  %v1682 = vsel %vm1396, %v1395, 0.0
  %v1683 = vadd.f32 %v1681, %v1682
  %v1684 = vrot.slane %v1683, 4
  %v1685 = vadd.f32 %v1683, %v1684
  %v1686 = vrot.slane %v1685, 2
  %v1687 = vadd.f32 %v1685, %v1686
  %v1688 = vrot.slane %v1687, 1
  %v1689 = vadd.f32 %v1687, %v1688
  %v1690 = vmul.f32 %v1689, 0.00086805556
  %v1691 = vsub.f32 %v1252, %v1690
  %v1692 = vsub.f32 %v1253, %v1690
  %v1693 = vsub.f32 %v1254, %v1690
  %v1694 = vsub.f32 %v1255, %v1690
  %v1695 = vsub.f32 %v1256, %v1690
  %v1696 = vsub.f32 %v1257, %v1690
  %v1697 = vsub.f32 %v1258, %v1690
  %v1698 = vsub.f32 %v1259, %v1690
  %v1699 = vsub.f32 %v1260, %v1690
  %v1700 = vsub.f32 %v1261, %v1690
  %v1701 = vsub.f32 %v1262, %v1690
  %v1702 = vsub.f32 %v1263, %v1690
  %v1703 = vsub.f32 %v1264, %v1690
  %v1704 = vsub.f32 %v1265, %v1690
  %v1705 = vsub.f32 %v1266, %v1690
  %v1706 = vsub.f32 %v1267, %v1690
  %v1707 = vsub.f32 %v1268, %v1690
  %v1708 = vsub.f32 %v1269, %v1690
  %v1709 = vsub.f32 %v1270, %v1690
  %v1710 = vsub.f32 %v1271, %v1690
  %v1711 = vsub.f32 %v1272, %v1690
  %v1712 = vsub.f32 %v1273, %v1690
  %v1713 = vsub.f32 %v1274, %v1690
  %v1714 = vsub.f32 %v1275, %v1690
  %v1715 = vsub.f32 %v1276, %v1690
  %v1716 = vsub.f32 %v1277, %v1690
  %v1717 = vsub.f32 %v1278, %v1690
  %v1718 = vsub.f32 %v1279, %v1690
  %v1719 = vsub.f32 %v1280, %v1690
  %v1720 = vsub.f32 %v1281, %v1690
  %v1721 = vsub.f32 %v1282, %v1690
  %v1722 = vsub.f32 %v1283, %v1690
  %v1723 = vsub.f32 %v1284, %v1690
  %v1724 = vsub.f32 %v1285, %v1690
  %v1725 = vsub.f32 %v1286, %v1690
  %v1726 = vsub.f32 %v1287, %v1690
  %v1727 = vsub.f32 %v1288, %v1690
  %v1728 = vsub.f32 %v1289, %v1690
  %v1729 = vsub.f32 %v1290, %v1690
  %v1730 = vsub.f32 %v1291, %v1690
  %v1731 = vsub.f32 %v1292, %v1690
  %v1732 = vsub.f32 %v1293, %v1690
  %v1733 = vsub.f32 %v1294, %v1690
  %v1734 = vsub.f32 %v1295, %v1690
  %v1735 = vsub.f32 %v1296, %v1690
  %v1736 = vsub.f32 %v1297, %v1690
  %v1737 = vsub.f32 %v1298, %v1690
  %v1738 = vsub.f32 %v1299, %v1690
  %v1739 = vsub.f32 %v1300, %v1690
  %v1740 = vsub.f32 %v1301, %v1690
  %v1741 = vsub.f32 %v1302, %v1690
  %v1742 = vsub.f32 %v1303, %v1690
  %v1743 = vsub.f32 %v1304, %v1690
  %v1744 = vsub.f32 %v1305, %v1690
  %v1745 = vsub.f32 %v1306, %v1690
  %v1746 = vsub.f32 %v1307, %v1690
  %v1747 = vsub.f32 %v1308, %v1690
  %v1748 = vsub.f32 %v1309, %v1690
  %v1749 = vsub.f32 %v1310, %v1690
  %v1750 = vsub.f32 %v1311, %v1690
  %v1751 = vsub.f32 %v1312, %v1690
  %v1752 = vsub.f32 %v1313, %v1690
  %v1753 = vsub.f32 %v1314, %v1690
  %v1754 = vsub.f32 %v1315, %v1690
  %v1755 = vsub.f32 %v1316, %v1690
  %v1756 = vsub.f32 %v1317, %v1690
  %v1757 = vsub.f32 %v1318, %v1690
  %v1758 = vsub.f32 %v1319, %v1690
  %v1759 = vsub.f32 %v1320, %v1690
  %v1760 = vsub.f32 %v1321, %v1690
  %v1761 = vsub.f32 %v1322, %v1690
  %v1762 = vsub.f32 %v1323, %v1690
  %v1763 = vsub.f32 %v1324, %v1690
  %v1764 = vsub.f32 %v1325, %v1690
  %v1765 = vsub.f32 %v1326, %v1690
  %v1766 = vsub.f32 %v1327, %v1690
  %v1767 = vsub.f32 %v1328, %v1690
  %v1768 = vsub.f32 %v1329, %v1690
  %v1769 = vsub.f32 %v1330, %v1690
  %v1770 = vsub.f32 %v1331, %v1690
  %v1771 = vsub.f32 %v1332, %v1690
  %v1772 = vsub.f32 %v1333, %v1690
  %v1773 = vsub.f32 %v1334, %v1690
  %v1774 = vsub.f32 %v1335, %v1690
  %v1775 = vsub.f32 %v1336, %v1690
  %v1776 = vsub.f32 %v1337, %v1690
  %v1777 = vsub.f32 %v1338, %v1690
  %v1778 = vsub.f32 %v1339, %v1690
  %v1779 = vsub.f32 %v1340, %v1690
  %v1780 = vsub.f32 %v1341, %v1690
  %v1781 = vsub.f32 %v1342, %v1690
  %v1782 = vsub.f32 %v1343, %v1690
  %v1783 = vsub.f32 %v1344, %v1690
  %v1784 = vsub.f32 %v1345, %v1690
  %v1785 = vsub.f32 %v1346, %v1690
  %v1786 = vsub.f32 %v1347, %v1690
  %v1787 = vsub.f32 %v1348, %v1690
  %v1788 = vsub.f32 %v1349, %v1690
  %v1789 = vsub.f32 %v1350, %v1690
  %v1790 = vsub.f32 %v1351, %v1690
  %v1791 = vsub.f32 %v1352, %v1690
  %v1792 = vsub.f32 %v1353, %v1690
  %v1793 = vsub.f32 %v1354, %v1690
  %v1794 = vsub.f32 %v1355, %v1690
  %v1795 = vsub.f32 %v1356, %v1690
  %v1796 = vsub.f32 %v1357, %v1690
  %v1797 = vsub.f32 %v1358, %v1690
  %v1798 = vsub.f32 %v1359, %v1690
  %v1799 = vsub.f32 %v1360, %v1690
  %v1800 = vsub.f32 %v1361, %v1690
  %v1801 = vsub.f32 %v1362, %v1690
  %v1802 = vsub.f32 %v1363, %v1690
  %v1803 = vsub.f32 %v1364, %v1690
  %v1804 = vsub.f32 %v1365, %v1690
  %v1805 = vsub.f32 %v1366, %v1690
  %v1806 = vsub.f32 %v1367, %v1690
  %v1807 = vsub.f32 %v1368, %v1690
  %v1808 = vsub.f32 %v1369, %v1690
  %v1809 = vsub.f32 %v1370, %v1690
  %v1810 = vsub.f32 %v1371, %v1690
  %v1811 = vsub.f32 %v1372, %v1690
  %v1812 = vsub.f32 %v1373, %v1690
  %v1813 = vsub.f32 %v1374, %v1690
  %v1814 = vsub.f32 %v1375, %v1690
  %v1815 = vsub.f32 %v1376, %v1690
  %v1816 = vsub.f32 %v1377, %v1690
  %v1817 = vsub.f32 %v1378, %v1690
  %v1818 = vsub.f32 %v1379, %v1690
  %v1819 = vsub.f32 %v1380, %v1690
  %v1820 = vsub.f32 %v1381, %v1690
  %v1821 = vsub.f32 %v1382, %v1690
  %v1822 = vsub.f32 %v1383, %v1690
  %v1823 = vsub.f32 %v1384, %v1690
  %v1824 = vsub.f32 %v1385, %v1690
  %v1825 = vsub.f32 %v1386, %v1690
  %v1826 = vsub.f32 %v1387, %v1690
  %v1827 = vsub.f32 %v1388, %v1690
  %v1828 = vsub.f32 %v1389, %v1690
  %v1829 = vsub.f32 %v1390, %v1690
  %v1830 = vsub.f32 %v1391, %v1690
  %v1831 = vsub.f32 %v1392, %v1690
  %v1832 = vsub.f32 %v1393, %v1690
  %v1833 = vsub.f32 %v1394, %v1690
  %v1834 = vsub.f32 %v1395, %v1690
  %v1835 = vmul.f32 %v1691, %v1691
  %v1836 = vmul.f32 %v1692, %v1692
  %v1837 = vmul.f32 %v1693, %v1693
  %v1838 = vmul.f32 %v1694, %v1694
  %v1839 = vmul.f32 %v1695, %v1695
  %v1840 = vmul.f32 %v1696, %v1696
  %v1841 = vmul.f32 %v1697, %v1697
  %v1842 = vmul.f32 %v1698, %v1698
  %v1843 = vmul.f32 %v1699, %v1699
  %v1844 = vmul.f32 %v1700, %v1700
  %v1845 = vmul.f32 %v1701, %v1701
  %v1846 = vmul.f32 %v1702, %v1702
  %v1847 = vmul.f32 %v1703, %v1703
  %v1848 = vmul.f32 %v1704, %v1704
  %v1849 = vmul.f32 %v1705, %v1705
  %v1850 = vmul.f32 %v1706, %v1706
  %v1851 = vmul.f32 %v1707, %v1707
  %v1852 = vmul.f32 %v1708, %v1708
  %v1853 = vmul.f32 %v1709, %v1709
  %v1854 = vmul.f32 %v1710, %v1710
  %v1855 = vmul.f32 %v1711, %v1711
  %v1856 = vmul.f32 %v1712, %v1712
  %v1857 = vmul.f32 %v1713, %v1713
  %v1858 = vmul.f32 %v1714, %v1714
  %v1859 = vmul.f32 %v1715, %v1715
  %v1860 = vmul.f32 %v1716, %v1716
  %v1861 = vmul.f32 %v1717, %v1717
  %v1862 = vmul.f32 %v1718, %v1718
  %v1863 = vmul.f32 %v1719, %v1719
  %v1864 = vmul.f32 %v1720, %v1720
  %v1865 = vmul.f32 %v1721, %v1721
  %v1866 = vmul.f32 %v1722, %v1722
  %v1867 = vmul.f32 %v1723, %v1723
  %v1868 = vmul.f32 %v1724, %v1724
  %v1869 = vmul.f32 %v1725, %v1725
  %v1870 = vmul.f32 %v1726, %v1726
  %v1871 = vmul.f32 %v1727, %v1727
  %v1872 = vmul.f32 %v1728, %v1728
  %v1873 = vmul.f32 %v1729, %v1729
  %v1874 = vmul.f32 %v1730, %v1730
  %v1875 = vmul.f32 %v1731, %v1731
  %v1876 = vmul.f32 %v1732, %v1732
  %v1877 = vmul.f32 %v1733, %v1733
  %v1878 = vmul.f32 %v1734, %v1734
  %v1879 = vmul.f32 %v1735, %v1735
  %v1880 = vmul.f32 %v1736, %v1736
  %v1881 = vmul.f32 %v1737, %v1737
  %v1882 = vmul.f32 %v1738, %v1738
  %v1883 = vmul.f32 %v1739, %v1739
  %v1884 = vmul.f32 %v1740, %v1740
  %v1885 = vmul.f32 %v1741, %v1741
  %v1886 = vmul.f32 %v1742, %v1742
  %v1887 = vmul.f32 %v1743, %v1743
  %v1888 = vmul.f32 %v1744, %v1744
  %v1889 = vmul.f32 %v1745, %v1745
  %v1890 = vmul.f32 %v1746, %v1746
  %v1891 = vmul.f32 %v1747, %v1747
  %v1892 = vmul.f32 %v1748, %v1748
  %v1893 = vmul.f32 %v1749, %v1749
  %v1894 = vmul.f32 %v1750, %v1750
  %v1895 = vmul.f32 %v1751, %v1751
  %v1896 = vmul.f32 %v1752, %v1752
  %v1897 = vmul.f32 %v1753, %v1753
  %v1898 = vmul.f32 %v1754, %v1754
  %v1899 = vmul.f32 %v1755, %v1755
  %v1900 = vmul.f32 %v1756, %v1756
  %v1901 = vmul.f32 %v1757, %v1757
  %v1902 = vmul.f32 %v1758, %v1758
  %v1903 = vmul.f32 %v1759, %v1759
  %v1904 = vmul.f32 %v1760, %v1760
  %v1905 = vmul.f32 %v1761, %v1761
  %v1906 = vmul.f32 %v1762, %v1762
  %v1907 = vmul.f32 %v1763, %v1763
  %v1908 = vmul.f32 %v1764, %v1764
  %v1909 = vmul.f32 %v1765, %v1765
  %v1910 = vmul.f32 %v1766, %v1766
  %v1911 = vmul.f32 %v1767, %v1767
  %v1912 = vmul.f32 %v1768, %v1768
  %v1913 = vmul.f32 %v1769, %v1769
  %v1914 = vmul.f32 %v1770, %v1770
  %v1915 = vmul.f32 %v1771, %v1771
  %v1916 = vmul.f32 %v1772, %v1772
  %v1917 = vmul.f32 %v1773, %v1773
  %v1918 = vmul.f32 %v1774, %v1774
  %v1919 = vmul.f32 %v1775, %v1775
  %v1920 = vmul.f32 %v1776, %v1776
  %v1921 = vmul.f32 %v1777, %v1777
  %v1922 = vmul.f32 %v1778, %v1778
  %v1923 = vmul.f32 %v1779, %v1779
  %v1924 = vmul.f32 %v1780, %v1780
  %v1925 = vmul.f32 %v1781, %v1781
  %v1926 = vmul.f32 %v1782, %v1782
  %v1927 = vmul.f32 %v1783, %v1783
  %v1928 = vmul.f32 %v1784, %v1784
  %v1929 = vmul.f32 %v1785, %v1785
  %v1930 = vmul.f32 %v1786, %v1786
  %v1931 = vmul.f32 %v1787, %v1787
  %v1932 = vmul.f32 %v1788, %v1788
  %v1933 = vmul.f32 %v1789, %v1789
  %v1934 = vmul.f32 %v1790, %v1790
  %v1935 = vmul.f32 %v1791, %v1791
  %v1936 = vmul.f32 %v1792, %v1792
  %v1937 = vmul.f32 %v1793, %v1793
  %v1938 = vmul.f32 %v1794, %v1794
  %v1939 = vmul.f32 %v1795, %v1795
  %v1940 = vmul.f32 %v1796, %v1796
  %v1941 = vmul.f32 %v1797, %v1797
  %v1942 = vmul.f32 %v1798, %v1798
  %v1943 = vmul.f32 %v1799, %v1799
  %v1944 = vmul.f32 %v1800, %v1800
  %v1945 = vmul.f32 %v1801, %v1801
  %v1946 = vmul.f32 %v1802, %v1802
  %v1947 = vmul.f32 %v1803, %v1803
  %v1948 = vmul.f32 %v1804, %v1804
  %v1949 = vmul.f32 %v1805, %v1805
  %v1950 = vmul.f32 %v1806, %v1806
  %v1951 = vmul.f32 %v1807, %v1807
  %v1952 = vmul.f32 %v1808, %v1808
  %v1953 = vmul.f32 %v1809, %v1809
  %v1954 = vmul.f32 %v1810, %v1810
  %v1955 = vmul.f32 %v1811, %v1811
  %v1956 = vmul.f32 %v1812, %v1812
  %v1957 = vmul.f32 %v1813, %v1813
  %v1958 = vmul.f32 %v1814, %v1814
  %v1959 = vmul.f32 %v1815, %v1815
  %v1960 = vmul.f32 %v1816, %v1816
  %v1961 = vmul.f32 %v1817, %v1817
  %v1962 = vmul.f32 %v1818, %v1818
  %v1963 = vmul.f32 %v1819, %v1819
  %v1964 = vmul.f32 %v1820, %v1820
  %v1965 = vmul.f32 %v1821, %v1821
  %v1966 = vmul.f32 %v1822, %v1822
  %v1967 = vmul.f32 %v1823, %v1823
  %v1968 = vmul.f32 %v1824, %v1824
  %v1969 = vmul.f32 %v1825, %v1825
  %v1970 = vmul.f32 %v1826, %v1826
  %v1971 = vmul.f32 %v1827, %v1827
  %v1972 = vmul.f32 %v1828, %v1828
  %v1973 = vmul.f32 %v1829, %v1829
  %v1974 = vmul.f32 %v1830, %v1830
  %v1975 = vmul.f32 %v1831, %v1831
  %v1976 = vmul.f32 %v1832, %v1832
  %v1977 = vmul.f32 %v1833, %v1833
  %v1978 = vmul.f32 %v1834, %v1834
  %v1979 = vsel %vm1396, %v1835, 0.0
  %v1980 = vsel %vm1396, %v1836, 0.0
  %v1981 = vadd.f32 %v1979, %v1980
  %v1982 = vsel %vm1396, %v1837, 0.0
  %v1983 = vadd.f32 %v1981, %v1982
  %v1984 = vsel %vm1396, %v1838, 0.0
  %v1985 = vadd.f32 %v1983, %v1984
  %v1986 = vsel %vm1396, %v1839, 0.0
  %v1987 = vadd.f32 %v1985, %v1986
  %v1988 = vsel %vm1396, %v1840, 0.0
  %v1989 = vadd.f32 %v1987, %v1988
  %v1990 = vsel %vm1396, %v1841, 0.0
  %v1991 = vadd.f32 %v1989, %v1990
  %v1992 = vsel %vm1396, %v1842, 0.0
  %v1993 = vadd.f32 %v1991, %v1992
  %v1994 = vsel %vm1396, %v1843, 0.0
  %v1995 = vadd.f32 %v1993, %v1994
  %v1996 = vsel %vm1396, %v1844, 0.0
  %v1997 = vadd.f32 %v1995, %v1996
  %v1998 = vsel %vm1396, %v1845, 0.0
  %v1999 = vadd.f32 %v1997, %v1998
  %v2000 = vsel %vm1396, %v1846, 0.0
  %v2001 = vadd.f32 %v1999, %v2000
  %v2002 = vsel %vm1396, %v1847, 0.0
  %v2003 = vadd.f32 %v2001, %v2002
  %v2004 = vsel %vm1396, %v1848, 0.0
  %v2005 = vadd.f32 %v2003, %v2004
  %v2006 = vsel %vm1396, %v1849, 0.0
  %v2007 = vadd.f32 %v2005, %v2006
  %v2008 = vsel %vm1396, %v1850, 0.0
  %v2009 = vadd.f32 %v2007, %v2008
  %v2010 = vsel %vm1396, %v1851, 0.0
  %v2011 = vadd.f32 %v2009, %v2010
  %v2012 = vsel %vm1396, %v1852, 0.0
  %v2013 = vadd.f32 %v2011, %v2012
  %v2014 = vsel %vm1396, %v1853, 0.0
  %v2015 = vadd.f32 %v2013, %v2014
  %v2016 = vsel %vm1396, %v1854, 0.0
  %v2017 = vadd.f32 %v2015, %v2016
  %v2018 = vsel %vm1396, %v1855, 0.0
  %v2019 = vadd.f32 %v2017, %v2018
  %v2020 = vsel %vm1396, %v1856, 0.0
  %v2021 = vadd.f32 %v2019, %v2020
  %v2022 = vsel %vm1396, %v1857, 0.0
  %v2023 = vadd.f32 %v2021, %v2022
  %v2024 = vsel %vm1396, %v1858, 0.0
  %v2025 = vadd.f32 %v2023, %v2024
  %v2026 = vsel %vm1396, %v1859, 0.0
  %v2027 = vadd.f32 %v2025, %v2026
  %v2028 = vsel %vm1396, %v1860, 0.0
  %v2029 = vadd.f32 %v2027, %v2028
  %v2030 = vsel %vm1396, %v1861, 0.0
  %v2031 = vadd.f32 %v2029, %v2030
  %v2032 = vsel %vm1396, %v1862, 0.0
  %v2033 = vadd.f32 %v2031, %v2032
  %v2034 = vsel %vm1396, %v1863, 0.0
  %v2035 = vadd.f32 %v2033, %v2034
  %v2036 = vsel %vm1396, %v1864, 0.0
  %v2037 = vadd.f32 %v2035, %v2036
  %v2038 = vsel %vm1396, %v1865, 0.0
  %v2039 = vadd.f32 %v2037, %v2038
  %v2040 = vsel %vm1396, %v1866, 0.0
  %v2041 = vadd.f32 %v2039, %v2040
  %v2042 = vsel %vm1396, %v1867, 0.0
  %v2043 = vadd.f32 %v2041, %v2042
  %v2044 = vsel %vm1396, %v1868, 0.0
  %v2045 = vadd.f32 %v2043, %v2044
  %v2046 = vsel %vm1396, %v1869, 0.0
  %v2047 = vadd.f32 %v2045, %v2046
  %v2048 = vsel %vm1396, %v1870, 0.0
  %v2049 = vadd.f32 %v2047, %v2048
  %v2050 = vsel %vm1396, %v1871, 0.0
  %v2051 = vadd.f32 %v2049, %v2050
  %v2052 = vsel %vm1396, %v1872, 0.0
  %v2053 = vadd.f32 %v2051, %v2052
  %v2054 = vsel %vm1396, %v1873, 0.0
  %v2055 = vadd.f32 %v2053, %v2054
  %v2056 = vsel %vm1396, %v1874, 0.0
  %v2057 = vadd.f32 %v2055, %v2056
  %v2058 = vsel %vm1396, %v1875, 0.0
  %v2059 = vadd.f32 %v2057, %v2058
  %v2060 = vsel %vm1396, %v1876, 0.0
  %v2061 = vadd.f32 %v2059, %v2060
  %v2062 = vsel %vm1396, %v1877, 0.0
  %v2063 = vadd.f32 %v2061, %v2062
  %v2064 = vsel %vm1396, %v1878, 0.0
  %v2065 = vadd.f32 %v2063, %v2064
  %v2066 = vsel %vm1396, %v1879, 0.0
  %v2067 = vadd.f32 %v2065, %v2066
  %v2068 = vsel %vm1396, %v1880, 0.0
  %v2069 = vadd.f32 %v2067, %v2068
  %v2070 = vsel %vm1396, %v1881, 0.0
  %v2071 = vadd.f32 %v2069, %v2070
  %v2072 = vsel %vm1396, %v1882, 0.0
  %v2073 = vadd.f32 %v2071, %v2072
  %v2074 = vsel %vm1396, %v1883, 0.0
  %v2075 = vadd.f32 %v2073, %v2074
  %v2076 = vsel %vm1396, %v1884, 0.0
  %v2077 = vadd.f32 %v2075, %v2076
  %v2078 = vsel %vm1396, %v1885, 0.0
  %v2079 = vadd.f32 %v2077, %v2078
  %v2080 = vsel %vm1396, %v1886, 0.0
  %v2081 = vadd.f32 %v2079, %v2080
  %v2082 = vsel %vm1396, %v1887, 0.0
  %v2083 = vadd.f32 %v2081, %v2082
  %v2084 = vsel %vm1396, %v1888, 0.0
  %v2085 = vadd.f32 %v2083, %v2084
  %v2086 = vsel %vm1396, %v1889, 0.0
  %v2087 = vadd.f32 %v2085, %v2086
  %v2088 = vsel %vm1396, %v1890, 0.0
  %v2089 = vadd.f32 %v2087, %v2088
  %v2090 = vsel %vm1396, %v1891, 0.0
  %v2091 = vadd.f32 %v2089, %v2090
  %v2092 = vsel %vm1396, %v1892, 0.0
  %v2093 = vadd.f32 %v2091, %v2092
  %v2094 = vsel %vm1396, %v1893, 0.0
  %v2095 = vadd.f32 %v2093, %v2094
  %v2096 = vsel %vm1396, %v1894, 0.0
  %v2097 = vadd.f32 %v2095, %v2096
  %v2098 = vsel %vm1396, %v1895, 0.0
  %v2099 = vadd.f32 %v2097, %v2098
  %v2100 = vsel %vm1396, %v1896, 0.0
  %v2101 = vadd.f32 %v2099, %v2100
  %v2102 = vsel %vm1396, %v1897, 0.0
  %v2103 = vadd.f32 %v2101, %v2102
  %v2104 = vsel %vm1396, %v1898, 0.0
  %v2105 = vadd.f32 %v2103, %v2104
  %v2106 = vsel %vm1396, %v1899, 0.0
  %v2107 = vadd.f32 %v2105, %v2106
  %v2108 = vsel %vm1396, %v1900, 0.0
  %v2109 = vadd.f32 %v2107, %v2108
  %v2110 = vsel %vm1396, %v1901, 0.0
  %v2111 = vadd.f32 %v2109, %v2110
  %v2112 = vsel %vm1396, %v1902, 0.0
  %v2113 = vadd.f32 %v2111, %v2112
  %v2114 = vsel %vm1396, %v1903, 0.0
  %v2115 = vadd.f32 %v2113, %v2114
  %v2116 = vsel %vm1396, %v1904, 0.0
  %v2117 = vadd.f32 %v2115, %v2116
  %v2118 = vsel %vm1396, %v1905, 0.0
  %v2119 = vadd.f32 %v2117, %v2118
  %v2120 = vsel %vm1396, %v1906, 0.0
  %v2121 = vadd.f32 %v2119, %v2120
  %v2122 = vsel %vm1396, %v1907, 0.0
  %v2123 = vadd.f32 %v2121, %v2122
  %v2124 = vsel %vm1396, %v1908, 0.0
  %v2125 = vadd.f32 %v2123, %v2124
  %v2126 = vsel %vm1396, %v1909, 0.0
  %v2127 = vadd.f32 %v2125, %v2126
  %v2128 = vsel %vm1396, %v1910, 0.0
  %v2129 = vadd.f32 %v2127, %v2128
  %v2130 = vsel %vm1396, %v1911, 0.0
  %v2131 = vadd.f32 %v2129, %v2130
  %v2132 = vsel %vm1396, %v1912, 0.0
  %v2133 = vadd.f32 %v2131, %v2132
  %v2134 = vsel %vm1396, %v1913, 0.0
  %v2135 = vadd.f32 %v2133, %v2134
  %v2136 = vsel %vm1396, %v1914, 0.0
  %v2137 = vadd.f32 %v2135, %v2136
  %v2138 = vsel %vm1396, %v1915, 0.0
  %v2139 = vadd.f32 %v2137, %v2138
  %v2140 = vsel %vm1396, %v1916, 0.0
  %v2141 = vadd.f32 %v2139, %v2140
  %v2142 = vsel %vm1396, %v1917, 0.0
  %v2143 = vadd.f32 %v2141, %v2142
  %v2144 = vsel %vm1396, %v1918, 0.0
  %v2145 = vadd.f32 %v2143, %v2144
  %v2146 = vsel %vm1396, %v1919, 0.0
  %v2147 = vadd.f32 %v2145, %v2146
  %v2148 = vsel %vm1396, %v1920, 0.0
  %v2149 = vadd.f32 %v2147, %v2148
  %v2150 = vsel %vm1396, %v1921, 0.0
  %v2151 = vadd.f32 %v2149, %v2150
  %v2152 = vsel %vm1396, %v1922, 0.0
  %v2153 = vadd.f32 %v2151, %v2152
  %v2154 = vsel %vm1396, %v1923, 0.0
  %v2155 = vadd.f32 %v2153, %v2154
  %v2156 = vsel %vm1396, %v1924, 0.0
  %v2157 = vadd.f32 %v2155, %v2156
  %v2158 = vsel %vm1396, %v1925, 0.0
  %v2159 = vadd.f32 %v2157, %v2158
  %v2160 = vsel %vm1396, %v1926, 0.0
  %v2161 = vadd.f32 %v2159, %v2160
  %v2162 = vsel %vm1396, %v1927, 0.0
  %v2163 = vadd.f32 %v2161, %v2162
  %v2164 = vsel %vm1396, %v1928, 0.0
  %v2165 = vadd.f32 %v2163, %v2164
  %v2166 = vsel %vm1396, %v1929, 0.0
  %v2167 = vadd.f32 %v2165, %v2166
  %v2168 = vsel %vm1396, %v1930, 0.0
  %v2169 = vadd.f32 %v2167, %v2168
  %v2170 = vsel %vm1396, %v1931, 0.0
  %v2171 = vadd.f32 %v2169, %v2170
  %v2172 = vsel %vm1396, %v1932, 0.0
  %v2173 = vadd.f32 %v2171, %v2172
  %v2174 = vsel %vm1396, %v1933, 0.0
  %v2175 = vadd.f32 %v2173, %v2174
  %v2176 = vsel %vm1396, %v1934, 0.0
  %v2177 = vadd.f32 %v2175, %v2176
  %v2178 = vsel %vm1396, %v1935, 0.0
  %v2179 = vadd.f32 %v2177, %v2178
  %v2180 = vsel %vm1396, %v1936, 0.0
  %v2181 = vadd.f32 %v2179, %v2180
  %v2182 = vsel %vm1396, %v1937, 0.0
  %v2183 = vadd.f32 %v2181, %v2182
  %v2184 = vsel %vm1396, %v1938, 0.0
  %v2185 = vadd.f32 %v2183, %v2184
  %v2186 = vsel %vm1396, %v1939, 0.0
  %v2187 = vadd.f32 %v2185, %v2186
  %v2188 = vsel %vm1396, %v1940, 0.0
  %v2189 = vadd.f32 %v2187, %v2188
  %v2190 = vsel %vm1396, %v1941, 0.0
  %v2191 = vadd.f32 %v2189, %v2190
  %v2192 = vsel %vm1396, %v1942, 0.0
  %v2193 = vadd.f32 %v2191, %v2192
  %v2194 = vsel %vm1396, %v1943, 0.0
  %v2195 = vadd.f32 %v2193, %v2194
  %v2196 = vsel %vm1396, %v1944, 0.0
  %v2197 = vadd.f32 %v2195, %v2196
  %v2198 = vsel %vm1396, %v1945, 0.0
  %v2199 = vadd.f32 %v2197, %v2198
  %v2200 = vsel %vm1396, %v1946, 0.0
  %v2201 = vadd.f32 %v2199, %v2200
  %v2202 = vsel %vm1396, %v1947, 0.0
  %v2203 = vadd.f32 %v2201, %v2202
  %v2204 = vsel %vm1396, %v1948, 0.0
  %v2205 = vadd.f32 %v2203, %v2204
  %v2206 = vsel %vm1396, %v1949, 0.0
  %v2207 = vadd.f32 %v2205, %v2206
  %v2208 = vsel %vm1396, %v1950, 0.0
  %v2209 = vadd.f32 %v2207, %v2208
  %v2210 = vsel %vm1396, %v1951, 0.0
  %v2211 = vadd.f32 %v2209, %v2210
  %v2212 = vsel %vm1396, %v1952, 0.0
  %v2213 = vadd.f32 %v2211, %v2212
  %v2214 = vsel %vm1396, %v1953, 0.0
  %v2215 = vadd.f32 %v2213, %v2214
  %v2216 = vsel %vm1396, %v1954, 0.0
  %v2217 = vadd.f32 %v2215, %v2216
  %v2218 = vsel %vm1396, %v1955, 0.0
  %v2219 = vadd.f32 %v2217, %v2218
  %v2220 = vsel %vm1396, %v1956, 0.0
  %v2221 = vadd.f32 %v2219, %v2220
  %v2222 = vsel %vm1396, %v1957, 0.0
  %v2223 = vadd.f32 %v2221, %v2222
  %v2224 = vsel %vm1396, %v1958, 0.0
  %v2225 = vadd.f32 %v2223, %v2224
  %v2226 = vsel %vm1396, %v1959, 0.0
  %v2227 = vadd.f32 %v2225, %v2226
  %v2228 = vsel %vm1396, %v1960, 0.0
  %v2229 = vadd.f32 %v2227, %v2228
  %v2230 = vsel %vm1396, %v1961, 0.0
  %v2231 = vadd.f32 %v2229, %v2230
  %v2232 = vsel %vm1396, %v1962, 0.0
  %v2233 = vadd.f32 %v2231, %v2232
  %v2234 = vsel %vm1396, %v1963, 0.0
  %v2235 = vadd.f32 %v2233, %v2234
  %v2236 = vsel %vm1396, %v1964, 0.0
  %v2237 = vadd.f32 %v2235, %v2236
  %v2238 = vsel %vm1396, %v1965, 0.0
  %v2239 = vadd.f32 %v2237, %v2238
  %v2240 = vsel %vm1396, %v1966, 0.0
  %v2241 = vadd.f32 %v2239, %v2240
  %v2242 = vsel %vm1396, %v1967, 0.0
  %v2243 = vadd.f32 %v2241, %v2242
  %v2244 = vsel %vm1396, %v1968, 0.0
  %v2245 = vadd.f32 %v2243, %v2244
  %v2246 = vsel %vm1396, %v1969, 0.0
  %v2247 = vadd.f32 %v2245, %v2246
  %v2248 = vsel %vm1396, %v1970, 0.0
  %v2249 = vadd.f32 %v2247, %v2248
  %v2250 = vsel %vm1396, %v1971, 0.0
  %v2251 = vadd.f32 %v2249, %v2250
  %v2252 = vsel %vm1396, %v1972, 0.0
  %v2253 = vadd.f32 %v2251, %v2252
  %v2254 = vsel %vm1396, %v1973, 0.0
  %v2255 = vadd.f32 %v2253, %v2254
  %v2256 = vsel %vm1396, %v1974, 0.0
  %v2257 = vadd.f32 %v2255, %v2256
  %v2258 = vsel %vm1396, %v1975, 0.0
  %v2259 = vadd.f32 %v2257, %v2258
  %v2260 = vsel %vm1396, %v1976, 0.0
  %v2261 = vadd.f32 %v2259, %v2260
  %v2262 = vsel %vm1396, %v1977, 0.0
  %v2263 = vadd.f32 %v2261, %v2262
  %v2264 = vsel %vm1396, %v1978, 0.0
  %v2265 = vadd.f32 %v2263, %v2264
  %v2266 = vrot.slane %v2265, 4
  %v2267 = vadd.f32 %v2265, %v2266
  %v2268 = vrot.slane %v2267, 2
  %v2269 = vadd.f32 %v2267, %v2268
  %v2270 = vrot.slane %v2269, 1
  %v2271 = vadd.f32 %v2269, %v2270
  %v2272 = vmul.f32 %v2271, 0.00086805556
  %v2273 = vadd.f32 %v2272, 1e-05
  %v2274 = vrsqrt.pop %v2273
  %v2275 = vmul.f32 %v2274, %v2273
  %v2276 = vmul.f32 %v2275, %v2274
  %v2277 = vmul.f32 0.5, %v2276
  %v2278 = vsub.f32 1.5, %v2277
  %v2279 = vmul.f32 %v2274, %v2278
  %vm2280 = vweird.f32 %v2273
  %vm2281 = vweird.f32 %v2274
  %vm2282 = vmor %vm2280, %vm2281
  %v2283 = vsel %vm2282, %v2274, %v2279
  %v2284 = vmul.f32 %v1691, %v2283
  %v2285 = vmul.f32 %v1692, %v2283
  %v2286 = vmul.f32 %v1693, %v2283
  %v2287 = vmul.f32 %v1694, %v2283
  %v2288 = vmul.f32 %v1695, %v2283
  %v2289 = vmul.f32 %v1696, %v2283
  %v2290 = vmul.f32 %v1697, %v2283
  %v2291 = vmul.f32 %v1698, %v2283
  %v2292 = vmul.f32 %v1699, %v2283
  %v2293 = vmul.f32 %v1700, %v2283
  %v2294 = vmul.f32 %v1701, %v2283
  %v2295 = vmul.f32 %v1702, %v2283
  %v2296 = vmul.f32 %v1703, %v2283
  %v2297 = vmul.f32 %v1704, %v2283
  %v2298 = vmul.f32 %v1705, %v2283
  %v2299 = vmul.f32 %v1706, %v2283
  %v2300 = vmul.f32 %v1707, %v2283
  %v2301 = vmul.f32 %v1708, %v2283
  %v2302 = vmul.f32 %v1709, %v2283
  %v2303 = vmul.f32 %v1710, %v2283
  %v2304 = vmul.f32 %v1711, %v2283
  %v2305 = vmul.f32 %v1712, %v2283
  %v2306 = vmul.f32 %v1713, %v2283
  %v2307 = vmul.f32 %v1714, %v2283
  %v2308 = vmul.f32 %v1715, %v2283
  %v2309 = vmul.f32 %v1716, %v2283
  %v2310 = vmul.f32 %v1717, %v2283
  %v2311 = vmul.f32 %v1718, %v2283
  %v2312 = vmul.f32 %v1719, %v2283
  %v2313 = vmul.f32 %v1720, %v2283
  %v2314 = vmul.f32 %v1721, %v2283
  %v2315 = vmul.f32 %v1722, %v2283
  %v2316 = vmul.f32 %v1723, %v2283
  %v2317 = vmul.f32 %v1724, %v2283
  %v2318 = vmul.f32 %v1725, %v2283
  %v2319 = vmul.f32 %v1726, %v2283
  %v2320 = vmul.f32 %v1727, %v2283
  %v2321 = vmul.f32 %v1728, %v2283
  %v2322 = vmul.f32 %v1729, %v2283
  %v2323 = vmul.f32 %v1730, %v2283
  %v2324 = vmul.f32 %v1731, %v2283
  %v2325 = vmul.f32 %v1732, %v2283
  %v2326 = vmul.f32 %v1733, %v2283
  %v2327 = vmul.f32 %v1734, %v2283
  %v2328 = vmul.f32 %v1735, %v2283
  %v2329 = vmul.f32 %v1736, %v2283
  %v2330 = vmul.f32 %v1737, %v2283
  %v2331 = vmul.f32 %v1738, %v2283
  %v2332 = vmul.f32 %v1739, %v2283
  %v2333 = vmul.f32 %v1740, %v2283
  %v2334 = vmul.f32 %v1741, %v2283
  %v2335 = vmul.f32 %v1742, %v2283
  %v2336 = vmul.f32 %v1743, %v2283
  %v2337 = vmul.f32 %v1744, %v2283
  %v2338 = vmul.f32 %v1745, %v2283
  %v2339 = vmul.f32 %v1746, %v2283
  %v2340 = vmul.f32 %v1747, %v2283
  %v2341 = vmul.f32 %v1748, %v2283
  %v2342 = vmul.f32 %v1749, %v2283
  %v2343 = vmul.f32 %v1750, %v2283
  %v2344 = vmul.f32 %v1751, %v2283
  %v2345 = vmul.f32 %v1752, %v2283
  %v2346 = vmul.f32 %v1753, %v2283
  %v2347 = vmul.f32 %v1754, %v2283
  %v2348 = vmul.f32 %v1755, %v2283
  %v2349 = vmul.f32 %v1756, %v2283
  %v2350 = vmul.f32 %v1757, %v2283
  %v2351 = vmul.f32 %v1758, %v2283
  %v2352 = vmul.f32 %v1759, %v2283
  %v2353 = vmul.f32 %v1760, %v2283
  %v2354 = vmul.f32 %v1761, %v2283
  %v2355 = vmul.f32 %v1762, %v2283
  %v2356 = vmul.f32 %v1763, %v2283
  %v2357 = vmul.f32 %v1764, %v2283
  %v2358 = vmul.f32 %v1765, %v2283
  %v2359 = vmul.f32 %v1766, %v2283
  %v2360 = vmul.f32 %v1767, %v2283
  %v2361 = vmul.f32 %v1768, %v2283
  %v2362 = vmul.f32 %v1769, %v2283
  %v2363 = vmul.f32 %v1770, %v2283
  %v2364 = vmul.f32 %v1771, %v2283
  %v2365 = vmul.f32 %v1772, %v2283
  %v2366 = vmul.f32 %v1773, %v2283
  %v2367 = vmul.f32 %v1774, %v2283
  %v2368 = vmul.f32 %v1775, %v2283
  %v2369 = vmul.f32 %v1776, %v2283
  %v2370 = vmul.f32 %v1777, %v2283
  %v2371 = vmul.f32 %v1778, %v2283
  %v2372 = vmul.f32 %v1779, %v2283
  %v2373 = vmul.f32 %v1780, %v2283
  %v2374 = vmul.f32 %v1781, %v2283
  %v2375 = vmul.f32 %v1782, %v2283
  %v2376 = vmul.f32 %v1783, %v2283
  %v2377 = vmul.f32 %v1784, %v2283
  %v2378 = vmul.f32 %v1785, %v2283
  %v2379 = vmul.f32 %v1786, %v2283
  %v2380 = vmul.f32 %v1787, %v2283
  %v2381 = vmul.f32 %v1788, %v2283
  %v2382 = vmul.f32 %v1789, %v2283
  %v2383 = vmul.f32 %v1790, %v2283
  %v2384 = vmul.f32 %v1791, %v2283
  %v2385 = vmul.f32 %v1792, %v2283
  %v2386 = vmul.f32 %v1793, %v2283
  %v2387 = vmul.f32 %v1794, %v2283
  %v2388 = vmul.f32 %v1795, %v2283
  %v2389 = vmul.f32 %v1796, %v2283
  %v2390 = vmul.f32 %v1797, %v2283
  %v2391 = vmul.f32 %v1798, %v2283
  %v2392 = vmul.f32 %v1799, %v2283
  %v2393 = vmul.f32 %v1800, %v2283
  %v2394 = vmul.f32 %v1801, %v2283
  %v2395 = vmul.f32 %v1802, %v2283
  %v2396 = vmul.f32 %v1803, %v2283
  %v2397 = vmul.f32 %v1804, %v2283
  %v2398 = vmul.f32 %v1805, %v2283
  %v2399 = vmul.f32 %v1806, %v2283
  %v2400 = vmul.f32 %v1807, %v2283
  %v2401 = vmul.f32 %v1808, %v2283
  %v2402 = vmul.f32 %v1809, %v2283
  %v2403 = vmul.f32 %v1810, %v2283
  %v2404 = vmul.f32 %v1811, %v2283
  %v2405 = vmul.f32 %v1812, %v2283
  %v2406 = vmul.f32 %v1813, %v2283
  %v2407 = vmul.f32 %v1814, %v2283
  %v2408 = vmul.f32 %v1815, %v2283
  %v2409 = vmul.f32 %v1816, %v2283
  %v2410 = vmul.f32 %v1817, %v2283
  %v2411 = vmul.f32 %v1818, %v2283
  %v2412 = vmul.f32 %v1819, %v2283
  %v2413 = vmul.f32 %v1820, %v2283
  %v2414 = vmul.f32 %v1821, %v2283
  %v2415 = vmul.f32 %v1822, %v2283
  %v2416 = vmul.f32 %v1823, %v2283
  %v2417 = vmul.f32 %v1824, %v2283
  %v2418 = vmul.f32 %v1825, %v2283
  %v2419 = vmul.f32 %v1826, %v2283
  %v2420 = vmul.f32 %v1827, %v2283
  %v2421 = vmul.f32 %v1828, %v2283
  %v2422 = vmul.f32 %v1829, %v2283
  %v2423 = vmul.f32 %v1830, %v2283
  %v2424 = vmul.f32 %v1831, %v2283
  %v2425 = vmul.f32 %v1832, %v2283
  %v2426 = vmul.f32 %v1833, %v2283
  %v2427 = vmul.f32 %v1834, %v2283
  %v2428 = vsub.f32 0.0, %v2284
  %v2429 = vsub.f32 0.0, %v2285
  %v2430 = vsub.f32 0.0, %v2286
  %v2431 = vsub.f32 0.0, %v2287
  %v2432 = vsub.f32 0.0, %v2288
  %v2433 = vsub.f32 0.0, %v2289
  %v2434 = vsub.f32 0.0, %v2290
  %v2435 = vsub.f32 0.0, %v2291
  %v2436 = vsub.f32 0.0, %v2292
  %v2437 = vsub.f32 0.0, %v2293
  %v2438 = vsub.f32 0.0, %v2294
  %v2439 = vsub.f32 0.0, %v2295
  %v2440 = vsub.f32 0.0, %v2296
  %v2441 = vsub.f32 0.0, %v2297
  %v2442 = vsub.f32 0.0, %v2298
  %v2443 = vsub.f32 0.0, %v2299
  %v2444 = vsub.f32 0.0, %v2300
  %v2445 = vsub.f32 0.0, %v2301
  %v2446 = vsub.f32 0.0, %v2302
  %v2447 = vsub.f32 0.0, %v2303
  %v2448 = vsub.f32 0.0, %v2304
  %v2449 = vsub.f32 0.0, %v2305
  %v2450 = vsub.f32 0.0, %v2306
  %v2451 = vsub.f32 0.0, %v2307
  %v2452 = vsub.f32 0.0, %v2308
  %v2453 = vsub.f32 0.0, %v2309
  %v2454 = vsub.f32 0.0, %v2310
  %v2455 = vsub.f32 0.0, %v2311
  %v2456 = vsub.f32 0.0, %v2312
  %v2457 = vsub.f32 0.0, %v2313
  %v2458 = vsub.f32 0.0, %v2314
  %v2459 = vsub.f32 0.0, %v2315
  %v2460 = vsub.f32 0.0, %v2316
  %v2461 = vsub.f32 0.0, %v2317
  %v2462 = vsub.f32 0.0, %v2318
  %v2463 = vsub.f32 0.0, %v2319
  %v2464 = vsub.f32 0.0, %v2320
  %v2465 = vsub.f32 0.0, %v2321
  %v2466 = vsub.f32 0.0, %v2322
  %v2467 = vsub.f32 0.0, %v2323
  %v2468 = vsub.f32 0.0, %v2324
  %v2469 = vsub.f32 0.0, %v2325
  %v2470 = vsub.f32 0.0, %v2326
  %v2471 = vsub.f32 0.0, %v2327
  %v2472 = vsub.f32 0.0, %v2328
  %v2473 = vsub.f32 0.0, %v2329
  %v2474 = vsub.f32 0.0, %v2330
  %v2475 = vsub.f32 0.0, %v2331
  %v2476 = vsub.f32 0.0, %v2332
  %v2477 = vsub.f32 0.0, %v2333
  %v2478 = vsub.f32 0.0, %v2334
  %v2479 = vsub.f32 0.0, %v2335
  %v2480 = vsub.f32 0.0, %v2336
  %v2481 = vsub.f32 0.0, %v2337
  %v2482 = vsub.f32 0.0, %v2338
  %v2483 = vsub.f32 0.0, %v2339
  %v2484 = vsub.f32 0.0, %v2340
  %v2485 = vsub.f32 0.0, %v2341
  %v2486 = vsub.f32 0.0, %v2342
  %v2487 = vsub.f32 0.0, %v2343
  %v2488 = vsub.f32 0.0, %v2344
  %v2489 = vsub.f32 0.0, %v2345
  %v2490 = vsub.f32 0.0, %v2346
  %v2491 = vsub.f32 0.0, %v2347
  %v2492 = vsub.f32 0.0, %v2348
  %v2493 = vsub.f32 0.0, %v2349
  %v2494 = vsub.f32 0.0, %v2350
  %v2495 = vsub.f32 0.0, %v2351
  %v2496 = vsub.f32 0.0, %v2352
  %v2497 = vsub.f32 0.0, %v2353
  %v2498 = vsub.f32 0.0, %v2354
  %v2499 = vsub.f32 0.0, %v2355
  %v2500 = vsub.f32 0.0, %v2356
  %v2501 = vsub.f32 0.0, %v2357
  %v2502 = vsub.f32 0.0, %v2358
  %v2503 = vsub.f32 0.0, %v2359
  %v2504 = vsub.f32 0.0, %v2360
  %v2505 = vsub.f32 0.0, %v2361
  %v2506 = vsub.f32 0.0, %v2362
  %v2507 = vsub.f32 0.0, %v2363
  %v2508 = vsub.f32 0.0, %v2364
  %v2509 = vsub.f32 0.0, %v2365
  %v2510 = vsub.f32 0.0, %v2366
  %v2511 = vsub.f32 0.0, %v2367
  %v2512 = vsub.f32 0.0, %v2368
  %v2513 = vsub.f32 0.0, %v2369
  %v2514 = vsub.f32 0.0, %v2370
  %v2515 = vsub.f32 0.0, %v2371
  %v2516 = vsub.f32 0.0, %v2372
  %v2517 = vsub.f32 0.0, %v2373
  %v2518 = vsub.f32 0.0, %v2374
  %v2519 = vsub.f32 0.0, %v2375
  %v2520 = vsub.f32 0.0, %v2376
  %v2521 = vsub.f32 0.0, %v2377
  %v2522 = vsub.f32 0.0, %v2378
  %v2523 = vsub.f32 0.0, %v2379
  %v2524 = vsub.f32 0.0, %v2380
  %v2525 = vsub.f32 0.0, %v2381
  %v2526 = vsub.f32 0.0, %v2382
  %v2527 = vsub.f32 0.0, %v2383
  %v2528 = vsub.f32 0.0, %v2384
  %v2529 = vsub.f32 0.0, %v2385
  %v2530 = vsub.f32 0.0, %v2386
  %v2531 = vsub.f32 0.0, %v2387
  %v2532 = vsub.f32 0.0, %v2388
  %v2533 = vsub.f32 0.0, %v2389
  %v2534 = vsub.f32 0.0, %v2390
  %v2535 = vsub.f32 0.0, %v2391
  %v2536 = vsub.f32 0.0, %v2392
  %v2537 = vsub.f32 0.0, %v2393
  %v2538 = vsub.f32 0.0, %v2394
  %v2539 = vsub.f32 0.0, %v2395
  %v2540 = vsub.f32 0.0, %v2396
  %v2541 = vsub.f32 0.0, %v2397
  %v2542 = vsub.f32 0.0, %v2398
  %v2543 = vsub.f32 0.0, %v2399
  %v2544 = vsub.f32 0.0, %v2400
  %v2545 = vsub.f32 0.0, %v2401
  %v2546 = vsub.f32 0.0, %v2402
  %v2547 = vsub.f32 0.0, %v2403
  %v2548 = vsub.f32 0.0, %v2404
  %v2549 = vsub.f32 0.0, %v2405
  %v2550 = vsub.f32 0.0, %v2406
  %v2551 = vsub.f32 0.0, %v2407
  %v2552 = vsub.f32 0.0, %v2408
  %v2553 = vsub.f32 0.0, %v2409
  %v2554 = vsub.f32 0.0, %v2410
  %v2555 = vsub.f32 0.0, %v2411
  %v2556 = vsub.f32 0.0, %v2412
  %v2557 = vsub.f32 0.0, %v2413
  %v2558 = vsub.f32 0.0, %v2414
  %v2559 = vsub.f32 0.0, %v2415
  %v2560 = vsub.f32 0.0, %v2416
  %v2561 = vsub.f32 0.0, %v2417
  %v2562 = vsub.f32 0.0, %v2418
  %v2563 = vsub.f32 0.0, %v2419
  %v2564 = vsub.f32 0.0, %v2420
  %v2565 = vsub.f32 0.0, %v2421
  %v2566 = vsub.f32 0.0, %v2422
  %v2567 = vsub.f32 0.0, %v2423
  %v2568 = vsub.f32 0.0, %v2424
  %v2569 = vsub.f32 0.0, %v2425
  %v2570 = vsub.f32 0.0, %v2426
  %v2571 = vsub.f32 0.0, %v2427
  %v2572 = vmul.f32 %v2428, 1.442695
  %v2573 = vpow.pop %v2572
  %v2574 = vmul.f32 %v2429, 1.442695
  %v2575 = vpow.pop %v2574
  %v2576 = vmul.f32 %v2430, 1.442695
  %v2577 = vpow.pop %v2576
  %v2578 = vmul.f32 %v2431, 1.442695
  %v2579 = vpow.pop %v2578
  %v2580 = vmul.f32 %v2432, 1.442695
  %v2581 = vpow.pop %v2580
  %v2582 = vmul.f32 %v2433, 1.442695
  %v2583 = vpow.pop %v2582
  %v2584 = vmul.f32 %v2434, 1.442695
  %v2585 = vpow.pop %v2584
  %v2586 = vmul.f32 %v2435, 1.442695
  %v2587 = vpow.pop %v2586
  %v2588 = vmul.f32 %v2436, 1.442695
  %v2589 = vpow.pop %v2588
  %v2590 = vmul.f32 %v2437, 1.442695
  %v2591 = vpow.pop %v2590
  %v2592 = vmul.f32 %v2438, 1.442695
  %v2593 = vpow.pop %v2592
  %v2594 = vmul.f32 %v2439, 1.442695
  %v2595 = vpow.pop %v2594
  %v2596 = vmul.f32 %v2440, 1.442695
  %v2597 = vpow.pop %v2596
  %v2598 = vmul.f32 %v2441, 1.442695
  %v2599 = vpow.pop %v2598
  %v2600 = vmul.f32 %v2442, 1.442695
  %v2601 = vpow.pop %v2600
  %v2602 = vmul.f32 %v2443, 1.442695
  %v2603 = vpow.pop %v2602
  %v2604 = vmul.f32 %v2444, 1.442695
  %v2605 = vpow.pop %v2604
  %v2606 = vmul.f32 %v2445, 1.442695
  %v2607 = vpow.pop %v2606
  %v2608 = vmul.f32 %v2446, 1.442695
  %v2609 = vpow.pop %v2608
  %v2610 = vmul.f32 %v2447, 1.442695
  %v2611 = vpow.pop %v2610
  %v2612 = vmul.f32 %v2448, 1.442695
  %v2613 = vpow.pop %v2612
  %v2614 = vmul.f32 %v2449, 1.442695
  %v2615 = vpow.pop %v2614
  %v2616 = vmul.f32 %v2450, 1.442695
  %v2617 = vpow.pop %v2616
  %v2618 = vmul.f32 %v2451, 1.442695
  %v2619 = vpow.pop %v2618
  %v2620 = vmul.f32 %v2452, 1.442695
  %v2621 = vpow.pop %v2620
  %v2622 = vmul.f32 %v2453, 1.442695
  %v2623 = vpow.pop %v2622
  %v2624 = vmul.f32 %v2454, 1.442695
  %v2625 = vpow.pop %v2624
  %v2626 = vmul.f32 %v2455, 1.442695
  %v2627 = vpow.pop %v2626
  %v2628 = vmul.f32 %v2456, 1.442695
  %v2629 = vpow.pop %v2628
  %v2630 = vmul.f32 %v2457, 1.442695
  %v2631 = vpow.pop %v2630
  %v2632 = vmul.f32 %v2458, 1.442695
  %v2633 = vpow.pop %v2632
  %v2634 = vmul.f32 %v2459, 1.442695
  %v2635 = vpow.pop %v2634
  %v2636 = vmul.f32 %v2460, 1.442695
  %v2637 = vpow.pop %v2636
  %v2638 = vmul.f32 %v2461, 1.442695
  %v2639 = vpow.pop %v2638
  %v2640 = vmul.f32 %v2462, 1.442695
  %v2641 = vpow.pop %v2640
  %v2642 = vmul.f32 %v2463, 1.442695
  %v2643 = vpow.pop %v2642
  %v2644 = vmul.f32 %v2464, 1.442695
  %v2645 = vpow.pop %v2644
  %v2646 = vmul.f32 %v2465, 1.442695
  %v2647 = vpow.pop %v2646
  %v2648 = vmul.f32 %v2466, 1.442695
  %v2649 = vpow.pop %v2648
  %v2650 = vmul.f32 %v2467, 1.442695
  %v2651 = vpow.pop %v2650
  %v2652 = vmul.f32 %v2468, 1.442695
  %v2653 = vpow.pop %v2652
  %v2654 = vmul.f32 %v2469, 1.442695
  %v2655 = vpow.pop %v2654
  %v2656 = vmul.f32 %v2470, 1.442695
  %v2657 = vpow.pop %v2656
  %v2658 = vmul.f32 %v2471, 1.442695
  %v2659 = vpow.pop %v2658
  %v2660 = vmul.f32 %v2472, 1.442695
  %v2661 = vpow.pop %v2660
  %v2662 = vmul.f32 %v2473, 1.442695
  %v2663 = vpow.pop %v2662
  %v2664 = vmul.f32 %v2474, 1.442695
  %v2665 = vpow.pop %v2664
  %v2666 = vmul.f32 %v2475, 1.442695
  %v2667 = vpow.pop %v2666
  %v2668 = vmul.f32 %v2476, 1.442695
  %v2669 = vpow.pop %v2668
  %v2670 = vmul.f32 %v2477, 1.442695
  %v2671 = vpow.pop %v2670
  %v2672 = vmul.f32 %v2478, 1.442695
  %v2673 = vpow.pop %v2672
  %v2674 = vmul.f32 %v2479, 1.442695
  %v2675 = vpow.pop %v2674
  %v2676 = vmul.f32 %v2480, 1.442695
  %v2677 = vpow.pop %v2676
  %v2678 = vmul.f32 %v2481, 1.442695
  %v2679 = vpow.pop %v2678
  %v2680 = vmul.f32 %v2482, 1.442695
  %v2681 = vpow.pop %v2680
  %v2682 = vmul.f32 %v2483, 1.442695
  %v2683 = vpow.pop %v2682
  %v2684 = vmul.f32 %v2484, 1.442695
  %v2685 = vpow.pop %v2684
  %v2686 = vmul.f32 %v2485, 1.442695
  %v2687 = vpow.pop %v2686
  %v2688 = vmul.f32 %v2486, 1.442695
  %v2689 = vpow.pop %v2688
  %v2690 = vmul.f32 %v2487, 1.442695
  %v2691 = vpow.pop %v2690
  %v2692 = vmul.f32 %v2488, 1.442695
  %v2693 = vpow.pop %v2692
  %v2694 = vmul.f32 %v2489, 1.442695
  %v2695 = vpow.pop %v2694
  %v2696 = vmul.f32 %v2490, 1.442695
  %v2697 = vpow.pop %v2696
  %v2698 = vmul.f32 %v2491, 1.442695
  %v2699 = vpow.pop %v2698
  %v2700 = vmul.f32 %v2492, 1.442695
  %v2701 = vpow.pop %v2700
  %v2702 = vmul.f32 %v2493, 1.442695
  %v2703 = vpow.pop %v2702
  %v2704 = vmul.f32 %v2494, 1.442695
  %v2705 = vpow.pop %v2704
  %v2706 = vmul.f32 %v2495, 1.442695
  %v2707 = vpow.pop %v2706
  %v2708 = vmul.f32 %v2496, 1.442695
  %v2709 = vpow.pop %v2708
  %v2710 = vmul.f32 %v2497, 1.442695
  %v2711 = vpow.pop %v2710
  %v2712 = vmul.f32 %v2498, 1.442695
  %v2713 = vpow.pop %v2712
  %v2714 = vmul.f32 %v2499, 1.442695
  %v2715 = vpow.pop %v2714
  %v2716 = vmul.f32 %v2500, 1.442695
  %v2717 = vpow.pop %v2716
  %v2718 = vmul.f32 %v2501, 1.442695
  %v2719 = vpow.pop %v2718
  %v2720 = vmul.f32 %v2502, 1.442695
  %v2721 = vpow.pop %v2720
  %v2722 = vmul.f32 %v2503, 1.442695
  %v2723 = vpow.pop %v2722
  %v2724 = vmul.f32 %v2504, 1.442695
  %v2725 = vpow.pop %v2724
  %v2726 = vmul.f32 %v2505, 1.442695
  %v2727 = vpow.pop %v2726
  %v2728 = vmul.f32 %v2506, 1.442695
  %v2729 = vpow.pop %v2728
  %v2730 = vmul.f32 %v2507, 1.442695
  %v2731 = vpow.pop %v2730
  %v2732 = vmul.f32 %v2508, 1.442695
  %v2733 = vpow.pop %v2732
  %v2734 = vmul.f32 %v2509, 1.442695
  %v2735 = vpow.pop %v2734
  %v2736 = vmul.f32 %v2510, 1.442695
  %v2737 = vpow.pop %v2736
  %v2738 = vmul.f32 %v2511, 1.442695
  %v2739 = vpow.pop %v2738
  %v2740 = vmul.f32 %v2512, 1.442695
  %v2741 = vpow.pop %v2740
  %v2742 = vmul.f32 %v2513, 1.442695
  %v2743 = vpow.pop %v2742
  %v2744 = vmul.f32 %v2514, 1.442695
  %v2745 = vpow.pop %v2744
  %v2746 = vmul.f32 %v2515, 1.442695
  %v2747 = vpow.pop %v2746
  %v2748 = vmul.f32 %v2516, 1.442695
  %v2749 = vpow.pop %v2748
  %v2750 = vmul.f32 %v2517, 1.442695
  %v2751 = vpow.pop %v2750
  %v2752 = vmul.f32 %v2518, 1.442695
  %v2753 = vpow.pop %v2752
  %v2754 = vmul.f32 %v2519, 1.442695
  %v2755 = vpow.pop %v2754
  %v2756 = vmul.f32 %v2520, 1.442695
  %v2757 = vpow.pop %v2756
  %v2758 = vmul.f32 %v2521, 1.442695
  %v2759 = vpow.pop %v2758
  %v2760 = vmul.f32 %v2522, 1.442695
  %v2761 = vpow.pop %v2760
  %v2762 = vmul.f32 %v2523, 1.442695
  %v2763 = vpow.pop %v2762
  %v2764 = vmul.f32 %v2524, 1.442695
  %v2765 = vpow.pop %v2764
  %v2766 = vmul.f32 %v2525, 1.442695
  %v2767 = vpow.pop %v2766
  %v2768 = vmul.f32 %v2526, 1.442695
  %v2769 = vpow.pop %v2768
  %v2770 = vmul.f32 %v2527, 1.442695
  %v2771 = vpow.pop %v2770
  %v2772 = vmul.f32 %v2528, 1.442695
  %v2773 = vpow.pop %v2772
  %v2774 = vmul.f32 %v2529, 1.442695
  %v2775 = vpow.pop %v2774
  %v2776 = vmul.f32 %v2530, 1.442695
  %v2777 = vpow.pop %v2776
  %v2778 = vmul.f32 %v2531, 1.442695
  %v2779 = vpow.pop %v2778
  %v2780 = vmul.f32 %v2532, 1.442695
  %v2781 = vpow.pop %v2780
  %v2782 = vmul.f32 %v2533, 1.442695
  %v2783 = vpow.pop %v2782
  %v2784 = vmul.f32 %v2534, 1.442695
  %v2785 = vpow.pop %v2784
  %v2786 = vmul.f32 %v2535, 1.442695
  %v2787 = vpow.pop %v2786
  %v2788 = vmul.f32 %v2536, 1.442695
  %v2789 = vpow.pop %v2788
  %v2790 = vmul.f32 %v2537, 1.442695
  %v2791 = vpow.pop %v2790
  %v2792 = vmul.f32 %v2538, 1.442695
  %v2793 = vpow.pop %v2792
  %v2794 = vmul.f32 %v2539, 1.442695
  %v2795 = vpow.pop %v2794
  %v2796 = vmul.f32 %v2540, 1.442695
  %v2797 = vpow.pop %v2796
  %v2798 = vmul.f32 %v2541, 1.442695
  %v2799 = vpow.pop %v2798
  %v2800 = vmul.f32 %v2542, 1.442695
  %v2801 = vpow.pop %v2800
  %v2802 = vmul.f32 %v2543, 1.442695
  %v2803 = vpow.pop %v2802
  %v2804 = vmul.f32 %v2544, 1.442695
  %v2805 = vpow.pop %v2804
  %v2806 = vmul.f32 %v2545, 1.442695
  %v2807 = vpow.pop %v2806
  %v2808 = vmul.f32 %v2546, 1.442695
  %v2809 = vpow.pop %v2808
  %v2810 = vmul.f32 %v2547, 1.442695
  %v2811 = vpow.pop %v2810
  %v2812 = vmul.f32 %v2548, 1.442695
  %v2813 = vpow.pop %v2812
  %v2814 = vmul.f32 %v2549, 1.442695
  %v2815 = vpow.pop %v2814
  %v2816 = vmul.f32 %v2550, 1.442695
  %v2817 = vpow.pop %v2816
  %v2818 = vmul.f32 %v2551, 1.442695
  %v2819 = vpow.pop %v2818
  %v2820 = vmul.f32 %v2552, 1.442695
  %v2821 = vpow.pop %v2820
  %v2822 = vmul.f32 %v2553, 1.442695
  %v2823 = vpow.pop %v2822
  %v2824 = vmul.f32 %v2554, 1.442695
  %v2825 = vpow.pop %v2824
  %v2826 = vmul.f32 %v2555, 1.442695
  %v2827 = vpow.pop %v2826
  %v2828 = vmul.f32 %v2556, 1.442695
  %v2829 = vpow.pop %v2828
  %v2830 = vmul.f32 %v2557, 1.442695
  %v2831 = vpow.pop %v2830
  %v2832 = vmul.f32 %v2558, 1.442695
  %v2833 = vpow.pop %v2832
  %v2834 = vmul.f32 %v2559, 1.442695
  %v2835 = vpow.pop %v2834
  %v2836 = vmul.f32 %v2560, 1.442695
  %v2837 = vpow.pop %v2836
  %v2838 = vmul.f32 %v2561, 1.442695
  %v2839 = vpow.pop %v2838
  %v2840 = vmul.f32 %v2562, 1.442695
  %v2841 = vpow.pop %v2840
  %v2842 = vmul.f32 %v2563, 1.442695
  %v2843 = vpow.pop %v2842
  %v2844 = vmul.f32 %v2564, 1.442695
  %v2845 = vpow.pop %v2844
  %v2846 = vmul.f32 %v2565, 1.442695
  %v2847 = vpow.pop %v2846
  %v2848 = vmul.f32 %v2566, 1.442695
  %v2849 = vpow.pop %v2848
  %v2850 = vmul.f32 %v2567, 1.442695
  %v2851 = vpow.pop %v2850
  %v2852 = vmul.f32 %v2568, 1.442695
  %v2853 = vpow.pop %v2852
  %v2854 = vmul.f32 %v2569, 1.442695
  %v2855 = vpow.pop %v2854
  %v2856 = vmul.f32 %v2570, 1.442695
  %v2857 = vpow.pop %v2856
  %v2858 = vmul.f32 %v2571, 1.442695
  %v2859 = vpow.pop %v2858
  %v2860 = vadd.f32 %v2573, 1.0
  %v2861 = vadd.f32 %v2575, 1.0
  %v2862 = vadd.f32 %v2577, 1.0
  %v2863 = vadd.f32 %v2579, 1.0
  %v2864 = vadd.f32 %v2581, 1.0
  %v2865 = vadd.f32 %v2583, 1.0
  %v2866 = vadd.f32 %v2585, 1.0
  %v2867 = vadd.f32 %v2587, 1.0
  %v2868 = vadd.f32 %v2589, 1.0
  %v2869 = vadd.f32 %v2591, 1.0
  %v2870 = vadd.f32 %v2593, 1.0
  %v2871 = vadd.f32 %v2595, 1.0
  %v2872 = vadd.f32 %v2597, 1.0
  %v2873 = vadd.f32 %v2599, 1.0
  %v2874 = vadd.f32 %v2601, 1.0
  %v2875 = vadd.f32 %v2603, 1.0
  %v2876 = vadd.f32 %v2605, 1.0
  %v2877 = vadd.f32 %v2607, 1.0
  %v2878 = vadd.f32 %v2609, 1.0
  %v2879 = vadd.f32 %v2611, 1.0
  %v2880 = vadd.f32 %v2613, 1.0
  %v2881 = vadd.f32 %v2615, 1.0
  %v2882 = vadd.f32 %v2617, 1.0
  %v2883 = vadd.f32 %v2619, 1.0
  %v2884 = vadd.f32 %v2621, 1.0
  %v2885 = vadd.f32 %v2623, 1.0
  %v2886 = vadd.f32 %v2625, 1.0
  %v2887 = vadd.f32 %v2627, 1.0
  %v2888 = vadd.f32 %v2629, 1.0
  %v2889 = vadd.f32 %v2631, 1.0
  %v2890 = vadd.f32 %v2633, 1.0
  %v2891 = vadd.f32 %v2635, 1.0
  %v2892 = vadd.f32 %v2637, 1.0
  %v2893 = vadd.f32 %v2639, 1.0
  %v2894 = vadd.f32 %v2641, 1.0
  %v2895 = vadd.f32 %v2643, 1.0
  %v2896 = vadd.f32 %v2645, 1.0
  %v2897 = vadd.f32 %v2647, 1.0
  %v2898 = vadd.f32 %v2649, 1.0
  %v2899 = vadd.f32 %v2651, 1.0
  %v2900 = vadd.f32 %v2653, 1.0
  %v2901 = vadd.f32 %v2655, 1.0
  %v2902 = vadd.f32 %v2657, 1.0
  %v2903 = vadd.f32 %v2659, 1.0
  %v2904 = vadd.f32 %v2661, 1.0
  %v2905 = vadd.f32 %v2663, 1.0
  %v2906 = vadd.f32 %v2665, 1.0
  %v2907 = vadd.f32 %v2667, 1.0
  %v2908 = vadd.f32 %v2669, 1.0
  %v2909 = vadd.f32 %v2671, 1.0
  %v2910 = vadd.f32 %v2673, 1.0
  %v2911 = vadd.f32 %v2675, 1.0
  %v2912 = vadd.f32 %v2677, 1.0
  %v2913 = vadd.f32 %v2679, 1.0
  %v2914 = vadd.f32 %v2681, 1.0
  %v2915 = vadd.f32 %v2683, 1.0
  %v2916 = vadd.f32 %v2685, 1.0
  %v2917 = vadd.f32 %v2687, 1.0
  %v2918 = vadd.f32 %v2689, 1.0
  %v2919 = vadd.f32 %v2691, 1.0
  %v2920 = vadd.f32 %v2693, 1.0
  %v2921 = vadd.f32 %v2695, 1.0
  %v2922 = vadd.f32 %v2697, 1.0
  %v2923 = vadd.f32 %v2699, 1.0
  %v2924 = vadd.f32 %v2701, 1.0
  %v2925 = vadd.f32 %v2703, 1.0
  %v2926 = vadd.f32 %v2705, 1.0
  %v2927 = vadd.f32 %v2707, 1.0
  %v2928 = vadd.f32 %v2709, 1.0
  %v2929 = vadd.f32 %v2711, 1.0
  %v2930 = vadd.f32 %v2713, 1.0
  %v2931 = vadd.f32 %v2715, 1.0
  %v2932 = vadd.f32 %v2717, 1.0
  %v2933 = vadd.f32 %v2719, 1.0
  %v2934 = vadd.f32 %v2721, 1.0
  %v2935 = vadd.f32 %v2723, 1.0
  %v2936 = vadd.f32 %v2725, 1.0
  %v2937 = vadd.f32 %v2727, 1.0
  %v2938 = vadd.f32 %v2729, 1.0
  %v2939 = vadd.f32 %v2731, 1.0
  %v2940 = vadd.f32 %v2733, 1.0
  %v2941 = vadd.f32 %v2735, 1.0
  %v2942 = vadd.f32 %v2737, 1.0
  %v2943 = vadd.f32 %v2739, 1.0
  %v2944 = vadd.f32 %v2741, 1.0
  %v2945 = vadd.f32 %v2743, 1.0
  %v2946 = vadd.f32 %v2745, 1.0
  %v2947 = vadd.f32 %v2747, 1.0
  %v2948 = vadd.f32 %v2749, 1.0
  %v2949 = vadd.f32 %v2751, 1.0
  %v2950 = vadd.f32 %v2753, 1.0
  %v2951 = vadd.f32 %v2755, 1.0
  %v2952 = vadd.f32 %v2757, 1.0
  %v2953 = vadd.f32 %v2759, 1.0
  %v2954 = vadd.f32 %v2761, 1.0
  %v2955 = vadd.f32 %v2763, 1.0
  %v2956 = vadd.f32 %v2765, 1.0
  %v2957 = vadd.f32 %v2767, 1.0
  %v2958 = vadd.f32 %v2769, 1.0
  %v2959 = vadd.f32 %v2771, 1.0
  %v2960 = vadd.f32 %v2773, 1.0
  %v2961 = vadd.f32 %v2775, 1.0
  %v2962 = vadd.f32 %v2777, 1.0
  %v2963 = vadd.f32 %v2779, 1.0
  %v2964 = vadd.f32 %v2781, 1.0
  %v2965 = vadd.f32 %v2783, 1.0
  %v2966 = vadd.f32 %v2785, 1.0
  %v2967 = vadd.f32 %v2787, 1.0
  %v2968 = vadd.f32 %v2789, 1.0
  %v2969 = vadd.f32 %v2791, 1.0
  %v2970 = vadd.f32 %v2793, 1.0
  %v2971 = vadd.f32 %v2795, 1.0
  %v2972 = vadd.f32 %v2797, 1.0
  %v2973 = vadd.f32 %v2799, 1.0
  %v2974 = vadd.f32 %v2801, 1.0
  %v2975 = vadd.f32 %v2803, 1.0
  %v2976 = vadd.f32 %v2805, 1.0
  %v2977 = vadd.f32 %v2807, 1.0
  %v2978 = vadd.f32 %v2809, 1.0
  %v2979 = vadd.f32 %v2811, 1.0
  %v2980 = vadd.f32 %v2813, 1.0
  %v2981 = vadd.f32 %v2815, 1.0
  %v2982 = vadd.f32 %v2817, 1.0
  %v2983 = vadd.f32 %v2819, 1.0
  %v2984 = vadd.f32 %v2821, 1.0
  %v2985 = vadd.f32 %v2823, 1.0
  %v2986 = vadd.f32 %v2825, 1.0
  %v2987 = vadd.f32 %v2827, 1.0
  %v2988 = vadd.f32 %v2829, 1.0
  %v2989 = vadd.f32 %v2831, 1.0
  %v2990 = vadd.f32 %v2833, 1.0
  %v2991 = vadd.f32 %v2835, 1.0
  %v2992 = vadd.f32 %v2837, 1.0
  %v2993 = vadd.f32 %v2839, 1.0
  %v2994 = vadd.f32 %v2841, 1.0
  %v2995 = vadd.f32 %v2843, 1.0
  %v2996 = vadd.f32 %v2845, 1.0
  %v2997 = vadd.f32 %v2847, 1.0
  %v2998 = vadd.f32 %v2849, 1.0
  %v2999 = vadd.f32 %v2851, 1.0
  %v3000 = vadd.f32 %v2853, 1.0
  %v3001 = vadd.f32 %v2855, 1.0
  %v3002 = vadd.f32 %v2857, 1.0
  %v3003 = vadd.f32 %v2859, 1.0
  %3148 = vrot.lane.b32.xlu0 %v2860, 120
  %v3149 = vpop.permute.xlu0 %3148
  %3150 = vrot.lane.b32.xlu0 %v2861, 120
  %v3151 = vpop.permute.xlu0 %3150
  %3152 = vrot.lane.b32.xlu0 %v2862, 120
  %v3153 = vpop.permute.xlu0 %3152
  %3154 = vrot.lane.b32.xlu0 %v2863, 120
  %v3155 = vpop.permute.xlu0 %3154
  %3156 = vrot.lane.b32.xlu0 %v2864, 120
  %v3157 = vpop.permute.xlu0 %3156
  %3158 = vrot.lane.b32.xlu0 %v2865, 120
  %v3159 = vpop.permute.xlu0 %3158
  %3160 = vrot.lane.b32.xlu0 %v2866, 120
  %v3161 = vpop.permute.xlu0 %3160
  %3162 = vrot.lane.b32.xlu0 %v2867, 120
  %v3163 = vpop.permute.xlu0 %3162
  %3164 = vrot.lane.b32.xlu0 %v2868, 120
  %v3165 = vpop.permute.xlu0 %3164
  %3166 = vrot.lane.b32.xlu0 %v2869, 120
  %v3167 = vpop.permute.xlu0 %3166
  %3168 = vrot.lane.b32.xlu0 %v2870, 120
  %v3169 = vpop.permute.xlu0 %3168
  %3170 = vrot.lane.b32.xlu0 %v2871, 120
  %v3171 = vpop.permute.xlu0 %3170
  %3172 = vrot.lane.b32.xlu0 %v2872, 120
  %v3173 = vpop.permute.xlu0 %3172
  %3174 = vrot.lane.b32.xlu0 %v2873, 120
  %v3175 = vpop.permute.xlu0 %3174
  %3176 = vrot.lane.b32.xlu0 %v2874, 120
  %v3177 = vpop.permute.xlu0 %3176
  %3178 = vrot.lane.b32.xlu0 %v2875, 120
  %v3179 = vpop.permute.xlu0 %3178
  %3180 = vrot.lane.b32.xlu0 %v2876, 120
  %v3181 = vpop.permute.xlu0 %3180
  %3182 = vrot.lane.b32.xlu0 %v2877, 120
  %v3183 = vpop.permute.xlu0 %3182
  %3184 = vrot.lane.b32.xlu0 %v2878, 120
  %v3185 = vpop.permute.xlu0 %3184
  %3186 = vrot.lane.b32.xlu0 %v2879, 120
  %v3187 = vpop.permute.xlu0 %3186
  %3188 = vrot.lane.b32.xlu0 %v2880, 120
  %v3189 = vpop.permute.xlu0 %3188
  %3190 = vrot.lane.b32.xlu0 %v2881, 120
  %v3191 = vpop.permute.xlu0 %3190
  %3192 = vrot.lane.b32.xlu0 %v2882, 120
  %v3193 = vpop.permute.xlu0 %3192
  %3194 = vrot.lane.b32.xlu0 %v2883, 120
  %v3195 = vpop.permute.xlu0 %3194
  %3196 = vrot.lane.b32.xlu0 %v2884, 120
  %v3197 = vpop.permute.xlu0 %3196
  %3198 = vrot.lane.b32.xlu0 %v2885, 120
  %v3199 = vpop.permute.xlu0 %3198
  %3200 = vrot.lane.b32.xlu0 %v2886, 120
  %v3201 = vpop.permute.xlu0 %3200
  %3202 = vrot.lane.b32.xlu0 %v2887, 120
  %v3203 = vpop.permute.xlu0 %3202
  %3204 = vrot.lane.b32.xlu0 %v2888, 120
  %v3205 = vpop.permute.xlu0 %3204
  %3206 = vrot.lane.b32.xlu0 %v2889, 120
  %v3207 = vpop.permute.xlu0 %3206
  %3208 = vrot.lane.b32.xlu0 %v2890, 120
  %v3209 = vpop.permute.xlu0 %3208
  %3210 = vrot.lane.b32.xlu0 %v2891, 120
  %v3211 = vpop.permute.xlu0 %3210
  %3212 = vrot.lane.b32.xlu0 %v2892, 120
  %v3213 = vpop.permute.xlu0 %3212
  %3214 = vrot.lane.b32.xlu0 %v2893, 120
  %v3215 = vpop.permute.xlu0 %3214
  %3216 = vrot.lane.b32.xlu0 %v2894, 120
  %v3217 = vpop.permute.xlu0 %3216
  %3218 = vrot.lane.b32.xlu0 %v2895, 120
  %v3219 = vpop.permute.xlu0 %3218
  %3220 = vrot.lane.b32.xlu0 %v2896, 120
  %v3221 = vpop.permute.xlu0 %3220
  %3222 = vrot.lane.b32.xlu0 %v2897, 120
  %v3223 = vpop.permute.xlu0 %3222
  %3224 = vrot.lane.b32.xlu0 %v2898, 120
  %v3225 = vpop.permute.xlu0 %3224
  %3226 = vrot.lane.b32.xlu0 %v2899, 120
  %v3227 = vpop.permute.xlu0 %3226
  %3228 = vrot.lane.b32.xlu0 %v2900, 120
  %v3229 = vpop.permute.xlu0 %3228
  %3230 = vrot.lane.b32.xlu0 %v2901, 120
  %v3231 = vpop.permute.xlu0 %3230
  %3232 = vrot.lane.b32.xlu0 %v2902, 120
  %v3233 = vpop.permute.xlu0 %3232
  %3234 = vrot.lane.b32.xlu0 %v2903, 120
  %v3235 = vpop.permute.xlu0 %3234
  %3236 = vrot.lane.b32.xlu0 %v2904, 120
  %v3237 = vpop.permute.xlu0 %3236
  %3238 = vrot.lane.b32.xlu0 %v2905, 120
  %v3239 = vpop.permute.xlu0 %3238
  %3240 = vrot.lane.b32.xlu0 %v2906, 120
  %v3241 = vpop.permute.xlu0 %3240
  %3242 = vrot.lane.b32.xlu0 %v2907, 120
  %v3243 = vpop.permute.xlu0 %3242
  %3244 = vrot.lane.b32.xlu0 %v2908, 120
  %v3245 = vpop.permute.xlu0 %3244
  %3246 = vrot.lane.b32.xlu0 %v2909, 120
  %v3247 = vpop.permute.xlu0 %3246
  %3248 = vrot.lane.b32.xlu0 %v2910, 120
  %v3249 = vpop.permute.xlu0 %3248
  %3250 = vrot.lane.b32.xlu0 %v2911, 120
  %v3251 = vpop.permute.xlu0 %3250
  %3252 = vrot.lane.b32.xlu0 %v2912, 120
  %v3253 = vpop.permute.xlu0 %3252
  %3254 = vrot.lane.b32.xlu0 %v2913, 120
  %v3255 = vpop.permute.xlu0 %3254
  %3256 = vrot.lane.b32.xlu0 %v2914, 120
  %v3257 = vpop.permute.xlu0 %3256
  %3258 = vrot.lane.b32.xlu0 %v2915, 120
  %v3259 = vpop.permute.xlu0 %3258
  %3260 = vrot.lane.b32.xlu0 %v2916, 120
  %v3261 = vpop.permute.xlu0 %3260
  %3262 = vrot.lane.b32.xlu0 %v2917, 120
  %v3263 = vpop.permute.xlu0 %3262
  %3264 = vrot.lane.b32.xlu0 %v2918, 120
  %v3265 = vpop.permute.xlu0 %3264
  %3266 = vrot.lane.b32.xlu0 %v2919, 120
  %v3267 = vpop.permute.xlu0 %3266
  %3268 = vrot.lane.b32.xlu0 %v2920, 120
  %v3269 = vpop.permute.xlu0 %3268
  %3270 = vrot.lane.b32.xlu0 %v2921, 120
  %v3271 = vpop.permute.xlu0 %3270
  %3272 = vrot.lane.b32.xlu0 %v2922, 120
  %v3273 = vpop.permute.xlu0 %3272
  %3274 = vrot.lane.b32.xlu0 %v2923, 120
  %v3275 = vpop.permute.xlu0 %3274
  %3276 = vrot.lane.b32.xlu0 %v2924, 120
  %v3277 = vpop.permute.xlu0 %3276
  %3278 = vrot.lane.b32.xlu0 %v2925, 120
  %v3279 = vpop.permute.xlu0 %3278
  %3280 = vrot.lane.b32.xlu0 %v2926, 120
  %v3281 = vpop.permute.xlu0 %3280
  %3282 = vrot.lane.b32.xlu0 %v2927, 120
  %v3283 = vpop.permute.xlu0 %3282
  %3284 = vrot.lane.b32.xlu0 %v2928, 120
  %v3285 = vpop.permute.xlu0 %3284
  %3286 = vrot.lane.b32.xlu0 %v2929, 120
  %v3287 = vpop.permute.xlu0 %3286
  %3288 = vrot.lane.b32.xlu0 %v2930, 120
  %v3289 = vpop.permute.xlu0 %3288
  %3290 = vrot.lane.b32.xlu0 %v2931, 120
  %v3291 = vpop.permute.xlu0 %3290
  %3292 = vrot.lane.b32.xlu0 %v2932, 120
  %v3293 = vpop.permute.xlu0 %3292
  %3294 = vrot.lane.b32.xlu0 %v2933, 120
  %v3295 = vpop.permute.xlu0 %3294
  %3296 = vrot.lane.b32.xlu0 %v2934, 120
  %v3297 = vpop.permute.xlu0 %3296
  %3298 = vrot.lane.b32.xlu0 %v2935, 120
  %v3299 = vpop.permute.xlu0 %3298
  %3300 = vrot.lane.b32.xlu0 %v2936, 120
  %v3301 = vpop.permute.xlu0 %3300
  %3302 = vrot.lane.b32.xlu0 %v2937, 120
  %v3303 = vpop.permute.xlu0 %3302
  %3304 = vrot.lane.b32.xlu0 %v2938, 120
  %v3305 = vpop.permute.xlu0 %3304
  %3306 = vrot.lane.b32.xlu0 %v2939, 120
  %v3307 = vpop.permute.xlu0 %3306
  %3308 = vrot.lane.b32.xlu0 %v2940, 120
  %v3309 = vpop.permute.xlu0 %3308
  %3310 = vrot.lane.b32.xlu0 %v2941, 120
  %v3311 = vpop.permute.xlu0 %3310
  %3312 = vrot.lane.b32.xlu0 %v2942, 120
  %v3313 = vpop.permute.xlu0 %3312
  %3314 = vrot.lane.b32.xlu0 %v2943, 120
  %v3315 = vpop.permute.xlu0 %3314
  %3316 = vrot.lane.b32.xlu0 %v2944, 120
  %v3317 = vpop.permute.xlu0 %3316
  %3318 = vrot.lane.b32.xlu0 %v2945, 120
  %v3319 = vpop.permute.xlu0 %3318
  %3320 = vrot.lane.b32.xlu0 %v2946, 120
  %v3321 = vpop.permute.xlu0 %3320
  %3322 = vrot.lane.b32.xlu0 %v2947, 120
  %v3323 = vpop.permute.xlu0 %3322
  %3324 = vrot.lane.b32.xlu0 %v2948, 120
  %v3325 = vpop.permute.xlu0 %3324
  %3326 = vrot.lane.b32.xlu0 %v2949, 120
  %v3327 = vpop.permute.xlu0 %3326
  %3328 = vrot.lane.b32.xlu0 %v2950, 120
  %v3329 = vpop.permute.xlu0 %3328
  %3330 = vrot.lane.b32.xlu0 %v2951, 120
  %v3331 = vpop.permute.xlu0 %3330
  %3332 = vrot.lane.b32.xlu0 %v2952, 120
  %v3333 = vpop.permute.xlu0 %3332
  %3334 = vrot.lane.b32.xlu0 %v2953, 120
  %v3335 = vpop.permute.xlu0 %3334
  %3336 = vrot.lane.b32.xlu0 %v2954, 120
  %v3337 = vpop.permute.xlu0 %3336
  %3338 = vrot.lane.b32.xlu0 %v2955, 120
  %v3339 = vpop.permute.xlu0 %3338
  %3340 = vrot.lane.b32.xlu0 %v2956, 120
  %v3341 = vpop.permute.xlu0 %3340
  %3342 = vrot.lane.b32.xlu0 %v2957, 120
  %v3343 = vpop.permute.xlu0 %3342
  %3344 = vrot.lane.b32.xlu0 %v2958, 120
  %v3345 = vpop.permute.xlu0 %3344
  %3346 = vrot.lane.b32.xlu0 %v2959, 120
  %v3347 = vpop.permute.xlu0 %3346
  %3348 = vrot.lane.b32.xlu0 %v2960, 120
  %v3349 = vpop.permute.xlu0 %3348
  %3350 = vrot.lane.b32.xlu0 %v2961, 120
  %v3351 = vpop.permute.xlu0 %3350
  %3352 = vrot.lane.b32.xlu0 %v2962, 120
  %v3353 = vpop.permute.xlu0 %3352
  %3354 = vrot.lane.b32.xlu0 %v2963, 120
  %v3355 = vpop.permute.xlu0 %3354
  %3356 = vrot.lane.b32.xlu0 %v2964, 120
  %v3357 = vpop.permute.xlu0 %3356
  %3358 = vrot.lane.b32.xlu0 %v2965, 120
  %v3359 = vpop.permute.xlu0 %3358
  %3360 = vrot.lane.b32.xlu0 %v2966, 120
  %v3361 = vpop.permute.xlu0 %3360
  %3362 = vrot.lane.b32.xlu0 %v2967, 120
  %v3363 = vpop.permute.xlu0 %3362
  %3364 = vrot.lane.b32.xlu0 %v2968, 120
  %v3365 = vpop.permute.xlu0 %3364
  %3366 = vrot.lane.b32.xlu0 %v2969, 120
  %v3367 = vpop.permute.xlu0 %3366
  %3368 = vrot.lane.b32.xlu0 %v2970, 120
  %v3369 = vpop.permute.xlu0 %3368
  %3370 = vrot.lane.b32.xlu0 %v2971, 120
  %v3371 = vpop.permute.xlu0 %3370
  %3372 = vrot.lane.b32.xlu0 %v2972, 120
  %v3373 = vpop.permute.xlu0 %3372
  %3374 = vrot.lane.b32.xlu0 %v2973, 120
  %v3375 = vpop.permute.xlu0 %3374
  %3376 = vrot.lane.b32.xlu0 %v2974, 120
  %v3377 = vpop.permute.xlu0 %3376
  %3378 = vrot.lane.b32.xlu0 %v2975, 120
  %v3379 = vpop.permute.xlu0 %3378
  %3380 = vrot.lane.b32.xlu0 %v2976, 120
  %v3381 = vpop.permute.xlu0 %3380
  %3382 = vrot.lane.b32.xlu0 %v2977, 120
  %v3383 = vpop.permute.xlu0 %3382
  %3384 = vrot.lane.b32.xlu0 %v2978, 120
  %v3385 = vpop.permute.xlu0 %3384
  %3386 = vrot.lane.b32.xlu0 %v2979, 120
  %v3387 = vpop.permute.xlu0 %3386
  %3388 = vrot.lane.b32.xlu0 %v2980, 120
  %v3389 = vpop.permute.xlu0 %3388
  %3390 = vrot.lane.b32.xlu0 %v2981, 120
  %v3391 = vpop.permute.xlu0 %3390
  %3392 = vrot.lane.b32.xlu0 %v2982, 120
  %v3393 = vpop.permute.xlu0 %3392
  %3394 = vrot.lane.b32.xlu0 %v2983, 120
  %v3395 = vpop.permute.xlu0 %3394
  %3396 = vrot.lane.b32.xlu0 %v2984, 120
  %v3397 = vpop.permute.xlu0 %3396
  %3398 = vrot.lane.b32.xlu0 %v2985, 120
  %v3399 = vpop.permute.xlu0 %3398
  %3400 = vrot.lane.b32.xlu0 %v2986, 120
  %v3401 = vpop.permute.xlu0 %3400
  %3402 = vrot.lane.b32.xlu0 %v2987, 120
  %v3403 = vpop.permute.xlu0 %3402
  %3404 = vrot.lane.b32.xlu0 %v2988, 120
  %v3405 = vpop.permute.xlu0 %3404
  %3406 = vrot.lane.b32.xlu0 %v2989, 120
  %v3407 = vpop.permute.xlu0 %3406
  %3408 = vrot.lane.b32.xlu0 %v2990, 120
  %v3409 = vpop.permute.xlu0 %3408
  %3410 = vrot.lane.b32.xlu0 %v2991, 120
  %v3411 = vpop.permute.xlu0 %3410
  %3412 = vrot.lane.b32.xlu0 %v2992, 120
  %v3413 = vpop.permute.xlu0 %3412
  %3414 = vrot.lane.b32.xlu0 %v2993, 120
  %v3415 = vpop.permute.xlu0 %3414
  %3416 = vrot.lane.b32.xlu0 %v2994, 120
  %v3417 = vpop.permute.xlu0 %3416
  %3418 = vrot.lane.b32.xlu0 %v2995, 120
  %v3419 = vpop.permute.xlu0 %3418
  %3420 = vrot.lane.b32.xlu0 %v2996, 120
  %v3421 = vpop.permute.xlu0 %3420
  %3422 = vrot.lane.b32.xlu0 %v2997, 120
  %v3423 = vpop.permute.xlu0 %3422
  %3424 = vrot.lane.b32.xlu0 %v2998, 120
  %v3425 = vpop.permute.xlu0 %3424
  %3426 = vrot.lane.b32.xlu0 %v2999, 120
  %v3427 = vpop.permute.xlu0 %3426
  %3428 = vrot.lane.b32.xlu0 %v3000, 120
  %v3429 = vpop.permute.xlu0 %3428
  %3430 = vrot.lane.b32.xlu0 %v3001, 120
  %v3431 = vpop.permute.xlu0 %3430
  %3432 = vrot.lane.b32.xlu0 %v3002, 120
  %v3433 = vpop.permute.xlu0 %3432
  %3434 = vrot.lane.b32.xlu0 %v3003, 120
  %v3435 = vpop.permute.xlu0 %3434
  %v3580 = vrcp.pop %v3149
  %v3581 = vmul.f32 %v3149, %v3580
  %v3582 = vsub.f32 1.0, %v3581
  %v3583 = vmul.f32 %v3580, %v3582
  %v3584 = vadd.f32 %v3580, %v3583
  %vm3585 = vweird.f32 %v3149
  %vm3586 = vweird.f32 %v3580
  %vm3587 = vmor %vm3585, %vm3586
  %v3588 = vsel %vm3587, %v3580, %v3584
  %v3589 = vand.u32 2147483647, %v3149
  %vm3590 = vcmp.eq.f32.partialorder %v3589, 8.507059e+37
  %v3591 = vand.u32 %v3149, 2147483648
  %v3592 = vor.u32 1.1754944e-38, %v3591
  %v3593 = vsel %vm3590, %v3592, %v3588
  %v3594 = vmul.f32 %v2284, %v3593
  %v3595 = vrcp.pop %v3151
  %v3596 = vmul.f32 %v3151, %v3595
  %v3597 = vsub.f32 1.0, %v3596
  %v3598 = vmul.f32 %v3595, %v3597
  %v3599 = vadd.f32 %v3595, %v3598
  %vm3600 = vweird.f32 %v3151
  %vm3601 = vweird.f32 %v3595
  %vm3602 = vmor %vm3600, %vm3601
  %v3603 = vsel %vm3602, %v3595, %v3599
  %v3604 = vand.u32 2147483647, %v3151
  %vm3605 = vcmp.eq.f32.partialorder %v3604, 8.507059e+37
  %v3606 = vand.u32 %v3151, 2147483648
  %v3607 = vor.u32 1.1754944e-38, %v3606
  %v3608 = vsel %vm3605, %v3607, %v3603
  %v3609 = vmul.f32 %v2285, %v3608
  %v3610 = vrcp.pop %v3153
  %v3611 = vmul.f32 %v3153, %v3610
  %v3612 = vsub.f32 1.0, %v3611
  %v3613 = vmul.f32 %v3610, %v3612
  %v3614 = vadd.f32 %v3610, %v3613
  %vm3615 = vweird.f32 %v3153
  %vm3616 = vweird.f32 %v3610
  %vm3617 = vmor %vm3615, %vm3616
  %v3618 = vsel %vm3617, %v3610, %v3614
  %v3619 = vand.u32 2147483647, %v3153
  %vm3620 = vcmp.eq.f32.partialorder %v3619, 8.507059e+37
  %v3621 = vand.u32 %v3153, 2147483648
  %v3622 = vor.u32 1.1754944e-38, %v3621
  %v3623 = vsel %vm3620, %v3622, %v3618
  %v3624 = vmul.f32 %v2286, %v3623
  %v3625 = vrcp.pop %v3155
  %v3626 = vmul.f32 %v3155, %v3625
  %v3627 = vsub.f32 1.0, %v3626
  %v3628 = vmul.f32 %v3625, %v3627
  %v3629 = vadd.f32 %v3625, %v3628
  %vm3630 = vweird.f32 %v3155
  %vm3631 = vweird.f32 %v3625
  %vm3632 = vmor %vm3630, %vm3631
  %v3633 = vsel %vm3632, %v3625, %v3629
  %v3634 = vand.u32 2147483647, %v3155
  %vm3635 = vcmp.eq.f32.partialorder %v3634, 8.507059e+37
  %v3636 = vand.u32 %v3155, 2147483648
  %v3637 = vor.u32 1.1754944e-38, %v3636
  %v3638 = vsel %vm3635, %v3637, %v3633
  %v3639 = vmul.f32 %v2287, %v3638
  %v3640 = vrcp.pop %v3157
  %v3641 = vmul.f32 %v3157, %v3640
  %v3642 = vsub.f32 1.0, %v3641
  %v3643 = vmul.f32 %v3640, %v3642
  %v3644 = vadd.f32 %v3640, %v3643
  %vm3645 = vweird.f32 %v3157
  %vm3646 = vweird.f32 %v3640
  %vm3647 = vmor %vm3645, %vm3646
  %v3648 = vsel %vm3647, %v3640, %v3644
  %v3649 = vand.u32 2147483647, %v3157
  %vm3650 = vcmp.eq.f32.partialorder %v3649, 8.507059e+37
  %v3651 = vand.u32 %v3157, 2147483648
  %v3652 = vor.u32 1.1754944e-38, %v3651
  %v3653 = vsel %vm3650, %v3652, %v3648
  %v3654 = vmul.f32 %v2288, %v3653
  %v3655 = vrcp.pop %v3159
  %v3656 = vmul.f32 %v3159, %v3655
  %v3657 = vsub.f32 1.0, %v3656
  %v3658 = vmul.f32 %v3655, %v3657
  %v3659 = vadd.f32 %v3655, %v3658
  %vm3660 = vweird.f32 %v3159
  %vm3661 = vweird.f32 %v3655
  %vm3662 = vmor %vm3660, %vm3661
  %v3663 = vsel %vm3662, %v3655, %v3659
  %v3664 = vand.u32 2147483647, %v3159
  %vm3665 = vcmp.eq.f32.partialorder %v3664, 8.507059e+37
  %v3666 = vand.u32 %v3159, 2147483648
  %v3667 = vor.u32 1.1754944e-38, %v3666
  %v3668 = vsel %vm3665, %v3667, %v3663
  %v3669 = vmul.f32 %v2289, %v3668
  %v3670 = vrcp.pop %v3161
  %v3671 = vmul.f32 %v3161, %v3670
  %v3672 = vsub.f32 1.0, %v3671
  %v3673 = vmul.f32 %v3670, %v3672
  %v3674 = vadd.f32 %v3670, %v3673
  %vm3675 = vweird.f32 %v3161
  %vm3676 = vweird.f32 %v3670
  %vm3677 = vmor %vm3675, %vm3676
  %v3678 = vsel %vm3677, %v3670, %v3674
  %v3679 = vand.u32 2147483647, %v3161
  %vm3680 = vcmp.eq.f32.partialorder %v3679, 8.507059e+37
  %v3681 = vand.u32 %v3161, 2147483648
  %v3682 = vor.u32 1.1754944e-38, %v3681
  %v3683 = vsel %vm3680, %v3682, %v3678
  %v3684 = vmul.f32 %v2290, %v3683
  %v3685 = vrcp.pop %v3163
  %v3686 = vmul.f32 %v3163, %v3685
  %v3687 = vsub.f32 1.0, %v3686
  %v3688 = vmul.f32 %v3685, %v3687
  %v3689 = vadd.f32 %v3685, %v3688
  %vm3690 = vweird.f32 %v3163
  %vm3691 = vweird.f32 %v3685
  %vm3692 = vmor %vm3690, %vm3691
  %v3693 = vsel %vm3692, %v3685, %v3689
  %v3694 = vand.u32 2147483647, %v3163
  %vm3695 = vcmp.eq.f32.partialorder %v3694, 8.507059e+37
  %v3696 = vand.u32 %v3163, 2147483648
  %v3697 = vor.u32 1.1754944e-38, %v3696
  %v3698 = vsel %vm3695, %v3697, %v3693
  %v3699 = vmul.f32 %v2291, %v3698
  %v3700 = vrcp.pop %v3165
  %v3701 = vmul.f32 %v3165, %v3700
  %v3702 = vsub.f32 1.0, %v3701
  %v3703 = vmul.f32 %v3700, %v3702
  %v3704 = vadd.f32 %v3700, %v3703
  %vm3705 = vweird.f32 %v3165
  %vm3706 = vweird.f32 %v3700
  %vm3707 = vmor %vm3705, %vm3706
  %v3708 = vsel %vm3707, %v3700, %v3704
  %v3709 = vand.u32 2147483647, %v3165
  %vm3710 = vcmp.eq.f32.partialorder %v3709, 8.507059e+37
  %v3711 = vand.u32 %v3165, 2147483648
  %v3712 = vor.u32 1.1754944e-38, %v3711
  %v3713 = vsel %vm3710, %v3712, %v3708
  %v3714 = vmul.f32 %v2292, %v3713
  %v3715 = vrcp.pop %v3167
  %v3716 = vmul.f32 %v3167, %v3715
  %v3717 = vsub.f32 1.0, %v3716
  %v3718 = vmul.f32 %v3715, %v3717
  %v3719 = vadd.f32 %v3715, %v3718
  %vm3720 = vweird.f32 %v3167
  %vm3721 = vweird.f32 %v3715
  %vm3722 = vmor %vm3720, %vm3721
  %v3723 = vsel %vm3722, %v3715, %v3719
  %v3724 = vand.u32 2147483647, %v3167
  %vm3725 = vcmp.eq.f32.partialorder %v3724, 8.507059e+37
  %v3726 = vand.u32 %v3167, 2147483648
  %v3727 = vor.u32 1.1754944e-38, %v3726
  %v3728 = vsel %vm3725, %v3727, %v3723
  %v3729 = vmul.f32 %v2293, %v3728
  %v3730 = vrcp.pop %v3169
  %v3731 = vmul.f32 %v3169, %v3730
  %v3732 = vsub.f32 1.0, %v3731
  %v3733 = vmul.f32 %v3730, %v3732
  %v3734 = vadd.f32 %v3730, %v3733
  %vm3735 = vweird.f32 %v3169
  %vm3736 = vweird.f32 %v3730
  %vm3737 = vmor %vm3735, %vm3736
  %v3738 = vsel %vm3737, %v3730, %v3734
  %v3739 = vand.u32 2147483647, %v3169
  %vm3740 = vcmp.eq.f32.partialorder %v3739, 8.507059e+37
  %v3741 = vand.u32 %v3169, 2147483648
  %v3742 = vor.u32 1.1754944e-38, %v3741
  %v3743 = vsel %vm3740, %v3742, %v3738
  %v3744 = vmul.f32 %v2294, %v3743
  %v3745 = vrcp.pop %v3171
  %v3746 = vmul.f32 %v3171, %v3745
  %v3747 = vsub.f32 1.0, %v3746
  %v3748 = vmul.f32 %v3745, %v3747
  %v3749 = vadd.f32 %v3745, %v3748
  %vm3750 = vweird.f32 %v3171
  %vm3751 = vweird.f32 %v3745
  %vm3752 = vmor %vm3750, %vm3751
  %v3753 = vsel %vm3752, %v3745, %v3749
  %v3754 = vand.u32 2147483647, %v3171
  %vm3755 = vcmp.eq.f32.partialorder %v3754, 8.507059e+37
  %v3756 = vand.u32 %v3171, 2147483648
  %v3757 = vor.u32 1.1754944e-38, %v3756
  %v3758 = vsel %vm3755, %v3757, %v3753
  %v3759 = vmul.f32 %v2295, %v3758
  %v3760 = vrcp.pop %v3173
  %v3761 = vmul.f32 %v3173, %v3760
  %v3762 = vsub.f32 1.0, %v3761
  %v3763 = vmul.f32 %v3760, %v3762
  %v3764 = vadd.f32 %v3760, %v3763
  %vm3765 = vweird.f32 %v3173
  %vm3766 = vweird.f32 %v3760
  %vm3767 = vmor %vm3765, %vm3766
  %v3768 = vsel %vm3767, %v3760, %v3764
  %v3769 = vand.u32 2147483647, %v3173
  %vm3770 = vcmp.eq.f32.partialorder %v3769, 8.507059e+37
  %v3771 = vand.u32 %v3173, 2147483648
  %v3772 = vor.u32 1.1754944e-38, %v3771
  %v3773 = vsel %vm3770, %v3772, %v3768
  %v3774 = vmul.f32 %v2296, %v3773
  %v3775 = vrcp.pop %v3175
  %v3776 = vmul.f32 %v3175, %v3775
  %v3777 = vsub.f32 1.0, %v3776
  %v3778 = vmul.f32 %v3775, %v3777
  %v3779 = vadd.f32 %v3775, %v3778
  %vm3780 = vweird.f32 %v3175
  %vm3781 = vweird.f32 %v3775
  %vm3782 = vmor %vm3780, %vm3781
  %v3783 = vsel %vm3782, %v3775, %v3779
  %v3784 = vand.u32 2147483647, %v3175
  %vm3785 = vcmp.eq.f32.partialorder %v3784, 8.507059e+37
  %v3786 = vand.u32 %v3175, 2147483648
  %v3787 = vor.u32 1.1754944e-38, %v3786
  %v3788 = vsel %vm3785, %v3787, %v3783
  %v3789 = vmul.f32 %v2297, %v3788
  %v3790 = vrcp.pop %v3177
  %v3791 = vmul.f32 %v3177, %v3790
  %v3792 = vsub.f32 1.0, %v3791
  %v3793 = vmul.f32 %v3790, %v3792
  %v3794 = vadd.f32 %v3790, %v3793
  %vm3795 = vweird.f32 %v3177
  %vm3796 = vweird.f32 %v3790
  %vm3797 = vmor %vm3795, %vm3796
  %v3798 = vsel %vm3797, %v3790, %v3794
  %v3799 = vand.u32 2147483647, %v3177
  %vm3800 = vcmp.eq.f32.partialorder %v3799, 8.507059e+37
  %v3801 = vand.u32 %v3177, 2147483648
  %v3802 = vor.u32 1.1754944e-38, %v3801
  %v3803 = vsel %vm3800, %v3802, %v3798
  %v3804 = vmul.f32 %v2298, %v3803
  %v3805 = vrcp.pop %v3179
  %v3806 = vmul.f32 %v3179, %v3805
  %v3807 = vsub.f32 1.0, %v3806
  %v3808 = vmul.f32 %v3805, %v3807
  %v3809 = vadd.f32 %v3805, %v3808
  %vm3810 = vweird.f32 %v3179
  %vm3811 = vweird.f32 %v3805
  %vm3812 = vmor %vm3810, %vm3811
  %v3813 = vsel %vm3812, %v3805, %v3809
  %v3814 = vand.u32 2147483647, %v3179
  %vm3815 = vcmp.eq.f32.partialorder %v3814, 8.507059e+37
  %v3816 = vand.u32 %v3179, 2147483648
  %v3817 = vor.u32 1.1754944e-38, %v3816
  %v3818 = vsel %vm3815, %v3817, %v3813
  %v3819 = vmul.f32 %v2299, %v3818
  %v3820 = vrcp.pop %v3181
  %v3821 = vmul.f32 %v3181, %v3820
  %v3822 = vsub.f32 1.0, %v3821
  %v3823 = vmul.f32 %v3820, %v3822
  %v3824 = vadd.f32 %v3820, %v3823
  %vm3825 = vweird.f32 %v3181
  %vm3826 = vweird.f32 %v3820
  %vm3827 = vmor %vm3825, %vm3826
  %v3828 = vsel %vm3827, %v3820, %v3824
  %v3829 = vand.u32 2147483647, %v3181
  %vm3830 = vcmp.eq.f32.partialorder %v3829, 8.507059e+37
  %v3831 = vand.u32 %v3181, 2147483648
  %v3832 = vor.u32 1.1754944e-38, %v3831
  %v3833 = vsel %vm3830, %v3832, %v3828
  %v3834 = vmul.f32 %v2300, %v3833
  %v3835 = vrcp.pop %v3183
  %v3836 = vmul.f32 %v3183, %v3835
  %v3837 = vsub.f32 1.0, %v3836
  %v3838 = vmul.f32 %v3835, %v3837
  %v3839 = vadd.f32 %v3835, %v3838
  %vm3840 = vweird.f32 %v3183
  %vm3841 = vweird.f32 %v3835
  %vm3842 = vmor %vm3840, %vm3841
  %v3843 = vsel %vm3842, %v3835, %v3839
  %v3844 = vand.u32 2147483647, %v3183
  %vm3845 = vcmp.eq.f32.partialorder %v3844, 8.507059e+37
  %v3846 = vand.u32 %v3183, 2147483648
  %v3847 = vor.u32 1.1754944e-38, %v3846
  %v3848 = vsel %vm3845, %v3847, %v3843
  %v3849 = vmul.f32 %v2301, %v3848
  %v3850 = vrcp.pop %v3185
  %v3851 = vmul.f32 %v3185, %v3850
  %v3852 = vsub.f32 1.0, %v3851
  %v3853 = vmul.f32 %v3850, %v3852
  %v3854 = vadd.f32 %v3850, %v3853
  %vm3855 = vweird.f32 %v3185
  %vm3856 = vweird.f32 %v3850
  %vm3857 = vmor %vm3855, %vm3856
  %v3858 = vsel %vm3857, %v3850, %v3854
  %v3859 = vand.u32 2147483647, %v3185
  %vm3860 = vcmp.eq.f32.partialorder %v3859, 8.507059e+37
  %v3861 = vand.u32 %v3185, 2147483648
  %v3862 = vor.u32 1.1754944e-38, %v3861
  %v3863 = vsel %vm3860, %v3862, %v3858
  %v3864 = vmul.f32 %v2302, %v3863
  %v3865 = vrcp.pop %v3187
  %v3866 = vmul.f32 %v3187, %v3865
  %v3867 = vsub.f32 1.0, %v3866
  %v3868 = vmul.f32 %v3865, %v3867
  %v3869 = vadd.f32 %v3865, %v3868
  %vm3870 = vweird.f32 %v3187
  %vm3871 = vweird.f32 %v3865
  %vm3872 = vmor %vm3870, %vm3871
  %v3873 = vsel %vm3872, %v3865, %v3869
  %v3874 = vand.u32 2147483647, %v3187
  %vm3875 = vcmp.eq.f32.partialorder %v3874, 8.507059e+37
  %v3876 = vand.u32 %v3187, 2147483648
  %v3877 = vor.u32 1.1754944e-38, %v3876
  %v3878 = vsel %vm3875, %v3877, %v3873
  %v3879 = vmul.f32 %v2303, %v3878
  %v3880 = vrcp.pop %v3189
  %v3881 = vmul.f32 %v3189, %v3880
  %v3882 = vsub.f32 1.0, %v3881
  %v3883 = vmul.f32 %v3880, %v3882
  %v3884 = vadd.f32 %v3880, %v3883
  %vm3885 = vweird.f32 %v3189
  %vm3886 = vweird.f32 %v3880
  %vm3887 = vmor %vm3885, %vm3886
  %v3888 = vsel %vm3887, %v3880, %v3884
  %v3889 = vand.u32 2147483647, %v3189
  %vm3890 = vcmp.eq.f32.partialorder %v3889, 8.507059e+37
  %v3891 = vand.u32 %v3189, 2147483648
  %v3892 = vor.u32 1.1754944e-38, %v3891
  %v3893 = vsel %vm3890, %v3892, %v3888
  %v3894 = vmul.f32 %v2304, %v3893
  %v3895 = vrcp.pop %v3191
  %v3896 = vmul.f32 %v3191, %v3895
  %v3897 = vsub.f32 1.0, %v3896
  %v3898 = vmul.f32 %v3895, %v3897
  %v3899 = vadd.f32 %v3895, %v3898
  %vm3900 = vweird.f32 %v3191
  %vm3901 = vweird.f32 %v3895
  %vm3902 = vmor %vm3900, %vm3901
  %v3903 = vsel %vm3902, %v3895, %v3899
  %v3904 = vand.u32 2147483647, %v3191
  %vm3905 = vcmp.eq.f32.partialorder %v3904, 8.507059e+37
  %v3906 = vand.u32 %v3191, 2147483648
  %v3907 = vor.u32 1.1754944e-38, %v3906
  %v3908 = vsel %vm3905, %v3907, %v3903
  %v3909 = vmul.f32 %v2305, %v3908
  %v3910 = vrcp.pop %v3193
  %v3911 = vmul.f32 %v3193, %v3910
  %v3912 = vsub.f32 1.0, %v3911
  %v3913 = vmul.f32 %v3910, %v3912
  %v3914 = vadd.f32 %v3910, %v3913
  %vm3915 = vweird.f32 %v3193
  %vm3916 = vweird.f32 %v3910
  %vm3917 = vmor %vm3915, %vm3916
  %v3918 = vsel %vm3917, %v3910, %v3914
  %v3919 = vand.u32 2147483647, %v3193
  %vm3920 = vcmp.eq.f32.partialorder %v3919, 8.507059e+37
  %v3921 = vand.u32 %v3193, 2147483648
  %v3922 = vor.u32 1.1754944e-38, %v3921
  %v3923 = vsel %vm3920, %v3922, %v3918
  %v3924 = vmul.f32 %v2306, %v3923
  %v3925 = vrcp.pop %v3195
  %v3926 = vmul.f32 %v3195, %v3925
  %v3927 = vsub.f32 1.0, %v3926
  %v3928 = vmul.f32 %v3925, %v3927
  %v3929 = vadd.f32 %v3925, %v3928
  %vm3930 = vweird.f32 %v3195
  %vm3931 = vweird.f32 %v3925
  %vm3932 = vmor %vm3930, %vm3931
  %v3933 = vsel %vm3932, %v3925, %v3929
  %v3934 = vand.u32 2147483647, %v3195
  %vm3935 = vcmp.eq.f32.partialorder %v3934, 8.507059e+37
  %v3936 = vand.u32 %v3195, 2147483648
  %v3937 = vor.u32 1.1754944e-38, %v3936
  %v3938 = vsel %vm3935, %v3937, %v3933
  %v3939 = vmul.f32 %v2307, %v3938
  %v3940 = vrcp.pop %v3197
  %v3941 = vmul.f32 %v3197, %v3940
  %v3942 = vsub.f32 1.0, %v3941
  %v3943 = vmul.f32 %v3940, %v3942
  %v3944 = vadd.f32 %v3940, %v3943
  %vm3945 = vweird.f32 %v3197
  %vm3946 = vweird.f32 %v3940
  %vm3947 = vmor %vm3945, %vm3946
  %v3948 = vsel %vm3947, %v3940, %v3944
  %v3949 = vand.u32 2147483647, %v3197
  %vm3950 = vcmp.eq.f32.partialorder %v3949, 8.507059e+37
  %v3951 = vand.u32 %v3197, 2147483648
  %v3952 = vor.u32 1.1754944e-38, %v3951
  %v3953 = vsel %vm3950, %v3952, %v3948
  %v3954 = vmul.f32 %v2308, %v3953
  %v3955 = vrcp.pop %v3199
  %v3956 = vmul.f32 %v3199, %v3955
  %v3957 = vsub.f32 1.0, %v3956
  %v3958 = vmul.f32 %v3955, %v3957
  %v3959 = vadd.f32 %v3955, %v3958
  %vm3960 = vweird.f32 %v3199
  %vm3961 = vweird.f32 %v3955
  %vm3962 = vmor %vm3960, %vm3961
  %v3963 = vsel %vm3962, %v3955, %v3959
  %v3964 = vand.u32 2147483647, %v3199
  %vm3965 = vcmp.eq.f32.partialorder %v3964, 8.507059e+37
  %v3966 = vand.u32 %v3199, 2147483648
  %v3967 = vor.u32 1.1754944e-38, %v3966
  %v3968 = vsel %vm3965, %v3967, %v3963
  %v3969 = vmul.f32 %v2309, %v3968
  %v3970 = vrcp.pop %v3201
  %v3971 = vmul.f32 %v3201, %v3970
  %v3972 = vsub.f32 1.0, %v3971
  %v3973 = vmul.f32 %v3970, %v3972
  %v3974 = vadd.f32 %v3970, %v3973
  %vm3975 = vweird.f32 %v3201
  %vm3976 = vweird.f32 %v3970
  %vm3977 = vmor %vm3975, %vm3976
  %v3978 = vsel %vm3977, %v3970, %v3974
  %v3979 = vand.u32 2147483647, %v3201
  %vm3980 = vcmp.eq.f32.partialorder %v3979, 8.507059e+37
  %v3981 = vand.u32 %v3201, 2147483648
  %v3982 = vor.u32 1.1754944e-38, %v3981
  %v3983 = vsel %vm3980, %v3982, %v3978
  %v3984 = vmul.f32 %v2310, %v3983
  %v3985 = vrcp.pop %v3203
  %v3986 = vmul.f32 %v3203, %v3985
  %v3987 = vsub.f32 1.0, %v3986
  %v3988 = vmul.f32 %v3985, %v3987
  %v3989 = vadd.f32 %v3985, %v3988
  %vm3990 = vweird.f32 %v3203
  %vm3991 = vweird.f32 %v3985
  %vm3992 = vmor %vm3990, %vm3991
  %v3993 = vsel %vm3992, %v3985, %v3989
  %v3994 = vand.u32 2147483647, %v3203
  %vm3995 = vcmp.eq.f32.partialorder %v3994, 8.507059e+37
  %v3996 = vand.u32 %v3203, 2147483648
  %v3997 = vor.u32 1.1754944e-38, %v3996
  %v3998 = vsel %vm3995, %v3997, %v3993
  %v3999 = vmul.f32 %v2311, %v3998
  %v4000 = vrcp.pop %v3205
  %v4001 = vmul.f32 %v3205, %v4000
  %v4002 = vsub.f32 1.0, %v4001
  %v4003 = vmul.f32 %v4000, %v4002
  %v4004 = vadd.f32 %v4000, %v4003
  %vm4005 = vweird.f32 %v3205
  %vm4006 = vweird.f32 %v4000
  %vm4007 = vmor %vm4005, %vm4006
  %v4008 = vsel %vm4007, %v4000, %v4004
  %v4009 = vand.u32 2147483647, %v3205
  %vm4010 = vcmp.eq.f32.partialorder %v4009, 8.507059e+37
  %v4011 = vand.u32 %v3205, 2147483648
  %v4012 = vor.u32 1.1754944e-38, %v4011
  %v4013 = vsel %vm4010, %v4012, %v4008
  %v4014 = vmul.f32 %v2312, %v4013
  %v4015 = vrcp.pop %v3207
  %v4016 = vmul.f32 %v3207, %v4015
  %v4017 = vsub.f32 1.0, %v4016
  %v4018 = vmul.f32 %v4015, %v4017
  %v4019 = vadd.f32 %v4015, %v4018
  %vm4020 = vweird.f32 %v3207
  %vm4021 = vweird.f32 %v4015
  %vm4022 = vmor %vm4020, %vm4021
  %v4023 = vsel %vm4022, %v4015, %v4019
  %v4024 = vand.u32 2147483647, %v3207
  %vm4025 = vcmp.eq.f32.partialorder %v4024, 8.507059e+37
  %v4026 = vand.u32 %v3207, 2147483648
  %v4027 = vor.u32 1.1754944e-38, %v4026
  %v4028 = vsel %vm4025, %v4027, %v4023
  %v4029 = vmul.f32 %v2313, %v4028
  %v4030 = vrcp.pop %v3209
  %v4031 = vmul.f32 %v3209, %v4030
  %v4032 = vsub.f32 1.0, %v4031
  %v4033 = vmul.f32 %v4030, %v4032
  %v4034 = vadd.f32 %v4030, %v4033
  %vm4035 = vweird.f32 %v3209
  %vm4036 = vweird.f32 %v4030
  %vm4037 = vmor %vm4035, %vm4036
  %v4038 = vsel %vm4037, %v4030, %v4034
  %v4039 = vand.u32 2147483647, %v3209
  %vm4040 = vcmp.eq.f32.partialorder %v4039, 8.507059e+37
  %v4041 = vand.u32 %v3209, 2147483648
  %v4042 = vor.u32 1.1754944e-38, %v4041
  %v4043 = vsel %vm4040, %v4042, %v4038
  %v4044 = vmul.f32 %v2314, %v4043
  %v4045 = vrcp.pop %v3211
  %v4046 = vmul.f32 %v3211, %v4045
  %v4047 = vsub.f32 1.0, %v4046
  %v4048 = vmul.f32 %v4045, %v4047
  %v4049 = vadd.f32 %v4045, %v4048
  %vm4050 = vweird.f32 %v3211
  %vm4051 = vweird.f32 %v4045
  %vm4052 = vmor %vm4050, %vm4051
  %v4053 = vsel %vm4052, %v4045, %v4049
  %v4054 = vand.u32 2147483647, %v3211
  %vm4055 = vcmp.eq.f32.partialorder %v4054, 8.507059e+37
  %v4056 = vand.u32 %v3211, 2147483648
  %v4057 = vor.u32 1.1754944e-38, %v4056
  %v4058 = vsel %vm4055, %v4057, %v4053
  %v4059 = vmul.f32 %v2315, %v4058
  %v4060 = vrcp.pop %v3213
  %v4061 = vmul.f32 %v3213, %v4060
  %v4062 = vsub.f32 1.0, %v4061
  %v4063 = vmul.f32 %v4060, %v4062
  %v4064 = vadd.f32 %v4060, %v4063
  %vm4065 = vweird.f32 %v3213
  %vm4066 = vweird.f32 %v4060
  %vm4067 = vmor %vm4065, %vm4066
  %v4068 = vsel %vm4067, %v4060, %v4064
  %v4069 = vand.u32 2147483647, %v3213
  %vm4070 = vcmp.eq.f32.partialorder %v4069, 8.507059e+37
  %v4071 = vand.u32 %v3213, 2147483648
  %v4072 = vor.u32 1.1754944e-38, %v4071
  %v4073 = vsel %vm4070, %v4072, %v4068
  %v4074 = vmul.f32 %v2316, %v4073
  %v4075 = vrcp.pop %v3215
  %v4076 = vmul.f32 %v3215, %v4075
  %v4077 = vsub.f32 1.0, %v4076
  %v4078 = vmul.f32 %v4075, %v4077
  %v4079 = vadd.f32 %v4075, %v4078
  %vm4080 = vweird.f32 %v3215
  %vm4081 = vweird.f32 %v4075
  %vm4082 = vmor %vm4080, %vm4081
  %v4083 = vsel %vm4082, %v4075, %v4079
  %v4084 = vand.u32 2147483647, %v3215
  %vm4085 = vcmp.eq.f32.partialorder %v4084, 8.507059e+37
  %v4086 = vand.u32 %v3215, 2147483648
  %v4087 = vor.u32 1.1754944e-38, %v4086
  %v4088 = vsel %vm4085, %v4087, %v4083
  %v4089 = vmul.f32 %v2317, %v4088
  %v4090 = vrcp.pop %v3217
  %v4091 = vmul.f32 %v3217, %v4090
  %v4092 = vsub.f32 1.0, %v4091
  %v4093 = vmul.f32 %v4090, %v4092
  %v4094 = vadd.f32 %v4090, %v4093
  %vm4095 = vweird.f32 %v3217
  %vm4096 = vweird.f32 %v4090
  %vm4097 = vmor %vm4095, %vm4096
  %v4098 = vsel %vm4097, %v4090, %v4094
  %v4099 = vand.u32 2147483647, %v3217
  %vm4100 = vcmp.eq.f32.partialorder %v4099, 8.507059e+37
  %v4101 = vand.u32 %v3217, 2147483648
  %v4102 = vor.u32 1.1754944e-38, %v4101
  %v4103 = vsel %vm4100, %v4102, %v4098
  %v4104 = vmul.f32 %v2318, %v4103
  %v4105 = vrcp.pop %v3219
  %v4106 = vmul.f32 %v3219, %v4105
  %v4107 = vsub.f32 1.0, %v4106
  %v4108 = vmul.f32 %v4105, %v4107
  %v4109 = vadd.f32 %v4105, %v4108
  %vm4110 = vweird.f32 %v3219
  %vm4111 = vweird.f32 %v4105
  %vm4112 = vmor %vm4110, %vm4111
  %v4113 = vsel %vm4112, %v4105, %v4109
  %v4114 = vand.u32 2147483647, %v3219
  %vm4115 = vcmp.eq.f32.partialorder %v4114, 8.507059e+37
  %v4116 = vand.u32 %v3219, 2147483648
  %v4117 = vor.u32 1.1754944e-38, %v4116
  %v4118 = vsel %vm4115, %v4117, %v4113
  %v4119 = vmul.f32 %v2319, %v4118
  %v4120 = vrcp.pop %v3221
  %v4121 = vmul.f32 %v3221, %v4120
  %v4122 = vsub.f32 1.0, %v4121
  %v4123 = vmul.f32 %v4120, %v4122
  %v4124 = vadd.f32 %v4120, %v4123
  %vm4125 = vweird.f32 %v3221
  %vm4126 = vweird.f32 %v4120
  %vm4127 = vmor %vm4125, %vm4126
  %v4128 = vsel %vm4127, %v4120, %v4124
  %v4129 = vand.u32 2147483647, %v3221
  %vm4130 = vcmp.eq.f32.partialorder %v4129, 8.507059e+37
  %v4131 = vand.u32 %v3221, 2147483648
  %v4132 = vor.u32 1.1754944e-38, %v4131
  %v4133 = vsel %vm4130, %v4132, %v4128
  %v4134 = vmul.f32 %v2320, %v4133
  %v4135 = vrcp.pop %v3223
  %v4136 = vmul.f32 %v3223, %v4135
  %v4137 = vsub.f32 1.0, %v4136
  %v4138 = vmul.f32 %v4135, %v4137
  %v4139 = vadd.f32 %v4135, %v4138
  %vm4140 = vweird.f32 %v3223
  %vm4141 = vweird.f32 %v4135
  %vm4142 = vmor %vm4140, %vm4141
  %v4143 = vsel %vm4142, %v4135, %v4139
  %v4144 = vand.u32 2147483647, %v3223
  %vm4145 = vcmp.eq.f32.partialorder %v4144, 8.507059e+37
  %v4146 = vand.u32 %v3223, 2147483648
  %v4147 = vor.u32 1.1754944e-38, %v4146
  %v4148 = vsel %vm4145, %v4147, %v4143
  %v4149 = vmul.f32 %v2321, %v4148
  %v4150 = vrcp.pop %v3225
  %v4151 = vmul.f32 %v3225, %v4150
  %v4152 = vsub.f32 1.0, %v4151
  %v4153 = vmul.f32 %v4150, %v4152
  %v4154 = vadd.f32 %v4150, %v4153
  %vm4155 = vweird.f32 %v3225
  %vm4156 = vweird.f32 %v4150
  %vm4157 = vmor %vm4155, %vm4156
  %v4158 = vsel %vm4157, %v4150, %v4154
  %v4159 = vand.u32 2147483647, %v3225
  %vm4160 = vcmp.eq.f32.partialorder %v4159, 8.507059e+37
  %v4161 = vand.u32 %v3225, 2147483648
  %v4162 = vor.u32 1.1754944e-38, %v4161
  %v4163 = vsel %vm4160, %v4162, %v4158
  %v4164 = vmul.f32 %v2322, %v4163
  %v4165 = vrcp.pop %v3227
  %v4166 = vmul.f32 %v3227, %v4165
  %v4167 = vsub.f32 1.0, %v4166
  %v4168 = vmul.f32 %v4165, %v4167
  %v4169 = vadd.f32 %v4165, %v4168
  %vm4170 = vweird.f32 %v3227
  %vm4171 = vweird.f32 %v4165
  %vm4172 = vmor %vm4170, %vm4171
  %v4173 = vsel %vm4172, %v4165, %v4169
  %v4174 = vand.u32 2147483647, %v3227
  %vm4175 = vcmp.eq.f32.partialorder %v4174, 8.507059e+37
  %v4176 = vand.u32 %v3227, 2147483648
  %v4177 = vor.u32 1.1754944e-38, %v4176
  %v4178 = vsel %vm4175, %v4177, %v4173
  %v4179 = vmul.f32 %v2323, %v4178
  %v4180 = vrcp.pop %v3229
  %v4181 = vmul.f32 %v3229, %v4180
  %v4182 = vsub.f32 1.0, %v4181
  %v4183 = vmul.f32 %v4180, %v4182
  %v4184 = vadd.f32 %v4180, %v4183
  %vm4185 = vweird.f32 %v3229
  %vm4186 = vweird.f32 %v4180
  %vm4187 = vmor %vm4185, %vm4186
  %v4188 = vsel %vm4187, %v4180, %v4184
  %v4189 = vand.u32 2147483647, %v3229
  %vm4190 = vcmp.eq.f32.partialorder %v4189, 8.507059e+37
  %v4191 = vand.u32 %v3229, 2147483648
  %v4192 = vor.u32 1.1754944e-38, %v4191
  %v4193 = vsel %vm4190, %v4192, %v4188
  %v4194 = vmul.f32 %v2324, %v4193
  %v4195 = vrcp.pop %v3231
  %v4196 = vmul.f32 %v3231, %v4195
  %v4197 = vsub.f32 1.0, %v4196
  %v4198 = vmul.f32 %v4195, %v4197
  %v4199 = vadd.f32 %v4195, %v4198
  %vm4200 = vweird.f32 %v3231
  %vm4201 = vweird.f32 %v4195
  %vm4202 = vmor %vm4200, %vm4201
  %v4203 = vsel %vm4202, %v4195, %v4199
  %v4204 = vand.u32 2147483647, %v3231
  %vm4205 = vcmp.eq.f32.partialorder %v4204, 8.507059e+37
  %v4206 = vand.u32 %v3231, 2147483648
  %v4207 = vor.u32 1.1754944e-38, %v4206
  %v4208 = vsel %vm4205, %v4207, %v4203
  %v4209 = vmul.f32 %v2325, %v4208
  %v4210 = vrcp.pop %v3233
  %v4211 = vmul.f32 %v3233, %v4210
  %v4212 = vsub.f32 1.0, %v4211
  %v4213 = vmul.f32 %v4210, %v4212
  %v4214 = vadd.f32 %v4210, %v4213
  %vm4215 = vweird.f32 %v3233
  %vm4216 = vweird.f32 %v4210
  %vm4217 = vmor %vm4215, %vm4216
  %v4218 = vsel %vm4217, %v4210, %v4214
  %v4219 = vand.u32 2147483647, %v3233
  %vm4220 = vcmp.eq.f32.partialorder %v4219, 8.507059e+37
  %v4221 = vand.u32 %v3233, 2147483648
  %v4222 = vor.u32 1.1754944e-38, %v4221
  %v4223 = vsel %vm4220, %v4222, %v4218
  %v4224 = vmul.f32 %v2326, %v4223
  %v4225 = vrcp.pop %v3235
  %v4226 = vmul.f32 %v3235, %v4225
  %v4227 = vsub.f32 1.0, %v4226
  %v4228 = vmul.f32 %v4225, %v4227
  %v4229 = vadd.f32 %v4225, %v4228
  %vm4230 = vweird.f32 %v3235
  %vm4231 = vweird.f32 %v4225
  %vm4232 = vmor %vm4230, %vm4231
  %v4233 = vsel %vm4232, %v4225, %v4229
  %v4234 = vand.u32 2147483647, %v3235
  %vm4235 = vcmp.eq.f32.partialorder %v4234, 8.507059e+37
  %v4236 = vand.u32 %v3235, 2147483648
  %v4237 = vor.u32 1.1754944e-38, %v4236
  %v4238 = vsel %vm4235, %v4237, %v4233
  %v4239 = vmul.f32 %v2327, %v4238
  %v4240 = vrcp.pop %v3237
  %v4241 = vmul.f32 %v3237, %v4240
  %v4242 = vsub.f32 1.0, %v4241
  %v4243 = vmul.f32 %v4240, %v4242
  %v4244 = vadd.f32 %v4240, %v4243
  %vm4245 = vweird.f32 %v3237
  %vm4246 = vweird.f32 %v4240
  %vm4247 = vmor %vm4245, %vm4246
  %v4248 = vsel %vm4247, %v4240, %v4244
  %v4249 = vand.u32 2147483647, %v3237
  %vm4250 = vcmp.eq.f32.partialorder %v4249, 8.507059e+37
  %v4251 = vand.u32 %v3237, 2147483648
  %v4252 = vor.u32 1.1754944e-38, %v4251
  %v4253 = vsel %vm4250, %v4252, %v4248
  %v4254 = vmul.f32 %v2328, %v4253
  %v4255 = vrcp.pop %v3239
  %v4256 = vmul.f32 %v3239, %v4255
  %v4257 = vsub.f32 1.0, %v4256
  %v4258 = vmul.f32 %v4255, %v4257
  %v4259 = vadd.f32 %v4255, %v4258
  %vm4260 = vweird.f32 %v3239
  %vm4261 = vweird.f32 %v4255
  %vm4262 = vmor %vm4260, %vm4261
  %v4263 = vsel %vm4262, %v4255, %v4259
  %v4264 = vand.u32 2147483647, %v3239
  %vm4265 = vcmp.eq.f32.partialorder %v4264, 8.507059e+37
  %v4266 = vand.u32 %v3239, 2147483648
  %v4267 = vor.u32 1.1754944e-38, %v4266
  %v4268 = vsel %vm4265, %v4267, %v4263
  %v4269 = vmul.f32 %v2329, %v4268
  %v4270 = vrcp.pop %v3241
  %v4271 = vmul.f32 %v3241, %v4270
  %v4272 = vsub.f32 1.0, %v4271
  %v4273 = vmul.f32 %v4270, %v4272
  %v4274 = vadd.f32 %v4270, %v4273
  %vm4275 = vweird.f32 %v3241
  %vm4276 = vweird.f32 %v4270
  %vm4277 = vmor %vm4275, %vm4276
  %v4278 = vsel %vm4277, %v4270, %v4274
  %v4279 = vand.u32 2147483647, %v3241
  %vm4280 = vcmp.eq.f32.partialorder %v4279, 8.507059e+37
  %v4281 = vand.u32 %v3241, 2147483648
  %v4282 = vor.u32 1.1754944e-38, %v4281
  %v4283 = vsel %vm4280, %v4282, %v4278
  %v4284 = vmul.f32 %v2330, %v4283
  %v4285 = vrcp.pop %v3243
  %v4286 = vmul.f32 %v3243, %v4285
  %v4287 = vsub.f32 1.0, %v4286
  %v4288 = vmul.f32 %v4285, %v4287
  %v4289 = vadd.f32 %v4285, %v4288
  %vm4290 = vweird.f32 %v3243
  %vm4291 = vweird.f32 %v4285
  %vm4292 = vmor %vm4290, %vm4291
  %v4293 = vsel %vm4292, %v4285, %v4289
  %v4294 = vand.u32 2147483647, %v3243
  %vm4295 = vcmp.eq.f32.partialorder %v4294, 8.507059e+37
  %v4296 = vand.u32 %v3243, 2147483648
  %v4297 = vor.u32 1.1754944e-38, %v4296
  %v4298 = vsel %vm4295, %v4297, %v4293
  %v4299 = vmul.f32 %v2331, %v4298
  %v4300 = vrcp.pop %v3245
  %v4301 = vmul.f32 %v3245, %v4300
  %v4302 = vsub.f32 1.0, %v4301
  %v4303 = vmul.f32 %v4300, %v4302
  %v4304 = vadd.f32 %v4300, %v4303
  %vm4305 = vweird.f32 %v3245
  %vm4306 = vweird.f32 %v4300
  %vm4307 = vmor %vm4305, %vm4306
  %v4308 = vsel %vm4307, %v4300, %v4304
  %v4309 = vand.u32 2147483647, %v3245
  %vm4310 = vcmp.eq.f32.partialorder %v4309, 8.507059e+37
  %v4311 = vand.u32 %v3245, 2147483648
  %v4312 = vor.u32 1.1754944e-38, %v4311
  %v4313 = vsel %vm4310, %v4312, %v4308
  %v4314 = vmul.f32 %v2332, %v4313
  %v4315 = vrcp.pop %v3247
  %v4316 = vmul.f32 %v3247, %v4315
  %v4317 = vsub.f32 1.0, %v4316
  %v4318 = vmul.f32 %v4315, %v4317
  %v4319 = vadd.f32 %v4315, %v4318
  %vm4320 = vweird.f32 %v3247
  %vm4321 = vweird.f32 %v4315
  %vm4322 = vmor %vm4320, %vm4321
  %v4323 = vsel %vm4322, %v4315, %v4319
  %v4324 = vand.u32 2147483647, %v3247
  %vm4325 = vcmp.eq.f32.partialorder %v4324, 8.507059e+37
  %v4326 = vand.u32 %v3247, 2147483648
  %v4327 = vor.u32 1.1754944e-38, %v4326
  %v4328 = vsel %vm4325, %v4327, %v4323
  %v4329 = vmul.f32 %v2333, %v4328
  %v4330 = vrcp.pop %v3249
  %v4331 = vmul.f32 %v3249, %v4330
  %v4332 = vsub.f32 1.0, %v4331
  %v4333 = vmul.f32 %v4330, %v4332
  %v4334 = vadd.f32 %v4330, %v4333
  %vm4335 = vweird.f32 %v3249
  %vm4336 = vweird.f32 %v4330
  %vm4337 = vmor %vm4335, %vm4336
  %v4338 = vsel %vm4337, %v4330, %v4334
  %v4339 = vand.u32 2147483647, %v3249
  %vm4340 = vcmp.eq.f32.partialorder %v4339, 8.507059e+37
  %v4341 = vand.u32 %v3249, 2147483648
  %v4342 = vor.u32 1.1754944e-38, %v4341
  %v4343 = vsel %vm4340, %v4342, %v4338
  %v4344 = vmul.f32 %v2334, %v4343
  %v4345 = vrcp.pop %v3251
  %v4346 = vmul.f32 %v3251, %v4345
  %v4347 = vsub.f32 1.0, %v4346
  %v4348 = vmul.f32 %v4345, %v4347
  %v4349 = vadd.f32 %v4345, %v4348
  %vm4350 = vweird.f32 %v3251
  %vm4351 = vweird.f32 %v4345
  %vm4352 = vmor %vm4350, %vm4351
  %v4353 = vsel %vm4352, %v4345, %v4349
  %v4354 = vand.u32 2147483647, %v3251
  %vm4355 = vcmp.eq.f32.partialorder %v4354, 8.507059e+37
  %v4356 = vand.u32 %v3251, 2147483648
  %v4357 = vor.u32 1.1754944e-38, %v4356
  %v4358 = vsel %vm4355, %v4357, %v4353
  %v4359 = vmul.f32 %v2335, %v4358
  %v4360 = vrcp.pop %v3253
  %v4361 = vmul.f32 %v3253, %v4360
  %v4362 = vsub.f32 1.0, %v4361
  %v4363 = vmul.f32 %v4360, %v4362
  %v4364 = vadd.f32 %v4360, %v4363
  %vm4365 = vweird.f32 %v3253
  %vm4366 = vweird.f32 %v4360
  %vm4367 = vmor %vm4365, %vm4366
  %v4368 = vsel %vm4367, %v4360, %v4364
  %v4369 = vand.u32 2147483647, %v3253
  %vm4370 = vcmp.eq.f32.partialorder %v4369, 8.507059e+37
  %v4371 = vand.u32 %v3253, 2147483648
  %v4372 = vor.u32 1.1754944e-38, %v4371
  %v4373 = vsel %vm4370, %v4372, %v4368
  %v4374 = vmul.f32 %v2336, %v4373
  %v4375 = vrcp.pop %v3255
  %v4376 = vmul.f32 %v3255, %v4375
  %v4377 = vsub.f32 1.0, %v4376
  %v4378 = vmul.f32 %v4375, %v4377
  %v4379 = vadd.f32 %v4375, %v4378
  %vm4380 = vweird.f32 %v3255
  %vm4381 = vweird.f32 %v4375
  %vm4382 = vmor %vm4380, %vm4381
  %v4383 = vsel %vm4382, %v4375, %v4379
  %v4384 = vand.u32 2147483647, %v3255
  %vm4385 = vcmp.eq.f32.partialorder %v4384, 8.507059e+37
  %v4386 = vand.u32 %v3255, 2147483648
  %v4387 = vor.u32 1.1754944e-38, %v4386
  %v4388 = vsel %vm4385, %v4387, %v4383
  %v4389 = vmul.f32 %v2337, %v4388
  %v4390 = vrcp.pop %v3257
  %v4391 = vmul.f32 %v3257, %v4390
  %v4392 = vsub.f32 1.0, %v4391
  %v4393 = vmul.f32 %v4390, %v4392
  %v4394 = vadd.f32 %v4390, %v4393
  %vm4395 = vweird.f32 %v3257
  %vm4396 = vweird.f32 %v4390
  %vm4397 = vmor %vm4395, %vm4396
  %v4398 = vsel %vm4397, %v4390, %v4394
  %v4399 = vand.u32 2147483647, %v3257
  %vm4400 = vcmp.eq.f32.partialorder %v4399, 8.507059e+37
  %v4401 = vand.u32 %v3257, 2147483648
  %v4402 = vor.u32 1.1754944e-38, %v4401
  %v4403 = vsel %vm4400, %v4402, %v4398
  %v4404 = vmul.f32 %v2338, %v4403
  %v4405 = vrcp.pop %v3259
  %v4406 = vmul.f32 %v3259, %v4405
  %v4407 = vsub.f32 1.0, %v4406
  %v4408 = vmul.f32 %v4405, %v4407
  %v4409 = vadd.f32 %v4405, %v4408
  %vm4410 = vweird.f32 %v3259
  %vm4411 = vweird.f32 %v4405
  %vm4412 = vmor %vm4410, %vm4411
  %v4413 = vsel %vm4412, %v4405, %v4409
  %v4414 = vand.u32 2147483647, %v3259
  %vm4415 = vcmp.eq.f32.partialorder %v4414, 8.507059e+37
  %v4416 = vand.u32 %v3259, 2147483648
  %v4417 = vor.u32 1.1754944e-38, %v4416
  %v4418 = vsel %vm4415, %v4417, %v4413
  %v4419 = vmul.f32 %v2339, %v4418
  %v4420 = vrcp.pop %v3261
  %v4421 = vmul.f32 %v3261, %v4420
  %v4422 = vsub.f32 1.0, %v4421
  %v4423 = vmul.f32 %v4420, %v4422
  %v4424 = vadd.f32 %v4420, %v4423
  %vm4425 = vweird.f32 %v3261
  %vm4426 = vweird.f32 %v4420
  %vm4427 = vmor %vm4425, %vm4426
  %v4428 = vsel %vm4427, %v4420, %v4424
  %v4429 = vand.u32 2147483647, %v3261
  %vm4430 = vcmp.eq.f32.partialorder %v4429, 8.507059e+37
  %v4431 = vand.u32 %v3261, 2147483648
  %v4432 = vor.u32 1.1754944e-38, %v4431
  %v4433 = vsel %vm4430, %v4432, %v4428
  %v4434 = vmul.f32 %v2340, %v4433
  %v4435 = vrcp.pop %v3263
  %v4436 = vmul.f32 %v3263, %v4435
  %v4437 = vsub.f32 1.0, %v4436
  %v4438 = vmul.f32 %v4435, %v4437
  %v4439 = vadd.f32 %v4435, %v4438
  %vm4440 = vweird.f32 %v3263
  %vm4441 = vweird.f32 %v4435
  %vm4442 = vmor %vm4440, %vm4441
  %v4443 = vsel %vm4442, %v4435, %v4439
  %v4444 = vand.u32 2147483647, %v3263
  %vm4445 = vcmp.eq.f32.partialorder %v4444, 8.507059e+37
  %v4446 = vand.u32 %v3263, 2147483648
  %v4447 = vor.u32 1.1754944e-38, %v4446
  %v4448 = vsel %vm4445, %v4447, %v4443
  %v4449 = vmul.f32 %v2341, %v4448
  %v4450 = vrcp.pop %v3265
  %v4451 = vmul.f32 %v3265, %v4450
  %v4452 = vsub.f32 1.0, %v4451
  %v4453 = vmul.f32 %v4450, %v4452
  %v4454 = vadd.f32 %v4450, %v4453
  %vm4455 = vweird.f32 %v3265
  %vm4456 = vweird.f32 %v4450
  %vm4457 = vmor %vm4455, %vm4456
  %v4458 = vsel %vm4457, %v4450, %v4454
  %v4459 = vand.u32 2147483647, %v3265
  %vm4460 = vcmp.eq.f32.partialorder %v4459, 8.507059e+37
  %v4461 = vand.u32 %v3265, 2147483648
  %v4462 = vor.u32 1.1754944e-38, %v4461
  %v4463 = vsel %vm4460, %v4462, %v4458
  %v4464 = vmul.f32 %v2342, %v4463
  %v4465 = vrcp.pop %v3267
  %v4466 = vmul.f32 %v3267, %v4465
  %v4467 = vsub.f32 1.0, %v4466
  %v4468 = vmul.f32 %v4465, %v4467
  %v4469 = vadd.f32 %v4465, %v4468
  %vm4470 = vweird.f32 %v3267
  %vm4471 = vweird.f32 %v4465
  %vm4472 = vmor %vm4470, %vm4471
  %v4473 = vsel %vm4472, %v4465, %v4469
  %v4474 = vand.u32 2147483647, %v3267
  %vm4475 = vcmp.eq.f32.partialorder %v4474, 8.507059e+37
  %v4476 = vand.u32 %v3267, 2147483648
  %v4477 = vor.u32 1.1754944e-38, %v4476
  %v4478 = vsel %vm4475, %v4477, %v4473
  %v4479 = vmul.f32 %v2343, %v4478
  %v4480 = vrcp.pop %v3269
  %v4481 = vmul.f32 %v3269, %v4480
  %v4482 = vsub.f32 1.0, %v4481
  %v4483 = vmul.f32 %v4480, %v4482
  %v4484 = vadd.f32 %v4480, %v4483
  %vm4485 = vweird.f32 %v3269
  %vm4486 = vweird.f32 %v4480
  %vm4487 = vmor %vm4485, %vm4486
  %v4488 = vsel %vm4487, %v4480, %v4484
  %v4489 = vand.u32 2147483647, %v3269
  %vm4490 = vcmp.eq.f32.partialorder %v4489, 8.507059e+37
  %v4491 = vand.u32 %v3269, 2147483648
  %v4492 = vor.u32 1.1754944e-38, %v4491
  %v4493 = vsel %vm4490, %v4492, %v4488
  %v4494 = vmul.f32 %v2344, %v4493
  %v4495 = vrcp.pop %v3271
  %v4496 = vmul.f32 %v3271, %v4495
  %v4497 = vsub.f32 1.0, %v4496
  %v4498 = vmul.f32 %v4495, %v4497
  %v4499 = vadd.f32 %v4495, %v4498
  %vm4500 = vweird.f32 %v3271
  %vm4501 = vweird.f32 %v4495
  %vm4502 = vmor %vm4500, %vm4501
  %v4503 = vsel %vm4502, %v4495, %v4499
  %v4504 = vand.u32 2147483647, %v3271
  %vm4505 = vcmp.eq.f32.partialorder %v4504, 8.507059e+37
  %v4506 = vand.u32 %v3271, 2147483648
  %v4507 = vor.u32 1.1754944e-38, %v4506
  %v4508 = vsel %vm4505, %v4507, %v4503
  %v4509 = vmul.f32 %v2345, %v4508
  %v4510 = vrcp.pop %v3273
  %v4511 = vmul.f32 %v3273, %v4510
  %v4512 = vsub.f32 1.0, %v4511
  %v4513 = vmul.f32 %v4510, %v4512
  %v4514 = vadd.f32 %v4510, %v4513
  %vm4515 = vweird.f32 %v3273
  %vm4516 = vweird.f32 %v4510
  %vm4517 = vmor %vm4515, %vm4516
  %v4518 = vsel %vm4517, %v4510, %v4514
  %v4519 = vand.u32 2147483647, %v3273
  %vm4520 = vcmp.eq.f32.partialorder %v4519, 8.507059e+37
  %v4521 = vand.u32 %v3273, 2147483648
  %v4522 = vor.u32 1.1754944e-38, %v4521
  %v4523 = vsel %vm4520, %v4522, %v4518
  %v4524 = vmul.f32 %v2346, %v4523
  %v4525 = vrcp.pop %v3275
  %v4526 = vmul.f32 %v3275, %v4525
  %v4527 = vsub.f32 1.0, %v4526
  %v4528 = vmul.f32 %v4525, %v4527
  %v4529 = vadd.f32 %v4525, %v4528
  %vm4530 = vweird.f32 %v3275
  %vm4531 = vweird.f32 %v4525
  %vm4532 = vmor %vm4530, %vm4531
  %v4533 = vsel %vm4532, %v4525, %v4529
  %v4534 = vand.u32 2147483647, %v3275
  %vm4535 = vcmp.eq.f32.partialorder %v4534, 8.507059e+37
  %v4536 = vand.u32 %v3275, 2147483648
  %v4537 = vor.u32 1.1754944e-38, %v4536
  %v4538 = vsel %vm4535, %v4537, %v4533
  %v4539 = vmul.f32 %v2347, %v4538
  %v4540 = vrcp.pop %v3277
  %v4541 = vmul.f32 %v3277, %v4540
  %v4542 = vsub.f32 1.0, %v4541
  %v4543 = vmul.f32 %v4540, %v4542
  %v4544 = vadd.f32 %v4540, %v4543
  %vm4545 = vweird.f32 %v3277
  %vm4546 = vweird.f32 %v4540
  %vm4547 = vmor %vm4545, %vm4546
  %v4548 = vsel %vm4547, %v4540, %v4544
  %v4549 = vand.u32 2147483647, %v3277
  %vm4550 = vcmp.eq.f32.partialorder %v4549, 8.507059e+37
  %v4551 = vand.u32 %v3277, 2147483648
  %v4552 = vor.u32 1.1754944e-38, %v4551
  %v4553 = vsel %vm4550, %v4552, %v4548
  %v4554 = vmul.f32 %v2348, %v4553
  %v4555 = vrcp.pop %v3279
  %v4556 = vmul.f32 %v3279, %v4555
  %v4557 = vsub.f32 1.0, %v4556
  %v4558 = vmul.f32 %v4555, %v4557
  %v4559 = vadd.f32 %v4555, %v4558
  %vm4560 = vweird.f32 %v3279
  %vm4561 = vweird.f32 %v4555
  %vm4562 = vmor %vm4560, %vm4561
  %v4563 = vsel %vm4562, %v4555, %v4559
  %v4564 = vand.u32 2147483647, %v3279
  %vm4565 = vcmp.eq.f32.partialorder %v4564, 8.507059e+37
  %v4566 = vand.u32 %v3279, 2147483648
  %v4567 = vor.u32 1.1754944e-38, %v4566
  %v4568 = vsel %vm4565, %v4567, %v4563
  %v4569 = vmul.f32 %v2349, %v4568
  %v4570 = vrcp.pop %v3281
  %v4571 = vmul.f32 %v3281, %v4570
  %v4572 = vsub.f32 1.0, %v4571
  %v4573 = vmul.f32 %v4570, %v4572
  %v4574 = vadd.f32 %v4570, %v4573
  %vm4575 = vweird.f32 %v3281
  %vm4576 = vweird.f32 %v4570
  %vm4577 = vmor %vm4575, %vm4576
  %v4578 = vsel %vm4577, %v4570, %v4574
  %v4579 = vand.u32 2147483647, %v3281
  %vm4580 = vcmp.eq.f32.partialorder %v4579, 8.507059e+37
  %v4581 = vand.u32 %v3281, 2147483648
  %v4582 = vor.u32 1.1754944e-38, %v4581
  %v4583 = vsel %vm4580, %v4582, %v4578
  %v4584 = vmul.f32 %v2350, %v4583
  %v4585 = vrcp.pop %v3283
  %v4586 = vmul.f32 %v3283, %v4585
  %v4587 = vsub.f32 1.0, %v4586
  %v4588 = vmul.f32 %v4585, %v4587
  %v4589 = vadd.f32 %v4585, %v4588
  %vm4590 = vweird.f32 %v3283
  %vm4591 = vweird.f32 %v4585
  %vm4592 = vmor %vm4590, %vm4591
  %v4593 = vsel %vm4592, %v4585, %v4589
  %v4594 = vand.u32 2147483647, %v3283
  %vm4595 = vcmp.eq.f32.partialorder %v4594, 8.507059e+37
  %v4596 = vand.u32 %v3283, 2147483648
  %v4597 = vor.u32 1.1754944e-38, %v4596
  %v4598 = vsel %vm4595, %v4597, %v4593
  %v4599 = vmul.f32 %v2351, %v4598
  %v4600 = vrcp.pop %v3285
  %v4601 = vmul.f32 %v3285, %v4600
  %v4602 = vsub.f32 1.0, %v4601
  %v4603 = vmul.f32 %v4600, %v4602
  %v4604 = vadd.f32 %v4600, %v4603
  %vm4605 = vweird.f32 %v3285
  %vm4606 = vweird.f32 %v4600
  %vm4607 = vmor %vm4605, %vm4606
  %v4608 = vsel %vm4607, %v4600, %v4604
  %v4609 = vand.u32 2147483647, %v3285
  %vm4610 = vcmp.eq.f32.partialorder %v4609, 8.507059e+37
  %v4611 = vand.u32 %v3285, 2147483648
  %v4612 = vor.u32 1.1754944e-38, %v4611
  %v4613 = vsel %vm4610, %v4612, %v4608
  %v4614 = vmul.f32 %v2352, %v4613
  %v4615 = vrcp.pop %v3287
  %v4616 = vmul.f32 %v3287, %v4615
  %v4617 = vsub.f32 1.0, %v4616
  %v4618 = vmul.f32 %v4615, %v4617
  %v4619 = vadd.f32 %v4615, %v4618
  %vm4620 = vweird.f32 %v3287
  %vm4621 = vweird.f32 %v4615
  %vm4622 = vmor %vm4620, %vm4621
  %v4623 = vsel %vm4622, %v4615, %v4619
  %v4624 = vand.u32 2147483647, %v3287
  %vm4625 = vcmp.eq.f32.partialorder %v4624, 8.507059e+37
  %v4626 = vand.u32 %v3287, 2147483648
  %v4627 = vor.u32 1.1754944e-38, %v4626
  %v4628 = vsel %vm4625, %v4627, %v4623
  %v4629 = vmul.f32 %v2353, %v4628
  %v4630 = vrcp.pop %v3289
  %v4631 = vmul.f32 %v3289, %v4630
  %v4632 = vsub.f32 1.0, %v4631
  %v4633 = vmul.f32 %v4630, %v4632
  %v4634 = vadd.f32 %v4630, %v4633
  %vm4635 = vweird.f32 %v3289
  %vm4636 = vweird.f32 %v4630
  %vm4637 = vmor %vm4635, %vm4636
  %v4638 = vsel %vm4637, %v4630, %v4634
  %v4639 = vand.u32 2147483647, %v3289
  %vm4640 = vcmp.eq.f32.partialorder %v4639, 8.507059e+37
  %v4641 = vand.u32 %v3289, 2147483648
  %v4642 = vor.u32 1.1754944e-38, %v4641
  %v4643 = vsel %vm4640, %v4642, %v4638
  %v4644 = vmul.f32 %v2354, %v4643
  %v4645 = vrcp.pop %v3291
  %v4646 = vmul.f32 %v3291, %v4645
  %v4647 = vsub.f32 1.0, %v4646
  %v4648 = vmul.f32 %v4645, %v4647
  %v4649 = vadd.f32 %v4645, %v4648
  %vm4650 = vweird.f32 %v3291
  %vm4651 = vweird.f32 %v4645
  %vm4652 = vmor %vm4650, %vm4651
  %v4653 = vsel %vm4652, %v4645, %v4649
  %v4654 = vand.u32 2147483647, %v3291
  %vm4655 = vcmp.eq.f32.partialorder %v4654, 8.507059e+37
  %v4656 = vand.u32 %v3291, 2147483648
  %v4657 = vor.u32 1.1754944e-38, %v4656
  %v4658 = vsel %vm4655, %v4657, %v4653
  %v4659 = vmul.f32 %v2355, %v4658
  %v4660 = vrcp.pop %v3293
  %v4661 = vmul.f32 %v3293, %v4660
  %v4662 = vsub.f32 1.0, %v4661
  %v4663 = vmul.f32 %v4660, %v4662
  %v4664 = vadd.f32 %v4660, %v4663
  %vm4665 = vweird.f32 %v3293
  %vm4666 = vweird.f32 %v4660
  %vm4667 = vmor %vm4665, %vm4666
  %v4668 = vsel %vm4667, %v4660, %v4664
  %v4669 = vand.u32 2147483647, %v3293
  %vm4670 = vcmp.eq.f32.partialorder %v4669, 8.507059e+37
  %v4671 = vand.u32 %v3293, 2147483648
  %v4672 = vor.u32 1.1754944e-38, %v4671
  %v4673 = vsel %vm4670, %v4672, %v4668
  %v4674 = vmul.f32 %v2356, %v4673
  %v4675 = vrcp.pop %v3295
  %v4676 = vmul.f32 %v3295, %v4675
  %v4677 = vsub.f32 1.0, %v4676
  %v4678 = vmul.f32 %v4675, %v4677
  %v4679 = vadd.f32 %v4675, %v4678
  %vm4680 = vweird.f32 %v3295
  %vm4681 = vweird.f32 %v4675
  %vm4682 = vmor %vm4680, %vm4681
  %v4683 = vsel %vm4682, %v4675, %v4679
  %v4684 = vand.u32 2147483647, %v3295
  %vm4685 = vcmp.eq.f32.partialorder %v4684, 8.507059e+37
  %v4686 = vand.u32 %v3295, 2147483648
  %v4687 = vor.u32 1.1754944e-38, %v4686
  %v4688 = vsel %vm4685, %v4687, %v4683
  %v4689 = vmul.f32 %v2357, %v4688
  %v4690 = vrcp.pop %v3297
  %v4691 = vmul.f32 %v3297, %v4690
  %v4692 = vsub.f32 1.0, %v4691
  %v4693 = vmul.f32 %v4690, %v4692
  %v4694 = vadd.f32 %v4690, %v4693
  %vm4695 = vweird.f32 %v3297
  %vm4696 = vweird.f32 %v4690
  %vm4697 = vmor %vm4695, %vm4696
  %v4698 = vsel %vm4697, %v4690, %v4694
  %v4699 = vand.u32 2147483647, %v3297
  %vm4700 = vcmp.eq.f32.partialorder %v4699, 8.507059e+37
  %v4701 = vand.u32 %v3297, 2147483648
  %v4702 = vor.u32 1.1754944e-38, %v4701
  %v4703 = vsel %vm4700, %v4702, %v4698
  %v4704 = vmul.f32 %v2358, %v4703
  %v4705 = vrcp.pop %v3299
  %v4706 = vmul.f32 %v3299, %v4705
  %v4707 = vsub.f32 1.0, %v4706
  %v4708 = vmul.f32 %v4705, %v4707
  %v4709 = vadd.f32 %v4705, %v4708
  %vm4710 = vweird.f32 %v3299
  %vm4711 = vweird.f32 %v4705
  %vm4712 = vmor %vm4710, %vm4711
  %v4713 = vsel %vm4712, %v4705, %v4709
  %v4714 = vand.u32 2147483647, %v3299
  %vm4715 = vcmp.eq.f32.partialorder %v4714, 8.507059e+37
  %v4716 = vand.u32 %v3299, 2147483648
  %v4717 = vor.u32 1.1754944e-38, %v4716
  %v4718 = vsel %vm4715, %v4717, %v4713
  %v4719 = vmul.f32 %v2359, %v4718
  %v4720 = vrcp.pop %v3301
  %v4721 = vmul.f32 %v3301, %v4720
  %v4722 = vsub.f32 1.0, %v4721
  %v4723 = vmul.f32 %v4720, %v4722
  %v4724 = vadd.f32 %v4720, %v4723
  %vm4725 = vweird.f32 %v3301
  %vm4726 = vweird.f32 %v4720
  %vm4727 = vmor %vm4725, %vm4726
  %v4728 = vsel %vm4727, %v4720, %v4724
  %v4729 = vand.u32 2147483647, %v3301
  %vm4730 = vcmp.eq.f32.partialorder %v4729, 8.507059e+37
  %v4731 = vand.u32 %v3301, 2147483648
  %v4732 = vor.u32 1.1754944e-38, %v4731
  %v4733 = vsel %vm4730, %v4732, %v4728
  %v4734 = vmul.f32 %v2360, %v4733
  %v4735 = vrcp.pop %v3303
  %v4736 = vmul.f32 %v3303, %v4735
  %v4737 = vsub.f32 1.0, %v4736
  %v4738 = vmul.f32 %v4735, %v4737
  %v4739 = vadd.f32 %v4735, %v4738
  %vm4740 = vweird.f32 %v3303
  %vm4741 = vweird.f32 %v4735
  %vm4742 = vmor %vm4740, %vm4741
  %v4743 = vsel %vm4742, %v4735, %v4739
  %v4744 = vand.u32 2147483647, %v3303
  %vm4745 = vcmp.eq.f32.partialorder %v4744, 8.507059e+37
  %v4746 = vand.u32 %v3303, 2147483648
  %v4747 = vor.u32 1.1754944e-38, %v4746
  %v4748 = vsel %vm4745, %v4747, %v4743
  %v4749 = vmul.f32 %v2361, %v4748
  %v4750 = vrcp.pop %v3305
  %v4751 = vmul.f32 %v3305, %v4750
  %v4752 = vsub.f32 1.0, %v4751
  %v4753 = vmul.f32 %v4750, %v4752
  %v4754 = vadd.f32 %v4750, %v4753
  %vm4755 = vweird.f32 %v3305
  %vm4756 = vweird.f32 %v4750
  %vm4757 = vmor %vm4755, %vm4756
  %v4758 = vsel %vm4757, %v4750, %v4754
  %v4759 = vand.u32 2147483647, %v3305
  %vm4760 = vcmp.eq.f32.partialorder %v4759, 8.507059e+37
  %v4761 = vand.u32 %v3305, 2147483648
  %v4762 = vor.u32 1.1754944e-38, %v4761
  %v4763 = vsel %vm4760, %v4762, %v4758
  %v4764 = vmul.f32 %v2362, %v4763
  %v4765 = vrcp.pop %v3307
  %v4766 = vmul.f32 %v3307, %v4765
  %v4767 = vsub.f32 1.0, %v4766
  %v4768 = vmul.f32 %v4765, %v4767
  %v4769 = vadd.f32 %v4765, %v4768
  %vm4770 = vweird.f32 %v3307
  %vm4771 = vweird.f32 %v4765
  %vm4772 = vmor %vm4770, %vm4771
  %v4773 = vsel %vm4772, %v4765, %v4769
  %v4774 = vand.u32 2147483647, %v3307
  %vm4775 = vcmp.eq.f32.partialorder %v4774, 8.507059e+37
  %v4776 = vand.u32 %v3307, 2147483648
  %v4777 = vor.u32 1.1754944e-38, %v4776
  %v4778 = vsel %vm4775, %v4777, %v4773
  %v4779 = vmul.f32 %v2363, %v4778
  %v4780 = vrcp.pop %v3309
  %v4781 = vmul.f32 %v3309, %v4780
  %v4782 = vsub.f32 1.0, %v4781
  %v4783 = vmul.f32 %v4780, %v4782
  %v4784 = vadd.f32 %v4780, %v4783
  %vm4785 = vweird.f32 %v3309
  %vm4786 = vweird.f32 %v4780
  %vm4787 = vmor %vm4785, %vm4786
  %v4788 = vsel %vm4787, %v4780, %v4784
  %v4789 = vand.u32 2147483647, %v3309
  %vm4790 = vcmp.eq.f32.partialorder %v4789, 8.507059e+37
  %v4791 = vand.u32 %v3309, 2147483648
  %v4792 = vor.u32 1.1754944e-38, %v4791
  %v4793 = vsel %vm4790, %v4792, %v4788
  %v4794 = vmul.f32 %v2364, %v4793
  %v4795 = vrcp.pop %v3311
  %v4796 = vmul.f32 %v3311, %v4795
  %v4797 = vsub.f32 1.0, %v4796
  %v4798 = vmul.f32 %v4795, %v4797
  %v4799 = vadd.f32 %v4795, %v4798
  %vm4800 = vweird.f32 %v3311
  %vm4801 = vweird.f32 %v4795
  %vm4802 = vmor %vm4800, %vm4801
  %v4803 = vsel %vm4802, %v4795, %v4799
  %v4804 = vand.u32 2147483647, %v3311
  %vm4805 = vcmp.eq.f32.partialorder %v4804, 8.507059e+37
  %v4806 = vand.u32 %v3311, 2147483648
  %v4807 = vor.u32 1.1754944e-38, %v4806
  %v4808 = vsel %vm4805, %v4807, %v4803
  %v4809 = vmul.f32 %v2365, %v4808
  %v4810 = vrcp.pop %v3313
  %v4811 = vmul.f32 %v3313, %v4810
  %v4812 = vsub.f32 1.0, %v4811
  %v4813 = vmul.f32 %v4810, %v4812
  %v4814 = vadd.f32 %v4810, %v4813
  %vm4815 = vweird.f32 %v3313
  %vm4816 = vweird.f32 %v4810
  %vm4817 = vmor %vm4815, %vm4816
  %v4818 = vsel %vm4817, %v4810, %v4814
  %v4819 = vand.u32 2147483647, %v3313
  %vm4820 = vcmp.eq.f32.partialorder %v4819, 8.507059e+37
  %v4821 = vand.u32 %v3313, 2147483648
  %v4822 = vor.u32 1.1754944e-38, %v4821
  %v4823 = vsel %vm4820, %v4822, %v4818
  %v4824 = vmul.f32 %v2366, %v4823
  %v4825 = vrcp.pop %v3315
  %v4826 = vmul.f32 %v3315, %v4825
  %v4827 = vsub.f32 1.0, %v4826
  %v4828 = vmul.f32 %v4825, %v4827
  %v4829 = vadd.f32 %v4825, %v4828
  %vm4830 = vweird.f32 %v3315
  %vm4831 = vweird.f32 %v4825
  %vm4832 = vmor %vm4830, %vm4831
  %v4833 = vsel %vm4832, %v4825, %v4829
  %v4834 = vand.u32 2147483647, %v3315
  %vm4835 = vcmp.eq.f32.partialorder %v4834, 8.507059e+37
  %v4836 = vand.u32 %v3315, 2147483648
  %v4837 = vor.u32 1.1754944e-38, %v4836
  %v4838 = vsel %vm4835, %v4837, %v4833
  %v4839 = vmul.f32 %v2367, %v4838
  %v4840 = vrcp.pop %v3317
  %v4841 = vmul.f32 %v3317, %v4840
  %v4842 = vsub.f32 1.0, %v4841
  %v4843 = vmul.f32 %v4840, %v4842
  %v4844 = vadd.f32 %v4840, %v4843
  %vm4845 = vweird.f32 %v3317
  %vm4846 = vweird.f32 %v4840
  %vm4847 = vmor %vm4845, %vm4846
  %v4848 = vsel %vm4847, %v4840, %v4844
  %v4849 = vand.u32 2147483647, %v3317
  %vm4850 = vcmp.eq.f32.partialorder %v4849, 8.507059e+37
  %v4851 = vand.u32 %v3317, 2147483648
  %v4852 = vor.u32 1.1754944e-38, %v4851
  %v4853 = vsel %vm4850, %v4852, %v4848
  %v4854 = vmul.f32 %v2368, %v4853
  %v4855 = vrcp.pop %v3319
  %v4856 = vmul.f32 %v3319, %v4855
  %v4857 = vsub.f32 1.0, %v4856
  %v4858 = vmul.f32 %v4855, %v4857
  %v4859 = vadd.f32 %v4855, %v4858
  %vm4860 = vweird.f32 %v3319
  %vm4861 = vweird.f32 %v4855
  %vm4862 = vmor %vm4860, %vm4861
  %v4863 = vsel %vm4862, %v4855, %v4859
  %v4864 = vand.u32 2147483647, %v3319
  %vm4865 = vcmp.eq.f32.partialorder %v4864, 8.507059e+37
  %v4866 = vand.u32 %v3319, 2147483648
  %v4867 = vor.u32 1.1754944e-38, %v4866
  %v4868 = vsel %vm4865, %v4867, %v4863
  %v4869 = vmul.f32 %v2369, %v4868
  %v4870 = vrcp.pop %v3321
  %v4871 = vmul.f32 %v3321, %v4870
  %v4872 = vsub.f32 1.0, %v4871
  %v4873 = vmul.f32 %v4870, %v4872
  %v4874 = vadd.f32 %v4870, %v4873
  %vm4875 = vweird.f32 %v3321
  %vm4876 = vweird.f32 %v4870
  %vm4877 = vmor %vm4875, %vm4876
  %v4878 = vsel %vm4877, %v4870, %v4874
  %v4879 = vand.u32 2147483647, %v3321
  %vm4880 = vcmp.eq.f32.partialorder %v4879, 8.507059e+37
  %v4881 = vand.u32 %v3321, 2147483648
  %v4882 = vor.u32 1.1754944e-38, %v4881
  %v4883 = vsel %vm4880, %v4882, %v4878
  %v4884 = vmul.f32 %v2370, %v4883
  %v4885 = vrcp.pop %v3323
  %v4886 = vmul.f32 %v3323, %v4885
  %v4887 = vsub.f32 1.0, %v4886
  %v4888 = vmul.f32 %v4885, %v4887
  %v4889 = vadd.f32 %v4885, %v4888
  %vm4890 = vweird.f32 %v3323
  %vm4891 = vweird.f32 %v4885
  %vm4892 = vmor %vm4890, %vm4891
  %v4893 = vsel %vm4892, %v4885, %v4889
  %v4894 = vand.u32 2147483647, %v3323
  %vm4895 = vcmp.eq.f32.partialorder %v4894, 8.507059e+37
  %v4896 = vand.u32 %v3323, 2147483648
  %v4897 = vor.u32 1.1754944e-38, %v4896
  %v4898 = vsel %vm4895, %v4897, %v4893
  %v4899 = vmul.f32 %v2371, %v4898
  %v4900 = vrcp.pop %v3325
  %v4901 = vmul.f32 %v3325, %v4900
  %v4902 = vsub.f32 1.0, %v4901
  %v4903 = vmul.f32 %v4900, %v4902
  %v4904 = vadd.f32 %v4900, %v4903
  %vm4905 = vweird.f32 %v3325
  %vm4906 = vweird.f32 %v4900
  %vm4907 = vmor %vm4905, %vm4906
  %v4908 = vsel %vm4907, %v4900, %v4904
  %v4909 = vand.u32 2147483647, %v3325
  %vm4910 = vcmp.eq.f32.partialorder %v4909, 8.507059e+37
  %v4911 = vand.u32 %v3325, 2147483648
  %v4912 = vor.u32 1.1754944e-38, %v4911
  %v4913 = vsel %vm4910, %v4912, %v4908
  %v4914 = vmul.f32 %v2372, %v4913
  %v4915 = vrcp.pop %v3327
  %v4916 = vmul.f32 %v3327, %v4915
  %v4917 = vsub.f32 1.0, %v4916
  %v4918 = vmul.f32 %v4915, %v4917
  %v4919 = vadd.f32 %v4915, %v4918
  %vm4920 = vweird.f32 %v3327
  %vm4921 = vweird.f32 %v4915
  %vm4922 = vmor %vm4920, %vm4921
  %v4923 = vsel %vm4922, %v4915, %v4919
  %v4924 = vand.u32 2147483647, %v3327
  %vm4925 = vcmp.eq.f32.partialorder %v4924, 8.507059e+37
  %v4926 = vand.u32 %v3327, 2147483648
  %v4927 = vor.u32 1.1754944e-38, %v4926
  %v4928 = vsel %vm4925, %v4927, %v4923
  %v4929 = vmul.f32 %v2373, %v4928
  %v4930 = vrcp.pop %v3329
  %v4931 = vmul.f32 %v3329, %v4930
  %v4932 = vsub.f32 1.0, %v4931
  %v4933 = vmul.f32 %v4930, %v4932
  %v4934 = vadd.f32 %v4930, %v4933
  %vm4935 = vweird.f32 %v3329
  %vm4936 = vweird.f32 %v4930
  %vm4937 = vmor %vm4935, %vm4936
  %v4938 = vsel %vm4937, %v4930, %v4934
  %v4939 = vand.u32 2147483647, %v3329
  %vm4940 = vcmp.eq.f32.partialorder %v4939, 8.507059e+37
  %v4941 = vand.u32 %v3329, 2147483648
  %v4942 = vor.u32 1.1754944e-38, %v4941
  %v4943 = vsel %vm4940, %v4942, %v4938
  %v4944 = vmul.f32 %v2374, %v4943
  %v4945 = vrcp.pop %v3331
  %v4946 = vmul.f32 %v3331, %v4945
  %v4947 = vsub.f32 1.0, %v4946
  %v4948 = vmul.f32 %v4945, %v4947
  %v4949 = vadd.f32 %v4945, %v4948
  %vm4950 = vweird.f32 %v3331
  %vm4951 = vweird.f32 %v4945
  %vm4952 = vmor %vm4950, %vm4951
  %v4953 = vsel %vm4952, %v4945, %v4949
  %v4954 = vand.u32 2147483647, %v3331
  %vm4955 = vcmp.eq.f32.partialorder %v4954, 8.507059e+37
  %v4956 = vand.u32 %v3331, 2147483648
  %v4957 = vor.u32 1.1754944e-38, %v4956
  %v4958 = vsel %vm4955, %v4957, %v4953
  %v4959 = vmul.f32 %v2375, %v4958
  %v4960 = vrcp.pop %v3333
  %v4961 = vmul.f32 %v3333, %v4960
  %v4962 = vsub.f32 1.0, %v4961
  %v4963 = vmul.f32 %v4960, %v4962
  %v4964 = vadd.f32 %v4960, %v4963
  %vm4965 = vweird.f32 %v3333
  %vm4966 = vweird.f32 %v4960
  %vm4967 = vmor %vm4965, %vm4966
  %v4968 = vsel %vm4967, %v4960, %v4964
  %v4969 = vand.u32 2147483647, %v3333
  %vm4970 = vcmp.eq.f32.partialorder %v4969, 8.507059e+37
  %v4971 = vand.u32 %v3333, 2147483648
  %v4972 = vor.u32 1.1754944e-38, %v4971
  %v4973 = vsel %vm4970, %v4972, %v4968
  %v4974 = vmul.f32 %v2376, %v4973
  %v4975 = vrcp.pop %v3335
  %v4976 = vmul.f32 %v3335, %v4975
  %v4977 = vsub.f32 1.0, %v4976
  %v4978 = vmul.f32 %v4975, %v4977
  %v4979 = vadd.f32 %v4975, %v4978
  %vm4980 = vweird.f32 %v3335
  %vm4981 = vweird.f32 %v4975
  %vm4982 = vmor %vm4980, %vm4981
  %v4983 = vsel %vm4982, %v4975, %v4979
  %v4984 = vand.u32 2147483647, %v3335
  %vm4985 = vcmp.eq.f32.partialorder %v4984, 8.507059e+37
  %v4986 = vand.u32 %v3335, 2147483648
  %v4987 = vor.u32 1.1754944e-38, %v4986
  %v4988 = vsel %vm4985, %v4987, %v4983
  %v4989 = vmul.f32 %v2377, %v4988
  %v4990 = vrcp.pop %v3337
  %v4991 = vmul.f32 %v3337, %v4990
  %v4992 = vsub.f32 1.0, %v4991
  %v4993 = vmul.f32 %v4990, %v4992
  %v4994 = vadd.f32 %v4990, %v4993
  %vm4995 = vweird.f32 %v3337
  %vm4996 = vweird.f32 %v4990
  %vm4997 = vmor %vm4995, %vm4996
  %v4998 = vsel %vm4997, %v4990, %v4994
  %v4999 = vand.u32 2147483647, %v3337
  %vm5000 = vcmp.eq.f32.partialorder %v4999, 8.507059e+37
  %v5001 = vand.u32 %v3337, 2147483648
  %v5002 = vor.u32 1.1754944e-38, %v5001
  %v5003 = vsel %vm5000, %v5002, %v4998
  %v5004 = vmul.f32 %v2378, %v5003
  %v5005 = vrcp.pop %v3339
  %v5006 = vmul.f32 %v3339, %v5005
  %v5007 = vsub.f32 1.0, %v5006
  %v5008 = vmul.f32 %v5005, %v5007
  %v5009 = vadd.f32 %v5005, %v5008
  %vm5010 = vweird.f32 %v3339
  %vm5011 = vweird.f32 %v5005
  %vm5012 = vmor %vm5010, %vm5011
  %v5013 = vsel %vm5012, %v5005, %v5009
  %v5014 = vand.u32 2147483647, %v3339
  %vm5015 = vcmp.eq.f32.partialorder %v5014, 8.507059e+37
  %v5016 = vand.u32 %v3339, 2147483648
  %v5017 = vor.u32 1.1754944e-38, %v5016
  %v5018 = vsel %vm5015, %v5017, %v5013
  %v5019 = vmul.f32 %v2379, %v5018
  %v5020 = vrcp.pop %v3341
  %v5021 = vmul.f32 %v3341, %v5020
  %v5022 = vsub.f32 1.0, %v5021
  %v5023 = vmul.f32 %v5020, %v5022
  %v5024 = vadd.f32 %v5020, %v5023
  %vm5025 = vweird.f32 %v3341
  %vm5026 = vweird.f32 %v5020
  %vm5027 = vmor %vm5025, %vm5026
  %v5028 = vsel %vm5027, %v5020, %v5024
  %v5029 = vand.u32 2147483647, %v3341
  %vm5030 = vcmp.eq.f32.partialorder %v5029, 8.507059e+37
  %v5031 = vand.u32 %v3341, 2147483648
  %v5032 = vor.u32 1.1754944e-38, %v5031
  %v5033 = vsel %vm5030, %v5032, %v5028
  %v5034 = vmul.f32 %v2380, %v5033
  %v5035 = vrcp.pop %v3343
  %v5036 = vmul.f32 %v3343, %v5035
  %v5037 = vsub.f32 1.0, %v5036
  %v5038 = vmul.f32 %v5035, %v5037
  %v5039 = vadd.f32 %v5035, %v5038
  %vm5040 = vweird.f32 %v3343
  %vm5041 = vweird.f32 %v5035
  %vm5042 = vmor %vm5040, %vm5041
  %v5043 = vsel %vm5042, %v5035, %v5039
  %v5044 = vand.u32 2147483647, %v3343
  %vm5045 = vcmp.eq.f32.partialorder %v5044, 8.507059e+37
  %v5046 = vand.u32 %v3343, 2147483648
  %v5047 = vor.u32 1.1754944e-38, %v5046
  %v5048 = vsel %vm5045, %v5047, %v5043
  %v5049 = vmul.f32 %v2381, %v5048
  %v5050 = vrcp.pop %v3345
  %v5051 = vmul.f32 %v3345, %v5050
  %v5052 = vsub.f32 1.0, %v5051
  %v5053 = vmul.f32 %v5050, %v5052
  %v5054 = vadd.f32 %v5050, %v5053
  %vm5055 = vweird.f32 %v3345
  %vm5056 = vweird.f32 %v5050
  %vm5057 = vmor %vm5055, %vm5056
  %v5058 = vsel %vm5057, %v5050, %v5054
  %v5059 = vand.u32 2147483647, %v3345
  %vm5060 = vcmp.eq.f32.partialorder %v5059, 8.507059e+37
  %v5061 = vand.u32 %v3345, 2147483648
  %v5062 = vor.u32 1.1754944e-38, %v5061
  %v5063 = vsel %vm5060, %v5062, %v5058
  %v5064 = vmul.f32 %v2382, %v5063
  %v5065 = vrcp.pop %v3347
  %v5066 = vmul.f32 %v3347, %v5065
  %v5067 = vsub.f32 1.0, %v5066
  %v5068 = vmul.f32 %v5065, %v5067
  %v5069 = vadd.f32 %v5065, %v5068
  %vm5070 = vweird.f32 %v3347
  %vm5071 = vweird.f32 %v5065
  %vm5072 = vmor %vm5070, %vm5071
  %v5073 = vsel %vm5072, %v5065, %v5069
  %v5074 = vand.u32 2147483647, %v3347
  %vm5075 = vcmp.eq.f32.partialorder %v5074, 8.507059e+37
  %v5076 = vand.u32 %v3347, 2147483648
  %v5077 = vor.u32 1.1754944e-38, %v5076
  %v5078 = vsel %vm5075, %v5077, %v5073
  %v5079 = vmul.f32 %v2383, %v5078
  %v5080 = vrcp.pop %v3349
  %v5081 = vmul.f32 %v3349, %v5080
  %v5082 = vsub.f32 1.0, %v5081
  %v5083 = vmul.f32 %v5080, %v5082
  %v5084 = vadd.f32 %v5080, %v5083
  %vm5085 = vweird.f32 %v3349
  %vm5086 = vweird.f32 %v5080
  %vm5087 = vmor %vm5085, %vm5086
  %v5088 = vsel %vm5087, %v5080, %v5084
  %v5089 = vand.u32 2147483647, %v3349
  %vm5090 = vcmp.eq.f32.partialorder %v5089, 8.507059e+37
  %v5091 = vand.u32 %v3349, 2147483648
  %v5092 = vor.u32 1.1754944e-38, %v5091
  %v5093 = vsel %vm5090, %v5092, %v5088
  %v5094 = vmul.f32 %v2384, %v5093
  %v5095 = vrcp.pop %v3351
  %v5096 = vmul.f32 %v3351, %v5095
  %v5097 = vsub.f32 1.0, %v5096
  %v5098 = vmul.f32 %v5095, %v5097
  %v5099 = vadd.f32 %v5095, %v5098
  %vm5100 = vweird.f32 %v3351
  %vm5101 = vweird.f32 %v5095
  %vm5102 = vmor %vm5100, %vm5101
  %v5103 = vsel %vm5102, %v5095, %v5099
  %v5104 = vand.u32 2147483647, %v3351
  %vm5105 = vcmp.eq.f32.partialorder %v5104, 8.507059e+37
  %v5106 = vand.u32 %v3351, 2147483648
  %v5107 = vor.u32 1.1754944e-38, %v5106
  %v5108 = vsel %vm5105, %v5107, %v5103
  %v5109 = vmul.f32 %v2385, %v5108
  %v5110 = vrcp.pop %v3353
  %v5111 = vmul.f32 %v3353, %v5110
  %v5112 = vsub.f32 1.0, %v5111
  %v5113 = vmul.f32 %v5110, %v5112
  %v5114 = vadd.f32 %v5110, %v5113
  %vm5115 = vweird.f32 %v3353
  %vm5116 = vweird.f32 %v5110
  %vm5117 = vmor %vm5115, %vm5116
  %v5118 = vsel %vm5117, %v5110, %v5114
  %v5119 = vand.u32 2147483647, %v3353
  %vm5120 = vcmp.eq.f32.partialorder %v5119, 8.507059e+37
  %v5121 = vand.u32 %v3353, 2147483648
  %v5122 = vor.u32 1.1754944e-38, %v5121
  %v5123 = vsel %vm5120, %v5122, %v5118
  %v5124 = vmul.f32 %v2386, %v5123
  %v5125 = vrcp.pop %v3355
  %v5126 = vmul.f32 %v3355, %v5125
  %v5127 = vsub.f32 1.0, %v5126
  %v5128 = vmul.f32 %v5125, %v5127
  %v5129 = vadd.f32 %v5125, %v5128
  %vm5130 = vweird.f32 %v3355
  %vm5131 = vweird.f32 %v5125
  %vm5132 = vmor %vm5130, %vm5131
  %v5133 = vsel %vm5132, %v5125, %v5129
  %v5134 = vand.u32 2147483647, %v3355
  %vm5135 = vcmp.eq.f32.partialorder %v5134, 8.507059e+37
  %v5136 = vand.u32 %v3355, 2147483648
  %v5137 = vor.u32 1.1754944e-38, %v5136
  %v5138 = vsel %vm5135, %v5137, %v5133
  %v5139 = vmul.f32 %v2387, %v5138
  %v5140 = vrcp.pop %v3357
  %v5141 = vmul.f32 %v3357, %v5140
  %v5142 = vsub.f32 1.0, %v5141
  %v5143 = vmul.f32 %v5140, %v5142
  %v5144 = vadd.f32 %v5140, %v5143
  %vm5145 = vweird.f32 %v3357
  %vm5146 = vweird.f32 %v5140
  %vm5147 = vmor %vm5145, %vm5146
  %v5148 = vsel %vm5147, %v5140, %v5144
  %v5149 = vand.u32 2147483647, %v3357
  %vm5150 = vcmp.eq.f32.partialorder %v5149, 8.507059e+37
  %v5151 = vand.u32 %v3357, 2147483648
  %v5152 = vor.u32 1.1754944e-38, %v5151
  %v5153 = vsel %vm5150, %v5152, %v5148
  %v5154 = vmul.f32 %v2388, %v5153
  %v5155 = vrcp.pop %v3359
  %v5156 = vmul.f32 %v3359, %v5155
  %v5157 = vsub.f32 1.0, %v5156
  %v5158 = vmul.f32 %v5155, %v5157
  %v5159 = vadd.f32 %v5155, %v5158
  %vm5160 = vweird.f32 %v3359
  %vm5161 = vweird.f32 %v5155
  %vm5162 = vmor %vm5160, %vm5161
  %v5163 = vsel %vm5162, %v5155, %v5159
  %v5164 = vand.u32 2147483647, %v3359
  %vm5165 = vcmp.eq.f32.partialorder %v5164, 8.507059e+37
  %v5166 = vand.u32 %v3359, 2147483648
  %v5167 = vor.u32 1.1754944e-38, %v5166
  %v5168 = vsel %vm5165, %v5167, %v5163
  %v5169 = vmul.f32 %v2389, %v5168
  %v5170 = vrcp.pop %v3361
  %v5171 = vmul.f32 %v3361, %v5170
  %v5172 = vsub.f32 1.0, %v5171
  %v5173 = vmul.f32 %v5170, %v5172
  %v5174 = vadd.f32 %v5170, %v5173
  %vm5175 = vweird.f32 %v3361
  %vm5176 = vweird.f32 %v5170
  %vm5177 = vmor %vm5175, %vm5176
  %v5178 = vsel %vm5177, %v5170, %v5174
  %v5179 = vand.u32 2147483647, %v3361
  %vm5180 = vcmp.eq.f32.partialorder %v5179, 8.507059e+37
  %v5181 = vand.u32 %v3361, 2147483648
  %v5182 = vor.u32 1.1754944e-38, %v5181
  %v5183 = vsel %vm5180, %v5182, %v5178
  %v5184 = vmul.f32 %v2390, %v5183
  %v5185 = vrcp.pop %v3363
  %v5186 = vmul.f32 %v3363, %v5185
  %v5187 = vsub.f32 1.0, %v5186
  %v5188 = vmul.f32 %v5185, %v5187
  %v5189 = vadd.f32 %v5185, %v5188
  %vm5190 = vweird.f32 %v3363
  %vm5191 = vweird.f32 %v5185
  %vm5192 = vmor %vm5190, %vm5191
  %v5193 = vsel %vm5192, %v5185, %v5189
  %v5194 = vand.u32 2147483647, %v3363
  %vm5195 = vcmp.eq.f32.partialorder %v5194, 8.507059e+37
  %v5196 = vand.u32 %v3363, 2147483648
  %v5197 = vor.u32 1.1754944e-38, %v5196
  %v5198 = vsel %vm5195, %v5197, %v5193
  %v5199 = vmul.f32 %v2391, %v5198
  %v5200 = vrcp.pop %v3365
  %v5201 = vmul.f32 %v3365, %v5200
  %v5202 = vsub.f32 1.0, %v5201
  %v5203 = vmul.f32 %v5200, %v5202
  %v5204 = vadd.f32 %v5200, %v5203
  %vm5205 = vweird.f32 %v3365
  %vm5206 = vweird.f32 %v5200
  %vm5207 = vmor %vm5205, %vm5206
  %v5208 = vsel %vm5207, %v5200, %v5204
  %v5209 = vand.u32 2147483647, %v3365
  %vm5210 = vcmp.eq.f32.partialorder %v5209, 8.507059e+37
  %v5211 = vand.u32 %v3365, 2147483648
  %v5212 = vor.u32 1.1754944e-38, %v5211
  %v5213 = vsel %vm5210, %v5212, %v5208
  %v5214 = vmul.f32 %v2392, %v5213
  %v5215 = vrcp.pop %v3367
  %v5216 = vmul.f32 %v3367, %v5215
  %v5217 = vsub.f32 1.0, %v5216
  %v5218 = vmul.f32 %v5215, %v5217
  %v5219 = vadd.f32 %v5215, %v5218
  %vm5220 = vweird.f32 %v3367
  %vm5221 = vweird.f32 %v5215
  %vm5222 = vmor %vm5220, %vm5221
  %v5223 = vsel %vm5222, %v5215, %v5219
  %v5224 = vand.u32 2147483647, %v3367
  %vm5225 = vcmp.eq.f32.partialorder %v5224, 8.507059e+37
  %v5226 = vand.u32 %v3367, 2147483648
  %v5227 = vor.u32 1.1754944e-38, %v5226
  %v5228 = vsel %vm5225, %v5227, %v5223
  %v5229 = vmul.f32 %v2393, %v5228
  %v5230 = vrcp.pop %v3369
  %v5231 = vmul.f32 %v3369, %v5230
  %v5232 = vsub.f32 1.0, %v5231
  %v5233 = vmul.f32 %v5230, %v5232
  %v5234 = vadd.f32 %v5230, %v5233
  %vm5235 = vweird.f32 %v3369
  %vm5236 = vweird.f32 %v5230
  %vm5237 = vmor %vm5235, %vm5236
  %v5238 = vsel %vm5237, %v5230, %v5234
  %v5239 = vand.u32 2147483647, %v3369
  %vm5240 = vcmp.eq.f32.partialorder %v5239, 8.507059e+37
  %v5241 = vand.u32 %v3369, 2147483648
  %v5242 = vor.u32 1.1754944e-38, %v5241
  %v5243 = vsel %vm5240, %v5242, %v5238
  %v5244 = vmul.f32 %v2394, %v5243
  %v5245 = vrcp.pop %v3371
  %v5246 = vmul.f32 %v3371, %v5245
  %v5247 = vsub.f32 1.0, %v5246
  %v5248 = vmul.f32 %v5245, %v5247
  %v5249 = vadd.f32 %v5245, %v5248
  %vm5250 = vweird.f32 %v3371
  %vm5251 = vweird.f32 %v5245
  %vm5252 = vmor %vm5250, %vm5251
  %v5253 = vsel %vm5252, %v5245, %v5249
  %v5254 = vand.u32 2147483647, %v3371
  %vm5255 = vcmp.eq.f32.partialorder %v5254, 8.507059e+37
  %v5256 = vand.u32 %v3371, 2147483648
  %v5257 = vor.u32 1.1754944e-38, %v5256
  %v5258 = vsel %vm5255, %v5257, %v5253
  %v5259 = vmul.f32 %v2395, %v5258
  %v5260 = vrcp.pop %v3373
  %v5261 = vmul.f32 %v3373, %v5260
  %v5262 = vsub.f32 1.0, %v5261
  %v5263 = vmul.f32 %v5260, %v5262
  %v5264 = vadd.f32 %v5260, %v5263
  %vm5265 = vweird.f32 %v3373
  %vm5266 = vweird.f32 %v5260
  %vm5267 = vmor %vm5265, %vm5266
  %v5268 = vsel %vm5267, %v5260, %v5264
  %v5269 = vand.u32 2147483647, %v3373
  %vm5270 = vcmp.eq.f32.partialorder %v5269, 8.507059e+37
  %v5271 = vand.u32 %v3373, 2147483648
  %v5272 = vor.u32 1.1754944e-38, %v5271
  %v5273 = vsel %vm5270, %v5272, %v5268
  %v5274 = vmul.f32 %v2396, %v5273
  %v5275 = vrcp.pop %v3375
  %v5276 = vmul.f32 %v3375, %v5275
  %v5277 = vsub.f32 1.0, %v5276
  %v5278 = vmul.f32 %v5275, %v5277
  %v5279 = vadd.f32 %v5275, %v5278
  %vm5280 = vweird.f32 %v3375
  %vm5281 = vweird.f32 %v5275
  %vm5282 = vmor %vm5280, %vm5281
  %v5283 = vsel %vm5282, %v5275, %v5279
  %v5284 = vand.u32 2147483647, %v3375
  %vm5285 = vcmp.eq.f32.partialorder %v5284, 8.507059e+37
  %v5286 = vand.u32 %v3375, 2147483648
  %v5287 = vor.u32 1.1754944e-38, %v5286
  %v5288 = vsel %vm5285, %v5287, %v5283
  %v5289 = vmul.f32 %v2397, %v5288
  %v5290 = vrcp.pop %v3377
  %v5291 = vmul.f32 %v3377, %v5290
  %v5292 = vsub.f32 1.0, %v5291
  %v5293 = vmul.f32 %v5290, %v5292
  %v5294 = vadd.f32 %v5290, %v5293
  %vm5295 = vweird.f32 %v3377
  %vm5296 = vweird.f32 %v5290
  %vm5297 = vmor %vm5295, %vm5296
  %v5298 = vsel %vm5297, %v5290, %v5294
  %v5299 = vand.u32 2147483647, %v3377
  %vm5300 = vcmp.eq.f32.partialorder %v5299, 8.507059e+37
  %v5301 = vand.u32 %v3377, 2147483648
  %v5302 = vor.u32 1.1754944e-38, %v5301
  %v5303 = vsel %vm5300, %v5302, %v5298
  %v5304 = vmul.f32 %v2398, %v5303
  %v5305 = vrcp.pop %v3379
  %v5306 = vmul.f32 %v3379, %v5305
  %v5307 = vsub.f32 1.0, %v5306
  %v5308 = vmul.f32 %v5305, %v5307
  %v5309 = vadd.f32 %v5305, %v5308
  %vm5310 = vweird.f32 %v3379
  %vm5311 = vweird.f32 %v5305
  %vm5312 = vmor %vm5310, %vm5311
  %v5313 = vsel %vm5312, %v5305, %v5309
  %v5314 = vand.u32 2147483647, %v3379
  %vm5315 = vcmp.eq.f32.partialorder %v5314, 8.507059e+37
  %v5316 = vand.u32 %v3379, 2147483648
  %v5317 = vor.u32 1.1754944e-38, %v5316
  %v5318 = vsel %vm5315, %v5317, %v5313
  %v5319 = vmul.f32 %v2399, %v5318
  %v5320 = vrcp.pop %v3381
  %v5321 = vmul.f32 %v3381, %v5320
  %v5322 = vsub.f32 1.0, %v5321
  %v5323 = vmul.f32 %v5320, %v5322
  %v5324 = vadd.f32 %v5320, %v5323
  %vm5325 = vweird.f32 %v3381
  %vm5326 = vweird.f32 %v5320
  %vm5327 = vmor %vm5325, %vm5326
  %v5328 = vsel %vm5327, %v5320, %v5324
  %v5329 = vand.u32 2147483647, %v3381
  %vm5330 = vcmp.eq.f32.partialorder %v5329, 8.507059e+37
  %v5331 = vand.u32 %v3381, 2147483648
  %v5332 = vor.u32 1.1754944e-38, %v5331
  %v5333 = vsel %vm5330, %v5332, %v5328
  %v5334 = vmul.f32 %v2400, %v5333
  %v5335 = vrcp.pop %v3383
  %v5336 = vmul.f32 %v3383, %v5335
  %v5337 = vsub.f32 1.0, %v5336
  %v5338 = vmul.f32 %v5335, %v5337
  %v5339 = vadd.f32 %v5335, %v5338
  %vm5340 = vweird.f32 %v3383
  %vm5341 = vweird.f32 %v5335
  %vm5342 = vmor %vm5340, %vm5341
  %v5343 = vsel %vm5342, %v5335, %v5339
  %v5344 = vand.u32 2147483647, %v3383
  %vm5345 = vcmp.eq.f32.partialorder %v5344, 8.507059e+37
  %v5346 = vand.u32 %v3383, 2147483648
  %v5347 = vor.u32 1.1754944e-38, %v5346
  %v5348 = vsel %vm5345, %v5347, %v5343
  %v5349 = vmul.f32 %v2401, %v5348
  %v5350 = vrcp.pop %v3385
  %v5351 = vmul.f32 %v3385, %v5350
  %v5352 = vsub.f32 1.0, %v5351
  %v5353 = vmul.f32 %v5350, %v5352
  %v5354 = vadd.f32 %v5350, %v5353
  %vm5355 = vweird.f32 %v3385
  %vm5356 = vweird.f32 %v5350
  %vm5357 = vmor %vm5355, %vm5356
  %v5358 = vsel %vm5357, %v5350, %v5354
  %v5359 = vand.u32 2147483647, %v3385
  %vm5360 = vcmp.eq.f32.partialorder %v5359, 8.507059e+37
  %v5361 = vand.u32 %v3385, 2147483648
  %v5362 = vor.u32 1.1754944e-38, %v5361
  %v5363 = vsel %vm5360, %v5362, %v5358
  %v5364 = vmul.f32 %v2402, %v5363
  %v5365 = vrcp.pop %v3387
  %v5366 = vmul.f32 %v3387, %v5365
  %v5367 = vsub.f32 1.0, %v5366
  %v5368 = vmul.f32 %v5365, %v5367
  %v5369 = vadd.f32 %v5365, %v5368
  %vm5370 = vweird.f32 %v3387
  %vm5371 = vweird.f32 %v5365
  %vm5372 = vmor %vm5370, %vm5371
  %v5373 = vsel %vm5372, %v5365, %v5369
  %v5374 = vand.u32 2147483647, %v3387
  %vm5375 = vcmp.eq.f32.partialorder %v5374, 8.507059e+37
  %v5376 = vand.u32 %v3387, 2147483648
  %v5377 = vor.u32 1.1754944e-38, %v5376
  %v5378 = vsel %vm5375, %v5377, %v5373
  %v5379 = vmul.f32 %v2403, %v5378
  %v5380 = vrcp.pop %v3389
  %v5381 = vmul.f32 %v3389, %v5380
  %v5382 = vsub.f32 1.0, %v5381
  %v5383 = vmul.f32 %v5380, %v5382
  %v5384 = vadd.f32 %v5380, %v5383
  %vm5385 = vweird.f32 %v3389
  %vm5386 = vweird.f32 %v5380
  %vm5387 = vmor %vm5385, %vm5386
  %v5388 = vsel %vm5387, %v5380, %v5384
  %v5389 = vand.u32 2147483647, %v3389
  %vm5390 = vcmp.eq.f32.partialorder %v5389, 8.507059e+37
  %v5391 = vand.u32 %v3389, 2147483648
  %v5392 = vor.u32 1.1754944e-38, %v5391
  %v5393 = vsel %vm5390, %v5392, %v5388
  %v5394 = vmul.f32 %v2404, %v5393
  %v5395 = vrcp.pop %v3391
  %v5396 = vmul.f32 %v3391, %v5395
  %v5397 = vsub.f32 1.0, %v5396
  %v5398 = vmul.f32 %v5395, %v5397
  %v5399 = vadd.f32 %v5395, %v5398
  %vm5400 = vweird.f32 %v3391
  %vm5401 = vweird.f32 %v5395
  %vm5402 = vmor %vm5400, %vm5401
  %v5403 = vsel %vm5402, %v5395, %v5399
  %v5404 = vand.u32 2147483647, %v3391
  %vm5405 = vcmp.eq.f32.partialorder %v5404, 8.507059e+37
  %v5406 = vand.u32 %v3391, 2147483648
  %v5407 = vor.u32 1.1754944e-38, %v5406
  %v5408 = vsel %vm5405, %v5407, %v5403
  %v5409 = vmul.f32 %v2405, %v5408
  %v5410 = vrcp.pop %v3393
  %v5411 = vmul.f32 %v3393, %v5410
  %v5412 = vsub.f32 1.0, %v5411
  %v5413 = vmul.f32 %v5410, %v5412
  %v5414 = vadd.f32 %v5410, %v5413
  %vm5415 = vweird.f32 %v3393
  %vm5416 = vweird.f32 %v5410
  %vm5417 = vmor %vm5415, %vm5416
  %v5418 = vsel %vm5417, %v5410, %v5414
  %v5419 = vand.u32 2147483647, %v3393
  %vm5420 = vcmp.eq.f32.partialorder %v5419, 8.507059e+37
  %v5421 = vand.u32 %v3393, 2147483648
  %v5422 = vor.u32 1.1754944e-38, %v5421
  %v5423 = vsel %vm5420, %v5422, %v5418
  %v5424 = vmul.f32 %v2406, %v5423
  %v5425 = vrcp.pop %v3395
  %v5426 = vmul.f32 %v3395, %v5425
  %v5427 = vsub.f32 1.0, %v5426
  %v5428 = vmul.f32 %v5425, %v5427
  %v5429 = vadd.f32 %v5425, %v5428
  %vm5430 = vweird.f32 %v3395
  %vm5431 = vweird.f32 %v5425
  %vm5432 = vmor %vm5430, %vm5431
  %v5433 = vsel %vm5432, %v5425, %v5429
  %v5434 = vand.u32 2147483647, %v3395
  %vm5435 = vcmp.eq.f32.partialorder %v5434, 8.507059e+37
  %v5436 = vand.u32 %v3395, 2147483648
  %v5437 = vor.u32 1.1754944e-38, %v5436
  %v5438 = vsel %vm5435, %v5437, %v5433
  %v5439 = vmul.f32 %v2407, %v5438
  %v5440 = vrcp.pop %v3397
  %v5441 = vmul.f32 %v3397, %v5440
  %v5442 = vsub.f32 1.0, %v5441
  %v5443 = vmul.f32 %v5440, %v5442
  %v5444 = vadd.f32 %v5440, %v5443
  %vm5445 = vweird.f32 %v3397
  %vm5446 = vweird.f32 %v5440
  %vm5447 = vmor %vm5445, %vm5446
  %v5448 = vsel %vm5447, %v5440, %v5444
  %v5449 = vand.u32 2147483647, %v3397
  %vm5450 = vcmp.eq.f32.partialorder %v5449, 8.507059e+37
  %v5451 = vand.u32 %v3397, 2147483648
  %v5452 = vor.u32 1.1754944e-38, %v5451
  %v5453 = vsel %vm5450, %v5452, %v5448
  %v5454 = vmul.f32 %v2408, %v5453
  %v5455 = vrcp.pop %v3399
  %v5456 = vmul.f32 %v3399, %v5455
  %v5457 = vsub.f32 1.0, %v5456
  %v5458 = vmul.f32 %v5455, %v5457
  %v5459 = vadd.f32 %v5455, %v5458
  %vm5460 = vweird.f32 %v3399
  %vm5461 = vweird.f32 %v5455
  %vm5462 = vmor %vm5460, %vm5461
  %v5463 = vsel %vm5462, %v5455, %v5459
  %v5464 = vand.u32 2147483647, %v3399
  %vm5465 = vcmp.eq.f32.partialorder %v5464, 8.507059e+37
  %v5466 = vand.u32 %v3399, 2147483648
  %v5467 = vor.u32 1.1754944e-38, %v5466
  %v5468 = vsel %vm5465, %v5467, %v5463
  %v5469 = vmul.f32 %v2409, %v5468
  %v5470 = vrcp.pop %v3401
  %v5471 = vmul.f32 %v3401, %v5470
  %v5472 = vsub.f32 1.0, %v5471
  %v5473 = vmul.f32 %v5470, %v5472
  %v5474 = vadd.f32 %v5470, %v5473
  %vm5475 = vweird.f32 %v3401
  %vm5476 = vweird.f32 %v5470
  %vm5477 = vmor %vm5475, %vm5476
  %v5478 = vsel %vm5477, %v5470, %v5474
  %v5479 = vand.u32 2147483647, %v3401
  %vm5480 = vcmp.eq.f32.partialorder %v5479, 8.507059e+37
  %v5481 = vand.u32 %v3401, 2147483648
  %v5482 = vor.u32 1.1754944e-38, %v5481
  %v5483 = vsel %vm5480, %v5482, %v5478
  %v5484 = vmul.f32 %v2410, %v5483
  %v5485 = vrcp.pop %v3403
  %v5486 = vmul.f32 %v3403, %v5485
  %v5487 = vsub.f32 1.0, %v5486
  %v5488 = vmul.f32 %v5485, %v5487
  %v5489 = vadd.f32 %v5485, %v5488
  %vm5490 = vweird.f32 %v3403
  %vm5491 = vweird.f32 %v5485
  %vm5492 = vmor %vm5490, %vm5491
  %v5493 = vsel %vm5492, %v5485, %v5489
  %v5494 = vand.u32 2147483647, %v3403
  %vm5495 = vcmp.eq.f32.partialorder %v5494, 8.507059e+37
  %v5496 = vand.u32 %v3403, 2147483648
  %v5497 = vor.u32 1.1754944e-38, %v5496
  %v5498 = vsel %vm5495, %v5497, %v5493
  %v5499 = vmul.f32 %v2411, %v5498
  %v5500 = vrcp.pop %v3405
  %v5501 = vmul.f32 %v3405, %v5500
  %v5502 = vsub.f32 1.0, %v5501
  %v5503 = vmul.f32 %v5500, %v5502
  %v5504 = vadd.f32 %v5500, %v5503
  %vm5505 = vweird.f32 %v3405
  %vm5506 = vweird.f32 %v5500
  %vm5507 = vmor %vm5505, %vm5506
  %v5508 = vsel %vm5507, %v5500, %v5504
  %v5509 = vand.u32 2147483647, %v3405
  %vm5510 = vcmp.eq.f32.partialorder %v5509, 8.507059e+37
  %v5511 = vand.u32 %v3405, 2147483648
  %v5512 = vor.u32 1.1754944e-38, %v5511
  %v5513 = vsel %vm5510, %v5512, %v5508
  %v5514 = vmul.f32 %v2412, %v5513
  %v5515 = vrcp.pop %v3407
  %v5516 = vmul.f32 %v3407, %v5515
  %v5517 = vsub.f32 1.0, %v5516
  %v5518 = vmul.f32 %v5515, %v5517
  %v5519 = vadd.f32 %v5515, %v5518
  %vm5520 = vweird.f32 %v3407
  %vm5521 = vweird.f32 %v5515
  %vm5522 = vmor %vm5520, %vm5521
  %v5523 = vsel %vm5522, %v5515, %v5519
  %v5524 = vand.u32 2147483647, %v3407
  %vm5525 = vcmp.eq.f32.partialorder %v5524, 8.507059e+37
  %v5526 = vand.u32 %v3407, 2147483648
  %v5527 = vor.u32 1.1754944e-38, %v5526
  %v5528 = vsel %vm5525, %v5527, %v5523
  %v5529 = vmul.f32 %v2413, %v5528
  %v5530 = vrcp.pop %v3409
  %v5531 = vmul.f32 %v3409, %v5530
  %v5532 = vsub.f32 1.0, %v5531
  %v5533 = vmul.f32 %v5530, %v5532
  %v5534 = vadd.f32 %v5530, %v5533
  %vm5535 = vweird.f32 %v3409
  %vm5536 = vweird.f32 %v5530
  %vm5537 = vmor %vm5535, %vm5536
  %v5538 = vsel %vm5537, %v5530, %v5534
  %v5539 = vand.u32 2147483647, %v3409
  %vm5540 = vcmp.eq.f32.partialorder %v5539, 8.507059e+37
  %v5541 = vand.u32 %v3409, 2147483648
  %v5542 = vor.u32 1.1754944e-38, %v5541
  %v5543 = vsel %vm5540, %v5542, %v5538
  %v5544 = vmul.f32 %v2414, %v5543
  %v5545 = vrcp.pop %v3411
  %v5546 = vmul.f32 %v3411, %v5545
  %v5547 = vsub.f32 1.0, %v5546
  %v5548 = vmul.f32 %v5545, %v5547
  %v5549 = vadd.f32 %v5545, %v5548
  %vm5550 = vweird.f32 %v3411
  %vm5551 = vweird.f32 %v5545
  %vm5552 = vmor %vm5550, %vm5551
  %v5553 = vsel %vm5552, %v5545, %v5549
  %v5554 = vand.u32 2147483647, %v3411
  %vm5555 = vcmp.eq.f32.partialorder %v5554, 8.507059e+37
  %v5556 = vand.u32 %v3411, 2147483648
  %v5557 = vor.u32 1.1754944e-38, %v5556
  %v5558 = vsel %vm5555, %v5557, %v5553
  %v5559 = vmul.f32 %v2415, %v5558
  %v5560 = vrcp.pop %v3413
  %v5561 = vmul.f32 %v3413, %v5560
  %v5562 = vsub.f32 1.0, %v5561
  %v5563 = vmul.f32 %v5560, %v5562
  %v5564 = vadd.f32 %v5560, %v5563
  %vm5565 = vweird.f32 %v3413
  %vm5566 = vweird.f32 %v5560
  %vm5567 = vmor %vm5565, %vm5566
  %v5568 = vsel %vm5567, %v5560, %v5564
  %v5569 = vand.u32 2147483647, %v3413
  %vm5570 = vcmp.eq.f32.partialorder %v5569, 8.507059e+37
  %v5571 = vand.u32 %v3413, 2147483648
  %v5572 = vor.u32 1.1754944e-38, %v5571
  %v5573 = vsel %vm5570, %v5572, %v5568
  %v5574 = vmul.f32 %v2416, %v5573
  %v5575 = vrcp.pop %v3415
  %v5576 = vmul.f32 %v3415, %v5575
  %v5577 = vsub.f32 1.0, %v5576
  %v5578 = vmul.f32 %v5575, %v5577
  %v5579 = vadd.f32 %v5575, %v5578
  %vm5580 = vweird.f32 %v3415
  %vm5581 = vweird.f32 %v5575
  %vm5582 = vmor %vm5580, %vm5581
  %v5583 = vsel %vm5582, %v5575, %v5579
  %v5584 = vand.u32 2147483647, %v3415
  %vm5585 = vcmp.eq.f32.partialorder %v5584, 8.507059e+37
  %v5586 = vand.u32 %v3415, 2147483648
  %v5587 = vor.u32 1.1754944e-38, %v5586
  %v5588 = vsel %vm5585, %v5587, %v5583
  %v5589 = vmul.f32 %v2417, %v5588
  %v5590 = vrcp.pop %v3417
  %v5591 = vmul.f32 %v3417, %v5590
  %v5592 = vsub.f32 1.0, %v5591
  %v5593 = vmul.f32 %v5590, %v5592
  %v5594 = vadd.f32 %v5590, %v5593
  %vm5595 = vweird.f32 %v3417
  %vm5596 = vweird.f32 %v5590
  %vm5597 = vmor %vm5595, %vm5596
  %v5598 = vsel %vm5597, %v5590, %v5594
  %v5599 = vand.u32 2147483647, %v3417
  %vm5600 = vcmp.eq.f32.partialorder %v5599, 8.507059e+37
  %v5601 = vand.u32 %v3417, 2147483648
  %v5602 = vor.u32 1.1754944e-38, %v5601
  %v5603 = vsel %vm5600, %v5602, %v5598
  %v5604 = vmul.f32 %v2418, %v5603
  %v5605 = vrcp.pop %v3419
  %v5606 = vmul.f32 %v3419, %v5605
  %v5607 = vsub.f32 1.0, %v5606
  %v5608 = vmul.f32 %v5605, %v5607
  %v5609 = vadd.f32 %v5605, %v5608
  %vm5610 = vweird.f32 %v3419
  %vm5611 = vweird.f32 %v5605
  %vm5612 = vmor %vm5610, %vm5611
  %v5613 = vsel %vm5612, %v5605, %v5609
  %v5614 = vand.u32 2147483647, %v3419
  %vm5615 = vcmp.eq.f32.partialorder %v5614, 8.507059e+37
  %v5616 = vand.u32 %v3419, 2147483648
  %v5617 = vor.u32 1.1754944e-38, %v5616
  %v5618 = vsel %vm5615, %v5617, %v5613
  %v5619 = vmul.f32 %v2419, %v5618
  %v5620 = vrcp.pop %v3421
  %v5621 = vmul.f32 %v3421, %v5620
  %v5622 = vsub.f32 1.0, %v5621
  %v5623 = vmul.f32 %v5620, %v5622
  %v5624 = vadd.f32 %v5620, %v5623
  %vm5625 = vweird.f32 %v3421
  %vm5626 = vweird.f32 %v5620
  %vm5627 = vmor %vm5625, %vm5626
  %v5628 = vsel %vm5627, %v5620, %v5624
  %v5629 = vand.u32 2147483647, %v3421
  %vm5630 = vcmp.eq.f32.partialorder %v5629, 8.507059e+37
  %v5631 = vand.u32 %v3421, 2147483648
  %v5632 = vor.u32 1.1754944e-38, %v5631
  %v5633 = vsel %vm5630, %v5632, %v5628
  %v5634 = vmul.f32 %v2420, %v5633
  %v5635 = vrcp.pop %v3423
  %v5636 = vmul.f32 %v3423, %v5635
  %v5637 = vsub.f32 1.0, %v5636
  %v5638 = vmul.f32 %v5635, %v5637
  %v5639 = vadd.f32 %v5635, %v5638
  %vm5640 = vweird.f32 %v3423
  %vm5641 = vweird.f32 %v5635
  %vm5642 = vmor %vm5640, %vm5641
  %v5643 = vsel %vm5642, %v5635, %v5639
  %v5644 = vand.u32 2147483647, %v3423
  %vm5645 = vcmp.eq.f32.partialorder %v5644, 8.507059e+37
  %v5646 = vand.u32 %v3423, 2147483648
  %v5647 = vor.u32 1.1754944e-38, %v5646
  %v5648 = vsel %vm5645, %v5647, %v5643
  %v5649 = vmul.f32 %v2421, %v5648
  %v5650 = vrcp.pop %v3425
  %v5651 = vmul.f32 %v3425, %v5650
  %v5652 = vsub.f32 1.0, %v5651
  %v5653 = vmul.f32 %v5650, %v5652
  %v5654 = vadd.f32 %v5650, %v5653
  %vm5655 = vweird.f32 %v3425
  %vm5656 = vweird.f32 %v5650
  %vm5657 = vmor %vm5655, %vm5656
  %v5658 = vsel %vm5657, %v5650, %v5654
  %v5659 = vand.u32 2147483647, %v3425
  %vm5660 = vcmp.eq.f32.partialorder %v5659, 8.507059e+37
  %v5661 = vand.u32 %v3425, 2147483648
  %v5662 = vor.u32 1.1754944e-38, %v5661
  %v5663 = vsel %vm5660, %v5662, %v5658
  %v5664 = vmul.f32 %v2422, %v5663
  %v5665 = vrcp.pop %v3427
  %v5666 = vmul.f32 %v3427, %v5665
  %v5667 = vsub.f32 1.0, %v5666
  %v5668 = vmul.f32 %v5665, %v5667
  %v5669 = vadd.f32 %v5665, %v5668
  %vm5670 = vweird.f32 %v3427
  %vm5671 = vweird.f32 %v5665
  %vm5672 = vmor %vm5670, %vm5671
  %v5673 = vsel %vm5672, %v5665, %v5669
  %v5674 = vand.u32 2147483647, %v3427
  %vm5675 = vcmp.eq.f32.partialorder %v5674, 8.507059e+37
  %v5676 = vand.u32 %v3427, 2147483648
  %v5677 = vor.u32 1.1754944e-38, %v5676
  %v5678 = vsel %vm5675, %v5677, %v5673
  %v5679 = vmul.f32 %v2423, %v5678
  %v5680 = vrcp.pop %v3429
  %v5681 = vmul.f32 %v3429, %v5680
  %v5682 = vsub.f32 1.0, %v5681
  %v5683 = vmul.f32 %v5680, %v5682
  %v5684 = vadd.f32 %v5680, %v5683
  %vm5685 = vweird.f32 %v3429
  %vm5686 = vweird.f32 %v5680
  %vm5687 = vmor %vm5685, %vm5686
  %v5688 = vsel %vm5687, %v5680, %v5684
  %v5689 = vand.u32 2147483647, %v3429
  %vm5690 = vcmp.eq.f32.partialorder %v5689, 8.507059e+37
  %v5691 = vand.u32 %v3429, 2147483648
  %v5692 = vor.u32 1.1754944e-38, %v5691
  %v5693 = vsel %vm5690, %v5692, %v5688
  %v5694 = vmul.f32 %v2424, %v5693
  %v5695 = vrcp.pop %v3431
  %v5696 = vmul.f32 %v3431, %v5695
  %v5697 = vsub.f32 1.0, %v5696
  %v5698 = vmul.f32 %v5695, %v5697
  %v5699 = vadd.f32 %v5695, %v5698
  %vm5700 = vweird.f32 %v3431
  %vm5701 = vweird.f32 %v5695
  %vm5702 = vmor %vm5700, %vm5701
  %v5703 = vsel %vm5702, %v5695, %v5699
  %v5704 = vand.u32 2147483647, %v3431
  %vm5705 = vcmp.eq.f32.partialorder %v5704, 8.507059e+37
  %v5706 = vand.u32 %v3431, 2147483648
  %v5707 = vor.u32 1.1754944e-38, %v5706
  %v5708 = vsel %vm5705, %v5707, %v5703
  %v5709 = vmul.f32 %v2425, %v5708
  %v5710 = vrcp.pop %v3433
  %v5711 = vmul.f32 %v3433, %v5710
  %v5712 = vsub.f32 1.0, %v5711
  %v5713 = vmul.f32 %v5710, %v5712
  %v5714 = vadd.f32 %v5710, %v5713
  %vm5715 = vweird.f32 %v3433
  %vm5716 = vweird.f32 %v5710
  %vm5717 = vmor %vm5715, %vm5716
  %v5718 = vsel %vm5717, %v5710, %v5714
  %v5719 = vand.u32 2147483647, %v3433
  %vm5720 = vcmp.eq.f32.partialorder %v5719, 8.507059e+37
  %v5721 = vand.u32 %v3433, 2147483648
  %v5722 = vor.u32 1.1754944e-38, %v5721
  %v5723 = vsel %vm5720, %v5722, %v5718
  %v5724 = vmul.f32 %v2426, %v5723
  %v5725 = vrcp.pop %v3435
  %v5726 = vmul.f32 %v3435, %v5725
  %v5727 = vsub.f32 1.0, %v5726
  %v5728 = vmul.f32 %v5725, %v5727
  %v5729 = vadd.f32 %v5725, %v5728
  %vm5730 = vweird.f32 %v3435
  %vm5731 = vweird.f32 %v5725
  %vm5732 = vmor %vm5730, %vm5731
  %v5733 = vsel %vm5732, %v5725, %v5729
  %v5734 = vand.u32 2147483647, %v3435
  %vm5735 = vcmp.eq.f32.partialorder %v5734, 8.507059e+37
  %v5736 = vand.u32 %v3435, 2147483648
  %v5737 = vor.u32 1.1754944e-38, %v5736
  %v5738 = vsel %vm5735, %v5737, %v5733
  %v5739 = vmul.f32 %v2427, %v5738
  %v5740 = vpack.c.bf16 %v3594, %v3594
  %v5741 = vpack.c.bf16 %v3609, %v3609
  %v5742 = vpack.c.bf16 %v3624, %v3624
  %v5743 = vpack.c.bf16 %v3639, %v3639
  %v5744 = vpack.c.bf16 %v3654, %v3654
  %v5745 = vpack.c.bf16 %v3669, %v3669
  %v5746 = vpack.c.bf16 %v3684, %v3684
  %v5747 = vpack.c.bf16 %v3699, %v3699
  %v5748 = vpack.c.bf16 %v3714, %v3714
  %v5749 = vpack.c.bf16 %v3729, %v3729
  %v5750 = vpack.c.bf16 %v3744, %v3744
  %v5751 = vpack.c.bf16 %v3759, %v3759
  %v5752 = vpack.c.bf16 %v3774, %v3774
  %v5753 = vpack.c.bf16 %v3789, %v3789
  %v5754 = vpack.c.bf16 %v3804, %v3804
  %v5755 = vpack.c.bf16 %v3819, %v3819
  %v5756 = vpack.c.bf16 %v3834, %v3834
  %v5757 = vpack.c.bf16 %v3849, %v3849
  %v5758 = vpack.c.bf16 %v3864, %v3864
  %v5759 = vpack.c.bf16 %v3879, %v3879
  %v5760 = vpack.c.bf16 %v3894, %v3894
  %v5761 = vpack.c.bf16 %v3909, %v3909
  %v5762 = vpack.c.bf16 %v3924, %v3924
  %v5763 = vpack.c.bf16 %v3939, %v3939
  %v5764 = vpack.c.bf16 %v3954, %v3954
  %v5765 = vpack.c.bf16 %v3969, %v3969
  %v5766 = vpack.c.bf16 %v3984, %v3984
  %v5767 = vpack.c.bf16 %v3999, %v3999
  %v5768 = vpack.c.bf16 %v4014, %v4014
  %v5769 = vpack.c.bf16 %v4029, %v4029
  %v5770 = vpack.c.bf16 %v4044, %v4044
  %v5771 = vpack.c.bf16 %v4059, %v4059
  %v5772 = vpack.c.bf16 %v4074, %v4074
  %v5773 = vpack.c.bf16 %v4089, %v4089
  %v5774 = vpack.c.bf16 %v4104, %v4104
  %v5775 = vpack.c.bf16 %v4119, %v4119
  %v5776 = vpack.c.bf16 %v4134, %v4134
  %v5777 = vpack.c.bf16 %v4149, %v4149
  %v5778 = vpack.c.bf16 %v4164, %v4164
  %v5779 = vpack.c.bf16 %v4179, %v4179
  %v5780 = vpack.c.bf16 %v4194, %v4194
  %v5781 = vpack.c.bf16 %v4209, %v4209
  %v5782 = vpack.c.bf16 %v4224, %v4224
  %v5783 = vpack.c.bf16 %v4239, %v4239
  %v5784 = vpack.c.bf16 %v4254, %v4254
  %v5785 = vpack.c.bf16 %v4269, %v4269
  %v5786 = vpack.c.bf16 %v4284, %v4284
  %v5787 = vpack.c.bf16 %v4299, %v4299
  %v5788 = vpack.c.bf16 %v4314, %v4314
  %v5789 = vpack.c.bf16 %v4329, %v4329
  %v5790 = vpack.c.bf16 %v4344, %v4344
  %v5791 = vpack.c.bf16 %v4359, %v4359
  %v5792 = vpack.c.bf16 %v4374, %v4374
  %v5793 = vpack.c.bf16 %v4389, %v4389
  %v5794 = vpack.c.bf16 %v4404, %v4404
  %v5795 = vpack.c.bf16 %v4419, %v4419
  %v5796 = vpack.c.bf16 %v4434, %v4434
  %v5797 = vpack.c.bf16 %v4449, %v4449
  %v5798 = vpack.c.bf16 %v4464, %v4464
  %v5799 = vpack.c.bf16 %v4479, %v4479
  %v5800 = vpack.c.bf16 %v4494, %v4494
  %v5801 = vpack.c.bf16 %v4509, %v4509
  %v5802 = vpack.c.bf16 %v4524, %v4524
  %v5803 = vpack.c.bf16 %v4539, %v4539
  %v5804 = vpack.c.bf16 %v4554, %v4554
  %v5805 = vpack.c.bf16 %v4569, %v4569
  %v5806 = vpack.c.bf16 %v4584, %v4584
  %v5807 = vpack.c.bf16 %v4599, %v4599
  %v5808 = vpack.c.bf16 %v4614, %v4614
  %v5809 = vpack.c.bf16 %v4629, %v4629
  %v5810 = vpack.c.bf16 %v4644, %v4644
  %v5811 = vpack.c.bf16 %v4659, %v4659
  %v5812 = vpack.c.bf16 %v4674, %v4674
  %v5813 = vpack.c.bf16 %v4689, %v4689
  %v5814 = vpack.c.bf16 %v4704, %v4704
  %v5815 = vpack.c.bf16 %v4719, %v4719
  %v5816 = vpack.c.bf16 %v4734, %v4734
  %v5817 = vpack.c.bf16 %v4749, %v4749
  %v5818 = vpack.c.bf16 %v4764, %v4764
  %v5819 = vpack.c.bf16 %v4779, %v4779
  %v5820 = vpack.c.bf16 %v4794, %v4794
  %v5821 = vpack.c.bf16 %v4809, %v4809
  %v5822 = vpack.c.bf16 %v4824, %v4824
  %v5823 = vpack.c.bf16 %v4839, %v4839
  %v5824 = vpack.c.bf16 %v4854, %v4854
  %v5825 = vpack.c.bf16 %v4869, %v4869
  %v5826 = vpack.c.bf16 %v4884, %v4884
  %v5827 = vpack.c.bf16 %v4899, %v4899
  %v5828 = vpack.c.bf16 %v4914, %v4914
  %v5829 = vpack.c.bf16 %v4929, %v4929
  %v5830 = vpack.c.bf16 %v4944, %v4944
  %v5831 = vpack.c.bf16 %v4959, %v4959
  %v5832 = vpack.c.bf16 %v4974, %v4974
  %v5833 = vpack.c.bf16 %v4989, %v4989
  %v5834 = vpack.c.bf16 %v5004, %v5004
  %v5835 = vpack.c.bf16 %v5019, %v5019
  %v5836 = vpack.c.bf16 %v5034, %v5034
  %v5837 = vpack.c.bf16 %v5049, %v5049
  %v5838 = vpack.c.bf16 %v5064, %v5064
  %v5839 = vpack.c.bf16 %v5079, %v5079
  %v5840 = vpack.c.bf16 %v5094, %v5094
  %v5841 = vpack.c.bf16 %v5109, %v5109
  %v5842 = vpack.c.bf16 %v5124, %v5124
  %v5843 = vpack.c.bf16 %v5139, %v5139
  %v5844 = vpack.c.bf16 %v5154, %v5154
  %v5845 = vpack.c.bf16 %v5169, %v5169
  %v5846 = vpack.c.bf16 %v5184, %v5184
  %v5847 = vpack.c.bf16 %v5199, %v5199
  %v5848 = vpack.c.bf16 %v5214, %v5214
  %v5849 = vpack.c.bf16 %v5229, %v5229
  %v5850 = vpack.c.bf16 %v5244, %v5244
  %v5851 = vpack.c.bf16 %v5259, %v5259
  %v5852 = vpack.c.bf16 %v5274, %v5274
  %v5853 = vpack.c.bf16 %v5289, %v5289
  %v5854 = vpack.c.bf16 %v5304, %v5304
  %v5855 = vpack.c.bf16 %v5319, %v5319
  %v5856 = vpack.c.bf16 %v5334, %v5334
  %v5857 = vpack.c.bf16 %v5349, %v5349
  %v5858 = vpack.c.bf16 %v5364, %v5364
  %v5859 = vpack.c.bf16 %v5379, %v5379
  %v5860 = vpack.c.bf16 %v5394, %v5394
  %v5861 = vpack.c.bf16 %v5409, %v5409
  %v5862 = vpack.c.bf16 %v5424, %v5424
  %v5863 = vpack.c.bf16 %v5439, %v5439
  %v5864 = vpack.c.bf16 %v5454, %v5454
  %v5865 = vpack.c.bf16 %v5469, %v5469
  %v5866 = vpack.c.bf16 %v5484, %v5484
  %v5867 = vpack.c.bf16 %v5499, %v5499
  %v5868 = vpack.c.bf16 %v5514, %v5514
  %v5869 = vpack.c.bf16 %v5529, %v5529
  %v5870 = vpack.c.bf16 %v5544, %v5544
  %v5871 = vpack.c.bf16 %v5559, %v5559
  %v5872 = vpack.c.bf16 %v5574, %v5574
  %v5873 = vpack.c.bf16 %v5589, %v5589
  %v5874 = vpack.c.bf16 %v5604, %v5604
  %v5875 = vpack.c.bf16 %v5619, %v5619
  %v5876 = vpack.c.bf16 %v5634, %v5634
  %v5877 = vpack.c.bf16 %v5649, %v5649
  %v5878 = vpack.c.bf16 %v5664, %v5664
  %v5879 = vpack.c.bf16 %v5679, %v5679
  %v5880 = vpack.c.bf16 %v5694, %v5694
  %v5881 = vpack.c.bf16 %v5709, %v5709
  %v5882 = vpack.c.bf16 %v5724, %v5724
  %v5883 = vpack.c.bf16 %v5739, %v5739
  %vm5884 = vcmask 60416
  %5885 = vst.msk [vmem:[%s3] sm:$0xf] %vm5884, %v5740
  %5886 = vst.msk [vmem:[%s3 + $0x4] sm:$0xf] %vm5884, %v5741
  %5887 = vst.msk [vmem:[%s3 + $0x8] sm:$0xf] %vm5884, %v5742
  %5888 = vst.msk [vmem:[%s3 + $0xc] sm:$0xf] %vm5884, %v5743
  %5889 = vst.msk [vmem:[%s3 + $0x10] sm:$0xf] %vm5884, %v5744
  %5890 = vst.msk [vmem:[%s3 + $0x14] sm:$0xf] %vm5884, %v5745
  %5891 = vst.msk [vmem:[%s3 + $0x18] sm:$0xf] %vm5884, %v5746
  %5892 = vst.msk [vmem:[%s3 + $0x1c] sm:$0xf] %vm5884, %v5747
  %5893 = vst.msk [vmem:[%s3 + $0x20] sm:$0xf] %vm5884, %v5748
  %5894 = vst.msk [vmem:[%s3 + $0x24] sm:$0xf] %vm5884, %v5749
  %5895 = vst.msk [vmem:[%s3 + $0x28] sm:$0xf] %vm5884, %v5750
  %5896 = vst.msk [vmem:[%s3 + $0x2c] sm:$0xf] %vm5884, %v5751
  %5897 = vst.msk [vmem:[%s3 + $0x30] sm:$0xf] %vm5884, %v5752
  %5898 = vst.msk [vmem:[%s3 + $0x34] sm:$0xf] %vm5884, %v5753
  %5899 = vst.msk [vmem:[%s3 + $0x38] sm:$0xf] %vm5884, %v5754
  %5900 = vst.msk [vmem:[%s3 + $0x3c] sm:$0xf] %vm5884, %v5755
  %5901 = vst.msk [vmem:[%s3 + $0x40] sm:$0xf] %vm5884, %v5756
  %5902 = vst.msk [vmem:[%s3 + $0x44] sm:$0xf] %vm5884, %v5757
  %5903 = vst.msk [vmem:[%s3 + $0x48] sm:$0xf] %vm5884, %v5758
  %5904 = vst.msk [vmem:[%s3 + $0x4c] sm:$0xf] %vm5884, %v5759
  %5905 = vst.msk [vmem:[%s3 + $0x50] sm:$0xf] %vm5884, %v5760
  %5906 = vst.msk [vmem:[%s3 + $0x54] sm:$0xf] %vm5884, %v5761
  %5907 = vst.msk [vmem:[%s3 + $0x58] sm:$0xf] %vm5884, %v5762
  %5908 = vst.msk [vmem:[%s3 + $0x5c] sm:$0xf] %vm5884, %v5763
  %5909 = vst.msk [vmem:[%s3 + $0x60] sm:$0xf] %vm5884, %v5764
  %5910 = vst.msk [vmem:[%s3 + $0x64] sm:$0xf] %vm5884, %v5765
  %5911 = vst.msk [vmem:[%s3 + $0x68] sm:$0xf] %vm5884, %v5766
  %5912 = vst.msk [vmem:[%s3 + $0x6c] sm:$0xf] %vm5884, %v5767
  %5913 = vst.msk [vmem:[%s3 + $0x70] sm:$0xf] %vm5884, %v5768
  %5914 = vst.msk [vmem:[%s3 + $0x74] sm:$0xf] %vm5884, %v5769
  %5915 = vst.msk [vmem:[%s3 + $0x78] sm:$0xf] %vm5884, %v5770
  %5916 = vst.msk [vmem:[%s3 + $0x7c] sm:$0xf] %vm5884, %v5771
  %5917 = vst.msk [vmem:[%s3 + $0x80] sm:$0xf] %vm5884, %v5772
  %5918 = vst.msk [vmem:[%s3 + $0x84] sm:$0xf] %vm5884, %v5773
  %5919 = vst.msk [vmem:[%s3 + $0x88] sm:$0xf] %vm5884, %v5774
  %5920 = vst.msk [vmem:[%s3 + $0x8c] sm:$0xf] %vm5884, %v5775
  %5921 = vst.msk [vmem:[%s3 + $0x90] sm:$0xf] %vm5884, %v5776
  %5922 = vst.msk [vmem:[%s3 + $0x94] sm:$0xf] %vm5884, %v5777
  %5923 = vst.msk [vmem:[%s3 + $0x98] sm:$0xf] %vm5884, %v5778
  %5924 = vst.msk [vmem:[%s3 + $0x9c] sm:$0xf] %vm5884, %v5779
  %5925 = vst.msk [vmem:[%s3 + $0xa0] sm:$0xf] %vm5884, %v5780
  %5926 = vst.msk [vmem:[%s3 + $0xa4] sm:$0xf] %vm5884, %v5781
  %5927 = vst.msk [vmem:[%s3 + $0xa8] sm:$0xf] %vm5884, %v5782
  %5928 = vst.msk [vmem:[%s3 + $0xac] sm:$0xf] %vm5884, %v5783
  %5929 = vst.msk [vmem:[%s3 + $0xb0] sm:$0xf] %vm5884, %v5784
  %5930 = vst.msk [vmem:[%s3 + $0xb4] sm:$0xf] %vm5884, %v5785
  %5931 = vst.msk [vmem:[%s3 + $0xb8] sm:$0xf] %vm5884, %v5786
  %5932 = vst.msk [vmem:[%s3 + $0xbc] sm:$0xf] %vm5884, %v5787
  %5933 = vst.msk [vmem:[%s3 + $0xc0] sm:$0xf] %vm5884, %v5788
  %5934 = vst.msk [vmem:[%s3 + $0xc4] sm:$0xf] %vm5884, %v5789
  %5935 = vst.msk [vmem:[%s3 + $0xc8] sm:$0xf] %vm5884, %v5790
  %5936 = vst.msk [vmem:[%s3 + $0xcc] sm:$0xf] %vm5884, %v5791
  %5937 = vst.msk [vmem:[%s3 + $0xd0] sm:$0xf] %vm5884, %v5792
  %5938 = vst.msk [vmem:[%s3 + $0xd4] sm:$0xf] %vm5884, %v5793
  %5939 = vst.msk [vmem:[%s3 + $0xd8] sm:$0xf] %vm5884, %v5794
  %5940 = vst.msk [vmem:[%s3 + $0xdc] sm:$0xf] %vm5884, %v5795
  %5941 = vst.msk [vmem:[%s3 + $0xe0] sm:$0xf] %vm5884, %v5796
  %5942 = vst.msk [vmem:[%s3 + $0xe4] sm:$0xf] %vm5884, %v5797
  %5943 = vst.msk [vmem:[%s3 + $0xe8] sm:$0xf] %vm5884, %v5798
  %5944 = vst.msk [vmem:[%s3 + $0xec] sm:$0xf] %vm5884, %v5799
  %5945 = vst.msk [vmem:[%s3 + $0xf0] sm:$0xf] %vm5884, %v5800
  %5946 = vst.msk [vmem:[%s3 + $0xf4] sm:$0xf] %vm5884, %v5801
  %5947 = vst.msk [vmem:[%s3 + $0xf8] sm:$0xf] %vm5884, %v5802
  %5948 = vst.msk [vmem:[%s3 + $0xfc] sm:$0xf] %vm5884, %v5803
  %5949 = vst.msk [vmem:[%s3 + $0x100] sm:$0xf] %vm5884, %v5804
  %5950 = vst.msk [vmem:[%s3 + $0x104] sm:$0xf] %vm5884, %v5805
  %5951 = vst.msk [vmem:[%s3 + $0x108] sm:$0xf] %vm5884, %v5806
  %5952 = vst.msk [vmem:[%s3 + $0x10c] sm:$0xf] %vm5884, %v5807
  %5953 = vst.msk [vmem:[%s3 + $0x110] sm:$0xf] %vm5884, %v5808
  %5954 = vst.msk [vmem:[%s3 + $0x114] sm:$0xf] %vm5884, %v5809
  %5955 = vst.msk [vmem:[%s3 + $0x118] sm:$0xf] %vm5884, %v5810
  %5956 = vst.msk [vmem:[%s3 + $0x11c] sm:$0xf] %vm5884, %v5811
  %5957 = vst.msk [vmem:[%s3 + $0x120] sm:$0xf] %vm5884, %v5812
  %5958 = vst.msk [vmem:[%s3 + $0x124] sm:$0xf] %vm5884, %v5813
  %5959 = vst.msk [vmem:[%s3 + $0x128] sm:$0xf] %vm5884, %v5814
  %5960 = vst.msk [vmem:[%s3 + $0x12c] sm:$0xf] %vm5884, %v5815
  %5961 = vst.msk [vmem:[%s3 + $0x130] sm:$0xf] %vm5884, %v5816
  %5962 = vst.msk [vmem:[%s3 + $0x134] sm:$0xf] %vm5884, %v5817
  %5963 = vst.msk [vmem:[%s3 + $0x138] sm:$0xf] %vm5884, %v5818
  %5964 = vst.msk [vmem:[%s3 + $0x13c] sm:$0xf] %vm5884, %v5819
  %5965 = vst.msk [vmem:[%s3 + $0x140] sm:$0xf] %vm5884, %v5820
  %5966 = vst.msk [vmem:[%s3 + $0x144] sm:$0xf] %vm5884, %v5821
  %5967 = vst.msk [vmem:[%s3 + $0x148] sm:$0xf] %vm5884, %v5822
  %5968 = vst.msk [vmem:[%s3 + $0x14c] sm:$0xf] %vm5884, %v5823
  %5969 = vst.msk [vmem:[%s3 + $0x150] sm:$0xf] %vm5884, %v5824
  %5970 = vst.msk [vmem:[%s3 + $0x154] sm:$0xf] %vm5884, %v5825
  %5971 = vst.msk [vmem:[%s3 + $0x158] sm:$0xf] %vm5884, %v5826
  %5972 = vst.msk [vmem:[%s3 + $0x15c] sm:$0xf] %vm5884, %v5827
  %5973 = vst.msk [vmem:[%s3 + $0x160] sm:$0xf] %vm5884, %v5828
  %5974 = vst.msk [vmem:[%s3 + $0x164] sm:$0xf] %vm5884, %v5829
  %5975 = vst.msk [vmem:[%s3 + $0x168] sm:$0xf] %vm5884, %v5830
  %5976 = vst.msk [vmem:[%s3 + $0x16c] sm:$0xf] %vm5884, %v5831
  %5977 = vst.msk [vmem:[%s3 + $0x170] sm:$0xf] %vm5884, %v5832
  %5978 = vst.msk [vmem:[%s3 + $0x174] sm:$0xf] %vm5884, %v5833
  %5979 = vst.msk [vmem:[%s3 + $0x178] sm:$0xf] %vm5884, %v5834
  %5980 = vst.msk [vmem:[%s3 + $0x17c] sm:$0xf] %vm5884, %v5835
  %5981 = vst.msk [vmem:[%s3 + $0x180] sm:$0xf] %vm5884, %v5836
  %5982 = vst.msk [vmem:[%s3 + $0x184] sm:$0xf] %vm5884, %v5837
  %5983 = vst.msk [vmem:[%s3 + $0x188] sm:$0xf] %vm5884, %v5838
  %5984 = vst.msk [vmem:[%s3 + $0x18c] sm:$0xf] %vm5884, %v5839
  %5985 = vst.msk [vmem:[%s3 + $0x190] sm:$0xf] %vm5884, %v5840
  %5986 = vst.msk [vmem:[%s3 + $0x194] sm:$0xf] %vm5884, %v5841
  %5987 = vst.msk [vmem:[%s3 + $0x198] sm:$0xf] %vm5884, %v5842
  %5988 = vst.msk [vmem:[%s3 + $0x19c] sm:$0xf] %vm5884, %v5843
  %5989 = vst.msk [vmem:[%s3 + $0x1a0] sm:$0xf] %vm5884, %v5844
  %5990 = vst.msk [vmem:[%s3 + $0x1a4] sm:$0xf] %vm5884, %v5845
  %5991 = vst.msk [vmem:[%s3 + $0x1a8] sm:$0xf] %vm5884, %v5846
  %5992 = vst.msk [vmem:[%s3 + $0x1ac] sm:$0xf] %vm5884, %v5847
  %5993 = vst.msk [vmem:[%s3 + $0x1b0] sm:$0xf] %vm5884, %v5848
  %5994 = vst.msk [vmem:[%s3 + $0x1b4] sm:$0xf] %vm5884, %v5849
  %5995 = vst.msk [vmem:[%s3 + $0x1b8] sm:$0xf] %vm5884, %v5850
  %5996 = vst.msk [vmem:[%s3 + $0x1bc] sm:$0xf] %vm5884, %v5851
  %5997 = vst.msk [vmem:[%s3 + $0x1c0] sm:$0xf] %vm5884, %v5852
  %5998 = vst.msk [vmem:[%s3 + $0x1c4] sm:$0xf] %vm5884, %v5853
  %5999 = vst.msk [vmem:[%s3 + $0x1c8] sm:$0xf] %vm5884, %v5854
  %6000 = vst.msk [vmem:[%s3 + $0x1cc] sm:$0xf] %vm5884, %v5855
  %6001 = vst.msk [vmem:[%s3 + $0x1d0] sm:$0xf] %vm5884, %v5856
  %6002 = vst.msk [vmem:[%s3 + $0x1d4] sm:$0xf] %vm5884, %v5857
  %6003 = vst.msk [vmem:[%s3 + $0x1d8] sm:$0xf] %vm5884, %v5858
  %6004 = vst.msk [vmem:[%s3 + $0x1dc] sm:$0xf] %vm5884, %v5859
  %6005 = vst.msk [vmem:[%s3 + $0x1e0] sm:$0xf] %vm5884, %v5860
  %6006 = vst.msk [vmem:[%s3 + $0x1e4] sm:$0xf] %vm5884, %v5861
  %6007 = vst.msk [vmem:[%s3 + $0x1e8] sm:$0xf] %vm5884, %v5862
  %6008 = vst.msk [vmem:[%s3 + $0x1ec] sm:$0xf] %vm5884, %v5863
  %6009 = vst.msk [vmem:[%s3 + $0x1f0] sm:$0xf] %vm5884, %v5864
  %6010 = vst.msk [vmem:[%s3 + $0x1f4] sm:$0xf] %vm5884, %v5865
  %6011 = vst.msk [vmem:[%s3 + $0x1f8] sm:$0xf] %vm5884, %v5866
  %6012 = vst.msk [vmem:[%s3 + $0x1fc] sm:$0xf] %vm5884, %v5867
  %6013 = vst.msk [vmem:[%s3 + $0x200] sm:$0xf] %vm5884, %v5868
  %6014 = vst.msk [vmem:[%s3 + $0x204] sm:$0xf] %vm5884, %v5869
  %6015 = vst.msk [vmem:[%s3 + $0x208] sm:$0xf] %vm5884, %v5870
  %6016 = vst.msk [vmem:[%s3 + $0x20c] sm:$0xf] %vm5884, %v5871
  %6017 = vst.msk [vmem:[%s3 + $0x210] sm:$0xf] %vm5884, %v5872
  %6018 = vst.msk [vmem:[%s3 + $0x214] sm:$0xf] %vm5884, %v5873
  %6019 = vst.msk [vmem:[%s3 + $0x218] sm:$0xf] %vm5884, %v5874
  %6020 = vst.msk [vmem:[%s3 + $0x21c] sm:$0xf] %vm5884, %v5875
  %6021 = vst.msk [vmem:[%s3 + $0x220] sm:$0xf] %vm5884, %v5876
  %6022 = vst.msk [vmem:[%s3 + $0x224] sm:$0xf] %vm5884, %v5877
  %6023 = vst.msk [vmem:[%s3 + $0x228] sm:$0xf] %vm5884, %v5878
  %6024 = vst.msk [vmem:[%s3 + $0x22c] sm:$0xf] %vm5884, %v5879
  %6025 = vst.msk [vmem:[%s3 + $0x230] sm:$0xf] %vm5884, %v5880
  %6026 = vst.msk [vmem:[%s3 + $0x234] sm:$0xf] %vm5884, %v5881
  %6027 = vst.msk [vmem:[%s3 + $0x238] sm:$0xf] %vm5884, %v5882
  %6028 = vst.msk [vmem:[%s3 + $0x23c] sm:$0xf] %vm5884, %v5883
  // Predicated region
  $region14: #{uttr_decoder_forward.6} parent=0 // pred_check
    _
  $region15: #{uttr_decoder_forward.6} parent=0 // pred_check_branch
    %6030 = sbr.rel (0) target = $region17
  $region16: #{uttr_decoder_forward.6} parent=0 // pred_region
    _
  $region17: #{uttr_decoder_forward.6} parent=0 // pred_fallthru
    _
  // Predicated region
  $region18: #{uttr_decoder_forward.6} parent=0 // pred_check
    _
  $region19: #{uttr_decoder_forward.6} parent=0 // pred_check_branch
    %6032 = sbr.rel (0) target = $region21
  $region20: #{uttr_decoder_forward.6} parent=0 // pred_region
    _
  $region21: #{uttr_decoder_forward.6} parent=0 // pred_fallthru
    _

// kernel: uttr_decoder_forward.7
$region0: #{uttr_decoder_forward.7}
  #allocation0 [shape = 'u32[]', space=smem, size = 0x4, offset = 0x4, fixed_abs, tag = 'smem constant byte address 0x4 - core index']
  #allocation1 [shape = 'u32[72,128]{1,0:T(1,128)}', space=vmem, size = 0x9000, scoped, tag = 'internal scratch']
  %s0 = inlined_call_operand.vmem [shape: bf16[1,1152,216], index: 0, kind: input, shape index: {}]
  %s1 = inlined_call_operand.vmem [shape: bf16[1,216,2], index: 1, kind: input, shape index: {}]
  %s2 = inlined_call_operand.vmem [shape: f32[1,2], index: 2, kind: input, shape index: {}]
  %s3 = inlined_call_operand.vmem [shape: f32[1152,1], index: 3, kind: input, shape index: {}]
  %s4 = inlined_call_operand.vmem [shape: f32[1152,1], index: 4, kind: output, shape index: {}]
  %s5 = sld [smem:[#allocation0]]
  $region26: #{uttr_decoder_forward.7} parent=0
    _
  %s7 = ssub.s32 1, %s5
  %s8 = scalar_select 0, %s7, %s5
  // Predicated region
  $region2: #{uttr_decoder_forward.7} parent=0 // pred_check
    _
  $region3: #{uttr_decoder_forward.7} parent=0 // pred_check_branch
    %10 = sbr.rel (0) target = $region5
  $region4: #{uttr_decoder_forward.7} parent=0 // pred_region
    _
  $region5: #{uttr_decoder_forward.7} parent=0 // pred_fallthru
    _
  // Predicated region
  $region6: #{uttr_decoder_forward.7} parent=0 // pred_check
    _
  $region7: #{uttr_decoder_forward.7} parent=0 // pred_check_branch
    %12 = sbr.rel (0) target = $region9
  $region8: #{uttr_decoder_forward.7} parent=0 // pred_region
    _
  $region9: #{uttr_decoder_forward.7} parent=0 // pred_fallthru
    _
  // Predicated region
  $region10: #{uttr_decoder_forward.7} parent=0 // pred_check
    _
  $region11: #{uttr_decoder_forward.7} parent=0 // pred_check_branch
    %14 = sbr.rel (0) target = $region13
  $region12: #{uttr_decoder_forward.7} parent=0 // pred_region
    _
  $region13: #{uttr_decoder_forward.7} parent=0 // pred_fallthru
    _
  // Predicated region
  $region14: #{uttr_decoder_forward.7} parent=0 // pred_check
    _
  $region15: #{uttr_decoder_forward.7} parent=0 // pred_check_branch
    %16 = sbr.rel (0) target = $region17
  $region16: #{uttr_decoder_forward.7} parent=0 // pred_region
    _
  $region17: #{uttr_decoder_forward.7} parent=0 // pred_fallthru
    _
  %v18 = vld [vmem:[%s0] sm:$0xff]
  %v19 = vld [vmem:[%s0 + $0x8] sm:$0xff]
  %v20 = vld [vmem:[%s0 + $0x10] sm:$0xff]
  %v21 = vld [vmem:[%s0 + $0x18] sm:$0xff]
  %v22 = vld [vmem:[%s0 + $0x20] sm:$0xff]
  %v23 = vld [vmem:[%s0 + $0x28] sm:$0xff]
  %v24 = vld [vmem:[%s0 + $0x30] sm:$0xff]
  %v25 = vld [vmem:[%s0 + $0x38] sm:$0xff]
  %v26 = vld [vmem:[%s0 + $0x40] sm:$0xff]
  %v27 = vld [vmem:[%s0 + $0x48] sm:$0xff]
  %v28 = vld [vmem:[%s0 + $0x50] sm:$0xff]
  %v29 = vld [vmem:[%s0 + $0x58] sm:$0xff]
  %v30 = vld [vmem:[%s0 + $0x60] sm:$0xff]
  %v31 = vld [vmem:[%s0 + $0x68] sm:$0xff]
  %v32 = vld [vmem:[%s0 + $0x70] sm:$0xff]
  %v33 = vld [vmem:[%s0 + $0x78] sm:$0xff]
  %v34 = vld [vmem:[%s0 + $0x80] sm:$0xff]
  %v35 = vld [vmem:[%s0 + $0x88] sm:$0xff]
  %v36 = vld [vmem:[%s0 + $0x90] sm:$0xff]
  %v37 = vld [vmem:[%s0 + $0x98] sm:$0xff]
  %v38 = vld [vmem:[%s0 + $0xa0] sm:$0xff]
  %v39 = vld [vmem:[%s0 + $0xa8] sm:$0xff]
  %v40 = vld [vmem:[%s0 + $0xb0] sm:$0xff]
  %v41 = vld [vmem:[%s0 + $0xb8] sm:$0xff]
  %v42 = vld [vmem:[%s0 + $0xc0] sm:$0xff]
  %v43 = vld [vmem:[%s0 + $0xc8] sm:$0xff]
  %v44 = vld [vmem:[%s0 + $0xd0] sm:$0xff]
  %v45 = vld [vmem:[%s0 + $0xd8] sm:$0xff]
  %v46 = vld [vmem:[%s0 + $0xe0] sm:$0xff]
  %v47 = vld [vmem:[%s0 + $0xe8] sm:$0xff]
  %v48 = vld [vmem:[%s0 + $0xf0] sm:$0xff]
  %v49 = vld [vmem:[%s0 + $0xf8] sm:$0xff]
  %v50 = vld [vmem:[%s0 + $0x100] sm:$0xff]
  %v51 = vld [vmem:[%s0 + $0x108] sm:$0xff]
  %v52 = vld [vmem:[%s0 + $0x110] sm:$0xff]
  %v53 = vld [vmem:[%s0 + $0x118] sm:$0xff]
  %v54 = vld [vmem:[%s0 + $0x120] sm:$0xff]
  %v55 = vld [vmem:[%s0 + $0x128] sm:$0xff]
  %v56 = vld [vmem:[%s0 + $0x130] sm:$0xff]
  %v57 = vld [vmem:[%s0 + $0x138] sm:$0xff]
  %v58 = vld [vmem:[%s0 + $0x140] sm:$0xff]
  %v59 = vld [vmem:[%s0 + $0x148] sm:$0xff]
  %v60 = vld [vmem:[%s0 + $0x150] sm:$0xff]
  %v61 = vld [vmem:[%s0 + $0x158] sm:$0xff]
  %v62 = vld [vmem:[%s0 + $0x160] sm:$0xff]
  %v63 = vld [vmem:[%s0 + $0x168] sm:$0xff]
  %v64 = vld [vmem:[%s0 + $0x170] sm:$0xff]
  %v65 = vld [vmem:[%s0 + $0x178] sm:$0xff]
  %v66 = vld [vmem:[%s0 + $0x180] sm:$0xff]
  %v67 = vld [vmem:[%s0 + $0x188] sm:$0xff]
  %v68 = vld [vmem:[%s0 + $0x190] sm:$0xff]
  %v69 = vld [vmem:[%s0 + $0x198] sm:$0xff]
  %v70 = vld [vmem:[%s0 + $0x1a0] sm:$0xff]
  %v71 = vld [vmem:[%s0 + $0x1a8] sm:$0xff]
  %v72 = vld [vmem:[%s0 + $0x1b0] sm:$0xff]
  %v73 = vld [vmem:[%s0 + $0x1b8] sm:$0xff]
  %v74 = vld [vmem:[%s0 + $0x1c0] sm:$0xff]
  %v75 = vld [vmem:[%s0 + $0x1c8] sm:$0xff]
  %v76 = vld [vmem:[%s0 + $0x1d0] sm:$0xff]
  %v77 = vld [vmem:[%s0 + $0x1d8] sm:$0xff]
  %v78 = vld [vmem:[%s0 + $0x1e0] sm:$0xff]
  %v79 = vld [vmem:[%s0 + $0x1e8] sm:$0xff]
  %v80 = vld [vmem:[%s0 + $0x1f0] sm:$0xff]
  %v81 = vld [vmem:[%s0 + $0x1f8] sm:$0xff]
  %v82 = vld [vmem:[%s0 + $0x200] sm:$0xff]
  %v83 = vld [vmem:[%s0 + $0x208] sm:$0xff]
  %v84 = vld [vmem:[%s0 + $0x210] sm:$0xff]
  %v85 = vld [vmem:[%s0 + $0x218] sm:$0xff]
  %v86 = vld [vmem:[%s0 + $0x220] sm:$0xff]
  %v87 = vld [vmem:[%s0 + $0x228] sm:$0xff]
  %v88 = vld [vmem:[%s0 + $0x230] sm:$0xff]
  %v89 = vld [vmem:[%s0 + $0x238] sm:$0xff]
  %v90 = vld [vmem:[%s0 + $0x240] sm:$0xff]
  %v91 = vld [vmem:[%s0 + $0x248] sm:$0xff]
  %v92 = vld [vmem:[%s0 + $0x250] sm:$0xff]
  %v93 = vld [vmem:[%s0 + $0x258] sm:$0xff]
  %v94 = vld [vmem:[%s0 + $0x260] sm:$0xff]
  %v95 = vld [vmem:[%s0 + $0x268] sm:$0xff]
  %v96 = vld [vmem:[%s0 + $0x270] sm:$0xff]
  %v97 = vld [vmem:[%s0 + $0x278] sm:$0xff]
  %v98 = vld [vmem:[%s0 + $0x280] sm:$0xff]
  %v99 = vld [vmem:[%s0 + $0x288] sm:$0xff]
  %v100 = vld [vmem:[%s0 + $0x290] sm:$0xff]
  %v101 = vld [vmem:[%s0 + $0x298] sm:$0xff]
  %v102 = vld [vmem:[%s0 + $0x2a0] sm:$0xff]
  %v103 = vld [vmem:[%s0 + $0x2a8] sm:$0xff]
  %v104 = vld [vmem:[%s0 + $0x2b0] sm:$0xff]
  %v105 = vld [vmem:[%s0 + $0x2b8] sm:$0xff]
  %v106 = vld [vmem:[%s0 + $0x2c0] sm:$0xff]
  %v107 = vld [vmem:[%s0 + $0x2c8] sm:$0xff]
  %v108 = vld [vmem:[%s0 + $0x2d0] sm:$0xff]
  %v109 = vld [vmem:[%s0 + $0x2d8] sm:$0xff]
  %v110 = vld [vmem:[%s0 + $0x2e0] sm:$0xff]
  %v111 = vld [vmem:[%s0 + $0x2e8] sm:$0xff]
  %v112 = vld [vmem:[%s0 + $0x2f0] sm:$0xff]
  %v113 = vld [vmem:[%s0 + $0x2f8] sm:$0xff]
  %v114 = vld [vmem:[%s0 + $0x300] sm:$0xff]
  %v115 = vld [vmem:[%s0 + $0x308] sm:$0xff]
  %v116 = vld [vmem:[%s0 + $0x310] sm:$0xff]
  %v117 = vld [vmem:[%s0 + $0x318] sm:$0xff]
  %v118 = vld [vmem:[%s0 + $0x320] sm:$0xff]
  %v119 = vld [vmem:[%s0 + $0x328] sm:$0xff]
  %v120 = vld [vmem:[%s0 + $0x330] sm:$0xff]
  %v121 = vld [vmem:[%s0 + $0x338] sm:$0xff]
  %v122 = vld [vmem:[%s0 + $0x340] sm:$0xff]
  %v123 = vld [vmem:[%s0 + $0x348] sm:$0xff]
  %v124 = vld [vmem:[%s0 + $0x350] sm:$0xff]
  %v125 = vld [vmem:[%s0 + $0x358] sm:$0xff]
  %v126 = vld [vmem:[%s0 + $0x360] sm:$0xff]
  %v127 = vld [vmem:[%s0 + $0x368] sm:$0xff]
  %v128 = vld [vmem:[%s0 + $0x370] sm:$0xff]
  %v129 = vld [vmem:[%s0 + $0x378] sm:$0xff]
  %v130 = vld [vmem:[%s0 + $0x380] sm:$0xff]
  %v131 = vld [vmem:[%s0 + $0x388] sm:$0xff]
  %v132 = vld [vmem:[%s0 + $0x390] sm:$0xff]
  %v133 = vld [vmem:[%s0 + $0x398] sm:$0xff]
  %v134 = vld [vmem:[%s0 + $0x3a0] sm:$0xff]
  %v135 = vld [vmem:[%s0 + $0x3a8] sm:$0xff]
  %v136 = vld [vmem:[%s0 + $0x3b0] sm:$0xff]
  %v137 = vld [vmem:[%s0 + $0x3b8] sm:$0xff]
  %v138 = vld [vmem:[%s0 + $0x3c0] sm:$0xff]
  %v139 = vld [vmem:[%s0 + $0x3c8] sm:$0xff]
  %v140 = vld [vmem:[%s0 + $0x3d0] sm:$0xff]
  %v141 = vld [vmem:[%s0 + $0x3d8] sm:$0xff]
  %v142 = vld [vmem:[%s0 + $0x3e0] sm:$0xff]
  %v143 = vld [vmem:[%s0 + $0x3e8] sm:$0xff]
  %v144 = vld [vmem:[%s0 + $0x3f0] sm:$0xff]
  %v145 = vld [vmem:[%s0 + $0x3f8] sm:$0xff]
  %v146 = vld [vmem:[%s0 + $0x400] sm:$0xff]
  %v147 = vld [vmem:[%s0 + $0x408] sm:$0xff]
  %v148 = vld [vmem:[%s0 + $0x410] sm:$0xff]
  %v149 = vld [vmem:[%s0 + $0x418] sm:$0xff]
  %v150 = vld [vmem:[%s0 + $0x420] sm:$0xff]
  %v151 = vld [vmem:[%s0 + $0x428] sm:$0xff]
  %v152 = vld [vmem:[%s0 + $0x430] sm:$0xff]
  %v153 = vld [vmem:[%s0 + $0x438] sm:$0xff]
  %v154 = vld [vmem:[%s0 + $0x440] sm:$0xff]
  %v155 = vld [vmem:[%s0 + $0x448] sm:$0xff]
  %v156 = vld [vmem:[%s0 + $0x450] sm:$0xff]
  %v157 = vld [vmem:[%s0 + $0x458] sm:$0xff]
  %v158 = vld [vmem:[%s0 + $0x460] sm:$0xff]
  %v159 = vld [vmem:[%s0 + $0x468] sm:$0xff]
  %v160 = vld [vmem:[%s0 + $0x470] sm:$0xff]
  %v161 = vld [vmem:[%s0 + $0x478] sm:$0xff]
  %v162 = vld [vmem:[%s1] sm:$0xf]
  %v163 = vld [vmem:[%s1 + $0x4] sm:$0xf]
  %v164 = vld [vmem:[%s1 + $0x8] sm:$0xf]
  %v165 = vld [vmem:[%s1 + $0xc] sm:$0xf]
  %v166 = vld [vmem:[%s1 + $0x10] sm:$0xf]
  %v167 = vld [vmem:[%s1 + $0x14] sm:$0xf]
  %v168 = vld [vmem:[%s1 + $0x18] sm:$0xf]
  %v169 = vld [vmem:[%s1 + $0x1c] sm:$0xf]
  %v170 = vld [vmem:[%s1 + $0x20] sm:$0xf]
  %v171 = vld [vmem:[%s1 + $0x24] sm:$0xf]
  %v172 = vld [vmem:[%s1 + $0x28] sm:$0xf]
  %v173 = vld [vmem:[%s1 + $0x2c] sm:$0xf]
  %v174 = vld [vmem:[%s1 + $0x30] sm:$0xf]
  %v175 = vld [vmem:[%s1 + $0x34] sm:$0xf]
  %v176 = vld [vmem:[%s1 + $0x38] sm:$0xf]
  %v177 = vld [vmem:[%s1 + $0x3c] sm:$0xf]
  %v178 = vld [vmem:[%s1 + $0x40] sm:$0xf]
  %v179 = vld [vmem:[%s1 + $0x44] sm:$0xf]
  %v180 = vld [vmem:[%s1 + $0x48] sm:$0xf]
  %v181 = vld [vmem:[%s1 + $0x4c] sm:$0xf]
  %v182 = vld [vmem:[%s1 + $0x50] sm:$0xf]
  %v183 = vld [vmem:[%s1 + $0x54] sm:$0xf]
  %v184 = vld [vmem:[%s1 + $0x58] sm:$0xf]
  %v185 = vld [vmem:[%s1 + $0x5c] sm:$0xf]
  %v186 = vld [vmem:[%s1 + $0x60] sm:$0xf]
  %v187 = vld [vmem:[%s1 + $0x64] sm:$0xf]
  %v188 = vld [vmem:[%s1 + $0x68] sm:$0xf]
  %v189 = vld [vmem:[%s2] sm:$0x1]
  %v191 = vperm.slane %v189, 0
  %v337 = vunpack.c.l.b16 %v18
  %v338 = vunpack.c.h.b16 %v18
  %v339 = vunpack.c.l.b16 %v19
  %v340 = vunpack.c.h.b16 %v19
  %v341 = vunpack.c.l.b16 %v20
  %v342 = vunpack.c.h.b16 %v20
  %v343 = vunpack.c.l.b16 %v21
  %v344 = vunpack.c.h.b16 %v21
  %v345 = vunpack.c.l.b16 %v22
  %v346 = vunpack.c.h.b16 %v22
  %v347 = vunpack.c.l.b16 %v23
  %v348 = vunpack.c.h.b16 %v23
  %v349 = vunpack.c.l.b16 %v24
  %v350 = vunpack.c.h.b16 %v24
  %v351 = vunpack.c.l.b16 %v25
  %v352 = vunpack.c.h.b16 %v25
  %v353 = vunpack.c.l.b16 %v26
  %v354 = vunpack.c.h.b16 %v26
  %v355 = vunpack.c.l.b16 %v27
  %v356 = vunpack.c.h.b16 %v27
  %v357 = vunpack.c.l.b16 %v28
  %v358 = vunpack.c.h.b16 %v28
  %v359 = vunpack.c.l.b16 %v29
  %v360 = vunpack.c.h.b16 %v29
  %v361 = vunpack.c.l.b16 %v30
  %v362 = vunpack.c.h.b16 %v30
  %v363 = vunpack.c.l.b16 %v31
  %v364 = vunpack.c.h.b16 %v31
  %v365 = vunpack.c.l.b16 %v32
  %v366 = vunpack.c.h.b16 %v32
  %v367 = vunpack.c.l.b16 %v33
  %v368 = vunpack.c.h.b16 %v33
  %v369 = vunpack.c.l.b16 %v34
  %v370 = vunpack.c.h.b16 %v34
  %v371 = vunpack.c.l.b16 %v35
  %v372 = vunpack.c.h.b16 %v35
  %v373 = vunpack.c.l.b16 %v36
  %v374 = vunpack.c.h.b16 %v36
  %v375 = vunpack.c.l.b16 %v37
  %v376 = vunpack.c.h.b16 %v37
  %v377 = vunpack.c.l.b16 %v38
  %v378 = vunpack.c.h.b16 %v38
  %v379 = vunpack.c.l.b16 %v39
  %v380 = vunpack.c.h.b16 %v39
  %v381 = vunpack.c.l.b16 %v40
  %v382 = vunpack.c.h.b16 %v40
  %v383 = vunpack.c.l.b16 %v41
  %v384 = vunpack.c.h.b16 %v41
  %v385 = vunpack.c.l.b16 %v42
  %v386 = vunpack.c.h.b16 %v42
  %v387 = vunpack.c.l.b16 %v43
  %v388 = vunpack.c.h.b16 %v43
  %v389 = vunpack.c.l.b16 %v44
  %v390 = vunpack.c.h.b16 %v44
  %v391 = vunpack.c.l.b16 %v45
  %v392 = vunpack.c.h.b16 %v45
  %v393 = vunpack.c.l.b16 %v46
  %v394 = vunpack.c.h.b16 %v46
  %v395 = vunpack.c.l.b16 %v47
  %v396 = vunpack.c.h.b16 %v47
  %v397 = vunpack.c.l.b16 %v48
  %v398 = vunpack.c.h.b16 %v48
  %v399 = vunpack.c.l.b16 %v49
  %v400 = vunpack.c.h.b16 %v49
  %v401 = vunpack.c.l.b16 %v50
  %v402 = vunpack.c.h.b16 %v50
  %v403 = vunpack.c.l.b16 %v51
  %v404 = vunpack.c.h.b16 %v51
  %v405 = vunpack.c.l.b16 %v52
  %v406 = vunpack.c.h.b16 %v52
  %v407 = vunpack.c.l.b16 %v53
  %v408 = vunpack.c.h.b16 %v53
  %v409 = vunpack.c.l.b16 %v54
  %v410 = vunpack.c.h.b16 %v54
  %v411 = vunpack.c.l.b16 %v55
  %v412 = vunpack.c.h.b16 %v55
  %v413 = vunpack.c.l.b16 %v56
  %v414 = vunpack.c.h.b16 %v56
  %v415 = vunpack.c.l.b16 %v57
  %v416 = vunpack.c.h.b16 %v57
  %v417 = vunpack.c.l.b16 %v58
  %v418 = vunpack.c.h.b16 %v58
  %v419 = vunpack.c.l.b16 %v59
  %v420 = vunpack.c.h.b16 %v59
  %v421 = vunpack.c.l.b16 %v60
  %v422 = vunpack.c.h.b16 %v60
  %v423 = vunpack.c.l.b16 %v61
  %v424 = vunpack.c.h.b16 %v61
  %v425 = vunpack.c.l.b16 %v62
  %v426 = vunpack.c.h.b16 %v62
  %v427 = vunpack.c.l.b16 %v63
  %v428 = vunpack.c.h.b16 %v63
  %v429 = vunpack.c.l.b16 %v64
  %v430 = vunpack.c.h.b16 %v64
  %v431 = vunpack.c.l.b16 %v65
  %v432 = vunpack.c.h.b16 %v65
  %v433 = vunpack.c.l.b16 %v66
  %v434 = vunpack.c.h.b16 %v66
  %v435 = vunpack.c.l.b16 %v67
  %v436 = vunpack.c.h.b16 %v67
  %v437 = vunpack.c.l.b16 %v68
  %v438 = vunpack.c.h.b16 %v68
  %v439 = vunpack.c.l.b16 %v69
  %v440 = vunpack.c.h.b16 %v69
  %v441 = vunpack.c.l.b16 %v70
  %v442 = vunpack.c.h.b16 %v70
  %v443 = vunpack.c.l.b16 %v71
  %v444 = vunpack.c.h.b16 %v71
  %v445 = vunpack.c.l.b16 %v72
  %v446 = vunpack.c.h.b16 %v72
  %v447 = vunpack.c.l.b16 %v73
  %v448 = vunpack.c.h.b16 %v73
  %v449 = vunpack.c.l.b16 %v74
  %v450 = vunpack.c.h.b16 %v74
  %v451 = vunpack.c.l.b16 %v75
  %v452 = vunpack.c.h.b16 %v75
  %v453 = vunpack.c.l.b16 %v76
  %v454 = vunpack.c.h.b16 %v76
  %v455 = vunpack.c.l.b16 %v77
  %v456 = vunpack.c.h.b16 %v77
  %v457 = vunpack.c.l.b16 %v78
  %v458 = vunpack.c.h.b16 %v78
  %v459 = vunpack.c.l.b16 %v79
  %v460 = vunpack.c.h.b16 %v79
  %v461 = vunpack.c.l.b16 %v80
  %v462 = vunpack.c.h.b16 %v80
  %v463 = vunpack.c.l.b16 %v81
  %v464 = vunpack.c.h.b16 %v81
  %v465 = vunpack.c.l.b16 %v82
  %v466 = vunpack.c.h.b16 %v82
  %v467 = vunpack.c.l.b16 %v83
  %v468 = vunpack.c.h.b16 %v83
  %v469 = vunpack.c.l.b16 %v84
  %v470 = vunpack.c.h.b16 %v84
  %v471 = vunpack.c.l.b16 %v85
  %v472 = vunpack.c.h.b16 %v85
  %v473 = vunpack.c.l.b16 %v86
  %v474 = vunpack.c.h.b16 %v86
  %v475 = vunpack.c.l.b16 %v87
  %v476 = vunpack.c.h.b16 %v87
  %v477 = vunpack.c.l.b16 %v88
  %v478 = vunpack.c.h.b16 %v88
  %v479 = vunpack.c.l.b16 %v89
  %v480 = vunpack.c.h.b16 %v89
  %v481 = vunpack.c.l.b16 %v90
  %v482 = vunpack.c.h.b16 %v90
  %v483 = vunpack.c.l.b16 %v91
  %v484 = vunpack.c.h.b16 %v91
  %v485 = vunpack.c.l.b16 %v92
  %v486 = vunpack.c.h.b16 %v92
  %v487 = vunpack.c.l.b16 %v93
  %v488 = vunpack.c.h.b16 %v93
  %v489 = vunpack.c.l.b16 %v94
  %v490 = vunpack.c.h.b16 %v94
  %v491 = vunpack.c.l.b16 %v95
  %v492 = vunpack.c.h.b16 %v95
  %v493 = vunpack.c.l.b16 %v96
  %v494 = vunpack.c.h.b16 %v96
  %v495 = vunpack.c.l.b16 %v97
  %v496 = vunpack.c.h.b16 %v97
  %v497 = vunpack.c.l.b16 %v98
  %v498 = vunpack.c.h.b16 %v98
  %v499 = vunpack.c.l.b16 %v99
  %v500 = vunpack.c.h.b16 %v99
  %v501 = vunpack.c.l.b16 %v100
  %v502 = vunpack.c.h.b16 %v100
  %v503 = vunpack.c.l.b16 %v101
  %v504 = vunpack.c.h.b16 %v101
  %v505 = vunpack.c.l.b16 %v102
  %v506 = vunpack.c.h.b16 %v102
  %v507 = vunpack.c.l.b16 %v103
  %v508 = vunpack.c.h.b16 %v103
  %v509 = vunpack.c.l.b16 %v104
  %v510 = vunpack.c.h.b16 %v104
  %v511 = vunpack.c.l.b16 %v105
  %v512 = vunpack.c.h.b16 %v105
  %v513 = vunpack.c.l.b16 %v106
  %v514 = vunpack.c.h.b16 %v106
  %v515 = vunpack.c.l.b16 %v107
  %v516 = vunpack.c.h.b16 %v107
  %v517 = vunpack.c.l.b16 %v108
  %v518 = vunpack.c.h.b16 %v108
  %v519 = vunpack.c.l.b16 %v109
  %v520 = vunpack.c.h.b16 %v109
  %v521 = vunpack.c.l.b16 %v110
  %v522 = vunpack.c.h.b16 %v110
  %v523 = vunpack.c.l.b16 %v111
  %v524 = vunpack.c.h.b16 %v111
  %v525 = vunpack.c.l.b16 %v112
  %v526 = vunpack.c.h.b16 %v112
  %v527 = vunpack.c.l.b16 %v113
  %v528 = vunpack.c.h.b16 %v113
  %v529 = vunpack.c.l.b16 %v114
  %v530 = vunpack.c.h.b16 %v114
  %v531 = vunpack.c.l.b16 %v115
  %v532 = vunpack.c.h.b16 %v115
  %v533 = vunpack.c.l.b16 %v116
  %v534 = vunpack.c.h.b16 %v116
  %v535 = vunpack.c.l.b16 %v117
  %v536 = vunpack.c.h.b16 %v117
  %v537 = vunpack.c.l.b16 %v118
  %v538 = vunpack.c.h.b16 %v118
  %v539 = vunpack.c.l.b16 %v119
  %v540 = vunpack.c.h.b16 %v119
  %v541 = vunpack.c.l.b16 %v120
  %v542 = vunpack.c.h.b16 %v120
  %v543 = vunpack.c.l.b16 %v121
  %v544 = vunpack.c.h.b16 %v121
  %v545 = vunpack.c.l.b16 %v122
  %v546 = vunpack.c.h.b16 %v122
  %v547 = vunpack.c.l.b16 %v123
  %v548 = vunpack.c.h.b16 %v123
  %v549 = vunpack.c.l.b16 %v124
  %v550 = vunpack.c.h.b16 %v124
  %v551 = vunpack.c.l.b16 %v125
  %v552 = vunpack.c.h.b16 %v125
  %v553 = vunpack.c.l.b16 %v126
  %v554 = vunpack.c.h.b16 %v126
  %v555 = vunpack.c.l.b16 %v127
  %v556 = vunpack.c.h.b16 %v127
  %v557 = vunpack.c.l.b16 %v128
  %v558 = vunpack.c.h.b16 %v128
  %v559 = vunpack.c.l.b16 %v129
  %v560 = vunpack.c.h.b16 %v129
  %v561 = vunpack.c.l.b16 %v130
  %v562 = vunpack.c.h.b16 %v130
  %v563 = vunpack.c.l.b16 %v131
  %v564 = vunpack.c.h.b16 %v131
  %v565 = vunpack.c.l.b16 %v132
  %v566 = vunpack.c.h.b16 %v132
  %v567 = vunpack.c.l.b16 %v133
  %v568 = vunpack.c.h.b16 %v133
  %v569 = vunpack.c.l.b16 %v134
  %v570 = vunpack.c.h.b16 %v134
  %v571 = vunpack.c.l.b16 %v135
  %v572 = vunpack.c.h.b16 %v135
  %v573 = vunpack.c.l.b16 %v136
  %v574 = vunpack.c.h.b16 %v136
  %v575 = vunpack.c.l.b16 %v137
  %v576 = vunpack.c.h.b16 %v137
  %v577 = vunpack.c.l.b16 %v138
  %v578 = vunpack.c.h.b16 %v138
  %v579 = vunpack.c.l.b16 %v139
  %v580 = vunpack.c.h.b16 %v139
  %v581 = vunpack.c.l.b16 %v140
  %v582 = vunpack.c.h.b16 %v140
  %v583 = vunpack.c.l.b16 %v141
  %v584 = vunpack.c.h.b16 %v141
  %v585 = vunpack.c.l.b16 %v142
  %v586 = vunpack.c.h.b16 %v142
  %v587 = vunpack.c.l.b16 %v143
  %v588 = vunpack.c.h.b16 %v143
  %v589 = vunpack.c.l.b16 %v144
  %v590 = vunpack.c.h.b16 %v144
  %v591 = vunpack.c.l.b16 %v145
  %v592 = vunpack.c.h.b16 %v145
  %v593 = vunpack.c.l.b16 %v146
  %v594 = vunpack.c.h.b16 %v146
  %v595 = vunpack.c.l.b16 %v147
  %v596 = vunpack.c.h.b16 %v147
  %v597 = vunpack.c.l.b16 %v148
  %v598 = vunpack.c.h.b16 %v148
  %v599 = vunpack.c.l.b16 %v149
  %v600 = vunpack.c.h.b16 %v149
  %v601 = vunpack.c.l.b16 %v150
  %v602 = vunpack.c.h.b16 %v150
  %v603 = vunpack.c.l.b16 %v151
  %v604 = vunpack.c.h.b16 %v151
  %v605 = vunpack.c.l.b16 %v152
  %v606 = vunpack.c.h.b16 %v152
  %v607 = vunpack.c.l.b16 %v153
  %v608 = vunpack.c.h.b16 %v153
  %v609 = vunpack.c.l.b16 %v154
  %v610 = vunpack.c.h.b16 %v154
  %v611 = vunpack.c.l.b16 %v155
  %v612 = vunpack.c.h.b16 %v155
  %v613 = vunpack.c.l.b16 %v156
  %v614 = vunpack.c.h.b16 %v156
  %v615 = vunpack.c.l.b16 %v157
  %v616 = vunpack.c.h.b16 %v157
  %v617 = vunpack.c.l.b16 %v158
  %v618 = vunpack.c.h.b16 %v158
  %v619 = vunpack.c.l.b16 %v159
  %v620 = vunpack.c.h.b16 %v159
  %v621 = vunpack.c.l.b16 %v160
  %v622 = vunpack.c.h.b16 %v160
  %v623 = vunpack.c.l.b16 %v161
  %v624 = vunpack.c.h.b16 %v161
  %v625 = vpack.c.b16 %v339, %v337
  %v626 = vpack.c.b16 %v340, %v338
  %v627 = vpack.c.b16 %v343, %v341
  %v628 = vpack.c.b16 %v344, %v342
  %v629 = vpack.c.b16 %v347, %v345
  %v630 = vpack.c.b16 %v348, %v346
  %v631 = vpack.c.b16 %v351, %v349
  %v632 = vpack.c.b16 %v352, %v350
  %v633 = vpack.c.b16 %v355, %v353
  %v634 = vpack.c.b16 %v356, %v354
  %v635 = vpack.c.b16 %v359, %v357
  %v636 = vpack.c.b16 %v360, %v358
  %v637 = vpack.c.b16 %v363, %v361
  %v638 = vpack.c.b16 %v364, %v362
  %v639 = vpack.c.b16 %v367, %v365
  %v640 = vpack.c.b16 %v368, %v366
  %v641 = vpack.c.b16 %v371, %v369
  %v642 = vpack.c.b16 %v372, %v370
  %v643 = vpack.c.b16 %v375, %v373
  %v644 = vpack.c.b16 %v376, %v374
  %v645 = vpack.c.b16 %v379, %v377
  %v646 = vpack.c.b16 %v380, %v378
  %v647 = vpack.c.b16 %v383, %v381
  %v648 = vpack.c.b16 %v384, %v382
  %v649 = vpack.c.b16 %v387, %v385
  %v650 = vpack.c.b16 %v388, %v386
  %v651 = vpack.c.b16 %v391, %v389
  %v652 = vpack.c.b16 %v392, %v390
  %v653 = vpack.c.b16 %v395, %v393
  %v654 = vpack.c.b16 %v396, %v394
  %v655 = vpack.c.b16 %v399, %v397
  %v656 = vpack.c.b16 %v400, %v398
  %v657 = vpack.c.b16 %v403, %v401
  %v658 = vpack.c.b16 %v404, %v402
  %v659 = vpack.c.b16 %v407, %v405
  %v660 = vpack.c.b16 %v408, %v406
  %v661 = vpack.c.b16 %v411, %v409
  %v662 = vpack.c.b16 %v412, %v410
  %v663 = vpack.c.b16 %v415, %v413
  %v664 = vpack.c.b16 %v416, %v414
  %v665 = vpack.c.b16 %v419, %v417
  %v666 = vpack.c.b16 %v420, %v418
  %v667 = vpack.c.b16 %v423, %v421
  %v668 = vpack.c.b16 %v424, %v422
  %v669 = vpack.c.b16 %v427, %v425
  %v670 = vpack.c.b16 %v428, %v426
  %v671 = vpack.c.b16 %v431, %v429
  %v672 = vpack.c.b16 %v432, %v430
  %v673 = vpack.c.b16 %v435, %v433
  %v674 = vpack.c.b16 %v436, %v434
  %v675 = vpack.c.b16 %v439, %v437
  %v676 = vpack.c.b16 %v440, %v438
  %v677 = vpack.c.b16 %v443, %v441
  %v678 = vpack.c.b16 %v444, %v442
  %v679 = vpack.c.b16 %v447, %v445
  %v680 = vpack.c.b16 %v448, %v446
  %v681 = vpack.c.b16 %v451, %v449
  %v682 = vpack.c.b16 %v452, %v450
  %v683 = vpack.c.b16 %v455, %v453
  %v684 = vpack.c.b16 %v456, %v454
  %v685 = vpack.c.b16 %v459, %v457
  %v686 = vpack.c.b16 %v460, %v458
  %v687 = vpack.c.b16 %v463, %v461
  %v688 = vpack.c.b16 %v464, %v462
  %v689 = vpack.c.b16 %v467, %v465
  %v690 = vpack.c.b16 %v468, %v466
  %v691 = vpack.c.b16 %v471, %v469
  %v692 = vpack.c.b16 %v472, %v470
  %v693 = vpack.c.b16 %v475, %v473
  %v694 = vpack.c.b16 %v476, %v474
  %v695 = vpack.c.b16 %v479, %v477
  %v696 = vpack.c.b16 %v480, %v478
  %v697 = vpack.c.b16 %v483, %v481
  %v698 = vpack.c.b16 %v484, %v482
  %v699 = vpack.c.b16 %v487, %v485
  %v700 = vpack.c.b16 %v488, %v486
  %v701 = vpack.c.b16 %v491, %v489
  %v702 = vpack.c.b16 %v492, %v490
  %v703 = vpack.c.b16 %v495, %v493
  %v704 = vpack.c.b16 %v496, %v494
  %v705 = vpack.c.b16 %v499, %v497
  %v706 = vpack.c.b16 %v500, %v498
  %v707 = vpack.c.b16 %v503, %v501
  %v708 = vpack.c.b16 %v504, %v502
  %v709 = vpack.c.b16 %v507, %v505
  %v710 = vpack.c.b16 %v508, %v506
  %v711 = vpack.c.b16 %v511, %v509
  %v712 = vpack.c.b16 %v512, %v510
  %v713 = vpack.c.b16 %v515, %v513
  %v714 = vpack.c.b16 %v516, %v514
  %v715 = vpack.c.b16 %v519, %v517
  %v716 = vpack.c.b16 %v520, %v518
  %v717 = vpack.c.b16 %v523, %v521
  %v718 = vpack.c.b16 %v524, %v522
  %v719 = vpack.c.b16 %v527, %v525
  %v720 = vpack.c.b16 %v528, %v526
  %v721 = vpack.c.b16 %v531, %v529
  %v722 = vpack.c.b16 %v532, %v530
  %v723 = vpack.c.b16 %v535, %v533
  %v724 = vpack.c.b16 %v536, %v534
  %v725 = vpack.c.b16 %v539, %v537
  %v726 = vpack.c.b16 %v540, %v538
  %v727 = vpack.c.b16 %v543, %v541
  %v728 = vpack.c.b16 %v544, %v542
  %v729 = vpack.c.b16 %v547, %v545
  %v730 = vpack.c.b16 %v548, %v546
  %v731 = vpack.c.b16 %v551, %v549
  %v732 = vpack.c.b16 %v552, %v550
  %v733 = vpack.c.b16 %v555, %v553
  %v734 = vpack.c.b16 %v556, %v554
  %v735 = vpack.c.b16 %v559, %v557
  %v736 = vpack.c.b16 %v560, %v558
  %v737 = vpack.c.b16 %v563, %v561
  %v738 = vpack.c.b16 %v564, %v562
  %v739 = vpack.c.b16 %v567, %v565
  %v740 = vpack.c.b16 %v568, %v566
  %v741 = vpack.c.b16 %v571, %v569
  %v742 = vpack.c.b16 %v572, %v570
  %v743 = vpack.c.b16 %v575, %v573
  %v744 = vpack.c.b16 %v576, %v574
  %v745 = vpack.c.b16 %v579, %v577
  %v746 = vpack.c.b16 %v580, %v578
  %v747 = vpack.c.b16 %v583, %v581
  %v748 = vpack.c.b16 %v584, %v582
  %v749 = vpack.c.b16 %v587, %v585
  %v750 = vpack.c.b16 %v588, %v586
  %v751 = vpack.c.b16 %v591, %v589
  %v752 = vpack.c.b16 %v592, %v590
  %v753 = vpack.c.b16 %v595, %v593
  %v754 = vpack.c.b16 %v596, %v594
  %v755 = vpack.c.b16 %v599, %v597
  %v756 = vpack.c.b16 %v600, %v598
  %v757 = vpack.c.b16 %v603, %v601
  %v758 = vpack.c.b16 %v604, %v602
  %v759 = vpack.c.b16 %v607, %v605
  %v760 = vpack.c.b16 %v608, %v606
  %v761 = vpack.c.b16 %v611, %v609
  %v762 = vpack.c.b16 %v612, %v610
  %v763 = vpack.c.b16 %v615, %v613
  %v764 = vpack.c.b16 %v616, %v614
  %v765 = vpack.c.b16 %v619, %v617
  %v766 = vpack.c.b16 %v620, %v618
  %v767 = vpack.c.b16 %v623, %v621
  %v768 = vpack.c.b16 %v624, %v622
  %v868 = vunpack.c.l.b16 %v162
  %v869 = vunpack.c.l.b16 %v163
  %v870 = vunpack.c.l.b16 %v164
  %v871 = vunpack.c.l.b16 %v165
  %v872 = vunpack.c.l.b16 %v166
  %v873 = vunpack.c.l.b16 %v167
  %v874 = vunpack.c.l.b16 %v168
  %v875 = vunpack.c.l.b16 %v169
  %v876 = vunpack.c.l.b16 %v170
  %v877 = vunpack.c.l.b16 %v171
  %v878 = vunpack.c.l.b16 %v172
  %v879 = vunpack.c.l.b16 %v173
  %v880 = vunpack.c.l.b16 %v174
  %v881 = vunpack.c.l.b16 %v175
  %v882 = vunpack.c.l.b16 %v176
  %v883 = vunpack.c.l.b16 %v177
  %v884 = vunpack.c.l.b16 %v178
  %v885 = vunpack.c.l.b16 %v179
  %v886 = vunpack.c.l.b16 %v180
  %v887 = vunpack.c.l.b16 %v181
  %v888 = vunpack.c.l.b16 %v182
  %v889 = vunpack.c.l.b16 %v183
  %v890 = vunpack.c.l.b16 %v184
  %v891 = vunpack.c.l.b16 %v185
  %v892 = vunpack.c.l.b16 %v186
  %v893 = vunpack.c.l.b16 %v187
  %v894 = vunpack.c.l.b16 %v188
  %v895 = vpack.c.b16 %v869, %v868
  %v896 = vpack.c.b16 %v871, %v870
  %v897 = vpack.c.b16 %v873, %v872
  %v898 = vpack.c.b16 %v875, %v874
  %v899 = vpack.c.b16 %v877, %v876
  %v900 = vpack.c.b16 %v879, %v878
  %v901 = vpack.c.b16 %v881, %v880
  %v902 = vpack.c.b16 %v883, %v882
  %v903 = vpack.c.b16 %v885, %v884
  %v904 = vpack.c.b16 %v887, %v886
  %v905 = vpack.c.b16 %v889, %v888
  %v906 = vpack.c.b16 %v891, %v890
  %v907 = vpack.c.b16 %v893, %v892
  %v908 = vpack.c.b16 %v894, %v894
  %vm922 = vcmask 719872
  %v924 = vsel %vm922, %v626, 0
  %v927 = vsel %vm922, %v628, 0
  %v930 = vsel %vm922, %v630, 0
  %v933 = vsel %vm922, %v632, 0
  %v936 = vsel %vm922, %v634, 0
  %v939 = vsel %vm922, %v636, 0
  %v942 = vsel %vm922, %v638, 0
  %v945 = vsel %vm922, %v640, 0
  %v948 = vsel %vm922, %v642, 0
  %v951 = vsel %vm922, %v644, 0
  %v954 = vsel %vm922, %v646, 0
  %v957 = vsel %vm922, %v648, 0
  %v960 = vsel %vm922, %v650, 0
  %v963 = vsel %vm922, %v652, 0
  %v966 = vsel %vm922, %v654, 0
  %v969 = vsel %vm922, %v656, 0
  %v972 = vsel %vm922, %v658, 0
  %v975 = vsel %vm922, %v660, 0
  %v978 = vsel %vm922, %v662, 0
  %v981 = vsel %vm922, %v664, 0
  %v984 = vsel %vm922, %v666, 0
  %v987 = vsel %vm922, %v668, 0
  %v990 = vsel %vm922, %v670, 0
  %v993 = vsel %vm922, %v672, 0
  %v996 = vsel %vm922, %v674, 0
  %v999 = vsel %vm922, %v676, 0
  %v1002 = vsel %vm922, %v678, 0
  %v1005 = vsel %vm922, %v680, 0
  %v1008 = vsel %vm922, %v682, 0
  %v1011 = vsel %vm922, %v684, 0
  %v1014 = vsel %vm922, %v686, 0
  %v1017 = vsel %vm922, %v688, 0
  %v1020 = vsel %vm922, %v690, 0
  %v1023 = vsel %vm922, %v692, 0
  %v1026 = vsel %vm922, %v694, 0
  %v1029 = vsel %vm922, %v696, 0
  %v1032 = vsel %vm922, %v698, 0
  %v1035 = vsel %vm922, %v700, 0
  %v1038 = vsel %vm922, %v702, 0
  %v1041 = vsel %vm922, %v704, 0
  %v1044 = vsel %vm922, %v706, 0
  %v1047 = vsel %vm922, %v708, 0
  %v1050 = vsel %vm922, %v710, 0
  %v1053 = vsel %vm922, %v712, 0
  %v1056 = vsel %vm922, %v714, 0
  %v1059 = vsel %vm922, %v716, 0
  %v1062 = vsel %vm922, %v718, 0
  %v1065 = vsel %vm922, %v720, 0
  %v1068 = vsel %vm922, %v722, 0
  %v1071 = vsel %vm922, %v724, 0
  %v1074 = vsel %vm922, %v726, 0
  %v1077 = vsel %vm922, %v728, 0
  %v1080 = vsel %vm922, %v730, 0
  %v1083 = vsel %vm922, %v732, 0
  %v1086 = vsel %vm922, %v734, 0
  %v1089 = vsel %vm922, %v736, 0
  %v1092 = vsel %vm922, %v738, 0
  %v1095 = vsel %vm922, %v740, 0
  %v1098 = vsel %vm922, %v742, 0
  %v1101 = vsel %vm922, %v744, 0
  %v1104 = vsel %vm922, %v746, 0
  %v1107 = vsel %vm922, %v748, 0
  %v1110 = vsel %vm922, %v750, 0
  %v1113 = vsel %vm922, %v752, 0
  %v1116 = vsel %vm922, %v754, 0
  %v1119 = vsel %vm922, %v756, 0
  %v1122 = vsel %vm922, %v758, 0
  %v1125 = vsel %vm922, %v760, 0
  %v1128 = vsel %vm922, %v762, 0
  %v1131 = vsel %vm922, %v764, 0
  %v1134 = vsel %vm922, %v766, 0
  %v1137 = vsel %vm922, %v768, 0
  %vm1139 = vcmask 1043456
  %v1141 = vsel %vm1139, %v908, 0
  %1143 = vmatpush.bf16.msra.mxu0 %v902
  %1144 = vmatpush.bf16.msra.mxu0 %v901
  %1145 = vmatpush.bf16.msra.mxu0 %v900
  %1146 = vmatpush.bf16.msra.mxu0 %v899
  %1147 = vmatpush.bf16.msra.mxu0 %v898
  %1148 = vmatpush.bf16.msra.mxu0 %v897
  %1149 = vmatpush.bf16.msra.mxu0 %v896
  %1150 = vmatpush.bf16.msra.mxu0 %v895
  %1151 = vmatmul.bf16.gmra.mxu0 %v625
  %v1152 = vpop.f32.mrf.mxu0
  %v1153 = vadd.f32 %v191, %v1152
  %v1154 = vpop.f32.mrf.mxu0
  %v1155 = vadd.f32 %v191, %v1154
  %1156 = vmatmul.bf16.gmra.mxu0 %v627
  %v1157 = vpop.f32.mrf.mxu0
  %v1158 = vadd.f32 %v191, %v1157
  %v1159 = vpop.f32.mrf.mxu0
  %v1160 = vadd.f32 %v191, %v1159
  %1161 = vmatmul.bf16.gmra.mxu0 %v629
  %v1162 = vpop.f32.mrf.mxu0
  %v1163 = vadd.f32 %v191, %v1162
  %v1164 = vpop.f32.mrf.mxu0
  %v1165 = vadd.f32 %v191, %v1164
  %1166 = vmatmul.bf16.gmra.mxu0 %v631
  %v1167 = vpop.f32.mrf.mxu0
  %v1168 = vadd.f32 %v191, %v1167
  %v1169 = vpop.f32.mrf.mxu0
  %v1170 = vadd.f32 %v191, %v1169
  %1171 = vmatmul.bf16.gmra.mxu0 %v633
  %v1172 = vpop.f32.mrf.mxu0
  %v1173 = vadd.f32 %v191, %v1172
  %v1174 = vpop.f32.mrf.mxu0
  %v1175 = vadd.f32 %v191, %v1174
  %1176 = vmatmul.bf16.gmra.mxu0 %v635
  %v1177 = vpop.f32.mrf.mxu0
  %v1178 = vadd.f32 %v191, %v1177
  %v1179 = vpop.f32.mrf.mxu0
  %v1180 = vadd.f32 %v191, %v1179
  %1181 = vmatmul.bf16.gmra.mxu0 %v637
  %v1182 = vpop.f32.mrf.mxu0
  %v1183 = vadd.f32 %v191, %v1182
  %v1184 = vpop.f32.mrf.mxu0
  %v1185 = vadd.f32 %v191, %v1184
  %1186 = vmatmul.bf16.gmra.mxu0 %v639
  %v1187 = vpop.f32.mrf.mxu0
  %v1188 = vadd.f32 %v191, %v1187
  %v1189 = vpop.f32.mrf.mxu0
  %v1190 = vadd.f32 %v191, %v1189
  %1191 = vmatmul.bf16.gmra.mxu0 %v641
  %v1192 = vpop.f32.mrf.mxu0
  %v1193 = vadd.f32 %v191, %v1192
  %v1194 = vpop.f32.mrf.mxu0
  %v1195 = vadd.f32 %v191, %v1194
  %1196 = vmatmul.bf16.gmra.mxu0 %v643
  %v1197 = vpop.f32.mrf.mxu0
  %v1198 = vadd.f32 %v191, %v1197
  %v1199 = vpop.f32.mrf.mxu0
  %v1200 = vadd.f32 %v191, %v1199
  %1201 = vmatmul.bf16.gmra.mxu0 %v645
  %v1202 = vpop.f32.mrf.mxu0
  %v1203 = vadd.f32 %v191, %v1202
  %v1204 = vpop.f32.mrf.mxu0
  %v1205 = vadd.f32 %v191, %v1204
  %1206 = vmatmul.bf16.gmra.mxu0 %v647
  %v1207 = vpop.f32.mrf.mxu0
  %v1208 = vadd.f32 %v191, %v1207
  %v1209 = vpop.f32.mrf.mxu0
  %v1210 = vadd.f32 %v191, %v1209
  %1211 = vmatmul.bf16.gmra.mxu0 %v649
  %v1212 = vpop.f32.mrf.mxu0
  %v1213 = vadd.f32 %v191, %v1212
  %v1214 = vpop.f32.mrf.mxu0
  %v1215 = vadd.f32 %v191, %v1214
  %1216 = vmatmul.bf16.gmra.mxu0 %v651
  %v1217 = vpop.f32.mrf.mxu0
  %v1218 = vadd.f32 %v191, %v1217
  %v1219 = vpop.f32.mrf.mxu0
  %v1220 = vadd.f32 %v191, %v1219
  %1221 = vmatmul.bf16.gmra.mxu0 %v653
  %v1222 = vpop.f32.mrf.mxu0
  %v1223 = vadd.f32 %v191, %v1222
  %v1224 = vpop.f32.mrf.mxu0
  %v1225 = vadd.f32 %v191, %v1224
  %1226 = vmatmul.bf16.gmra.mxu0 %v655
  %v1227 = vpop.f32.mrf.mxu0
  %v1228 = vadd.f32 %v191, %v1227
  %v1229 = vpop.f32.mrf.mxu0
  %v1230 = vadd.f32 %v191, %v1229
  %1231 = vmatmul.bf16.gmra.mxu0 %v657
  %v1232 = vpop.f32.mrf.mxu0
  %v1233 = vadd.f32 %v191, %v1232
  %v1234 = vpop.f32.mrf.mxu0
  %v1235 = vadd.f32 %v191, %v1234
  %1236 = vmatmul.bf16.gmra.mxu0 %v659
  %v1237 = vpop.f32.mrf.mxu0
  %v1238 = vadd.f32 %v191, %v1237
  %v1239 = vpop.f32.mrf.mxu0
  %v1240 = vadd.f32 %v191, %v1239
  %1241 = vmatmul.bf16.gmra.mxu0 %v661
  %v1242 = vpop.f32.mrf.mxu0
  %v1243 = vadd.f32 %v191, %v1242
  %v1244 = vpop.f32.mrf.mxu0
  %v1245 = vadd.f32 %v191, %v1244
  %1246 = vmatmul.bf16.gmra.mxu0 %v663
  %v1247 = vpop.f32.mrf.mxu0
  %v1248 = vadd.f32 %v191, %v1247
  %v1249 = vpop.f32.mrf.mxu0
  %v1250 = vadd.f32 %v191, %v1249
  %1251 = vmatmul.bf16.gmra.mxu0 %v665
  %v1252 = vpop.f32.mrf.mxu0
  %v1253 = vadd.f32 %v191, %v1252
  %v1254 = vpop.f32.mrf.mxu0
  %v1255 = vadd.f32 %v191, %v1254
  %1256 = vmatmul.bf16.gmra.mxu0 %v667
  %v1257 = vpop.f32.mrf.mxu0
  %v1258 = vadd.f32 %v191, %v1257
  %v1259 = vpop.f32.mrf.mxu0
  %v1260 = vadd.f32 %v191, %v1259
  %1261 = vmatmul.bf16.gmra.mxu0 %v669
  %v1262 = vpop.f32.mrf.mxu0
  %v1263 = vadd.f32 %v191, %v1262
  %v1264 = vpop.f32.mrf.mxu0
  %v1265 = vadd.f32 %v191, %v1264
  %1266 = vmatmul.bf16.gmra.mxu0 %v671
  %v1267 = vpop.f32.mrf.mxu0
  %v1268 = vadd.f32 %v191, %v1267
  %v1269 = vpop.f32.mrf.mxu0
  %v1270 = vadd.f32 %v191, %v1269
  %1271 = vmatmul.bf16.gmra.mxu0 %v673
  %v1272 = vpop.f32.mrf.mxu0
  %v1273 = vadd.f32 %v191, %v1272
  %v1274 = vpop.f32.mrf.mxu0
  %v1275 = vadd.f32 %v191, %v1274
  %1276 = vmatmul.bf16.gmra.mxu0 %v675
  %v1277 = vpop.f32.mrf.mxu0
  %v1278 = vadd.f32 %v191, %v1277
  %v1279 = vpop.f32.mrf.mxu0
  %v1280 = vadd.f32 %v191, %v1279
  %1281 = vmatmul.bf16.gmra.mxu0 %v677
  %v1282 = vpop.f32.mrf.mxu0
  %v1283 = vadd.f32 %v191, %v1282
  %v1284 = vpop.f32.mrf.mxu0
  %v1285 = vadd.f32 %v191, %v1284
  %1286 = vmatmul.bf16.gmra.mxu0 %v679
  %v1287 = vpop.f32.mrf.mxu0
  %v1288 = vadd.f32 %v191, %v1287
  %v1289 = vpop.f32.mrf.mxu0
  %v1290 = vadd.f32 %v191, %v1289
  %1291 = vmatmul.bf16.gmra.mxu0 %v681
  %v1292 = vpop.f32.mrf.mxu0
  %v1293 = vadd.f32 %v191, %v1292
  %v1294 = vpop.f32.mrf.mxu0
  %v1295 = vadd.f32 %v191, %v1294
  %1296 = vmatmul.bf16.gmra.mxu0 %v683
  %v1297 = vpop.f32.mrf.mxu0
  %v1298 = vadd.f32 %v191, %v1297
  %v1299 = vpop.f32.mrf.mxu0
  %v1300 = vadd.f32 %v191, %v1299
  %1301 = vmatmul.bf16.gmra.mxu0 %v685
  %v1302 = vpop.f32.mrf.mxu0
  %v1303 = vadd.f32 %v191, %v1302
  %v1304 = vpop.f32.mrf.mxu0
  %v1305 = vadd.f32 %v191, %v1304
  %1306 = vmatmul.bf16.gmra.mxu0 %v687
  %v1307 = vpop.f32.mrf.mxu0
  %v1308 = vadd.f32 %v191, %v1307
  %v1309 = vpop.f32.mrf.mxu0
  %v1310 = vadd.f32 %v191, %v1309
  %1311 = vmatmul.bf16.gmra.mxu0 %v689
  %v1312 = vpop.f32.mrf.mxu0
  %v1313 = vadd.f32 %v191, %v1312
  %v1314 = vpop.f32.mrf.mxu0
  %v1315 = vadd.f32 %v191, %v1314
  %1316 = vmatmul.bf16.gmra.mxu0 %v691
  %v1317 = vpop.f32.mrf.mxu0
  %v1318 = vadd.f32 %v191, %v1317
  %v1319 = vpop.f32.mrf.mxu0
  %v1320 = vadd.f32 %v191, %v1319
  %1321 = vmatmul.bf16.gmra.mxu0 %v693
  %v1322 = vpop.f32.mrf.mxu0
  %v1323 = vadd.f32 %v191, %v1322
  %v1324 = vpop.f32.mrf.mxu0
  %v1325 = vadd.f32 %v191, %v1324
  %1326 = vmatmul.bf16.gmra.mxu0 %v695
  %v1327 = vpop.f32.mrf.mxu0
  %v1328 = vadd.f32 %v191, %v1327
  %v1329 = vpop.f32.mrf.mxu0
  %v1330 = vadd.f32 %v191, %v1329
  %1331 = vmatmul.bf16.gmra.mxu0 %v697
  %v1332 = vpop.f32.mrf.mxu0
  %v1333 = vadd.f32 %v191, %v1332
  %v1334 = vpop.f32.mrf.mxu0
  %v1335 = vadd.f32 %v191, %v1334
  %1336 = vmatmul.bf16.gmra.mxu0 %v699
  %v1337 = vpop.f32.mrf.mxu0
  %v1338 = vadd.f32 %v191, %v1337
  %v1339 = vpop.f32.mrf.mxu0
  %v1340 = vadd.f32 %v191, %v1339
  %1341 = vmatmul.bf16.gmra.mxu0 %v701
  %v1342 = vpop.f32.mrf.mxu0
  %v1343 = vadd.f32 %v191, %v1342
  %v1344 = vpop.f32.mrf.mxu0
  %v1345 = vadd.f32 %v191, %v1344
  %1346 = vmatmul.bf16.gmra.mxu0 %v703
  %v1347 = vpop.f32.mrf.mxu0
  %v1348 = vadd.f32 %v191, %v1347
  %v1349 = vpop.f32.mrf.mxu0
  %v1350 = vadd.f32 %v191, %v1349
  %1351 = vmatmul.bf16.gmra.mxu0 %v705
  %v1352 = vpop.f32.mrf.mxu0
  %v1353 = vadd.f32 %v191, %v1352
  %v1354 = vpop.f32.mrf.mxu0
  %v1355 = vadd.f32 %v191, %v1354
  %1356 = vmatmul.bf16.gmra.mxu0 %v707
  %v1357 = vpop.f32.mrf.mxu0
  %v1358 = vadd.f32 %v191, %v1357
  %v1359 = vpop.f32.mrf.mxu0
  %v1360 = vadd.f32 %v191, %v1359
  %1361 = vmatmul.bf16.gmra.mxu0 %v709
  %v1362 = vpop.f32.mrf.mxu0
  %v1363 = vadd.f32 %v191, %v1362
  %v1364 = vpop.f32.mrf.mxu0
  %v1365 = vadd.f32 %v191, %v1364
  %1366 = vmatmul.bf16.gmra.mxu0 %v711
  %v1367 = vpop.f32.mrf.mxu0
  %v1368 = vadd.f32 %v191, %v1367
  %v1369 = vpop.f32.mrf.mxu0
  %v1370 = vadd.f32 %v191, %v1369
  %1371 = vmatmul.bf16.gmra.mxu0 %v713
  %v1372 = vpop.f32.mrf.mxu0
  %v1373 = vadd.f32 %v191, %v1372
  %v1374 = vpop.f32.mrf.mxu0
  %v1375 = vadd.f32 %v191, %v1374
  %1376 = vmatmul.bf16.gmra.mxu0 %v715
  %v1377 = vpop.f32.mrf.mxu0
  %v1378 = vadd.f32 %v191, %v1377
  %v1379 = vpop.f32.mrf.mxu0
  %v1380 = vadd.f32 %v191, %v1379
  %1381 = vmatmul.bf16.gmra.mxu0 %v717
  %v1382 = vpop.f32.mrf.mxu0
  %v1383 = vadd.f32 %v191, %v1382
  %v1384 = vpop.f32.mrf.mxu0
  %v1385 = vadd.f32 %v191, %v1384
  %1386 = vmatmul.bf16.gmra.mxu0 %v719
  %v1387 = vpop.f32.mrf.mxu0
  %v1388 = vadd.f32 %v191, %v1387
  %v1389 = vpop.f32.mrf.mxu0
  %v1390 = vadd.f32 %v191, %v1389
  %1391 = vmatmul.bf16.gmra.mxu0 %v721
  %v1392 = vpop.f32.mrf.mxu0
  %v1393 = vadd.f32 %v191, %v1392
  %v1394 = vpop.f32.mrf.mxu0
  %v1395 = vadd.f32 %v191, %v1394
  %1396 = vmatmul.bf16.gmra.mxu0 %v723
  %v1397 = vpop.f32.mrf.mxu0
  %v1398 = vadd.f32 %v191, %v1397
  %v1399 = vpop.f32.mrf.mxu0
  %v1400 = vadd.f32 %v191, %v1399
  %1401 = vmatmul.bf16.gmra.mxu0 %v725
  %v1402 = vpop.f32.mrf.mxu0
  %v1403 = vadd.f32 %v191, %v1402
  %v1404 = vpop.f32.mrf.mxu0
  %v1405 = vadd.f32 %v191, %v1404
  %1406 = vmatmul.bf16.gmra.mxu0 %v727
  %v1407 = vpop.f32.mrf.mxu0
  %v1408 = vadd.f32 %v191, %v1407
  %v1409 = vpop.f32.mrf.mxu0
  %v1410 = vadd.f32 %v191, %v1409
  %1411 = vmatmul.bf16.gmra.mxu0 %v729
  %v1412 = vpop.f32.mrf.mxu0
  %v1413 = vadd.f32 %v191, %v1412
  %v1414 = vpop.f32.mrf.mxu0
  %v1415 = vadd.f32 %v191, %v1414
  %1416 = vmatmul.bf16.gmra.mxu0 %v731
  %v1417 = vpop.f32.mrf.mxu0
  %v1418 = vadd.f32 %v191, %v1417
  %v1419 = vpop.f32.mrf.mxu0
  %v1420 = vadd.f32 %v191, %v1419
  %1421 = vmatmul.bf16.gmra.mxu0 %v733
  %v1422 = vpop.f32.mrf.mxu0
  %v1423 = vadd.f32 %v191, %v1422
  %v1424 = vpop.f32.mrf.mxu0
  %v1425 = vadd.f32 %v191, %v1424
  %1426 = vmatmul.bf16.gmra.mxu0 %v735
  %v1427 = vpop.f32.mrf.mxu0
  %v1428 = vadd.f32 %v191, %v1427
  %v1429 = vpop.f32.mrf.mxu0
  %v1430 = vadd.f32 %v191, %v1429
  %1431 = vmatmul.bf16.gmra.mxu0 %v737
  %v1432 = vpop.f32.mrf.mxu0
  %v1433 = vadd.f32 %v191, %v1432
  %v1434 = vpop.f32.mrf.mxu0
  %v1435 = vadd.f32 %v191, %v1434
  %1436 = vmatmul.bf16.gmra.mxu0 %v739
  %v1437 = vpop.f32.mrf.mxu0
  %v1438 = vadd.f32 %v191, %v1437
  %v1439 = vpop.f32.mrf.mxu0
  %v1440 = vadd.f32 %v191, %v1439
  %1441 = vmatmul.bf16.gmra.mxu0 %v741
  %v1442 = vpop.f32.mrf.mxu0
  %v1443 = vadd.f32 %v191, %v1442
  %v1444 = vpop.f32.mrf.mxu0
  %v1445 = vadd.f32 %v191, %v1444
  %1446 = vmatmul.bf16.gmra.mxu0 %v743
  %v1447 = vpop.f32.mrf.mxu0
  %v1448 = vadd.f32 %v191, %v1447
  %v1449 = vpop.f32.mrf.mxu0
  %v1450 = vadd.f32 %v191, %v1449
  %1451 = vmatmul.bf16.gmra.mxu0 %v745
  %v1452 = vpop.f32.mrf.mxu0
  %v1453 = vadd.f32 %v191, %v1452
  %v1454 = vpop.f32.mrf.mxu0
  %v1455 = vadd.f32 %v191, %v1454
  %1456 = vmatmul.bf16.gmra.mxu0 %v747
  %v1457 = vpop.f32.mrf.mxu0
  %v1458 = vadd.f32 %v191, %v1457
  %v1459 = vpop.f32.mrf.mxu0
  %v1460 = vadd.f32 %v191, %v1459
  %1461 = vmatmul.bf16.gmra.mxu0 %v749
  %v1462 = vpop.f32.mrf.mxu0
  %v1463 = vadd.f32 %v191, %v1462
  %v1464 = vpop.f32.mrf.mxu0
  %v1465 = vadd.f32 %v191, %v1464
  %1466 = vmatmul.bf16.gmra.mxu0 %v751
  %v1467 = vpop.f32.mrf.mxu0
  %v1468 = vadd.f32 %v191, %v1467
  %v1469 = vpop.f32.mrf.mxu0
  %v1470 = vadd.f32 %v191, %v1469
  %1471 = vmatmul.bf16.gmra.mxu0 %v753
  %v1472 = vpop.f32.mrf.mxu0
  %v1473 = vadd.f32 %v191, %v1472
  %v1474 = vpop.f32.mrf.mxu0
  %v1475 = vadd.f32 %v191, %v1474
  %1476 = vmatmul.bf16.gmra.mxu0 %v755
  %v1477 = vpop.f32.mrf.mxu0
  %v1478 = vadd.f32 %v191, %v1477
  %v1479 = vpop.f32.mrf.mxu0
  %v1480 = vadd.f32 %v191, %v1479
  %1481 = vmatmul.bf16.gmra.mxu0 %v757
  %v1482 = vpop.f32.mrf.mxu0
  %v1483 = vadd.f32 %v191, %v1482
  %v1484 = vpop.f32.mrf.mxu0
  %v1485 = vadd.f32 %v191, %v1484
  %1486 = vmatmul.bf16.gmra.mxu0 %v759
  %v1487 = vpop.f32.mrf.mxu0
  %v1488 = vadd.f32 %v191, %v1487
  %v1489 = vpop.f32.mrf.mxu0
  %v1490 = vadd.f32 %v191, %v1489
  %1491 = vmatmul.bf16.gmra.mxu0 %v761
  %v1492 = vpop.f32.mrf.mxu0
  %v1493 = vadd.f32 %v191, %v1492
  %v1494 = vpop.f32.mrf.mxu0
  %v1495 = vadd.f32 %v191, %v1494
  %1496 = vmatmul.bf16.gmra.mxu0 %v763
  %v1497 = vpop.f32.mrf.mxu0
  %v1498 = vadd.f32 %v191, %v1497
  %v1499 = vpop.f32.mrf.mxu0
  %v1500 = vadd.f32 %v191, %v1499
  %1501 = vmatmul.bf16.gmra.mxu0 %v765
  %v1502 = vpop.f32.mrf.mxu0
  %v1503 = vadd.f32 %v191, %v1502
  %v1504 = vpop.f32.mrf.mxu0
  %v1505 = vadd.f32 %v191, %v1504
  %1506 = vmatmul.bf16.gmra.mxu0 %v767
  %v1507 = vpop.f32.mrf.mxu0
  %v1508 = vadd.f32 %v191, %v1507
  %v1509 = vpop.f32.mrf.mxu0
  %v1510 = vadd.f32 %v191, %v1509
  %1511 = vdwg.mxu0
  %1512 = vmatpush.bf16.msra.mxu0 0
  %1513 = vmatpush.bf16.msra.mxu0 0
  %1514 = vmatpush.bf16.msra.mxu0 %v1141
  %1515 = vmatpush.bf16.msra.mxu0 %v907
  %1516 = vmatpush.bf16.msra.mxu0 %v906
  %1517 = vmatpush.bf16.msra.mxu0 %v905
  %1518 = vmatpush.bf16.msra.mxu0 %v904
  %1519 = vmatpush.bf16.msra.mxu0 %v903
  %1520 = vmatmul.bf16.gmra.mxu0 %v924
  %v1521 = vpop.f32.mrf.mxu0
  %v1522 = vadd.f32 %v1153, %v1521
  %v1523 = vpop.f32.mrf.mxu0
  %v1524 = vadd.f32 %v1155, %v1523
  %1525 = vmatmul.bf16.gmra.mxu0 %v927
  %v1526 = vpop.f32.mrf.mxu0
  %v1527 = vadd.f32 %v1158, %v1526
  %v1528 = vpop.f32.mrf.mxu0
  %v1529 = vadd.f32 %v1160, %v1528
  %1530 = vmatmul.bf16.gmra.mxu0 %v930
  %v1531 = vpop.f32.mrf.mxu0
  %v1532 = vadd.f32 %v1163, %v1531
  %v1533 = vpop.f32.mrf.mxu0
  %v1534 = vadd.f32 %v1165, %v1533
  %1535 = vmatmul.bf16.gmra.mxu0 %v933
  %v1536 = vpop.f32.mrf.mxu0
  %v1537 = vadd.f32 %v1168, %v1536
  %v1538 = vpop.f32.mrf.mxu0
  %v1539 = vadd.f32 %v1170, %v1538
  %1540 = vmatmul.bf16.gmra.mxu0 %v936
  %v1541 = vpop.f32.mrf.mxu0
  %v1542 = vadd.f32 %v1173, %v1541
  %v1543 = vpop.f32.mrf.mxu0
  %v1544 = vadd.f32 %v1175, %v1543
  %1545 = vmatmul.bf16.gmra.mxu0 %v939
  %v1546 = vpop.f32.mrf.mxu0
  %v1547 = vadd.f32 %v1178, %v1546
  %v1548 = vpop.f32.mrf.mxu0
  %v1549 = vadd.f32 %v1180, %v1548
  %1550 = vmatmul.bf16.gmra.mxu0 %v942
  %v1551 = vpop.f32.mrf.mxu0
  %v1552 = vadd.f32 %v1183, %v1551
  %v1553 = vpop.f32.mrf.mxu0
  %v1554 = vadd.f32 %v1185, %v1553
  %1555 = vmatmul.bf16.gmra.mxu0 %v945
  %v1556 = vpop.f32.mrf.mxu0
  %v1557 = vadd.f32 %v1188, %v1556
  %v1558 = vpop.f32.mrf.mxu0
  %v1559 = vadd.f32 %v1190, %v1558
  %1560 = vmatmul.bf16.gmra.mxu0 %v948
  %v1561 = vpop.f32.mrf.mxu0
  %v1562 = vadd.f32 %v1193, %v1561
  %v1563 = vpop.f32.mrf.mxu0
  %v1564 = vadd.f32 %v1195, %v1563
  %1565 = vmatmul.bf16.gmra.mxu0 %v951
  %v1566 = vpop.f32.mrf.mxu0
  %v1567 = vadd.f32 %v1198, %v1566
  %v1568 = vpop.f32.mrf.mxu0
  %v1569 = vadd.f32 %v1200, %v1568
  %1570 = vmatmul.bf16.gmra.mxu0 %v954
  %v1571 = vpop.f32.mrf.mxu0
  %v1572 = vadd.f32 %v1203, %v1571
  %v1573 = vpop.f32.mrf.mxu0
  %v1574 = vadd.f32 %v1205, %v1573
  %1575 = vmatmul.bf16.gmra.mxu0 %v957
  %v1576 = vpop.f32.mrf.mxu0
  %v1577 = vadd.f32 %v1208, %v1576
  %v1578 = vpop.f32.mrf.mxu0
  %v1579 = vadd.f32 %v1210, %v1578
  %1580 = vmatmul.bf16.gmra.mxu0 %v960
  %v1581 = vpop.f32.mrf.mxu0
  %v1582 = vadd.f32 %v1213, %v1581
  %v1583 = vpop.f32.mrf.mxu0
  %v1584 = vadd.f32 %v1215, %v1583
  %1585 = vmatmul.bf16.gmra.mxu0 %v963
  %v1586 = vpop.f32.mrf.mxu0
  %v1587 = vadd.f32 %v1218, %v1586
  %v1588 = vpop.f32.mrf.mxu0
  %v1589 = vadd.f32 %v1220, %v1588
  %1590 = vmatmul.bf16.gmra.mxu0 %v966
  %v1591 = vpop.f32.mrf.mxu0
  %v1592 = vadd.f32 %v1223, %v1591
  %v1593 = vpop.f32.mrf.mxu0
  %v1594 = vadd.f32 %v1225, %v1593
  %1595 = vmatmul.bf16.gmra.mxu0 %v969
  %v1596 = vpop.f32.mrf.mxu0
  %v1597 = vadd.f32 %v1228, %v1596
  %v1598 = vpop.f32.mrf.mxu0
  %v1599 = vadd.f32 %v1230, %v1598
  %1600 = vmatmul.bf16.gmra.mxu0 %v972
  %v1601 = vpop.f32.mrf.mxu0
  %v1602 = vadd.f32 %v1233, %v1601
  %v1603 = vpop.f32.mrf.mxu0
  %v1604 = vadd.f32 %v1235, %v1603
  %1605 = vmatmul.bf16.gmra.mxu0 %v975
  %v1606 = vpop.f32.mrf.mxu0
  %v1607 = vadd.f32 %v1238, %v1606
  %v1608 = vpop.f32.mrf.mxu0
  %v1609 = vadd.f32 %v1240, %v1608
  %1610 = vmatmul.bf16.gmra.mxu0 %v978
  %v1611 = vpop.f32.mrf.mxu0
  %v1612 = vadd.f32 %v1243, %v1611
  %v1613 = vpop.f32.mrf.mxu0
  %v1614 = vadd.f32 %v1245, %v1613
  %1615 = vmatmul.bf16.gmra.mxu0 %v981
  %v1616 = vpop.f32.mrf.mxu0
  %v1617 = vadd.f32 %v1248, %v1616
  %v1618 = vpop.f32.mrf.mxu0
  %v1619 = vadd.f32 %v1250, %v1618
  %1620 = vmatmul.bf16.gmra.mxu0 %v984
  %v1621 = vpop.f32.mrf.mxu0
  %v1622 = vadd.f32 %v1253, %v1621
  %v1623 = vpop.f32.mrf.mxu0
  %v1624 = vadd.f32 %v1255, %v1623
  %1625 = vmatmul.bf16.gmra.mxu0 %v987
  %v1626 = vpop.f32.mrf.mxu0
  %v1627 = vadd.f32 %v1258, %v1626
  %v1628 = vpop.f32.mrf.mxu0
  %v1629 = vadd.f32 %v1260, %v1628
  %1630 = vmatmul.bf16.gmra.mxu0 %v990
  %v1631 = vpop.f32.mrf.mxu0
  %v1632 = vadd.f32 %v1263, %v1631
  %v1633 = vpop.f32.mrf.mxu0
  %v1634 = vadd.f32 %v1265, %v1633
  %1635 = vmatmul.bf16.gmra.mxu0 %v993
  %v1636 = vpop.f32.mrf.mxu0
  %v1637 = vadd.f32 %v1268, %v1636
  %v1638 = vpop.f32.mrf.mxu0
  %v1639 = vadd.f32 %v1270, %v1638
  %1640 = vmatmul.bf16.gmra.mxu0 %v996
  %v1641 = vpop.f32.mrf.mxu0
  %v1642 = vadd.f32 %v1273, %v1641
  %v1643 = vpop.f32.mrf.mxu0
  %v1644 = vadd.f32 %v1275, %v1643
  %1645 = vmatmul.bf16.gmra.mxu0 %v999
  %v1646 = vpop.f32.mrf.mxu0
  %v1647 = vadd.f32 %v1278, %v1646
  %v1648 = vpop.f32.mrf.mxu0
  %v1649 = vadd.f32 %v1280, %v1648
  %1650 = vmatmul.bf16.gmra.mxu0 %v1002
  %v1651 = vpop.f32.mrf.mxu0
  %v1652 = vadd.f32 %v1283, %v1651
  %v1653 = vpop.f32.mrf.mxu0
  %v1654 = vadd.f32 %v1285, %v1653
  %1655 = vmatmul.bf16.gmra.mxu0 %v1005
  %v1656 = vpop.f32.mrf.mxu0
  %v1657 = vadd.f32 %v1288, %v1656
  %v1658 = vpop.f32.mrf.mxu0
  %v1659 = vadd.f32 %v1290, %v1658
  %1660 = vmatmul.bf16.gmra.mxu0 %v1008
  %v1661 = vpop.f32.mrf.mxu0
  %v1662 = vadd.f32 %v1293, %v1661
  %v1663 = vpop.f32.mrf.mxu0
  %v1664 = vadd.f32 %v1295, %v1663
  %1665 = vmatmul.bf16.gmra.mxu0 %v1011
  %v1666 = vpop.f32.mrf.mxu0
  %v1667 = vadd.f32 %v1298, %v1666
  %v1668 = vpop.f32.mrf.mxu0
  %v1669 = vadd.f32 %v1300, %v1668
  %1670 = vmatmul.bf16.gmra.mxu0 %v1014
  %v1671 = vpop.f32.mrf.mxu0
  %v1672 = vadd.f32 %v1303, %v1671
  %v1673 = vpop.f32.mrf.mxu0
  %v1674 = vadd.f32 %v1305, %v1673
  %1675 = vmatmul.bf16.gmra.mxu0 %v1017
  %v1676 = vpop.f32.mrf.mxu0
  %v1677 = vadd.f32 %v1308, %v1676
  %v1678 = vpop.f32.mrf.mxu0
  %v1679 = vadd.f32 %v1310, %v1678
  %1680 = vmatmul.bf16.gmra.mxu0 %v1020
  %v1681 = vpop.f32.mrf.mxu0
  %v1682 = vadd.f32 %v1313, %v1681
  %v1683 = vpop.f32.mrf.mxu0
  %v1684 = vadd.f32 %v1315, %v1683
  %1685 = vmatmul.bf16.gmra.mxu0 %v1023
  %v1686 = vpop.f32.mrf.mxu0
  %v1687 = vadd.f32 %v1318, %v1686
  %v1688 = vpop.f32.mrf.mxu0
  %v1689 = vadd.f32 %v1320, %v1688
  %1690 = vmatmul.bf16.gmra.mxu0 %v1026
  %v1691 = vpop.f32.mrf.mxu0
  %v1692 = vadd.f32 %v1323, %v1691
  %v1693 = vpop.f32.mrf.mxu0
  %v1694 = vadd.f32 %v1325, %v1693
  %1695 = vmatmul.bf16.gmra.mxu0 %v1029
  %v1696 = vpop.f32.mrf.mxu0
  %v1697 = vadd.f32 %v1328, %v1696
  %v1698 = vpop.f32.mrf.mxu0
  %v1699 = vadd.f32 %v1330, %v1698
  %1700 = vmatmul.bf16.gmra.mxu0 %v1032
  %v1701 = vpop.f32.mrf.mxu0
  %v1702 = vadd.f32 %v1333, %v1701
  %v1703 = vpop.f32.mrf.mxu0
  %v1704 = vadd.f32 %v1335, %v1703
  %1705 = vmatmul.bf16.gmra.mxu0 %v1035
  %v1706 = vpop.f32.mrf.mxu0
  %v1707 = vadd.f32 %v1338, %v1706
  %v1708 = vpop.f32.mrf.mxu0
  %v1709 = vadd.f32 %v1340, %v1708
  %1710 = vmatmul.bf16.gmra.mxu0 %v1038
  %v1711 = vpop.f32.mrf.mxu0
  %v1712 = vadd.f32 %v1343, %v1711
  %v1713 = vpop.f32.mrf.mxu0
  %v1714 = vadd.f32 %v1345, %v1713
  %1715 = vmatmul.bf16.gmra.mxu0 %v1041
  %v1716 = vpop.f32.mrf.mxu0
  %v1717 = vadd.f32 %v1348, %v1716
  %v1718 = vpop.f32.mrf.mxu0
  %v1719 = vadd.f32 %v1350, %v1718
  %1720 = vmatmul.bf16.gmra.mxu0 %v1044
  %v1721 = vpop.f32.mrf.mxu0
  %v1722 = vadd.f32 %v1353, %v1721
  %v1723 = vpop.f32.mrf.mxu0
  %v1724 = vadd.f32 %v1355, %v1723
  %1725 = vmatmul.bf16.gmra.mxu0 %v1047
  %v1726 = vpop.f32.mrf.mxu0
  %v1727 = vadd.f32 %v1358, %v1726
  %v1728 = vpop.f32.mrf.mxu0
  %v1729 = vadd.f32 %v1360, %v1728
  %1730 = vmatmul.bf16.gmra.mxu0 %v1050
  %v1731 = vpop.f32.mrf.mxu0
  %v1732 = vadd.f32 %v1363, %v1731
  %v1733 = vpop.f32.mrf.mxu0
  %v1734 = vadd.f32 %v1365, %v1733
  %1735 = vmatmul.bf16.gmra.mxu0 %v1053
  %v1736 = vpop.f32.mrf.mxu0
  %v1737 = vadd.f32 %v1368, %v1736
  %v1738 = vpop.f32.mrf.mxu0
  %v1739 = vadd.f32 %v1370, %v1738
  %1740 = vmatmul.bf16.gmra.mxu0 %v1056
  %v1741 = vpop.f32.mrf.mxu0
  %v1742 = vadd.f32 %v1373, %v1741
  %v1743 = vpop.f32.mrf.mxu0
  %v1744 = vadd.f32 %v1375, %v1743
  %1745 = vmatmul.bf16.gmra.mxu0 %v1059
  %v1746 = vpop.f32.mrf.mxu0
  %v1747 = vadd.f32 %v1378, %v1746
  %v1748 = vpop.f32.mrf.mxu0
  %v1749 = vadd.f32 %v1380, %v1748
  %1750 = vmatmul.bf16.gmra.mxu0 %v1062
  %v1751 = vpop.f32.mrf.mxu0
  %v1752 = vadd.f32 %v1383, %v1751
  %v1753 = vpop.f32.mrf.mxu0
  %v1754 = vadd.f32 %v1385, %v1753
  %1755 = vmatmul.bf16.gmra.mxu0 %v1065
  %v1756 = vpop.f32.mrf.mxu0
  %v1757 = vadd.f32 %v1388, %v1756
  %v1758 = vpop.f32.mrf.mxu0
  %v1759 = vadd.f32 %v1390, %v1758
  %1760 = vmatmul.bf16.gmra.mxu0 %v1068
  %v1761 = vpop.f32.mrf.mxu0
  %v1762 = vadd.f32 %v1393, %v1761
  %v1763 = vpop.f32.mrf.mxu0
  %v1764 = vadd.f32 %v1395, %v1763
  %1765 = vmatmul.bf16.gmra.mxu0 %v1071
  %v1766 = vpop.f32.mrf.mxu0
  %v1767 = vadd.f32 %v1398, %v1766
  %v1768 = vpop.f32.mrf.mxu0
  %v1769 = vadd.f32 %v1400, %v1768
  %1770 = vmatmul.bf16.gmra.mxu0 %v1074
  %v1771 = vpop.f32.mrf.mxu0
  %v1772 = vadd.f32 %v1403, %v1771
  %v1773 = vpop.f32.mrf.mxu0
  %v1774 = vadd.f32 %v1405, %v1773
  %1775 = vmatmul.bf16.gmra.mxu0 %v1077
  %v1776 = vpop.f32.mrf.mxu0
  %v1777 = vadd.f32 %v1408, %v1776
  %v1778 = vpop.f32.mrf.mxu0
  %v1779 = vadd.f32 %v1410, %v1778
  %1780 = vmatmul.bf16.gmra.mxu0 %v1080
  %v1781 = vpop.f32.mrf.mxu0
  %v1782 = vadd.f32 %v1413, %v1781
  %v1783 = vpop.f32.mrf.mxu0
  %v1784 = vadd.f32 %v1415, %v1783
  %1785 = vmatmul.bf16.gmra.mxu0 %v1083
  %v1786 = vpop.f32.mrf.mxu0
  %v1787 = vadd.f32 %v1418, %v1786
  %v1788 = vpop.f32.mrf.mxu0
  %v1789 = vadd.f32 %v1420, %v1788
  %1790 = vmatmul.bf16.gmra.mxu0 %v1086
  %v1791 = vpop.f32.mrf.mxu0
  %v1792 = vadd.f32 %v1423, %v1791
  %v1793 = vpop.f32.mrf.mxu0
  %v1794 = vadd.f32 %v1425, %v1793
  %1795 = vmatmul.bf16.gmra.mxu0 %v1089
  %v1796 = vpop.f32.mrf.mxu0
  %v1797 = vadd.f32 %v1428, %v1796
  %v1798 = vpop.f32.mrf.mxu0
  %v1799 = vadd.f32 %v1430, %v1798
  %1800 = vmatmul.bf16.gmra.mxu0 %v1092
  %v1801 = vpop.f32.mrf.mxu0
  %v1802 = vadd.f32 %v1433, %v1801
  %v1803 = vpop.f32.mrf.mxu0
  %v1804 = vadd.f32 %v1435, %v1803
  %1805 = vmatmul.bf16.gmra.mxu0 %v1095
  %v1806 = vpop.f32.mrf.mxu0
  %v1807 = vadd.f32 %v1438, %v1806
  %v1808 = vpop.f32.mrf.mxu0
  %v1809 = vadd.f32 %v1440, %v1808
  %1810 = vmatmul.bf16.gmra.mxu0 %v1098
  %v1811 = vpop.f32.mrf.mxu0
  %v1812 = vadd.f32 %v1443, %v1811
  %v1813 = vpop.f32.mrf.mxu0
  %v1814 = vadd.f32 %v1445, %v1813
  %1815 = vmatmul.bf16.gmra.mxu0 %v1101
  %v1816 = vpop.f32.mrf.mxu0
  %v1817 = vadd.f32 %v1448, %v1816
  %v1818 = vpop.f32.mrf.mxu0
  %v1819 = vadd.f32 %v1450, %v1818
  %1820 = vmatmul.bf16.gmra.mxu0 %v1104
  %v1821 = vpop.f32.mrf.mxu0
  %v1822 = vadd.f32 %v1453, %v1821
  %v1823 = vpop.f32.mrf.mxu0
  %v1824 = vadd.f32 %v1455, %v1823
  %1825 = vmatmul.bf16.gmra.mxu0 %v1107
  %v1826 = vpop.f32.mrf.mxu0
  %v1827 = vadd.f32 %v1458, %v1826
  %v1828 = vpop.f32.mrf.mxu0
  %v1829 = vadd.f32 %v1460, %v1828
  %1830 = vmatmul.bf16.gmra.mxu0 %v1110
  %v1831 = vpop.f32.mrf.mxu0
  %v1832 = vadd.f32 %v1463, %v1831
  %v1833 = vpop.f32.mrf.mxu0
  %v1834 = vadd.f32 %v1465, %v1833
  %1835 = vmatmul.bf16.gmra.mxu0 %v1113
  %v1836 = vpop.f32.mrf.mxu0
  %v1837 = vadd.f32 %v1468, %v1836
  %v1838 = vpop.f32.mrf.mxu0
  %v1839 = vadd.f32 %v1470, %v1838
  %1840 = vmatmul.bf16.gmra.mxu0 %v1116
  %v1841 = vpop.f32.mrf.mxu0
  %v1842 = vadd.f32 %v1473, %v1841
  %v1843 = vpop.f32.mrf.mxu0
  %v1844 = vadd.f32 %v1475, %v1843
  %1845 = vmatmul.bf16.gmra.mxu0 %v1119
  %v1846 = vpop.f32.mrf.mxu0
  %v1847 = vadd.f32 %v1478, %v1846
  %v1848 = vpop.f32.mrf.mxu0
  %v1849 = vadd.f32 %v1480, %v1848
  %1850 = vmatmul.bf16.gmra.mxu0 %v1122
  %v1851 = vpop.f32.mrf.mxu0
  %v1852 = vadd.f32 %v1483, %v1851
  %v1853 = vpop.f32.mrf.mxu0
  %v1854 = vadd.f32 %v1485, %v1853
  %1855 = vmatmul.bf16.gmra.mxu0 %v1125
  %v1856 = vpop.f32.mrf.mxu0
  %v1857 = vadd.f32 %v1488, %v1856
  %v1858 = vpop.f32.mrf.mxu0
  %v1859 = vadd.f32 %v1490, %v1858
  %1860 = vmatmul.bf16.gmra.mxu0 %v1128
  %v1861 = vpop.f32.mrf.mxu0
  %v1862 = vadd.f32 %v1493, %v1861
  %v1863 = vpop.f32.mrf.mxu0
  %v1864 = vadd.f32 %v1495, %v1863
  %1865 = vmatmul.bf16.gmra.mxu0 %v1131
  %v1866 = vpop.f32.mrf.mxu0
  %v1867 = vadd.f32 %v1498, %v1866
  %v1868 = vpop.f32.mrf.mxu0
  %v1869 = vadd.f32 %v1500, %v1868
  %1870 = vmatmul.bf16.gmra.mxu0 %v1134
  %v1871 = vpop.f32.mrf.mxu0
  %v1872 = vadd.f32 %v1503, %v1871
  %v1873 = vpop.f32.mrf.mxu0
  %v1874 = vadd.f32 %v1505, %v1873
  %1875 = vmatmul.bf16.gmra.mxu0 %v1137
  %v1876 = vpop.f32.mrf.mxu0
  %v1877 = vadd.f32 %v1508, %v1876
  %v1878 = vpop.f32.mrf.mxu0
  %v1879 = vadd.f32 %v1510, %v1878
  %1880 = vdwg.mxu0
  %v1881 = vmul.f32 %v1522, 1.442695
  %v1882 = vpow.pop %v1881
  %v1883 = vmul.f32 %v1524, 1.442695
  %v1884 = vpow.pop %v1883
  %v1885 = vmul.f32 %v1527, 1.442695
  %v1886 = vpow.pop %v1885
  %v1887 = vmul.f32 %v1529, 1.442695
  %v1888 = vpow.pop %v1887
  %v1889 = vmul.f32 %v1532, 1.442695
  %v1890 = vpow.pop %v1889
  %v1891 = vmul.f32 %v1534, 1.442695
  %v1892 = vpow.pop %v1891
  %v1893 = vmul.f32 %v1537, 1.442695
  %v1894 = vpow.pop %v1893
  %v1895 = vmul.f32 %v1539, 1.442695
  %v1896 = vpow.pop %v1895
  %v1897 = vmul.f32 %v1542, 1.442695
  %v1898 = vpow.pop %v1897
  %v1899 = vmul.f32 %v1544, 1.442695
  %v1900 = vpow.pop %v1899
  %v1901 = vmul.f32 %v1547, 1.442695
  %v1902 = vpow.pop %v1901
  %v1903 = vmul.f32 %v1549, 1.442695
  %v1904 = vpow.pop %v1903
  %v1905 = vmul.f32 %v1552, 1.442695
  %v1906 = vpow.pop %v1905
  %v1907 = vmul.f32 %v1554, 1.442695
  %v1908 = vpow.pop %v1907
  %v1909 = vmul.f32 %v1557, 1.442695
  %v1910 = vpow.pop %v1909
  %v1911 = vmul.f32 %v1559, 1.442695
  %v1912 = vpow.pop %v1911
  %v1913 = vmul.f32 %v1562, 1.442695
  %v1914 = vpow.pop %v1913
  %v1915 = vmul.f32 %v1564, 1.442695
  %v1916 = vpow.pop %v1915
  %v1917 = vmul.f32 %v1567, 1.442695
  %v1918 = vpow.pop %v1917
  %v1919 = vmul.f32 %v1569, 1.442695
  %v1920 = vpow.pop %v1919
  %v1921 = vmul.f32 %v1572, 1.442695
  %v1922 = vpow.pop %v1921
  %v1923 = vmul.f32 %v1574, 1.442695
  %v1924 = vpow.pop %v1923
  %v1925 = vmul.f32 %v1577, 1.442695
  %v1926 = vpow.pop %v1925
  %v1927 = vmul.f32 %v1579, 1.442695
  %v1928 = vpow.pop %v1927
  %v1929 = vmul.f32 %v1582, 1.442695
  %v1930 = vpow.pop %v1929
  %v1931 = vmul.f32 %v1584, 1.442695
  %v1932 = vpow.pop %v1931
  %v1933 = vmul.f32 %v1587, 1.442695
  %v1934 = vpow.pop %v1933
  %v1935 = vmul.f32 %v1589, 1.442695
  %v1936 = vpow.pop %v1935
  %v1937 = vmul.f32 %v1592, 1.442695
  %v1938 = vpow.pop %v1937
  %v1939 = vmul.f32 %v1594, 1.442695
  %v1940 = vpow.pop %v1939
  %v1941 = vmul.f32 %v1597, 1.442695
  %v1942 = vpow.pop %v1941
  %v1943 = vmul.f32 %v1599, 1.442695
  %v1944 = vpow.pop %v1943
  %v1945 = vmul.f32 %v1602, 1.442695
  %v1946 = vpow.pop %v1945
  %v1947 = vmul.f32 %v1604, 1.442695
  %v1948 = vpow.pop %v1947
  %v1949 = vmul.f32 %v1607, 1.442695
  %v1950 = vpow.pop %v1949
  %v1951 = vmul.f32 %v1609, 1.442695
  %v1952 = vpow.pop %v1951
  %v1953 = vmul.f32 %v1612, 1.442695
  %v1954 = vpow.pop %v1953
  %v1955 = vmul.f32 %v1614, 1.442695
  %v1956 = vpow.pop %v1955
  %v1957 = vmul.f32 %v1617, 1.442695
  %v1958 = vpow.pop %v1957
  %v1959 = vmul.f32 %v1619, 1.442695
  %v1960 = vpow.pop %v1959
  %v1961 = vmul.f32 %v1622, 1.442695
  %v1962 = vpow.pop %v1961
  %v1963 = vmul.f32 %v1624, 1.442695
  %v1964 = vpow.pop %v1963
  %v1965 = vmul.f32 %v1627, 1.442695
  %v1966 = vpow.pop %v1965
  %v1967 = vmul.f32 %v1629, 1.442695
  %v1968 = vpow.pop %v1967
  %v1969 = vmul.f32 %v1632, 1.442695
  %v1970 = vpow.pop %v1969
  %v1971 = vmul.f32 %v1634, 1.442695
  %v1972 = vpow.pop %v1971
  %v1973 = vmul.f32 %v1637, 1.442695
  %v1974 = vpow.pop %v1973
  %v1975 = vmul.f32 %v1639, 1.442695
  %v1976 = vpow.pop %v1975
  %v1977 = vmul.f32 %v1642, 1.442695
  %v1978 = vpow.pop %v1977
  %v1979 = vmul.f32 %v1644, 1.442695
  %v1980 = vpow.pop %v1979
  %v1981 = vmul.f32 %v1647, 1.442695
  %v1982 = vpow.pop %v1981
  %v1983 = vmul.f32 %v1649, 1.442695
  %v1984 = vpow.pop %v1983
  %v1985 = vmul.f32 %v1652, 1.442695
  %v1986 = vpow.pop %v1985
  %v1987 = vmul.f32 %v1654, 1.442695
  %v1988 = vpow.pop %v1987
  %v1989 = vmul.f32 %v1657, 1.442695
  %v1990 = vpow.pop %v1989
  %v1991 = vmul.f32 %v1659, 1.442695
  %v1992 = vpow.pop %v1991
  %v1993 = vmul.f32 %v1662, 1.442695
  %v1994 = vpow.pop %v1993
  %v1995 = vmul.f32 %v1664, 1.442695
  %v1996 = vpow.pop %v1995
  %v1997 = vmul.f32 %v1667, 1.442695
  %v1998 = vpow.pop %v1997
  %v1999 = vmul.f32 %v1669, 1.442695
  %v2000 = vpow.pop %v1999
  %v2001 = vmul.f32 %v1672, 1.442695
  %v2002 = vpow.pop %v2001
  %v2003 = vmul.f32 %v1674, 1.442695
  %v2004 = vpow.pop %v2003
  %v2005 = vmul.f32 %v1677, 1.442695
  %v2006 = vpow.pop %v2005
  %v2007 = vmul.f32 %v1679, 1.442695
  %v2008 = vpow.pop %v2007
  %v2009 = vmul.f32 %v1682, 1.442695
  %v2010 = vpow.pop %v2009
  %v2011 = vmul.f32 %v1684, 1.442695
  %v2012 = vpow.pop %v2011
  %v2013 = vmul.f32 %v1687, 1.442695
  %v2014 = vpow.pop %v2013
  %v2015 = vmul.f32 %v1689, 1.442695
  %v2016 = vpow.pop %v2015
  %v2017 = vmul.f32 %v1692, 1.442695
  %v2018 = vpow.pop %v2017
  %v2019 = vmul.f32 %v1694, 1.442695
  %v2020 = vpow.pop %v2019
  %v2021 = vmul.f32 %v1697, 1.442695
  %v2022 = vpow.pop %v2021
  %v2023 = vmul.f32 %v1699, 1.442695
  %v2024 = vpow.pop %v2023
  %v2025 = vmul.f32 %v1702, 1.442695
  %v2026 = vpow.pop %v2025
  %v2027 = vmul.f32 %v1704, 1.442695
  %v2028 = vpow.pop %v2027
  %v2029 = vmul.f32 %v1707, 1.442695
  %v2030 = vpow.pop %v2029
  %v2031 = vmul.f32 %v1709, 1.442695
  %v2032 = vpow.pop %v2031
  %v2033 = vmul.f32 %v1712, 1.442695
  %v2034 = vpow.pop %v2033
  %v2035 = vmul.f32 %v1714, 1.442695
  %v2036 = vpow.pop %v2035
  %v2037 = vmul.f32 %v1717, 1.442695
  %v2038 = vpow.pop %v2037
  %v2039 = vmul.f32 %v1719, 1.442695
  %v2040 = vpow.pop %v2039
  %v2041 = vmul.f32 %v1722, 1.442695
  %v2042 = vpow.pop %v2041
  %v2043 = vmul.f32 %v1724, 1.442695
  %v2044 = vpow.pop %v2043
  %v2045 = vmul.f32 %v1727, 1.442695
  %v2046 = vpow.pop %v2045
  %v2047 = vmul.f32 %v1729, 1.442695
  %v2048 = vpow.pop %v2047
  %v2049 = vmul.f32 %v1732, 1.442695
  %v2050 = vpow.pop %v2049
  %v2051 = vmul.f32 %v1734, 1.442695
  %v2052 = vpow.pop %v2051
  %v2053 = vmul.f32 %v1737, 1.442695
  %v2054 = vpow.pop %v2053
  %v2055 = vmul.f32 %v1739, 1.442695
  %v2056 = vpow.pop %v2055
  %v2057 = vmul.f32 %v1742, 1.442695
  %v2058 = vpow.pop %v2057
  %v2059 = vmul.f32 %v1744, 1.442695
  %v2060 = vpow.pop %v2059
  %v2061 = vmul.f32 %v1747, 1.442695
  %v2062 = vpow.pop %v2061
  %v2063 = vmul.f32 %v1749, 1.442695
  %v2064 = vpow.pop %v2063
  %v2065 = vmul.f32 %v1752, 1.442695
  %v2066 = vpow.pop %v2065
  %v2067 = vmul.f32 %v1754, 1.442695
  %v2068 = vpow.pop %v2067
  %v2069 = vmul.f32 %v1757, 1.442695
  %v2070 = vpow.pop %v2069
  %v2071 = vmul.f32 %v1759, 1.442695
  %v2072 = vpow.pop %v2071
  %v2073 = vmul.f32 %v1762, 1.442695
  %v2074 = vpow.pop %v2073
  %v2075 = vmul.f32 %v1764, 1.442695
  %v2076 = vpow.pop %v2075
  %v2077 = vmul.f32 %v1767, 1.442695
  %v2078 = vpow.pop %v2077
  %v2079 = vmul.f32 %v1769, 1.442695
  %v2080 = vpow.pop %v2079
  %v2081 = vmul.f32 %v1772, 1.442695
  %v2082 = vpow.pop %v2081
  %v2083 = vmul.f32 %v1774, 1.442695
  %v2084 = vpow.pop %v2083
  %v2085 = vmul.f32 %v1777, 1.442695
  %v2086 = vpow.pop %v2085
  %v2087 = vmul.f32 %v1779, 1.442695
  %v2088 = vpow.pop %v2087
  %v2089 = vmul.f32 %v1782, 1.442695
  %v2090 = vpow.pop %v2089
  %v2091 = vmul.f32 %v1784, 1.442695
  %v2092 = vpow.pop %v2091
  %v2093 = vmul.f32 %v1787, 1.442695
  %v2094 = vpow.pop %v2093
  %v2095 = vmul.f32 %v1789, 1.442695
  %v2096 = vpow.pop %v2095
  %v2097 = vmul.f32 %v1792, 1.442695
  %v2098 = vpow.pop %v2097
  %v2099 = vmul.f32 %v1794, 1.442695
  %v2100 = vpow.pop %v2099
  %v2101 = vmul.f32 %v1797, 1.442695
  %v2102 = vpow.pop %v2101
  %v2103 = vmul.f32 %v1799, 1.442695
  %v2104 = vpow.pop %v2103
  %v2105 = vmul.f32 %v1802, 1.442695
  %v2106 = vpow.pop %v2105
  %v2107 = vmul.f32 %v1804, 1.442695
  %v2108 = vpow.pop %v2107
  %v2109 = vmul.f32 %v1807, 1.442695
  %v2110 = vpow.pop %v2109
  %v2111 = vmul.f32 %v1809, 1.442695
  %v2112 = vpow.pop %v2111
  %v2113 = vmul.f32 %v1812, 1.442695
  %v2114 = vpow.pop %v2113
  %v2115 = vmul.f32 %v1814, 1.442695
  %v2116 = vpow.pop %v2115
  %v2117 = vmul.f32 %v1817, 1.442695
  %v2118 = vpow.pop %v2117
  %v2119 = vmul.f32 %v1819, 1.442695
  %v2120 = vpow.pop %v2119
  %v2121 = vmul.f32 %v1822, 1.442695
  %v2122 = vpow.pop %v2121
  %v2123 = vmul.f32 %v1824, 1.442695
  %v2124 = vpow.pop %v2123
  %v2125 = vmul.f32 %v1827, 1.442695
  %v2126 = vpow.pop %v2125
  %v2127 = vmul.f32 %v1829, 1.442695
  %v2128 = vpow.pop %v2127
  %v2129 = vmul.f32 %v1832, 1.442695
  %v2130 = vpow.pop %v2129
  %v2131 = vmul.f32 %v1834, 1.442695
  %v2132 = vpow.pop %v2131
  %v2133 = vmul.f32 %v1837, 1.442695
  %v2134 = vpow.pop %v2133
  %v2135 = vmul.f32 %v1839, 1.442695
  %v2136 = vpow.pop %v2135
  %v2137 = vmul.f32 %v1842, 1.442695
  %v2138 = vpow.pop %v2137
  %v2139 = vmul.f32 %v1844, 1.442695
  %v2140 = vpow.pop %v2139
  %v2141 = vmul.f32 %v1847, 1.442695
  %v2142 = vpow.pop %v2141
  %v2143 = vmul.f32 %v1849, 1.442695
  %v2144 = vpow.pop %v2143
  %v2145 = vmul.f32 %v1852, 1.442695
  %v2146 = vpow.pop %v2145
  %v2147 = vmul.f32 %v1854, 1.442695
  %v2148 = vpow.pop %v2147
  %v2149 = vmul.f32 %v1857, 1.442695
  %v2150 = vpow.pop %v2149
  %v2151 = vmul.f32 %v1859, 1.442695
  %v2152 = vpow.pop %v2151
  %v2153 = vmul.f32 %v1862, 1.442695
  %v2154 = vpow.pop %v2153
  %v2155 = vmul.f32 %v1864, 1.442695
  %v2156 = vpow.pop %v2155
  %v2157 = vmul.f32 %v1867, 1.442695
  %v2158 = vpow.pop %v2157
  %v2159 = vmul.f32 %v1869, 1.442695
  %v2160 = vpow.pop %v2159
  %v2161 = vmul.f32 %v1872, 1.442695
  %v2162 = vpow.pop %v2161
  %v2163 = vmul.f32 %v1874, 1.442695
  %v2164 = vpow.pop %v2163
  %v2165 = vmul.f32 %v1877, 1.442695
  %v2166 = vpow.pop %v2165
  %v2167 = vmul.f32 %v1879, 1.442695
  %v2168 = vpow.pop %v2167
  %v2169 = vld [vmem:[%s3] sm:$0xff]
  %v2170 = vld [vmem:[%s3 + $0x8] sm:$0xff]
  %v2171 = vld [vmem:[%s3 + $0x10] sm:$0xff]
  %v2172 = vld [vmem:[%s3 + $0x18] sm:$0xff]
  %v2173 = vld [vmem:[%s3 + $0x20] sm:$0xff]
  %v2174 = vld [vmem:[%s3 + $0x28] sm:$0xff]
  %v2175 = vld [vmem:[%s3 + $0x30] sm:$0xff]
  %v2176 = vld [vmem:[%s3 + $0x38] sm:$0xff]
  %v2177 = vld [vmem:[%s3 + $0x40] sm:$0xff]
  %v2178 = vld [vmem:[%s3 + $0x48] sm:$0xff]
  %v2179 = vld [vmem:[%s3 + $0x50] sm:$0xff]
  %v2180 = vld [vmem:[%s3 + $0x58] sm:$0xff]
  %v2181 = vld [vmem:[%s3 + $0x60] sm:$0xff]
  %v2182 = vld [vmem:[%s3 + $0x68] sm:$0xff]
  %v2183 = vld [vmem:[%s3 + $0x70] sm:$0xff]
  %v2184 = vld [vmem:[%s3 + $0x78] sm:$0xff]
  %v2185 = vld [vmem:[%s3 + $0x80] sm:$0xff]
  %v2186 = vld [vmem:[%s3 + $0x88] sm:$0xff]
  %v2187 = vld [vmem:[%s3 + $0x90] sm:$0xff]
  %v2188 = vld [vmem:[%s3 + $0x98] sm:$0xff]
  %v2189 = vld [vmem:[%s3 + $0xa0] sm:$0xff]
  %v2190 = vld [vmem:[%s3 + $0xa8] sm:$0xff]
  %v2191 = vld [vmem:[%s3 + $0xb0] sm:$0xff]
  %v2192 = vld [vmem:[%s3 + $0xb8] sm:$0xff]
  %v2193 = vld [vmem:[%s3 + $0xc0] sm:$0xff]
  %v2194 = vld [vmem:[%s3 + $0xc8] sm:$0xff]
  %v2195 = vld [vmem:[%s3 + $0xd0] sm:$0xff]
  %v2196 = vld [vmem:[%s3 + $0xd8] sm:$0xff]
  %v2197 = vld [vmem:[%s3 + $0xe0] sm:$0xff]
  %v2198 = vld [vmem:[%s3 + $0xe8] sm:$0xff]
  %v2199 = vld [vmem:[%s3 + $0xf0] sm:$0xff]
  %v2200 = vld [vmem:[%s3 + $0xf8] sm:$0xff]
  %v2201 = vld [vmem:[%s3 + $0x100] sm:$0xff]
  %v2202 = vld [vmem:[%s3 + $0x108] sm:$0xff]
  %v2203 = vld [vmem:[%s3 + $0x110] sm:$0xff]
  %v2204 = vld [vmem:[%s3 + $0x118] sm:$0xff]
  %v2205 = vld [vmem:[%s3 + $0x120] sm:$0xff]
  %v2206 = vld [vmem:[%s3 + $0x128] sm:$0xff]
  %v2207 = vld [vmem:[%s3 + $0x130] sm:$0xff]
  %v2208 = vld [vmem:[%s3 + $0x138] sm:$0xff]
  %v2209 = vld [vmem:[%s3 + $0x140] sm:$0xff]
  %v2210 = vld [vmem:[%s3 + $0x148] sm:$0xff]
  %v2211 = vld [vmem:[%s3 + $0x150] sm:$0xff]
  %v2212 = vld [vmem:[%s3 + $0x158] sm:$0xff]
  %v2213 = vld [vmem:[%s3 + $0x160] sm:$0xff]
  %v2214 = vld [vmem:[%s3 + $0x168] sm:$0xff]
  %v2215 = vld [vmem:[%s3 + $0x170] sm:$0xff]
  %v2216 = vld [vmem:[%s3 + $0x178] sm:$0xff]
  %v2217 = vld [vmem:[%s3 + $0x180] sm:$0xff]
  %v2218 = vld [vmem:[%s3 + $0x188] sm:$0xff]
  %v2219 = vld [vmem:[%s3 + $0x190] sm:$0xff]
  %v2220 = vld [vmem:[%s3 + $0x198] sm:$0xff]
  %v2221 = vld [vmem:[%s3 + $0x1a0] sm:$0xff]
  %v2222 = vld [vmem:[%s3 + $0x1a8] sm:$0xff]
  %v2223 = vld [vmem:[%s3 + $0x1b0] sm:$0xff]
  %v2224 = vld [vmem:[%s3 + $0x1b8] sm:$0xff]
  %v2225 = vld [vmem:[%s3 + $0x1c0] sm:$0xff]
  %v2226 = vld [vmem:[%s3 + $0x1c8] sm:$0xff]
  %v2227 = vld [vmem:[%s3 + $0x1d0] sm:$0xff]
  %v2228 = vld [vmem:[%s3 + $0x1d8] sm:$0xff]
  %v2229 = vld [vmem:[%s3 + $0x1e0] sm:$0xff]
  %v2230 = vld [vmem:[%s3 + $0x1e8] sm:$0xff]
  %v2231 = vld [vmem:[%s3 + $0x1f0] sm:$0xff]
  %v2232 = vld [vmem:[%s3 + $0x1f8] sm:$0xff]
  %v2233 = vld [vmem:[%s3 + $0x200] sm:$0xff]
  %v2234 = vld [vmem:[%s3 + $0x208] sm:$0xff]
  %v2235 = vld [vmem:[%s3 + $0x210] sm:$0xff]
  %v2236 = vld [vmem:[%s3 + $0x218] sm:$0xff]
  %v2237 = vld [vmem:[%s3 + $0x220] sm:$0xff]
  %v2238 = vld [vmem:[%s3 + $0x228] sm:$0xff]
  %v2239 = vld [vmem:[%s3 + $0x230] sm:$0xff]
  %v2240 = vld [vmem:[%s3 + $0x238] sm:$0xff]
  %v2241 = vld [vmem:[%s3 + $0x240] sm:$0xff]
  %v2242 = vld [vmem:[%s3 + $0x248] sm:$0xff]
  %v2243 = vld [vmem:[%s3 + $0x250] sm:$0xff]
  %v2244 = vld [vmem:[%s3 + $0x258] sm:$0xff]
  %v2245 = vld [vmem:[%s3 + $0x260] sm:$0xff]
  %v2246 = vld [vmem:[%s3 + $0x268] sm:$0xff]
  %v2247 = vld [vmem:[%s3 + $0x270] sm:$0xff]
  %v2248 = vld [vmem:[%s3 + $0x278] sm:$0xff]
  %v2249 = vld [vmem:[%s3 + $0x280] sm:$0xff]
  %v2250 = vld [vmem:[%s3 + $0x288] sm:$0xff]
  %v2251 = vld [vmem:[%s3 + $0x290] sm:$0xff]
  %v2252 = vld [vmem:[%s3 + $0x298] sm:$0xff]
  %v2253 = vld [vmem:[%s3 + $0x2a0] sm:$0xff]
  %v2254 = vld [vmem:[%s3 + $0x2a8] sm:$0xff]
  %v2255 = vld [vmem:[%s3 + $0x2b0] sm:$0xff]
  %v2256 = vld [vmem:[%s3 + $0x2b8] sm:$0xff]
  %v2257 = vld [vmem:[%s3 + $0x2c0] sm:$0xff]
  %v2258 = vld [vmem:[%s3 + $0x2c8] sm:$0xff]
  %v2259 = vld [vmem:[%s3 + $0x2d0] sm:$0xff]
  %v2260 = vld [vmem:[%s3 + $0x2d8] sm:$0xff]
  %v2261 = vld [vmem:[%s3 + $0x2e0] sm:$0xff]
  %v2262 = vld [vmem:[%s3 + $0x2e8] sm:$0xff]
  %v2263 = vld [vmem:[%s3 + $0x2f0] sm:$0xff]
  %v2264 = vld [vmem:[%s3 + $0x2f8] sm:$0xff]
  %v2265 = vld [vmem:[%s3 + $0x300] sm:$0xff]
  %v2266 = vld [vmem:[%s3 + $0x308] sm:$0xff]
  %v2267 = vld [vmem:[%s3 + $0x310] sm:$0xff]
  %v2268 = vld [vmem:[%s3 + $0x318] sm:$0xff]
  %v2269 = vld [vmem:[%s3 + $0x320] sm:$0xff]
  %v2270 = vld [vmem:[%s3 + $0x328] sm:$0xff]
  %v2271 = vld [vmem:[%s3 + $0x330] sm:$0xff]
  %v2272 = vld [vmem:[%s3 + $0x338] sm:$0xff]
  %v2273 = vld [vmem:[%s3 + $0x340] sm:$0xff]
  %v2274 = vld [vmem:[%s3 + $0x348] sm:$0xff]
  %v2275 = vld [vmem:[%s3 + $0x350] sm:$0xff]
  %v2276 = vld [vmem:[%s3 + $0x358] sm:$0xff]
  %v2277 = vld [vmem:[%s3 + $0x360] sm:$0xff]
  %v2278 = vld [vmem:[%s3 + $0x368] sm:$0xff]
  %v2279 = vld [vmem:[%s3 + $0x370] sm:$0xff]
  %v2280 = vld [vmem:[%s3 + $0x378] sm:$0xff]
  %v2281 = vld [vmem:[%s3 + $0x380] sm:$0xff]
  %v2282 = vld [vmem:[%s3 + $0x388] sm:$0xff]
  %v2283 = vld [vmem:[%s3 + $0x390] sm:$0xff]
  %v2284 = vld [vmem:[%s3 + $0x398] sm:$0xff]
  %v2285 = vld [vmem:[%s3 + $0x3a0] sm:$0xff]
  %v2286 = vld [vmem:[%s3 + $0x3a8] sm:$0xff]
  %v2287 = vld [vmem:[%s3 + $0x3b0] sm:$0xff]
  %v2288 = vld [vmem:[%s3 + $0x3b8] sm:$0xff]
  %v2289 = vld [vmem:[%s3 + $0x3c0] sm:$0xff]
  %v2290 = vld [vmem:[%s3 + $0x3c8] sm:$0xff]
  %v2291 = vld [vmem:[%s3 + $0x3d0] sm:$0xff]
  %v2292 = vld [vmem:[%s3 + $0x3d8] sm:$0xff]
  %v2293 = vld [vmem:[%s3 + $0x3e0] sm:$0xff]
  %v2294 = vld [vmem:[%s3 + $0x3e8] sm:$0xff]
  %v2295 = vld [vmem:[%s3 + $0x3f0] sm:$0xff]
  %v2296 = vld [vmem:[%s3 + $0x3f8] sm:$0xff]
  %v2297 = vld [vmem:[%s3 + $0x400] sm:$0xff]
  %v2298 = vld [vmem:[%s3 + $0x408] sm:$0xff]
  %v2299 = vld [vmem:[%s3 + $0x410] sm:$0xff]
  %v2300 = vld [vmem:[%s3 + $0x418] sm:$0xff]
  %v2301 = vld [vmem:[%s3 + $0x420] sm:$0xff]
  %v2302 = vld [vmem:[%s3 + $0x428] sm:$0xff]
  %v2303 = vld [vmem:[%s3 + $0x430] sm:$0xff]
  %v2304 = vld [vmem:[%s3 + $0x438] sm:$0xff]
  %v2305 = vld [vmem:[%s3 + $0x440] sm:$0xff]
  %v2306 = vld [vmem:[%s3 + $0x448] sm:$0xff]
  %v2307 = vld [vmem:[%s3 + $0x450] sm:$0xff]
  %v2308 = vld [vmem:[%s3 + $0x458] sm:$0xff]
  %v2309 = vld [vmem:[%s3 + $0x460] sm:$0xff]
  %v2310 = vld [vmem:[%s3 + $0x468] sm:$0xff]
  %v2311 = vld [vmem:[%s3 + $0x470] sm:$0xff]
  %v2312 = vld [vmem:[%s3 + $0x478] sm:$0xff]
  %2457 = vrot.lane.b32.xlu0 %v2169, 1
  %v2458 = vpop.permute.xlu0 %2457
  %2459 = vrot.lane.b32.xlu0 %v2170, 1
  %v2460 = vpop.permute.xlu0 %2459
  %2461 = vrot.lane.b32.xlu0 %v2171, 1
  %v2462 = vpop.permute.xlu0 %2461
  %2463 = vrot.lane.b32.xlu0 %v2172, 1
  %v2464 = vpop.permute.xlu0 %2463
  %2465 = vrot.lane.b32.xlu0 %v2173, 1
  %v2466 = vpop.permute.xlu0 %2465
  %2467 = vrot.lane.b32.xlu0 %v2174, 1
  %v2468 = vpop.permute.xlu0 %2467
  %2469 = vrot.lane.b32.xlu0 %v2175, 1
  %v2470 = vpop.permute.xlu0 %2469
  %2471 = vrot.lane.b32.xlu0 %v2176, 1
  %v2472 = vpop.permute.xlu0 %2471
  %2473 = vrot.lane.b32.xlu0 %v2177, 1
  %v2474 = vpop.permute.xlu0 %2473
  %2475 = vrot.lane.b32.xlu0 %v2178, 1
  %v2476 = vpop.permute.xlu0 %2475
  %2477 = vrot.lane.b32.xlu0 %v2179, 1
  %v2478 = vpop.permute.xlu0 %2477
  %2479 = vrot.lane.b32.xlu0 %v2180, 1
  %v2480 = vpop.permute.xlu0 %2479
  %2481 = vrot.lane.b32.xlu0 %v2181, 1
  %v2482 = vpop.permute.xlu0 %2481
  %2483 = vrot.lane.b32.xlu0 %v2182, 1
  %v2484 = vpop.permute.xlu0 %2483
  %2485 = vrot.lane.b32.xlu0 %v2183, 1
  %v2486 = vpop.permute.xlu0 %2485
  %2487 = vrot.lane.b32.xlu0 %v2184, 1
  %v2488 = vpop.permute.xlu0 %2487
  %2489 = vrot.lane.b32.xlu0 %v2185, 1
  %v2490 = vpop.permute.xlu0 %2489
  %2491 = vrot.lane.b32.xlu0 %v2186, 1
  %v2492 = vpop.permute.xlu0 %2491
  %2493 = vrot.lane.b32.xlu0 %v2187, 1
  %v2494 = vpop.permute.xlu0 %2493
  %2495 = vrot.lane.b32.xlu0 %v2188, 1
  %v2496 = vpop.permute.xlu0 %2495
  %2497 = vrot.lane.b32.xlu0 %v2189, 1
  %v2498 = vpop.permute.xlu0 %2497
  %2499 = vrot.lane.b32.xlu0 %v2190, 1
  %v2500 = vpop.permute.xlu0 %2499
  %2501 = vrot.lane.b32.xlu0 %v2191, 1
  %v2502 = vpop.permute.xlu0 %2501
  %2503 = vrot.lane.b32.xlu0 %v2192, 1
  %v2504 = vpop.permute.xlu0 %2503
  %2505 = vrot.lane.b32.xlu0 %v2193, 1
  %v2506 = vpop.permute.xlu0 %2505
  %2507 = vrot.lane.b32.xlu0 %v2194, 1
  %v2508 = vpop.permute.xlu0 %2507
  %2509 = vrot.lane.b32.xlu0 %v2195, 1
  %v2510 = vpop.permute.xlu0 %2509
  %2511 = vrot.lane.b32.xlu0 %v2196, 1
  %v2512 = vpop.permute.xlu0 %2511
  %2513 = vrot.lane.b32.xlu0 %v2197, 1
  %v2514 = vpop.permute.xlu0 %2513
  %2515 = vrot.lane.b32.xlu0 %v2198, 1
  %v2516 = vpop.permute.xlu0 %2515
  %2517 = vrot.lane.b32.xlu0 %v2199, 1
  %v2518 = vpop.permute.xlu0 %2517
  %2519 = vrot.lane.b32.xlu0 %v2200, 1
  %v2520 = vpop.permute.xlu0 %2519
  %2521 = vrot.lane.b32.xlu0 %v2201, 1
  %v2522 = vpop.permute.xlu0 %2521
  %2523 = vrot.lane.b32.xlu0 %v2202, 1
  %v2524 = vpop.permute.xlu0 %2523
  %2525 = vrot.lane.b32.xlu0 %v2203, 1
  %v2526 = vpop.permute.xlu0 %2525
  %2527 = vrot.lane.b32.xlu0 %v2204, 1
  %v2528 = vpop.permute.xlu0 %2527
  %2529 = vrot.lane.b32.xlu0 %v2205, 1
  %v2530 = vpop.permute.xlu0 %2529
  %2531 = vrot.lane.b32.xlu0 %v2206, 1
  %v2532 = vpop.permute.xlu0 %2531
  %2533 = vrot.lane.b32.xlu0 %v2207, 1
  %v2534 = vpop.permute.xlu0 %2533
  %2535 = vrot.lane.b32.xlu0 %v2208, 1
  %v2536 = vpop.permute.xlu0 %2535
  %2537 = vrot.lane.b32.xlu0 %v2209, 1
  %v2538 = vpop.permute.xlu0 %2537
  %2539 = vrot.lane.b32.xlu0 %v2210, 1
  %v2540 = vpop.permute.xlu0 %2539
  %2541 = vrot.lane.b32.xlu0 %v2211, 1
  %v2542 = vpop.permute.xlu0 %2541
  %2543 = vrot.lane.b32.xlu0 %v2212, 1
  %v2544 = vpop.permute.xlu0 %2543
  %2545 = vrot.lane.b32.xlu0 %v2213, 1
  %v2546 = vpop.permute.xlu0 %2545
  %2547 = vrot.lane.b32.xlu0 %v2214, 1
  %v2548 = vpop.permute.xlu0 %2547
  %2549 = vrot.lane.b32.xlu0 %v2215, 1
  %v2550 = vpop.permute.xlu0 %2549
  %2551 = vrot.lane.b32.xlu0 %v2216, 1
  %v2552 = vpop.permute.xlu0 %2551
  %2553 = vrot.lane.b32.xlu0 %v2217, 1
  %v2554 = vpop.permute.xlu0 %2553
  %2555 = vrot.lane.b32.xlu0 %v2218, 1
  %v2556 = vpop.permute.xlu0 %2555
  %2557 = vrot.lane.b32.xlu0 %v2219, 1
  %v2558 = vpop.permute.xlu0 %2557
  %2559 = vrot.lane.b32.xlu0 %v2220, 1
  %v2560 = vpop.permute.xlu0 %2559
  %2561 = vrot.lane.b32.xlu0 %v2221, 1
  %v2562 = vpop.permute.xlu0 %2561
  %2563 = vrot.lane.b32.xlu0 %v2222, 1
  %v2564 = vpop.permute.xlu0 %2563
  %2565 = vrot.lane.b32.xlu0 %v2223, 1
  %v2566 = vpop.permute.xlu0 %2565
  %2567 = vrot.lane.b32.xlu0 %v2224, 1
  %v2568 = vpop.permute.xlu0 %2567
  %2569 = vrot.lane.b32.xlu0 %v2225, 1
  %v2570 = vpop.permute.xlu0 %2569
  %2571 = vrot.lane.b32.xlu0 %v2226, 1
  %v2572 = vpop.permute.xlu0 %2571
  %2573 = vrot.lane.b32.xlu0 %v2227, 1
  %v2574 = vpop.permute.xlu0 %2573
  %2575 = vrot.lane.b32.xlu0 %v2228, 1
  %v2576 = vpop.permute.xlu0 %2575
  %2577 = vrot.lane.b32.xlu0 %v2229, 1
  %v2578 = vpop.permute.xlu0 %2577
  %2579 = vrot.lane.b32.xlu0 %v2230, 1
  %v2580 = vpop.permute.xlu0 %2579
  %2581 = vrot.lane.b32.xlu0 %v2231, 1
  %v2582 = vpop.permute.xlu0 %2581
  %2583 = vrot.lane.b32.xlu0 %v2232, 1
  %v2584 = vpop.permute.xlu0 %2583
  %2585 = vrot.lane.b32.xlu0 %v2233, 1
  %v2586 = vpop.permute.xlu0 %2585
  %2587 = vrot.lane.b32.xlu0 %v2234, 1
  %v2588 = vpop.permute.xlu0 %2587
  %2589 = vrot.lane.b32.xlu0 %v2235, 1
  %v2590 = vpop.permute.xlu0 %2589
  %2591 = vrot.lane.b32.xlu0 %v2236, 1
  %v2592 = vpop.permute.xlu0 %2591
  %2593 = vrot.lane.b32.xlu0 %v2237, 1
  %v2594 = vpop.permute.xlu0 %2593
  %2595 = vrot.lane.b32.xlu0 %v2238, 1
  %v2596 = vpop.permute.xlu0 %2595
  %2597 = vrot.lane.b32.xlu0 %v2239, 1
  %v2598 = vpop.permute.xlu0 %2597
  %2599 = vrot.lane.b32.xlu0 %v2240, 1
  %v2600 = vpop.permute.xlu0 %2599
  %2601 = vrot.lane.b32.xlu0 %v2241, 1
  %v2602 = vpop.permute.xlu0 %2601
  %2603 = vrot.lane.b32.xlu0 %v2242, 1
  %v2604 = vpop.permute.xlu0 %2603
  %2605 = vrot.lane.b32.xlu0 %v2243, 1
  %v2606 = vpop.permute.xlu0 %2605
  %2607 = vrot.lane.b32.xlu0 %v2244, 1
  %v2608 = vpop.permute.xlu0 %2607
  %2609 = vrot.lane.b32.xlu0 %v2245, 1
  %v2610 = vpop.permute.xlu0 %2609
  %2611 = vrot.lane.b32.xlu0 %v2246, 1
  %v2612 = vpop.permute.xlu0 %2611
  %2613 = vrot.lane.b32.xlu0 %v2247, 1
  %v2614 = vpop.permute.xlu0 %2613
  %2615 = vrot.lane.b32.xlu0 %v2248, 1
  %v2616 = vpop.permute.xlu0 %2615
  %2617 = vrot.lane.b32.xlu0 %v2249, 1
  %v2618 = vpop.permute.xlu0 %2617
  %2619 = vrot.lane.b32.xlu0 %v2250, 1
  %v2620 = vpop.permute.xlu0 %2619
  %2621 = vrot.lane.b32.xlu0 %v2251, 1
  %v2622 = vpop.permute.xlu0 %2621
  %2623 = vrot.lane.b32.xlu0 %v2252, 1
  %v2624 = vpop.permute.xlu0 %2623
  %2625 = vrot.lane.b32.xlu0 %v2253, 1
  %v2626 = vpop.permute.xlu0 %2625
  %2627 = vrot.lane.b32.xlu0 %v2254, 1
  %v2628 = vpop.permute.xlu0 %2627
  %2629 = vrot.lane.b32.xlu0 %v2255, 1
  %v2630 = vpop.permute.xlu0 %2629
  %2631 = vrot.lane.b32.xlu0 %v2256, 1
  %v2632 = vpop.permute.xlu0 %2631
  %2633 = vrot.lane.b32.xlu0 %v2257, 1
  %v2634 = vpop.permute.xlu0 %2633
  %2635 = vrot.lane.b32.xlu0 %v2258, 1
  %v2636 = vpop.permute.xlu0 %2635
  %2637 = vrot.lane.b32.xlu0 %v2259, 1
  %v2638 = vpop.permute.xlu0 %2637
  %2639 = vrot.lane.b32.xlu0 %v2260, 1
  %v2640 = vpop.permute.xlu0 %2639
  %2641 = vrot.lane.b32.xlu0 %v2261, 1
  %v2642 = vpop.permute.xlu0 %2641
  %2643 = vrot.lane.b32.xlu0 %v2262, 1
  %v2644 = vpop.permute.xlu0 %2643
  %2645 = vrot.lane.b32.xlu0 %v2263, 1
  %v2646 = vpop.permute.xlu0 %2645
  %2647 = vrot.lane.b32.xlu0 %v2264, 1
  %v2648 = vpop.permute.xlu0 %2647
  %2649 = vrot.lane.b32.xlu0 %v2265, 1
  %v2650 = vpop.permute.xlu0 %2649
  %2651 = vrot.lane.b32.xlu0 %v2266, 1
  %v2652 = vpop.permute.xlu0 %2651
  %2653 = vrot.lane.b32.xlu0 %v2267, 1
  %v2654 = vpop.permute.xlu0 %2653
  %2655 = vrot.lane.b32.xlu0 %v2268, 1
  %v2656 = vpop.permute.xlu0 %2655
  %2657 = vrot.lane.b32.xlu0 %v2269, 1
  %v2658 = vpop.permute.xlu0 %2657
  %2659 = vrot.lane.b32.xlu0 %v2270, 1
  %v2660 = vpop.permute.xlu0 %2659
  %2661 = vrot.lane.b32.xlu0 %v2271, 1
  %v2662 = vpop.permute.xlu0 %2661
  %2663 = vrot.lane.b32.xlu0 %v2272, 1
  %v2664 = vpop.permute.xlu0 %2663
  %2665 = vrot.lane.b32.xlu0 %v2273, 1
  %v2666 = vpop.permute.xlu0 %2665
  %2667 = vrot.lane.b32.xlu0 %v2274, 1
  %v2668 = vpop.permute.xlu0 %2667
  %2669 = vrot.lane.b32.xlu0 %v2275, 1
  %v2670 = vpop.permute.xlu0 %2669
  %2671 = vrot.lane.b32.xlu0 %v2276, 1
  %v2672 = vpop.permute.xlu0 %2671
  %2673 = vrot.lane.b32.xlu0 %v2277, 1
  %v2674 = vpop.permute.xlu0 %2673
  %2675 = vrot.lane.b32.xlu0 %v2278, 1
  %v2676 = vpop.permute.xlu0 %2675
  %2677 = vrot.lane.b32.xlu0 %v2279, 1
  %v2678 = vpop.permute.xlu0 %2677
  %2679 = vrot.lane.b32.xlu0 %v2280, 1
  %v2680 = vpop.permute.xlu0 %2679
  %2681 = vrot.lane.b32.xlu0 %v2281, 1
  %v2682 = vpop.permute.xlu0 %2681
  %2683 = vrot.lane.b32.xlu0 %v2282, 1
  %v2684 = vpop.permute.xlu0 %2683
  %2685 = vrot.lane.b32.xlu0 %v2283, 1
  %v2686 = vpop.permute.xlu0 %2685
  %2687 = vrot.lane.b32.xlu0 %v2284, 1
  %v2688 = vpop.permute.xlu0 %2687
  %2689 = vrot.lane.b32.xlu0 %v2285, 1
  %v2690 = vpop.permute.xlu0 %2689
  %2691 = vrot.lane.b32.xlu0 %v2286, 1
  %v2692 = vpop.permute.xlu0 %2691
  %2693 = vrot.lane.b32.xlu0 %v2287, 1
  %v2694 = vpop.permute.xlu0 %2693
  %2695 = vrot.lane.b32.xlu0 %v2288, 1
  %v2696 = vpop.permute.xlu0 %2695
  %2697 = vrot.lane.b32.xlu0 %v2289, 1
  %v2698 = vpop.permute.xlu0 %2697
  %2699 = vrot.lane.b32.xlu0 %v2290, 1
  %v2700 = vpop.permute.xlu0 %2699
  %2701 = vrot.lane.b32.xlu0 %v2291, 1
  %v2702 = vpop.permute.xlu0 %2701
  %2703 = vrot.lane.b32.xlu0 %v2292, 1
  %v2704 = vpop.permute.xlu0 %2703
  %2705 = vrot.lane.b32.xlu0 %v2293, 1
  %v2706 = vpop.permute.xlu0 %2705
  %2707 = vrot.lane.b32.xlu0 %v2294, 1
  %v2708 = vpop.permute.xlu0 %2707
  %2709 = vrot.lane.b32.xlu0 %v2295, 1
  %v2710 = vpop.permute.xlu0 %2709
  %2711 = vrot.lane.b32.xlu0 %v2296, 1
  %v2712 = vpop.permute.xlu0 %2711
  %2713 = vrot.lane.b32.xlu0 %v2297, 1
  %v2714 = vpop.permute.xlu0 %2713
  %2715 = vrot.lane.b32.xlu0 %v2298, 1
  %v2716 = vpop.permute.xlu0 %2715
  %2717 = vrot.lane.b32.xlu0 %v2299, 1
  %v2718 = vpop.permute.xlu0 %2717
  %2719 = vrot.lane.b32.xlu0 %v2300, 1
  %v2720 = vpop.permute.xlu0 %2719
  %2721 = vrot.lane.b32.xlu0 %v2301, 1
  %v2722 = vpop.permute.xlu0 %2721
  %2723 = vrot.lane.b32.xlu0 %v2302, 1
  %v2724 = vpop.permute.xlu0 %2723
  %2725 = vrot.lane.b32.xlu0 %v2303, 1
  %v2726 = vpop.permute.xlu0 %2725
  %2727 = vrot.lane.b32.xlu0 %v2304, 1
  %v2728 = vpop.permute.xlu0 %2727
  %2729 = vrot.lane.b32.xlu0 %v2305, 1
  %v2730 = vpop.permute.xlu0 %2729
  %2731 = vrot.lane.b32.xlu0 %v2306, 1
  %v2732 = vpop.permute.xlu0 %2731
  %2733 = vrot.lane.b32.xlu0 %v2307, 1
  %v2734 = vpop.permute.xlu0 %2733
  %2735 = vrot.lane.b32.xlu0 %v2308, 1
  %v2736 = vpop.permute.xlu0 %2735
  %2737 = vrot.lane.b32.xlu0 %v2309, 1
  %v2738 = vpop.permute.xlu0 %2737
  %2739 = vrot.lane.b32.xlu0 %v2310, 1
  %v2740 = vpop.permute.xlu0 %2739
  %2741 = vrot.lane.b32.xlu0 %v2311, 1
  %v2742 = vpop.permute.xlu0 %2741
  %2743 = vrot.lane.b32.xlu0 %v2312, 1
  %v2744 = vpop.permute.xlu0 %2743
  %v2889 = vmul.f32 %v1882, %v2458
  %v2890 = vmul.f32 %v1884, %v2460
  %v2891 = vmul.f32 %v1886, %v2462
  %v2892 = vmul.f32 %v1888, %v2464
  %v2893 = vmul.f32 %v1890, %v2466
  %v2894 = vmul.f32 %v1892, %v2468
  %v2895 = vmul.f32 %v1894, %v2470
  %v2896 = vmul.f32 %v1896, %v2472
  %v2897 = vmul.f32 %v1898, %v2474
  %v2898 = vmul.f32 %v1900, %v2476
  %v2899 = vmul.f32 %v1902, %v2478
  %v2900 = vmul.f32 %v1904, %v2480
  %v2901 = vmul.f32 %v1906, %v2482
  %v2902 = vmul.f32 %v1908, %v2484
  %v2903 = vmul.f32 %v1910, %v2486
  %v2904 = vmul.f32 %v1912, %v2488
  %v2905 = vmul.f32 %v1914, %v2490
  %v2906 = vmul.f32 %v1916, %v2492
  %v2907 = vmul.f32 %v1918, %v2494
  %v2908 = vmul.f32 %v1920, %v2496
  %v2909 = vmul.f32 %v1922, %v2498
  %v2910 = vmul.f32 %v1924, %v2500
  %v2911 = vmul.f32 %v1926, %v2502
  %v2912 = vmul.f32 %v1928, %v2504
  %v2913 = vmul.f32 %v1930, %v2506
  %v2914 = vmul.f32 %v1932, %v2508
  %v2915 = vmul.f32 %v1934, %v2510
  %v2916 = vmul.f32 %v1936, %v2512
  %v2917 = vmul.f32 %v1938, %v2514
  %v2918 = vmul.f32 %v1940, %v2516
  %v2919 = vmul.f32 %v1942, %v2518
  %v2920 = vmul.f32 %v1944, %v2520
  %v2921 = vmul.f32 %v1946, %v2522
  %v2922 = vmul.f32 %v1948, %v2524
  %v2923 = vmul.f32 %v1950, %v2526
  %v2924 = vmul.f32 %v1952, %v2528
  %v2925 = vmul.f32 %v1954, %v2530
  %v2926 = vmul.f32 %v1956, %v2532
  %v2927 = vmul.f32 %v1958, %v2534
  %v2928 = vmul.f32 %v1960, %v2536
  %v2929 = vmul.f32 %v1962, %v2538
  %v2930 = vmul.f32 %v1964, %v2540
  %v2931 = vmul.f32 %v1966, %v2542
  %v2932 = vmul.f32 %v1968, %v2544
  %v2933 = vmul.f32 %v1970, %v2546
  %v2934 = vmul.f32 %v1972, %v2548
  %v2935 = vmul.f32 %v1974, %v2550
  %v2936 = vmul.f32 %v1976, %v2552
  %v2937 = vmul.f32 %v1978, %v2554
  %v2938 = vmul.f32 %v1980, %v2556
  %v2939 = vmul.f32 %v1982, %v2558
  %v2940 = vmul.f32 %v1984, %v2560
  %v2941 = vmul.f32 %v1986, %v2562
  %v2942 = vmul.f32 %v1988, %v2564
  %v2943 = vmul.f32 %v1990, %v2566
  %v2944 = vmul.f32 %v1992, %v2568
  %v2945 = vmul.f32 %v1994, %v2570
  %v2946 = vmul.f32 %v1996, %v2572
  %v2947 = vmul.f32 %v1998, %v2574
  %v2948 = vmul.f32 %v2000, %v2576
  %v2949 = vmul.f32 %v2002, %v2578
  %v2950 = vmul.f32 %v2004, %v2580
  %v2951 = vmul.f32 %v2006, %v2582
  %v2952 = vmul.f32 %v2008, %v2584
  %v2953 = vmul.f32 %v2010, %v2586
  %v2954 = vmul.f32 %v2012, %v2588
  %v2955 = vmul.f32 %v2014, %v2590
  %v2956 = vmul.f32 %v2016, %v2592
  %v2957 = vmul.f32 %v2018, %v2594
  %v2958 = vmul.f32 %v2020, %v2596
  %v2959 = vmul.f32 %v2022, %v2598
  %v2960 = vmul.f32 %v2024, %v2600
  %v2961 = vmul.f32 %v2026, %v2602
  %v2962 = vmul.f32 %v2028, %v2604
  %v2963 = vmul.f32 %v2030, %v2606
  %v2964 = vmul.f32 %v2032, %v2608
  %v2965 = vmul.f32 %v2034, %v2610
  %v2966 = vmul.f32 %v2036, %v2612
  %v2967 = vmul.f32 %v2038, %v2614
  %v2968 = vmul.f32 %v2040, %v2616
  %v2969 = vmul.f32 %v2042, %v2618
  %v2970 = vmul.f32 %v2044, %v2620
  %v2971 = vmul.f32 %v2046, %v2622
  %v2972 = vmul.f32 %v2048, %v2624
  %v2973 = vmul.f32 %v2050, %v2626
  %v2974 = vmul.f32 %v2052, %v2628
  %v2975 = vmul.f32 %v2054, %v2630
  %v2976 = vmul.f32 %v2056, %v2632
  %v2977 = vmul.f32 %v2058, %v2634
  %v2978 = vmul.f32 %v2060, %v2636
  %v2979 = vmul.f32 %v2062, %v2638
  %v2980 = vmul.f32 %v2064, %v2640
  %v2981 = vmul.f32 %v2066, %v2642
  %v2982 = vmul.f32 %v2068, %v2644
  %v2983 = vmul.f32 %v2070, %v2646
  %v2984 = vmul.f32 %v2072, %v2648
  %v2985 = vmul.f32 %v2074, %v2650
  %v2986 = vmul.f32 %v2076, %v2652
  %v2987 = vmul.f32 %v2078, %v2654
  %v2988 = vmul.f32 %v2080, %v2656
  %v2989 = vmul.f32 %v2082, %v2658
  %v2990 = vmul.f32 %v2084, %v2660
  %v2991 = vmul.f32 %v2086, %v2662
  %v2992 = vmul.f32 %v2088, %v2664
  %v2993 = vmul.f32 %v2090, %v2666
  %v2994 = vmul.f32 %v2092, %v2668
  %v2995 = vmul.f32 %v2094, %v2670
  %v2996 = vmul.f32 %v2096, %v2672
  %v2997 = vmul.f32 %v2098, %v2674
  %v2998 = vmul.f32 %v2100, %v2676
  %v2999 = vmul.f32 %v2102, %v2678
  %v3000 = vmul.f32 %v2104, %v2680
  %v3001 = vmul.f32 %v2106, %v2682
  %v3002 = vmul.f32 %v2108, %v2684
  %v3003 = vmul.f32 %v2110, %v2686
  %v3004 = vmul.f32 %v2112, %v2688
  %v3005 = vmul.f32 %v2114, %v2690
  %v3006 = vmul.f32 %v2116, %v2692
  %v3007 = vmul.f32 %v2118, %v2694
  %v3008 = vmul.f32 %v2120, %v2696
  %v3009 = vmul.f32 %v2122, %v2698
  %v3010 = vmul.f32 %v2124, %v2700
  %v3011 = vmul.f32 %v2126, %v2702
  %v3012 = vmul.f32 %v2128, %v2704
  %v3013 = vmul.f32 %v2130, %v2706
  %v3014 = vmul.f32 %v2132, %v2708
  %v3015 = vmul.f32 %v2134, %v2710
  %v3016 = vmul.f32 %v2136, %v2712
  %v3017 = vmul.f32 %v2138, %v2714
  %v3018 = vmul.f32 %v2140, %v2716
  %v3019 = vmul.f32 %v2142, %v2718
  %v3020 = vmul.f32 %v2144, %v2720
  %v3021 = vmul.f32 %v2146, %v2722
  %v3022 = vmul.f32 %v2148, %v2724
  %v3023 = vmul.f32 %v2150, %v2726
  %v3024 = vmul.f32 %v2152, %v2728
  %v3025 = vmul.f32 %v2154, %v2730
  %v3026 = vmul.f32 %v2156, %v2732
  %v3027 = vmul.f32 %v2158, %v2734
  %v3028 = vmul.f32 %v2160, %v2736
  %v3029 = vmul.f32 %v2162, %v2738
  %v3030 = vmul.f32 %v2164, %v2740
  %v3031 = vmul.f32 %v2166, %v2742
  %v3032 = vmul.f32 %v2168, %v2744
  %3177 = vrot.lane.b32.xlu0 %v2889, 127
  %v3178 = vpop.permute.xlu0 %3177
  %3179 = vrot.lane.b32.xlu0 %v2890, 127
  %v3180 = vpop.permute.xlu0 %3179
  %3181 = vrot.lane.b32.xlu0 %v2891, 127
  %v3182 = vpop.permute.xlu0 %3181
  %3183 = vrot.lane.b32.xlu0 %v2892, 127
  %v3184 = vpop.permute.xlu0 %3183
  %3185 = vrot.lane.b32.xlu0 %v2893, 127
  %v3186 = vpop.permute.xlu0 %3185
  %3187 = vrot.lane.b32.xlu0 %v2894, 127
  %v3188 = vpop.permute.xlu0 %3187
  %3189 = vrot.lane.b32.xlu0 %v2895, 127
  %v3190 = vpop.permute.xlu0 %3189
  %3191 = vrot.lane.b32.xlu0 %v2896, 127
  %v3192 = vpop.permute.xlu0 %3191
  %3193 = vrot.lane.b32.xlu0 %v2897, 127
  %v3194 = vpop.permute.xlu0 %3193
  %3195 = vrot.lane.b32.xlu0 %v2898, 127
  %v3196 = vpop.permute.xlu0 %3195
  %3197 = vrot.lane.b32.xlu0 %v2899, 127
  %v3198 = vpop.permute.xlu0 %3197
  %3199 = vrot.lane.b32.xlu0 %v2900, 127
  %v3200 = vpop.permute.xlu0 %3199
  %3201 = vrot.lane.b32.xlu0 %v2901, 127
  %v3202 = vpop.permute.xlu0 %3201
  %3203 = vrot.lane.b32.xlu0 %v2902, 127
  %v3204 = vpop.permute.xlu0 %3203
  %3205 = vrot.lane.b32.xlu0 %v2903, 127
  %v3206 = vpop.permute.xlu0 %3205
  %3207 = vrot.lane.b32.xlu0 %v2904, 127
  %v3208 = vpop.permute.xlu0 %3207
  %3209 = vrot.lane.b32.xlu0 %v2905, 127
  %v3210 = vpop.permute.xlu0 %3209
  %3211 = vrot.lane.b32.xlu0 %v2906, 127
  %v3212 = vpop.permute.xlu0 %3211
  %3213 = vrot.lane.b32.xlu0 %v2907, 127
  %v3214 = vpop.permute.xlu0 %3213
  %3215 = vrot.lane.b32.xlu0 %v2908, 127
  %v3216 = vpop.permute.xlu0 %3215
  %3217 = vrot.lane.b32.xlu0 %v2909, 127
  %v3218 = vpop.permute.xlu0 %3217
  %3219 = vrot.lane.b32.xlu0 %v2910, 127
  %v3220 = vpop.permute.xlu0 %3219
  %3221 = vrot.lane.b32.xlu0 %v2911, 127
  %v3222 = vpop.permute.xlu0 %3221
  %3223 = vrot.lane.b32.xlu0 %v2912, 127
  %v3224 = vpop.permute.xlu0 %3223
  %3225 = vrot.lane.b32.xlu0 %v2913, 127
  %v3226 = vpop.permute.xlu0 %3225
  %3227 = vrot.lane.b32.xlu0 %v2914, 127
  %v3228 = vpop.permute.xlu0 %3227
  %3229 = vrot.lane.b32.xlu0 %v2915, 127
  %v3230 = vpop.permute.xlu0 %3229
  %3231 = vrot.lane.b32.xlu0 %v2916, 127
  %v3232 = vpop.permute.xlu0 %3231
  %3233 = vrot.lane.b32.xlu0 %v2917, 127
  %v3234 = vpop.permute.xlu0 %3233
  %3235 = vrot.lane.b32.xlu0 %v2918, 127
  %v3236 = vpop.permute.xlu0 %3235
  %3237 = vrot.lane.b32.xlu0 %v2919, 127
  %v3238 = vpop.permute.xlu0 %3237
  %3239 = vrot.lane.b32.xlu0 %v2920, 127
  %v3240 = vpop.permute.xlu0 %3239
  %3241 = vrot.lane.b32.xlu0 %v2921, 127
  %v3242 = vpop.permute.xlu0 %3241
  %3243 = vrot.lane.b32.xlu0 %v2922, 127
  %v3244 = vpop.permute.xlu0 %3243
  %3245 = vrot.lane.b32.xlu0 %v2923, 127
  %v3246 = vpop.permute.xlu0 %3245
  %3247 = vrot.lane.b32.xlu0 %v2924, 127
  %v3248 = vpop.permute.xlu0 %3247
  %3249 = vrot.lane.b32.xlu0 %v2925, 127
  %v3250 = vpop.permute.xlu0 %3249
  %3251 = vrot.lane.b32.xlu0 %v2926, 127
  %v3252 = vpop.permute.xlu0 %3251
  %3253 = vrot.lane.b32.xlu0 %v2927, 127
  %v3254 = vpop.permute.xlu0 %3253
  %3255 = vrot.lane.b32.xlu0 %v2928, 127
  %v3256 = vpop.permute.xlu0 %3255
  %3257 = vrot.lane.b32.xlu0 %v2929, 127
  %v3258 = vpop.permute.xlu0 %3257
  %3259 = vrot.lane.b32.xlu0 %v2930, 127
  %v3260 = vpop.permute.xlu0 %3259
  %3261 = vrot.lane.b32.xlu0 %v2931, 127
  %v3262 = vpop.permute.xlu0 %3261
  %3263 = vrot.lane.b32.xlu0 %v2932, 127
  %v3264 = vpop.permute.xlu0 %3263
  %3265 = vrot.lane.b32.xlu0 %v2933, 127
  %v3266 = vpop.permute.xlu0 %3265
  %3267 = vrot.lane.b32.xlu0 %v2934, 127
  %v3268 = vpop.permute.xlu0 %3267
  %3269 = vrot.lane.b32.xlu0 %v2935, 127
  %v3270 = vpop.permute.xlu0 %3269
  %3271 = vrot.lane.b32.xlu0 %v2936, 127
  %v3272 = vpop.permute.xlu0 %3271
  %3273 = vrot.lane.b32.xlu0 %v2937, 127
  %v3274 = vpop.permute.xlu0 %3273
  %3275 = vrot.lane.b32.xlu0 %v2938, 127
  %v3276 = vpop.permute.xlu0 %3275
  %3277 = vrot.lane.b32.xlu0 %v2939, 127
  %v3278 = vpop.permute.xlu0 %3277
  %3279 = vrot.lane.b32.xlu0 %v2940, 127
  %v3280 = vpop.permute.xlu0 %3279
  %3281 = vrot.lane.b32.xlu0 %v2941, 127
  %v3282 = vpop.permute.xlu0 %3281
  %3283 = vrot.lane.b32.xlu0 %v2942, 127
  %v3284 = vpop.permute.xlu0 %3283
  %3285 = vrot.lane.b32.xlu0 %v2943, 127
  %v3286 = vpop.permute.xlu0 %3285
  %3287 = vrot.lane.b32.xlu0 %v2944, 127
  %v3288 = vpop.permute.xlu0 %3287
  %3289 = vrot.lane.b32.xlu0 %v2945, 127
  %v3290 = vpop.permute.xlu0 %3289
  %3291 = vrot.lane.b32.xlu0 %v2946, 127
  %v3292 = vpop.permute.xlu0 %3291
  %3293 = vrot.lane.b32.xlu0 %v2947, 127
  %v3294 = vpop.permute.xlu0 %3293
  %3295 = vrot.lane.b32.xlu0 %v2948, 127
  %v3296 = vpop.permute.xlu0 %3295
  %3297 = vrot.lane.b32.xlu0 %v2949, 127
  %v3298 = vpop.permute.xlu0 %3297
  %3299 = vrot.lane.b32.xlu0 %v2950, 127
  %v3300 = vpop.permute.xlu0 %3299
  %3301 = vrot.lane.b32.xlu0 %v2951, 127
  %v3302 = vpop.permute.xlu0 %3301
  %3303 = vrot.lane.b32.xlu0 %v2952, 127
  %v3304 = vpop.permute.xlu0 %3303
  %3305 = vrot.lane.b32.xlu0 %v2953, 127
  %v3306 = vpop.permute.xlu0 %3305
  %3307 = vrot.lane.b32.xlu0 %v2954, 127
  %v3308 = vpop.permute.xlu0 %3307
  %3309 = vrot.lane.b32.xlu0 %v2955, 127
  %v3310 = vpop.permute.xlu0 %3309
  %3311 = vrot.lane.b32.xlu0 %v2956, 127
  %v3312 = vpop.permute.xlu0 %3311
  %3313 = vrot.lane.b32.xlu0 %v2957, 127
  %v3314 = vpop.permute.xlu0 %3313
  %3315 = vrot.lane.b32.xlu0 %v2958, 127
  %v3316 = vpop.permute.xlu0 %3315
  %3317 = vrot.lane.b32.xlu0 %v2959, 127
  %v3318 = vpop.permute.xlu0 %3317
  %3319 = vrot.lane.b32.xlu0 %v2960, 127
  %v3320 = vpop.permute.xlu0 %3319
  %3321 = vrot.lane.b32.xlu0 %v2961, 127
  %v3322 = vpop.permute.xlu0 %3321
  %3323 = vrot.lane.b32.xlu0 %v2962, 127
  %v3324 = vpop.permute.xlu0 %3323
  %3325 = vrot.lane.b32.xlu0 %v2963, 127
  %v3326 = vpop.permute.xlu0 %3325
  %3327 = vrot.lane.b32.xlu0 %v2964, 127
  %v3328 = vpop.permute.xlu0 %3327
  %3329 = vrot.lane.b32.xlu0 %v2965, 127
  %v3330 = vpop.permute.xlu0 %3329
  %3331 = vrot.lane.b32.xlu0 %v2966, 127
  %v3332 = vpop.permute.xlu0 %3331
  %3333 = vrot.lane.b32.xlu0 %v2967, 127
  %v3334 = vpop.permute.xlu0 %3333
  %3335 = vrot.lane.b32.xlu0 %v2968, 127
  %v3336 = vpop.permute.xlu0 %3335
  %3337 = vrot.lane.b32.xlu0 %v2969, 127
  %v3338 = vpop.permute.xlu0 %3337
  %3339 = vrot.lane.b32.xlu0 %v2970, 127
  %v3340 = vpop.permute.xlu0 %3339
  %3341 = vrot.lane.b32.xlu0 %v2971, 127
  %v3342 = vpop.permute.xlu0 %3341
  %3343 = vrot.lane.b32.xlu0 %v2972, 127
  %v3344 = vpop.permute.xlu0 %3343
  %3345 = vrot.lane.b32.xlu0 %v2973, 127
  %v3346 = vpop.permute.xlu0 %3345
  %3347 = vrot.lane.b32.xlu0 %v2974, 127
  %v3348 = vpop.permute.xlu0 %3347
  %3349 = vrot.lane.b32.xlu0 %v2975, 127
  %v3350 = vpop.permute.xlu0 %3349
  %3351 = vrot.lane.b32.xlu0 %v2976, 127
  %v3352 = vpop.permute.xlu0 %3351
  %3353 = vrot.lane.b32.xlu0 %v2977, 127
  %v3354 = vpop.permute.xlu0 %3353
  %3355 = vrot.lane.b32.xlu0 %v2978, 127
  %v3356 = vpop.permute.xlu0 %3355
  %3357 = vrot.lane.b32.xlu0 %v2979, 127
  %v3358 = vpop.permute.xlu0 %3357
  %3359 = vrot.lane.b32.xlu0 %v2980, 127
  %v3360 = vpop.permute.xlu0 %3359
  %3361 = vrot.lane.b32.xlu0 %v2981, 127
  %v3362 = vpop.permute.xlu0 %3361
  %3363 = vrot.lane.b32.xlu0 %v2982, 127
  %v3364 = vpop.permute.xlu0 %3363
  %3365 = vrot.lane.b32.xlu0 %v2983, 127
  %v3366 = vpop.permute.xlu0 %3365
  %3367 = vrot.lane.b32.xlu0 %v2984, 127
  %v3368 = vpop.permute.xlu0 %3367
  %3369 = vrot.lane.b32.xlu0 %v2985, 127
  %v3370 = vpop.permute.xlu0 %3369
  %3371 = vrot.lane.b32.xlu0 %v2986, 127
  %v3372 = vpop.permute.xlu0 %3371
  %3373 = vrot.lane.b32.xlu0 %v2987, 127
  %v3374 = vpop.permute.xlu0 %3373
  %3375 = vrot.lane.b32.xlu0 %v2988, 127
  %v3376 = vpop.permute.xlu0 %3375
  %3377 = vrot.lane.b32.xlu0 %v2989, 127
  %v3378 = vpop.permute.xlu0 %3377
  %3379 = vrot.lane.b32.xlu0 %v2990, 127
  %v3380 = vpop.permute.xlu0 %3379
  %3381 = vrot.lane.b32.xlu0 %v2991, 127
  %v3382 = vpop.permute.xlu0 %3381
  %3383 = vrot.lane.b32.xlu0 %v2992, 127
  %v3384 = vpop.permute.xlu0 %3383
  %3385 = vrot.lane.b32.xlu0 %v2993, 127
  %v3386 = vpop.permute.xlu0 %3385
  %3387 = vrot.lane.b32.xlu0 %v2994, 127
  %v3388 = vpop.permute.xlu0 %3387
  %3389 = vrot.lane.b32.xlu0 %v2995, 127
  %v3390 = vpop.permute.xlu0 %3389
  %3391 = vrot.lane.b32.xlu0 %v2996, 127
  %v3392 = vpop.permute.xlu0 %3391
  %3393 = vrot.lane.b32.xlu0 %v2997, 127
  %v3394 = vpop.permute.xlu0 %3393
  %3395 = vrot.lane.b32.xlu0 %v2998, 127
  %v3396 = vpop.permute.xlu0 %3395
  %3397 = vrot.lane.b32.xlu0 %v2999, 127
  %v3398 = vpop.permute.xlu0 %3397
  %3399 = vrot.lane.b32.xlu0 %v3000, 127
  %v3400 = vpop.permute.xlu0 %3399
  %3401 = vrot.lane.b32.xlu0 %v3001, 127
  %v3402 = vpop.permute.xlu0 %3401
  %3403 = vrot.lane.b32.xlu0 %v3002, 127
  %v3404 = vpop.permute.xlu0 %3403
  %3405 = vrot.lane.b32.xlu0 %v3003, 127
  %v3406 = vpop.permute.xlu0 %3405
  %3407 = vrot.lane.b32.xlu0 %v3004, 127
  %v3408 = vpop.permute.xlu0 %3407
  %3409 = vrot.lane.b32.xlu0 %v3005, 127
  %v3410 = vpop.permute.xlu0 %3409
  %3411 = vrot.lane.b32.xlu0 %v3006, 127
  %v3412 = vpop.permute.xlu0 %3411
  %3413 = vrot.lane.b32.xlu0 %v3007, 127
  %v3414 = vpop.permute.xlu0 %3413
  %3415 = vrot.lane.b32.xlu0 %v3008, 127
  %v3416 = vpop.permute.xlu0 %3415
  %3417 = vrot.lane.b32.xlu0 %v3009, 127
  %v3418 = vpop.permute.xlu0 %3417
  %3419 = vrot.lane.b32.xlu0 %v3010, 127
  %v3420 = vpop.permute.xlu0 %3419
  %3421 = vrot.lane.b32.xlu0 %v3011, 127
  %v3422 = vpop.permute.xlu0 %3421
  %3423 = vrot.lane.b32.xlu0 %v3012, 127
  %v3424 = vpop.permute.xlu0 %3423
  %3425 = vrot.lane.b32.xlu0 %v3013, 127
  %v3426 = vpop.permute.xlu0 %3425
  %3427 = vrot.lane.b32.xlu0 %v3014, 127
  %v3428 = vpop.permute.xlu0 %3427
  %3429 = vrot.lane.b32.xlu0 %v3015, 127
  %v3430 = vpop.permute.xlu0 %3429
  %3431 = vrot.lane.b32.xlu0 %v3016, 127
  %v3432 = vpop.permute.xlu0 %3431
  %3433 = vrot.lane.b32.xlu0 %v3017, 127
  %v3434 = vpop.permute.xlu0 %3433
  %3435 = vrot.lane.b32.xlu0 %v3018, 127
  %v3436 = vpop.permute.xlu0 %3435
  %3437 = vrot.lane.b32.xlu0 %v3019, 127
  %v3438 = vpop.permute.xlu0 %3437
  %3439 = vrot.lane.b32.xlu0 %v3020, 127
  %v3440 = vpop.permute.xlu0 %3439
  %3441 = vrot.lane.b32.xlu0 %v3021, 127
  %v3442 = vpop.permute.xlu0 %3441
  %3443 = vrot.lane.b32.xlu0 %v3022, 127
  %v3444 = vpop.permute.xlu0 %3443
  %3445 = vrot.lane.b32.xlu0 %v3023, 127
  %v3446 = vpop.permute.xlu0 %3445
  %3447 = vrot.lane.b32.xlu0 %v3024, 127
  %v3448 = vpop.permute.xlu0 %3447
  %3449 = vrot.lane.b32.xlu0 %v3025, 127
  %v3450 = vpop.permute.xlu0 %3449
  %3451 = vrot.lane.b32.xlu0 %v3026, 127
  %v3452 = vpop.permute.xlu0 %3451
  %3453 = vrot.lane.b32.xlu0 %v3027, 127
  %v3454 = vpop.permute.xlu0 %3453
  %3455 = vrot.lane.b32.xlu0 %v3028, 127
  %v3456 = vpop.permute.xlu0 %3455
  %3457 = vrot.lane.b32.xlu0 %v3029, 127
  %v3458 = vpop.permute.xlu0 %3457
  %3459 = vrot.lane.b32.xlu0 %v3030, 127
  %v3460 = vpop.permute.xlu0 %3459
  %3461 = vrot.lane.b32.xlu0 %v3031, 127
  %v3462 = vpop.permute.xlu0 %3461
  %3463 = vrot.lane.b32.xlu0 %v3032, 127
  %v3464 = vpop.permute.xlu0 %3463
  %v3609 = vadd.f32 %v1522, %v3178
  %v3610 = vadd.f32 %v1524, %v3180
  %v3611 = vadd.f32 %v1527, %v3182
  %v3612 = vadd.f32 %v1529, %v3184
  %v3613 = vadd.f32 %v1532, %v3186
  %v3614 = vadd.f32 %v1534, %v3188
  %v3615 = vadd.f32 %v1537, %v3190
  %v3616 = vadd.f32 %v1539, %v3192
  %v3617 = vadd.f32 %v1542, %v3194
  %v3618 = vadd.f32 %v1544, %v3196
  %v3619 = vadd.f32 %v1547, %v3198
  %v3620 = vadd.f32 %v1549, %v3200
  %v3621 = vadd.f32 %v1552, %v3202
  %v3622 = vadd.f32 %v1554, %v3204
  %v3623 = vadd.f32 %v1557, %v3206
  %v3624 = vadd.f32 %v1559, %v3208
  %v3625 = vadd.f32 %v1562, %v3210
  %v3626 = vadd.f32 %v1564, %v3212
  %v3627 = vadd.f32 %v1567, %v3214
  %v3628 = vadd.f32 %v1569, %v3216
  %v3629 = vadd.f32 %v1572, %v3218
  %v3630 = vadd.f32 %v1574, %v3220
  %v3631 = vadd.f32 %v1577, %v3222
  %v3632 = vadd.f32 %v1579, %v3224
  %v3633 = vadd.f32 %v1582, %v3226
  %v3634 = vadd.f32 %v1584, %v3228
  %v3635 = vadd.f32 %v1587, %v3230
  %v3636 = vadd.f32 %v1589, %v3232
  %v3637 = vadd.f32 %v1592, %v3234
  %v3638 = vadd.f32 %v1594, %v3236
  %v3639 = vadd.f32 %v1597, %v3238
  %v3640 = vadd.f32 %v1599, %v3240
  %v3641 = vadd.f32 %v1602, %v3242
  %v3642 = vadd.f32 %v1604, %v3244
  %v3643 = vadd.f32 %v1607, %v3246
  %v3644 = vadd.f32 %v1609, %v3248
  %v3645 = vadd.f32 %v1612, %v3250
  %v3646 = vadd.f32 %v1614, %v3252
  %v3647 = vadd.f32 %v1617, %v3254
  %v3648 = vadd.f32 %v1619, %v3256
  %v3649 = vadd.f32 %v1622, %v3258
  %v3650 = vadd.f32 %v1624, %v3260
  %v3651 = vadd.f32 %v1627, %v3262
  %v3652 = vadd.f32 %v1629, %v3264
  %v3653 = vadd.f32 %v1632, %v3266
  %v3654 = vadd.f32 %v1634, %v3268
  %v3655 = vadd.f32 %v1637, %v3270
  %v3656 = vadd.f32 %v1639, %v3272
  %v3657 = vadd.f32 %v1642, %v3274
  %v3658 = vadd.f32 %v1644, %v3276
  %v3659 = vadd.f32 %v1647, %v3278
  %v3660 = vadd.f32 %v1649, %v3280
  %v3661 = vadd.f32 %v1652, %v3282
  %v3662 = vadd.f32 %v1654, %v3284
  %v3663 = vadd.f32 %v1657, %v3286
  %v3664 = vadd.f32 %v1659, %v3288
  %v3665 = vadd.f32 %v1662, %v3290
  %v3666 = vadd.f32 %v1664, %v3292
  %v3667 = vadd.f32 %v1667, %v3294
  %v3668 = vadd.f32 %v1669, %v3296
  %v3669 = vadd.f32 %v1672, %v3298
  %v3670 = vadd.f32 %v1674, %v3300
  %v3671 = vadd.f32 %v1677, %v3302
  %v3672 = vadd.f32 %v1679, %v3304
  %v3673 = vadd.f32 %v1682, %v3306
  %v3674 = vadd.f32 %v1684, %v3308
  %v3675 = vadd.f32 %v1687, %v3310
  %v3676 = vadd.f32 %v1689, %v3312
  %v3677 = vadd.f32 %v1692, %v3314
  %v3678 = vadd.f32 %v1694, %v3316
  %v3679 = vadd.f32 %v1697, %v3318
  %v3680 = vadd.f32 %v1699, %v3320
  %v3681 = vadd.f32 %v1702, %v3322
  %v3682 = vadd.f32 %v1704, %v3324
  %v3683 = vadd.f32 %v1707, %v3326
  %v3684 = vadd.f32 %v1709, %v3328
  %v3685 = vadd.f32 %v1712, %v3330
  %v3686 = vadd.f32 %v1714, %v3332
  %v3687 = vadd.f32 %v1717, %v3334
  %v3688 = vadd.f32 %v1719, %v3336
  %v3689 = vadd.f32 %v1722, %v3338
  %v3690 = vadd.f32 %v1724, %v3340
  %v3691 = vadd.f32 %v1727, %v3342
  %v3692 = vadd.f32 %v1729, %v3344
  %v3693 = vadd.f32 %v1732, %v3346
  %v3694 = vadd.f32 %v1734, %v3348
  %v3695 = vadd.f32 %v1737, %v3350
  %v3696 = vadd.f32 %v1739, %v3352
  %v3697 = vadd.f32 %v1742, %v3354
  %v3698 = vadd.f32 %v1744, %v3356
  %v3699 = vadd.f32 %v1747, %v3358
  %v3700 = vadd.f32 %v1749, %v3360
  %v3701 = vadd.f32 %v1752, %v3362
  %v3702 = vadd.f32 %v1754, %v3364
  %v3703 = vadd.f32 %v1757, %v3366
  %v3704 = vadd.f32 %v1759, %v3368
  %v3705 = vadd.f32 %v1762, %v3370
  %v3706 = vadd.f32 %v1764, %v3372
  %v3707 = vadd.f32 %v1767, %v3374
  %v3708 = vadd.f32 %v1769, %v3376
  %v3709 = vadd.f32 %v1772, %v3378
  %v3710 = vadd.f32 %v1774, %v3380
  %v3711 = vadd.f32 %v1777, %v3382
  %v3712 = vadd.f32 %v1779, %v3384
  %v3713 = vadd.f32 %v1782, %v3386
  %v3714 = vadd.f32 %v1784, %v3388
  %v3715 = vadd.f32 %v1787, %v3390
  %v3716 = vadd.f32 %v1789, %v3392
  %v3717 = vadd.f32 %v1792, %v3394
  %v3718 = vadd.f32 %v1794, %v3396
  %v3719 = vadd.f32 %v1797, %v3398
  %v3720 = vadd.f32 %v1799, %v3400
  %v3721 = vadd.f32 %v1802, %v3402
  %v3722 = vadd.f32 %v1804, %v3404
  %v3723 = vadd.f32 %v1807, %v3406
  %v3724 = vadd.f32 %v1809, %v3408
  %v3725 = vadd.f32 %v1812, %v3410
  %v3726 = vadd.f32 %v1814, %v3412
  %v3727 = vadd.f32 %v1817, %v3414
  %v3728 = vadd.f32 %v1819, %v3416
  %v3729 = vadd.f32 %v1822, %v3418
  %v3730 = vadd.f32 %v1824, %v3420
  %v3731 = vadd.f32 %v1827, %v3422
  %v3732 = vadd.f32 %v1829, %v3424
  %v3733 = vadd.f32 %v1832, %v3426
  %v3734 = vadd.f32 %v1834, %v3428
  %v3735 = vadd.f32 %v1837, %v3430
  %v3736 = vadd.f32 %v1839, %v3432
  %v3737 = vadd.f32 %v1842, %v3434
  %v3738 = vadd.f32 %v1844, %v3436
  %v3739 = vadd.f32 %v1847, %v3438
  %v3740 = vadd.f32 %v1849, %v3440
  %v3741 = vadd.f32 %v1852, %v3442
  %v3742 = vadd.f32 %v1854, %v3444
  %v3743 = vadd.f32 %v1857, %v3446
  %v3744 = vadd.f32 %v1859, %v3448
  %v3745 = vadd.f32 %v1862, %v3450
  %v3746 = vadd.f32 %v1864, %v3452
  %v3747 = vadd.f32 %v1867, %v3454
  %v3748 = vadd.f32 %v1869, %v3456
  %v3749 = vadd.f32 %v1872, %v3458
  %v3750 = vadd.f32 %v1874, %v3460
  %v3751 = vadd.f32 %v1877, %v3462
  %v3752 = vadd.f32 %v1879, %v3464
  %vm3753 = vcmask 7168
  %3754 = vst.msk [vmem:[%s4] sm:$0xff] %vm3753, %v3609
  %3755 = vst.msk [vmem:[%s4 + $0x8] sm:$0xff] %vm3753, %v3610
  %3756 = vst.msk [vmem:[%s4 + $0x10] sm:$0xff] %vm3753, %v3611
  %3757 = vst.msk [vmem:[%s4 + $0x18] sm:$0xff] %vm3753, %v3612
  %3758 = vst.msk [vmem:[%s4 + $0x20] sm:$0xff] %vm3753, %v3613
  %3759 = vst.msk [vmem:[%s4 + $0x28] sm:$0xff] %vm3753, %v3614
  %3760 = vst.msk [vmem:[%s4 + $0x30] sm:$0xff] %vm3753, %v3615
  %3761 = vst.msk [vmem:[%s4 + $0x38] sm:$0xff] %vm3753, %v3616
  %3762 = vst.msk [vmem:[%s4 + $0x40] sm:$0xff] %vm3753, %v3617
  %3763 = vst.msk [vmem:[%s4 + $0x48] sm:$0xff] %vm3753, %v3618
  %3764 = vst.msk [vmem:[%s4 + $0x50] sm:$0xff] %vm3753, %v3619
  %3765 = vst.msk [vmem:[%s4 + $0x58] sm:$0xff] %vm3753, %v3620
  %3766 = vst.msk [vmem:[%s4 + $0x60] sm:$0xff] %vm3753, %v3621
  %3767 = vst.msk [vmem:[%s4 + $0x68] sm:$0xff] %vm3753, %v3622
  %3768 = vst.msk [vmem:[%s4 + $0x70] sm:$0xff] %vm3753, %v3623
  %3769 = vst.msk [vmem:[%s4 + $0x78] sm:$0xff] %vm3753, %v3624
  %3770 = vst.msk [vmem:[%s4 + $0x80] sm:$0xff] %vm3753, %v3625
  %3771 = vst.msk [vmem:[%s4 + $0x88] sm:$0xff] %vm3753, %v3626
  %3772 = vst.msk [vmem:[%s4 + $0x90] sm:$0xff] %vm3753, %v3627
  %3773 = vst.msk [vmem:[%s4 + $0x98] sm:$0xff] %vm3753, %v3628
  %3774 = vst.msk [vmem:[%s4 + $0xa0] sm:$0xff] %vm3753, %v3629
  %3775 = vst.msk [vmem:[%s4 + $0xa8] sm:$0xff] %vm3753, %v3630
  %3776 = vst.msk [vmem:[%s4 + $0xb0] sm:$0xff] %vm3753, %v3631
  %3777 = vst.msk [vmem:[%s4 + $0xb8] sm:$0xff] %vm3753, %v3632
  %3778 = vst.msk [vmem:[%s4 + $0xc0] sm:$0xff] %vm3753, %v3633
  %3779 = vst.msk [vmem:[%s4 + $0xc8] sm:$0xff] %vm3753, %v3634
  %3780 = vst.msk [vmem:[%s4 + $0xd0] sm:$0xff] %vm3753, %v3635
  %3781 = vst.msk [vmem:[%s4 + $0xd8] sm:$0xff] %vm3753, %v3636
  %3782 = vst.msk [vmem:[%s4 + $0xe0] sm:$0xff] %vm3753, %v3637
  %3783 = vst.msk [vmem:[%s4 + $0xe8] sm:$0xff] %vm3753, %v3638
  %3784 = vst.msk [vmem:[%s4 + $0xf0] sm:$0xff] %vm3753, %v3639
  %3785 = vst.msk [vmem:[%s4 + $0xf8] sm:$0xff] %vm3753, %v3640
  %3786 = vst.msk [vmem:[%s4 + $0x100] sm:$0xff] %vm3753, %v3641
  %3787 = vst.msk [vmem:[%s4 + $0x108] sm:$0xff] %vm3753, %v3642
  %3788 = vst.msk [vmem:[%s4 + $0x110] sm:$0xff] %vm3753, %v3643
  %3789 = vst.msk [vmem:[%s4 + $0x118] sm:$0xff] %vm3753, %v3644
  %3790 = vst.msk [vmem:[%s4 + $0x120] sm:$0xff] %vm3753, %v3645
  %3791 = vst.msk [vmem:[%s4 + $0x128] sm:$0xff] %vm3753, %v3646
  %3792 = vst.msk [vmem:[%s4 + $0x130] sm:$0xff] %vm3753, %v3647
  %3793 = vst.msk [vmem:[%s4 + $0x138] sm:$0xff] %vm3753, %v3648
  %3794 = vst.msk [vmem:[%s4 + $0x140] sm:$0xff] %vm3753, %v3649
  %3795 = vst.msk [vmem:[%s4 + $0x148] sm:$0xff] %vm3753, %v3650
  %3796 = vst.msk [vmem:[%s4 + $0x150] sm:$0xff] %vm3753, %v3651
  %3797 = vst.msk [vmem:[%s4 + $0x158] sm:$0xff] %vm3753, %v3652
  %3798 = vst.msk [vmem:[%s4 + $0x160] sm:$0xff] %vm3753, %v3653
  %3799 = vst.msk [vmem:[%s4 + $0x168] sm:$0xff] %vm3753, %v3654
  %3800 = vst.msk [vmem:[%s4 + $0x170] sm:$0xff] %vm3753, %v3655
  %3801 = vst.msk [vmem:[%s4 + $0x178] sm:$0xff] %vm3753, %v3656
  %3802 = vst.msk [vmem:[%s4 + $0x180] sm:$0xff] %vm3753, %v3657
  %3803 = vst.msk [vmem:[%s4 + $0x188] sm:$0xff] %vm3753, %v3658
  %3804 = vst.msk [vmem:[%s4 + $0x190] sm:$0xff] %vm3753, %v3659
  %3805 = vst.msk [vmem:[%s4 + $0x198] sm:$0xff] %vm3753, %v3660
  %3806 = vst.msk [vmem:[%s4 + $0x1a0] sm:$0xff] %vm3753, %v3661
  %3807 = vst.msk [vmem:[%s4 + $0x1a8] sm:$0xff] %vm3753, %v3662
  %3808 = vst.msk [vmem:[%s4 + $0x1b0] sm:$0xff] %vm3753, %v3663
  %3809 = vst.msk [vmem:[%s4 + $0x1b8] sm:$0xff] %vm3753, %v3664
  %3810 = vst.msk [vmem:[%s4 + $0x1c0] sm:$0xff] %vm3753, %v3665
  %3811 = vst.msk [vmem:[%s4 + $0x1c8] sm:$0xff] %vm3753, %v3666
  %3812 = vst.msk [vmem:[%s4 + $0x1d0] sm:$0xff] %vm3753, %v3667
  %3813 = vst.msk [vmem:[%s4 + $0x1d8] sm:$0xff] %vm3753, %v3668
  %3814 = vst.msk [vmem:[%s4 + $0x1e0] sm:$0xff] %vm3753, %v3669
  %3815 = vst.msk [vmem:[%s4 + $0x1e8] sm:$0xff] %vm3753, %v3670
  %3816 = vst.msk [vmem:[%s4 + $0x1f0] sm:$0xff] %vm3753, %v3671
  %3817 = vst.msk [vmem:[%s4 + $0x1f8] sm:$0xff] %vm3753, %v3672
  %3818 = vst.msk [vmem:[%s4 + $0x200] sm:$0xff] %vm3753, %v3673
  %3819 = vst.msk [vmem:[%s4 + $0x208] sm:$0xff] %vm3753, %v3674
  %3820 = vst.msk [vmem:[%s4 + $0x210] sm:$0xff] %vm3753, %v3675
  %3821 = vst.msk [vmem:[%s4 + $0x218] sm:$0xff] %vm3753, %v3676
  %3822 = vst.msk [vmem:[%s4 + $0x220] sm:$0xff] %vm3753, %v3677
  %3823 = vst.msk [vmem:[%s4 + $0x228] sm:$0xff] %vm3753, %v3678
  %3824 = vst.msk [vmem:[%s4 + $0x230] sm:$0xff] %vm3753, %v3679
  %3825 = vst.msk [vmem:[%s4 + $0x238] sm:$0xff] %vm3753, %v3680
  %3826 = vst.msk [vmem:[%s4 + $0x240] sm:$0xff] %vm3753, %v3681
  %3827 = vst.msk [vmem:[%s4 + $0x248] sm:$0xff] %vm3753, %v3682
  %3828 = vst.msk [vmem:[%s4 + $0x250] sm:$0xff] %vm3753, %v3683
  %3829 = vst.msk [vmem:[%s4 + $0x258] sm:$0xff] %vm3753, %v3684
  %3830 = vst.msk [vmem:[%s4 + $0x260] sm:$0xff] %vm3753, %v3685
  %3831 = vst.msk [vmem:[%s4 + $0x268] sm:$0xff] %vm3753, %v3686
  %3832 = vst.msk [vmem:[%s4 + $0x270] sm:$0xff] %vm3753, %v3687
  %3833 = vst.msk [vmem:[%s4 + $0x278] sm:$0xff] %vm3753, %v3688
  %3834 = vst.msk [vmem:[%s4 + $0x280] sm:$0xff] %vm3753, %v3689
  %3835 = vst.msk [vmem:[%s4 + $0x288] sm:$0xff] %vm3753, %v3690
  %3836 = vst.msk [vmem:[%s4 + $0x290] sm:$0xff] %vm3753, %v3691
  %3837 = vst.msk [vmem:[%s4 + $0x298] sm:$0xff] %vm3753, %v3692
  %3838 = vst.msk [vmem:[%s4 + $0x2a0] sm:$0xff] %vm3753, %v3693
  %3839 = vst.msk [vmem:[%s4 + $0x2a8] sm:$0xff] %vm3753, %v3694
  %3840 = vst.msk [vmem:[%s4 + $0x2b0] sm:$0xff] %vm3753, %v3695
  %3841 = vst.msk [vmem:[%s4 + $0x2b8] sm:$0xff] %vm3753, %v3696
  %3842 = vst.msk [vmem:[%s4 + $0x2c0] sm:$0xff] %vm3753, %v3697
  %3843 = vst.msk [vmem:[%s4 + $0x2c8] sm:$0xff] %vm3753, %v3698
  %3844 = vst.msk [vmem:[%s4 + $0x2d0] sm:$0xff] %vm3753, %v3699
  %3845 = vst.msk [vmem:[%s4 + $0x2d8] sm:$0xff] %vm3753, %v3700
  %3846 = vst.msk [vmem:[%s4 + $0x2e0] sm:$0xff] %vm3753, %v3701
  %3847 = vst.msk [vmem:[%s4 + $0x2e8] sm:$0xff] %vm3753, %v3702
  %3848 = vst.msk [vmem:[%s4 + $0x2f0] sm:$0xff] %vm3753, %v3703
  %3849 = vst.msk [vmem:[%s4 + $0x2f8] sm:$0xff] %vm3753, %v3704
  %3850 = vst.msk [vmem:[%s4 + $0x300] sm:$0xff] %vm3753, %v3705
  %3851 = vst.msk [vmem:[%s4 + $0x308] sm:$0xff] %vm3753, %v3706
  %3852 = vst.msk [vmem:[%s4 + $0x310] sm:$0xff] %vm3753, %v3707
  %3853 = vst.msk [vmem:[%s4 + $0x318] sm:$0xff] %vm3753, %v3708
  %3854 = vst.msk [vmem:[%s4 + $0x320] sm:$0xff] %vm3753, %v3709
  %3855 = vst.msk [vmem:[%s4 + $0x328] sm:$0xff] %vm3753, %v3710
  %3856 = vst.msk [vmem:[%s4 + $0x330] sm:$0xff] %vm3753, %v3711
  %3857 = vst.msk [vmem:[%s4 + $0x338] sm:$0xff] %vm3753, %v3712
  %3858 = vst.msk [vmem:[%s4 + $0x340] sm:$0xff] %vm3753, %v3713
  %3859 = vst.msk [vmem:[%s4 + $0x348] sm:$0xff] %vm3753, %v3714
  %3860 = vst.msk [vmem:[%s4 + $0x350] sm:$0xff] %vm3753, %v3715
  %3861 = vst.msk [vmem:[%s4 + $0x358] sm:$0xff] %vm3753, %v3716
  %3862 = vst.msk [vmem:[%s4 + $0x360] sm:$0xff] %vm3753, %v3717
  %3863 = vst.msk [vmem:[%s4 + $0x368] sm:$0xff] %vm3753, %v3718
  %3864 = vst.msk [vmem:[%s4 + $0x370] sm:$0xff] %vm3753, %v3719
  %3865 = vst.msk [vmem:[%s4 + $0x378] sm:$0xff] %vm3753, %v3720
  %3866 = vst.msk [vmem:[%s4 + $0x380] sm:$0xff] %vm3753, %v3721
  %3867 = vst.msk [vmem:[%s4 + $0x388] sm:$0xff] %vm3753, %v3722
  %3868 = vst.msk [vmem:[%s4 + $0x390] sm:$0xff] %vm3753, %v3723
  %3869 = vst.msk [vmem:[%s4 + $0x398] sm:$0xff] %vm3753, %v3724
  %3870 = vst.msk [vmem:[%s4 + $0x3a0] sm:$0xff] %vm3753, %v3725
  %3871 = vst.msk [vmem:[%s4 + $0x3a8] sm:$0xff] %vm3753, %v3726
  %3872 = vst.msk [vmem:[%s4 + $0x3b0] sm:$0xff] %vm3753, %v3727
  %3873 = vst.msk [vmem:[%s4 + $0x3b8] sm:$0xff] %vm3753, %v3728
  %3874 = vst.msk [vmem:[%s4 + $0x3c0] sm:$0xff] %vm3753, %v3729
  %3875 = vst.msk [vmem:[%s4 + $0x3c8] sm:$0xff] %vm3753, %v3730
  %3876 = vst.msk [vmem:[%s4 + $0x3d0] sm:$0xff] %vm3753, %v3731
  %3877 = vst.msk [vmem:[%s4 + $0x3d8] sm:$0xff] %vm3753, %v3732
  %3878 = vst.msk [vmem:[%s4 + $0x3e0] sm:$0xff] %vm3753, %v3733
  %3879 = vst.msk [vmem:[%s4 + $0x3e8] sm:$0xff] %vm3753, %v3734
  %3880 = vst.msk [vmem:[%s4 + $0x3f0] sm:$0xff] %vm3753, %v3735
  %3881 = vst.msk [vmem:[%s4 + $0x3f8] sm:$0xff] %vm3753, %v3736
  %3882 = vst.msk [vmem:[%s4 + $0x400] sm:$0xff] %vm3753, %v3737
  %3883 = vst.msk [vmem:[%s4 + $0x408] sm:$0xff] %vm3753, %v3738
  %3884 = vst.msk [vmem:[%s4 + $0x410] sm:$0xff] %vm3753, %v3739
  %3885 = vst.msk [vmem:[%s4 + $0x418] sm:$0xff] %vm3753, %v3740
  %3886 = vst.msk [vmem:[%s4 + $0x420] sm:$0xff] %vm3753, %v3741
  %3887 = vst.msk [vmem:[%s4 + $0x428] sm:$0xff] %vm3753, %v3742
  %3888 = vst.msk [vmem:[%s4 + $0x430] sm:$0xff] %vm3753, %v3743
  %3889 = vst.msk [vmem:[%s4 + $0x438] sm:$0xff] %vm3753, %v3744
  %3890 = vst.msk [vmem:[%s4 + $0x440] sm:$0xff] %vm3753, %v3745
  %3891 = vst.msk [vmem:[%s4 + $0x448] sm:$0xff] %vm3753, %v3746
  %3892 = vst.msk [vmem:[%s4 + $0x450] sm:$0xff] %vm3753, %v3747
  %3893 = vst.msk [vmem:[%s4 + $0x458] sm:$0xff] %vm3753, %v3748
  %3894 = vst.msk [vmem:[%s4 + $0x460] sm:$0xff] %vm3753, %v3749
  %3895 = vst.msk [vmem:[%s4 + $0x468] sm:$0xff] %vm3753, %v3750
  %3896 = vst.msk [vmem:[%s4 + $0x470] sm:$0xff] %vm3753, %v3751
  %3897 = vst.msk [vmem:[%s4 + $0x478] sm:$0xff] %vm3753, %v3752
  // Predicated region
  $region18: #{uttr_decoder_forward.7} parent=0 // pred_check
    _
  $region19: #{uttr_decoder_forward.7} parent=0 // pred_check_branch
    %3899 = sbr.rel (0) target = $region21
  $region20: #{uttr_decoder_forward.7} parent=0 // pred_region
    _
  $region21: #{uttr_decoder_forward.7} parent=0 // pred_fallthru
    _
  // Predicated region
  $region22: #{uttr_decoder_forward.7} parent=0 // pred_check
    _
  $region23: #{uttr_decoder_forward.7} parent=0 // pred_check_branch
    %3901 = sbr.rel (0) target = $region25
  $region24: #{uttr_decoder_forward.7} parent=0 // pred_region
    _
  $region25: #{uttr_decoder_forward.7} parent=0 // pred_fallthru
    _

</llo_original>
